<compile_context>
chip_gen: v7x
topology: tpu7x:2x2x1
jax: 0.10.0
libtpu: 0.0.40
codegen_flags: <defaults>
</compile_context>

<pallas_src>
import functools
import math

import jax
import jax.numpy as jnp
from jax.experimental import pallas as pl
from jax.experimental.pallas import tpu as pltpu


# --------------------------- Pearson correlation ---------------------------

def _corr_kernel(x_ref, o_ref):
    # x_ref: (bs, N, D).  Correlation between the N rows over the D features.
    x = x_ref[...]
    xc = x - jnp.mean(x, axis=-1, keepdims=True)
    inv = jax.lax.rsqrt(jnp.sum(xc * xc, axis=-1, keepdims=True) + 1e-8)  # (bs,N,1)
    xn = xc * inv                                                         # row-normalised
    # kept f32: tiny matmul whose result drives the top-k index selection
    o_ref[...] = jnp.einsum("bnd,bmd->bnm", xn, xn,
                            preferred_element_type=jnp.float32)


def corr_pallas(x):
    """x: (bs, N, D) float32 -> (bs, N, N) Pearson correlation per batch."""
    bs, N, D = x.shape
    return pl.pallas_call(
        _corr_kernel,
        out_shape=jax.ShapeDtypeStruct((bs, N, N), jnp.float32),
        grid=(1,),
        in_specs=[pl.BlockSpec((bs, N, D), lambda i: (0, 0, 0))],
        out_specs=pl.BlockSpec((bs, N, N), lambda i: (0, 0, 0)),
    )(x.astype(jnp.float32))


# ------------------ fused 1-layer encoder/decoder transformer ---------------
# TODO(synk): the original `train_model` implementation is not in the snippet;
# it is reproduced here as a 1-layer, 1-head encoder-decoder transformer with
# d_model=model_d, src input dim k+1, tgt input dim 1, output dim 1.

_W_NAMES = (
    "src_emb_w", "src_emb_b",
    "enc_qkv_w", "enc_qkv_b", "enc_o_w", "enc_o_b",
    "enc_ln1_g", "enc_ln1_b",
    "enc_ff1_w", "enc_ff1_b", "enc_ff2_w", "enc_ff2_b",
    "enc_ln2_g", "enc_ln2_b",
    "tgt_emb_w", "tgt_emb_b",
    "dec_sqkv_w", "dec_sqkv_b", "dec_so_w", "dec_so_b",
    "dec_ln1_g", "dec_ln1_b",
    "dec_cq_w", "dec_cq_b", "dec_ckv_w", "dec_ckv_b", "dec_co_w", "dec_co_b",
    "dec_ln2_g", "dec_ln2_b",
    "dec_ff1_w", "dec_ff1_b", "dec_ff2_w", "dec_ff2_b",
    "dec_ln3_g", "dec_ln3_b",
    "gen_w", "gen_b",
)


def _transformer_kernel(src_ref, tgt_ref, *rest, BB, L, d_model):
    assert len(rest) == len(_W_NAMES) + 1
    out_ref = rest[-1]
    w = dict(zip(_W_NAMES, rest[:-1]))
    M = BB * L
    f32, bf16 = jnp.float32, jnp.bfloat16

    def lin(x2d, name):
        # bf16 operands on the MXU, f32 accumulation, f32 bias add.
        return (jnp.dot(x2d.astype(bf16), w[name + "_w"][...],
                        preferred_element_type=f32) + w[name + "_b"][...])

    def add_ln(x, res, name):
        # fused residual + LayerNorm (eps matches torch default 1e-5)
        y = x + res
        mu = jnp.mean(y, axis=-1, keepdims=True)
        var = jnp.mean(jnp.square(y - mu), axis=-1, keepdims=True)
        return ((y - mu) * jax.lax.rsqrt(var + 1e-5) * w[name + "_g"][...]
                + w[name + "_b"][...])

    scale = 1.0 / math.sqrt(d_model)

    def attention(q3, k3, v3, causal):
        # q3/k3/v3: (BB, L, d).  Scale folded into q; softmax in f32;
        # causal mask (when needed) built in-kernel from iota -- no mask DMA.
        s = jnp.einsum("bqd,bkd->bqk",
                       (q3 * scale).astype(bf16), k3.astype(bf16),
                       preferred_element_type=f32)                    # (BB, L, L)
        if causal:
            row = jax.lax.broadcasted_iota(jnp.int32, (L, L), 0)
            col = jax.lax.broadcasted_iota(jnp.int32, (L, L), 1)
            s = jnp.where((row >= col)[None, :, :], s, -1e9)
        s = s - jnp.max(s, axis=-1, keepdims=True)
        p = jnp.exp(s)
        p = p * pl.reciprocal(jnp.sum(p, axis=-1, keepdims=True), approx=True)
        return jnp.einsum("bqk,bkd->bqd", p.astype(bf16), v3.astype(bf16),
                          preferred_element_type=f32)

    def split_qkv(qkv):
        q3 = qkv[:, 0:d_model].reshape(BB, L, d_model)
        k3 = qkv[:, d_model:2 * d_model].reshape(BB, L, d_model)
        v3 = qkv[:, 2 * d_model:3 * d_model].reshape(BB, L, d_model)
        return q3, k3, v3

    # ------------------------------ encoder ------------------------------
    x = lin(src_ref[...].reshape(M, -1), "src_emb")                   # (M, d)
    q3, k3, v3 = split_qkv(lin(x, "enc_qkv"))                         # fused QKV
    a = attention(q3, k3, v3, causal=False).reshape(M, d_model)
    x = add_ln(x, lin(a, "enc_o"), "enc_ln1")
    f = lin(jnp.maximum(lin(x, "enc_ff1"), 0.0), "enc_ff2")           # fused FFN
    mem = add_ln(x, f, "enc_ln2")

    # ------------------------------ decoder ------------------------------
    # target embedding has Din == 1 -> VPU scale+shift, not a K=1 MXU matmul
    y = tgt_ref[...].reshape(M, 1) * w["tgt_emb_w"][...] + w["tgt_emb_b"][...]
    q3, k3, v3 = split_qkv(lin(y, "dec_sqkv"))
    a = attention(q3, k3, v3, causal=True).reshape(M, d_model)        # subsequent mask
    y = add_ln(y, lin(a, "dec_so"), "dec_ln1")

    q3 = lin(y, "dec_cq").reshape(BB, L, d_model)
    kv = lin(mem, "dec_ckv")                                          # fused K|V of memory
    k3 = kv[:, 0:d_model].reshape(BB, L, d_model)
    v3 = kv[:, d_model:2 * d_model].reshape(BB, L, d_model)
    a = attention(q3, k3, v3, causal=False).reshape(M, d_model)
    y = add_ln(y, lin(a, "dec_co"), "dec_ln2")

    f = lin(jnp.maximum(lin(y, "dec_ff1"), 0.0), "dec_ff2")
    y = add_ln(y, f, "dec_ln3")

    # generator (Dout == 1): VPU multiply + lane reduce instead of a degenerate
    # (M, d) x (d, 1) matmul; writes the (BB, L) output block directly.
    y3 = y.reshape(BB, L, d_model)
    out_ref[...] = jnp.sum(y3 * w["gen_w"][...], axis=-1) + w["gen_b"][...]


def train_model_forward(params, src, tgt):
    """src: (B, L, src_dim) f32, tgt: (B, L, 1) f32 -> (B, L) f32.

    One pallas_call for the whole encoder/decoder.  The grid splits the B rows
    into blocks of BB ("parallel" -> shards across TensorCores on multi-TC
    chips); all weights use constant index_maps so they stay VMEM-resident.
    """
    B, L, src_dim = src.shape
    d_model = params["enc_o_w"].shape[0]
    BB = 16 if B % 16 == 0 else B
    weights = [params[n] for n in _W_NAMES]

    in_specs = [pl.BlockSpec((BB, L, src_dim), lambda b: (b, 0, 0)),
                pl.BlockSpec((BB, L, 1), lambda b: (b, 0, 0))]
    in_specs += [pl.BlockSpec(wv.shape, lambda b: (0, 0)) for wv in weights]

    kern = functools.partial(_transformer_kernel, BB=BB, L=L, d_model=d_model)
    return pl.pallas_call(
        kern,
        out_shape=jax.ShapeDtypeStruct((B, L), jnp.float32),
        grid=(B // BB,),
        in_specs=in_specs,
        out_specs=pl.BlockSpec((BB, L), lambda b: (b, 0)),
        compiler_params=pltpu.CompilerParams(
            dimension_semantics=("parallel",)),
    )(src.astype(jnp.float32), tgt.astype(jnp.float32), *weights)


def init_train_model_params(key, src_dim, d_model, d_ff):
    """Weight matrices stored bf16 (MXU operands); biases/LN/VPU params f32."""
    keys = iter(jax.random.split(key, 16))

    def dense(fi, fo):
        w = jax.random.normal(next(keys), (fi, fo), jnp.float32) / math.sqrt(fi)
        return w.astype(jnp.bfloat16), jnp.zeros((1, fo), jnp.float32)

    def ln():
        return (jnp.ones((1, d_model), jnp.float32),
                jnp.zeros((1, d_model), jnp.float32))

    p = {}
    p["src_emb_w"], p["src_emb_b"] = dense(src_dim, d_model)
    p["enc_qkv_w"], p["enc_qkv_b"] = dense(d_model, 3 * d_model)   # fused Wq|Wk|Wv
    p["enc_o_w"], p["enc_o_b"] = dense(d_model, d_model)
    p["enc_ln1_g"], p["enc_ln1_b"] = ln()
    p["enc_ff1_w"], p["enc_ff1_b"] = dense(d_model, d_ff)
    p["enc_ff2_w"], p["enc_ff2_b"] = dense(d_ff, d_model)
    p["enc_ln2_g"], p["enc_ln2_b"] = ln()

    # tgt embedding (Din == 1): applied on the VPU -> f32, stored as (1, d)
    p["tgt_emb_w"] = jax.random.normal(next(keys), (1, d_model), jnp.float32)
    p["tgt_emb_b"] = jnp.zeros((1, d_model), jnp.float32)
    p["dec_sqkv_w"], p["dec_sqkv_b"] = dense(d_model, 3 * d_model)
    p["dec_so_w"], p["dec_so_b"] = dense(d_model, d_model)
    p["dec_ln1_g"], p["dec_ln1_b"] = ln()
    p["dec_cq_w"], p["dec_cq_b"] = dense(d_model, d_model)
    p["dec_ckv_w"], p["dec_ckv_b"] = dense(d_model, 2 * d_model)   # fused Wk|Wv
    p["dec_co_w"], p["dec_co_b"] = dense(d_model, d_model)
    p["dec_ln2_g"], p["dec_ln2_b"] = ln()
    p["dec_ff1_w"], p["dec_ff1_b"] = dense(d_model, d_ff)
    p["dec_ff2_w"], p["dec_ff2_b"] = dense(d_ff, d_model)
    p["dec_ln3_g"], p["dec_ln3_b"] = ln()

    # generator (Dout == 1): applied on the VPU -> f32, stored as (1, d)
    p["gen_w"] = (jax.random.normal(next(keys), (1, d_model), jnp.float32)
                  / math.sqrt(d_model))
    p["gen_b"] = jnp.zeros((1, 1), jnp.float32)
    return p


# ----------------------------- proximal forward ----------------------------

def proximal_forward(params, x_pr, x_p, tgt_mode, mode, number, k):
    bs = x_pr.shape[0]
    L = x_pr.shape[1]            # len_proximal
    P = x_pr.shape[2]
    N = x_pr.shape[-1]

    sx_pr = jnp.transpose(x_pr, (0, 2, 3, 1)).astype(jnp.float32)      # (bs, P, N, L)

    # adjacency: Pearson correlation between nodes over their (P, L) features
    feat = jnp.transpose(sx_pr, (0, 2, 1, 3)).reshape(bs, N, P * L)
    adj = corr_pallas(feat)                                            # (bs, N, N)

    # top-k most-correlated neighbours per node (descending), O(N*k) not a sort
    _, index = jax.lax.top_k(adj, k)                                   # (bs, N, k)

    x_num = sx_pr[:, number]                                           # (bs, N, L)
    selected = jax.vmap(lambda xn, idx: xn[idx])(x_num, index)         # (bs, N, k, L)

    tx_pr = jnp.concatenate(
        [x_num[..., None], jnp.swapaxes(selected, -1, -2)], axis=-1)   # (bs, N, L, k+1)

    # the subsequent (causal) target mask is generated inside the fused kernel.

    if tgt_mode == "pr":
        # TODO(synk): original 'pr' branch references an undefined `sx_c`; not reproducible.
        raise NotImplementedError("tgt_mode='pr' uses undefined sx_c in the reference code")
    else:
        tgt_c = jnp.mean(x_p[:, :, :, number], axis=1)                 # (bs, L, N)
        tgt_c = jnp.swapaxes(tgt_c, 1, 2)[..., None]                   # (bs, N, L, 1)

    B = bs * N
    out = train_model_forward(params, tx_pr.reshape(B, L, k + 1),
                              tgt_c.reshape(B, L, 1))                  # (B, L)
    return out.reshape(bs, N, L)


# ----------------------------------- main -----------------------------------

if __name__ == "__main__":
    bs, L, P, N = 2, 8, 2, 16          # batch, len_proximal, planes, nodes
    k_nbr, model_d, d_ff = 3, 32, 64
    num_p = 2                          # periods in x_p
    number = 0

    key = jax.random.PRNGKey(0)
    k1, k2, k3 = jax.random.split(key, 3)
    x_pr = jax.random.normal(k1, (bs, L, P, N), jnp.float32)
    x_p = jax.random.normal(k2, (bs, num_p, L, P, N), jnp.float32)

    params = init_train_model_params(k3, src_dim=k_nbr + 1,
                                     d_model=model_d, d_ff=d_ff)

    fwd = jax.jit(functools.partial(proximal_forward, tgt_mode="p", mode=None,
                                    number=number, k=k_nbr))
    out = jax.block_until_ready(fwd(params, x_pr, x_p))
    assert out.shape == (bs, N, L), out.shape
    assert bool(jnp.all(jnp.isfinite(out)))
    print("KERNEL_OK")
</pallas_src>

<mosaic_0001>
module attributes {stable_mosaic.version = 11 : i64} {
  func.func @_corr_kernel(%arg0: i32, %arg1: memref<2x16x16xf32, #tpu.memory_space<vmem>>, %arg2: memref<2x16x16xf32, #tpu.memory_space<vmem>>) attributes {dimension_semantics = [#tpu.dimension_semantics<arbitrary>], iteration_bounds = array<i64: 1>, scalar_prefetch = 0 : i64, scratch_operands = 0 : i64, tpu.core_type = #tpu.core_type<tc>, window_params = [{pipeline_mode = #tpu.pipeline_mode<synchronous>, transform_indices = @transform_0, window_bounds = array<i64: 2, 16, 16>}, {pipeline_mode = #tpu.pipeline_mode<synchronous>, transform_indices = @transform_1, window_bounds = array<i64: 2, 16, 16>}]} {
    %c0 = arith.constant 0 : index
    %c0_0 = arith.constant 0 : index
    %c0_1 = arith.constant 0 : index
    %0 = vector.load %arg1[%c0, %c0_0, %c0_1] : memref<2x16x16xf32, #tpu.memory_space<vmem>>, vector<2x16x16xf32>
    %cst = arith.constant dense<0.000000e+00> : vector<2x16xf32>
    %1 = vector.multi_reduction <add>, %0, %cst [2] : vector<2x16x16xf32> to vector<2x16xf32>
    %2 = vector.shape_cast %1 : vector<2x16xf32> to vector<2x16x1xf32>
    %cst_2 = arith.constant 1.600000e+01 : f32
    %3 = vector.broadcast %cst_2 : f32 to vector<2x16x1xf32>
    %4 = arith.divf %2, %3 : vector<2x16x1xf32>
    %5 = vector.broadcast %4 : vector<2x16x1xf32> to vector<2x16x16xf32>
    %6 = arith.subf %0, %5 : vector<2x16x16xf32>
    %7 = arith.mulf %6, %6 : vector<2x16x16xf32>
    %cst_3 = arith.constant dense<0.000000e+00> : vector<2x16xf32>
    %8 = vector.multi_reduction <add>, %7, %cst_3 [2] : vector<2x16x16xf32> to vector<2x16xf32>
    %9 = vector.shape_cast %8 : vector<2x16xf32> to vector<2x16x1xf32>
    %cst_4 = arith.constant 9.99999993E-9 : f32
    %10 = vector.broadcast %cst_4 : f32 to vector<2x16x1xf32>
    %11 = arith.addf %9, %10 : vector<2x16x1xf32>
    %12 = math.rsqrt %11 : vector<2x16x1xf32>
    %13 = vector.broadcast %12 : vector<2x16x1xf32> to vector<2x16x16xf32>
    %14 = arith.mulf %6, %13 : vector<2x16x16xf32>
    "tpu.trace_start"() <{level = 10 : i32, message = "bnd,bmd->bnm"}> : () -> ()
    %cst_5 = arith.constant dense<0.000000e+00> : vector<2x16x16xf32>
    %15 = tpu.matmul %14, %14, %cst_5 {dimension_numbers = #tpu.dot_dimension_numbers<[2], [2], [1], [1], [0, 0, 0, 1, 1, 1], [0], [0]>} : vector<2x16x16xf32>, vector<2x16x16xf32>, vector<2x16x16xf32> -> vector<2x16x16xf32>
    "tpu.trace_stop"() : () -> ()
    %c0_6 = arith.constant 0 : index
    %c0_7 = arith.constant 0 : index
    %c0_8 = arith.constant 0 : index
    %16 = vector.load %arg2[%c0_6, %c0_7, %c0_8] : memref<2x16x16xf32, #tpu.memory_space<vmem>>, vector<2x16x16xf32>
    tpu.vector_store %arg2[%c0_6, %c0_7, %c0_8], %15 {strides = array<i32>} : memref<2x16x16xf32, #tpu.memory_space<vmem>>, vector<2x16x16xf32>,
    return
  }
  func.func @transform_0(%arg0: i32) -> (i32, i32, i32) {
    %c0_i32 = arith.constant 0 : i32
    %c0_i32_0 = arith.constant 0 : i32
    %c0_i32_1 = arith.constant 0 : i32
    %c0_i32_2 = arith.constant 0 : i32
    return %c0_i32, %c0_i32_0, %c0_i32_1 : i32, i32, i32
  }
  func.func @transform_1(%arg0: i32) -> (i32, i32, i32) {
    %c0_i32 = arith.constant 0 : i32
    %c0_i32_0 = arith.constant 0 : i32
    %c0_i32_1 = arith.constant 0 : i32
    %c0_i32_2 = arith.constant 0 : i32
    return %c0_i32, %c0_i32_0, %c0_i32_1 : i32, i32, i32
  }
}

module attributes {stable_mosaic.version = 11 : i64} {
  func.func @_transformer_kernel(%arg0: i32, %arg1: memref<16x8x4xf32, #tpu.memory_space<vmem>>, %arg2: memref<16x8x1xf32, #tpu.memory_space<vmem>>, %arg3: memref<4x32xbf16, #tpu.memory_space<vmem>>, %arg4: memref<1x32xf32, #tpu.memory_space<vmem>>, %arg5: memref<32x96xbf16, #tpu.memory_space<vmem>>, %arg6: memref<1x96xf32, #tpu.memory_space<vmem>>, %arg7: memref<32x32xbf16, #tpu.memory_space<vmem>>, %arg8: memref<1x32xf32, #tpu.memory_space<vmem>>, %arg9: memref<1x32xf32, #tpu.memory_space<vmem>>, %arg10: memref<1x32xf32, #tpu.memory_space<vmem>>, %arg11: memref<32x64xbf16, #tpu.memory_space<vmem>>, %arg12: memref<1x64xf32, #tpu.memory_space<vmem>>, %arg13: memref<64x32xbf16, #tpu.memory_space<vmem>>, %arg14: memref<1x32xf32, #tpu.memory_space<vmem>>, %arg15: memref<1x32xf32, #tpu.memory_space<vmem>>, %arg16: memref<1x32xf32, #tpu.memory_space<vmem>>, %arg17: memref<1x32xf32, #tpu.memory_space<vmem>>, %arg18: memref<1x32xf32, #tpu.memory_space<vmem>>, %arg19: memref<32x96xbf16, #tpu.memory_space<vmem>>, %arg20: memref<1x96xf32, #tpu.memory_space<vmem>>, %arg21: memref<32x32xbf16, #tpu.memory_space<vmem>>, %arg22: memref<1x32xf32, #tpu.memory_space<vmem>>, %arg23: memref<1x32xf32, #tpu.memory_space<vmem>>, %arg24: memref<1x32xf32, #tpu.memory_space<vmem>>, %arg25: memref<32x32xbf16, #tpu.memory_space<vmem>>, %arg26: memref<1x32xf32, #tpu.memory_space<vmem>>, %arg27: memref<32x64xbf16, #tpu.memory_space<vmem>>, %arg28: memref<1x64xf32, #tpu.memory_space<vmem>>, %arg29: memref<32x32xbf16, #tpu.memory_space<vmem>>, %arg30: memref<1x32xf32, #tpu.memory_space<vmem>>, %arg31: memref<1x32xf32, #tpu.memory_space<vmem>>, %arg32: memref<1x32xf32, #tpu.memory_space<vmem>>, %arg33: memref<32x64xbf16, #tpu.memory_space<vmem>>, %arg34: memref<1x64xf32, #tpu.memory_space<vmem>>, %arg35: memref<64x32xbf16, #tpu.memory_space<vmem>>, %arg36: memref<1x32xf32, #tpu.memory_space<vmem>>, %arg37: memref<1x32xf32, #tpu.memory_space<vmem>>, %arg38: memref<1x32xf32, #tpu.memory_space<vmem>>, %arg39: memref<1x32xf32, #tpu.memory_space<vmem>>, %arg40: memref<1x1xf32, #tpu.memory_space<vmem>>, %arg41: memref<16x8xf32, #tpu.memory_space<vmem>>) attributes {dimension_semantics = [#tpu.dimension_semantics<parallel>], iteration_bounds = array<i64: 2>, scalar_prefetch = 0 : i64, scratch_operands = 0 : i64, tpu.core_type = #tpu.core_type<tc>, window_params = [{transform_indices = @transform_0, window_bounds = array<i64: 16, 8, 4>}, {transform_indices = @transform_1, window_bounds = array<i64: 16, 8, 1>}, {pipeline_mode = #tpu.pipeline_mode<synchronous>, transform_indices = @transform_2, window_bounds = array<i64: 4, 32>}, {pipeline_mode = #tpu.pipeline_mode<synchronous>, transform_indices = @transform_3, window_bounds = array<i64: 1, 32>}, {pipeline_mode = #tpu.pipeline_mode<synchronous>, transform_indices = @transform_4, window_bounds = array<i64: 32, 96>}, {pipeline_mode = #tpu.pipeline_mode<synchronous>, transform_indices = @transform_5, window_bounds = array<i64: 1, 96>}, {pipeline_mode = #tpu.pipeline_mode<synchronous>, transform_indices = @transform_6, window_bounds = array<i64: 32, 32>}, {pipeline_mode = #tpu.pipeline_mode<synchronous>, transform_indices = @transform_7, window_bounds = array<i64: 1, 32>}, {pipeline_mode = #tpu.pipeline_mode<synchronous>, transform_indices = @transform_8, window_bounds = array<i64: 1, 32>}, {pipeline_mode = #tpu.pipeline_mode<synchronous>, transform_indices = @transform_9, window_bounds = array<i64: 1, 32>}, {pipeline_mode = #tpu.pipeline_mode<synchronous>, transform_indices = @transform_10, window_bounds = array<i64: 32, 64>}, {pipeline_mode = #tpu.pipeline_mode<synchronous>, transform_indices = @transform_11, window_bounds = array<i64: 1, 64>}, {pipeline_mode = #tpu.pipeline_mode<synchronous>, transform_indices = @transform_12, window_bounds = array<i64: 64, 32>}, {pipeline_mode = #tpu.pipeline_mode<synchronous>, transform_indices = @transform_13, window_bounds = array<i64: 1, 32>}, {pipeline_mode = #tpu.pipeline_mode<synchronous>, transform_indices = @transform_14, window_bounds = array<i64: 1, 32>}, {pipeline_mode = #tpu.pipeline_mode<synchronous>, transform_indices = @transform_15, window_bounds = array<i64: 1, 32>}, {pipeline_mode = #tpu.pipeline_mode<synchronous>, transform_indices = @transform_16, window_bounds = array<i64: 1, 32>}, {pipeline_mode = #tpu.pipeline_mode<synchronous>, transform_indices = @transform_17, window_bounds = array<i64: 1, 32>}, {pipeline_mode = #tpu.pipeline_mode<synchronous>, transform_indices = @transform_18, window_bounds = array<i64: 32, 96>}, {pipeline_mode = #tpu.pipeline_mode<synchronous>, transform_indices = @transform_19, window_bounds = array<i64: 1, 96>}, {pipeline_mode = #tpu.pipeline_mode<synchronous>, transform_indices = @transform_20, window_bounds = array<i64: 32, 32>}, {pipeline_mode = #tpu.pipeline_mode<synchronous>, transform_indices = @transform_21, window_bounds = array<i64: 1, 32>}, {pipeline_mode = #tpu.pipeline_mode<synchronous>, transform_indices = @transform_22, window_bounds = array<i64: 1, 32>}, {pipeline_mode = #tpu.pipeline_mode<synchronous>, transform_indices = @transform_23, window_bounds = array<i64: 1, 32>}, {pipeline_mode = #tpu.pipeline_mode<synchronous>, transform_indices = @transform_24, window_bounds = array<i64: 32, 32>}, {pipeline_mode = #tpu.pipeline_mode<synchronous>, transform_indices = @transform_25, window_bounds = array<i64: 1, 32>}, {pipeline_mode = #tpu.pipeline_mode<synchronous>, transform_indices = @transform_26, window_bounds = array<i64: 32, 64>}, {pipeline_mode = #tpu.pipeline_mode<synchronous>, transform_indices = @transform_27, window_bounds = array<i64: 1, 64>}, {pipeline_mode = #tpu.pipeline_mode<synchronous>, transform_indices = @transform_28, window_bounds = array<i64: 32, 32>}, {pipeline_mode = #tpu.pipeline_mode<synchronous>, transform_indices = @transform_29, window_bounds = array<i64: 1, 32>}, {pipeline_mode = #tpu.pipeline_mode<synchronous>, transform_indices = @transform_30, window_bounds = array<i64: 1, 32>}, {pipeline_mode = #tpu.pipeline_mode<synchronous>, transform_indices = @transform_31, window_bounds = array<i64: 1, 32>}, {pipeline_mode = #tpu.pipeline_mode<synchronous>, transform_indices = @transform_32, window_bounds = array<i64: 32, 64>}, {pipeline_mode = #tpu.pipeline_mode<synchronous>, transform_indices = @transform_33, window_bounds = array<i64: 1, 64>}, {pipeline_mode = #tpu.pipeline_mode<synchronous>, transform_indices = @transform_34, window_bounds = array<i64: 64, 32>}, {pipeline_mode = #tpu.pipeline_mode<synchronous>, transform_indices = @transform_35, window_bounds = array<i64: 1, 32>}, {pipeline_mode = #tpu.pipeline_mode<synchronous>, transform_indices = @transform_36, window_bounds = array<i64: 1, 32>}, {pipeline_mode = #tpu.pipeline_mode<synchronous>, transform_indices = @transform_37, window_bounds = array<i64: 1, 32>}, {pipeline_mode = #tpu.pipeline_mode<synchronous>, transform_indices = @transform_38, window_bounds = array<i64: 1, 32>}, {pipeline_mode = #tpu.pipeline_mode<synchronous>, transform_indices = @transform_39, window_bounds = array<i64: 1, 1>}, {transform_indices = @transform_40, window_bounds = array<i64: 16, 8>}]} {
    %c0 = arith.constant 0 : index
    %c0_0 = arith.constant 0 : index
    %c0_1 = arith.constant 0 : index
    %0 = vector.load %arg1[%c0, %c0_0, %c0_1] : memref<16x8x4xf32, #tpu.memory_space<vmem>>, vector<16x8x4xf32>
    %1 = vector.shape_cast %0 : vector<16x8x4xf32> to vector<128x4xf32>
    %2 = arith.truncf %1 : vector<128x4xf32> to vector<128x4xbf16>
    %c0_2 = arith.constant 0 : index
    %c0_3 = arith.constant 0 : index
    %3 = vector.load %arg3[%c0_2, %c0_3] : memref<4x32xbf16, #tpu.memory_space<vmem>>, vector<4x32xbf16>
    %cst = arith.constant dense<0.000000e+00> : vector<128x32xf32>
    %4 = tpu.matmul %2, %3, %cst {dimension_numbers = #tpu.dot_dimension_numbers<[1], [0], [0], [1], [0, 0, 1, 1], [], []>} : vector<128x4xbf16>, vector<4x32xbf16>, vector<128x32xf32> -> vector<128x32xf32>
    %c0_4 = arith.constant 0 : index
    %c0_5 = arith.constant 0 : index
    %5 = vector.load %arg4[%c0_4, %c0_5] : memref<1x32xf32, #tpu.memory_space<vmem>>, vector<1x32xf32>
    %6 = vector.broadcast %5 : vector<1x32xf32> to vector<128x32xf32>
    %7 = arith.addf %4, %6 : vector<128x32xf32>
    %8 = arith.truncf %7 : vector<128x32xf32> to vector<128x32xbf16>
    %c0_6 = arith.constant 0 : index
    %c0_7 = arith.constant 0 : index
    %9 = vector.load %arg5[%c0_6, %c0_7] : memref<32x96xbf16, #tpu.memory_space<vmem>>, vector<32x96xbf16>
    %cst_8 = arith.constant dense<0.000000e+00> : vector<128x96xf32>
    %10 = tpu.matmul %8, %9, %cst_8 {dimension_numbers = #tpu.dot_dimension_numbers<[1], [0], [0], [1], [0, 0, 1, 1], [], []>} : vector<128x32xbf16>, vector<32x96xbf16>, vector<128x96xf32> -> vector<128x96xf32>
    %c0_9 = arith.constant 0 : index
    %c0_10 = arith.constant 0 : index
    %11 = vector.load %arg6[%c0_9, %c0_10] : memref<1x96xf32, #tpu.memory_space<vmem>>, vector<1x96xf32>
    %12 = vector.broadcast %11 : vector<1x96xf32> to vector<128x96xf32>
    %13 = arith.addf %10, %12 : vector<128x96xf32>
    %14 = vector.extract_strided_slice %13 {offsets = [0, 0], sizes = [128, 32], strides = [1, 1]} : vector<128x96xf32> to vector<128x32xf32>
    %15 = vector.shape_cast %14 : vector<128x32xf32> to vector<16x8x32xf32>
    %16 = vector.extract_strided_slice %13 {offsets = [0, 32], sizes = [128, 32], strides = [1, 1]} : vector<128x96xf32> to vector<128x32xf32>
    %17 = vector.shape_cast %16 : vector<128x32xf32> to vector<16x8x32xf32>
    %18 = vector.extract_strided_slice %13 {offsets = [0, 64], sizes = [128, 32], strides = [1, 1]} : vector<128x96xf32> to vector<128x32xf32>
    %19 = vector.shape_cast %18 : vector<128x32xf32> to vector<16x8x32xf32>
    %cst_11 = arith.constant 0.176776692 : f32
    %20 = vector.broadcast %cst_11 : f32 to vector<16x8x32xf32>
    %21 = arith.mulf %15, %20 : vector<16x8x32xf32>
    %22 = arith.truncf %21 : vector<16x8x32xf32> to vector<16x8x32xbf16>
    %23 = arith.truncf %17 : vector<16x8x32xf32> to vector<16x8x32xbf16>
    "tpu.trace_start"() <{level = 10 : i32, message = "bqd,bkd->bqk"}> : () -> ()
    %cst_12 = arith.constant dense<0.000000e+00> : vector<16x8x8xf32>
    %24 = tpu.matmul %22, %23, %cst_12 {dimension_numbers = #tpu.dot_dimension_numbers<[2], [2], [1], [1], [0, 0, 0, 1, 1, 1], [0], [0]>} : vector<16x8x32xbf16>, vector<16x8x32xbf16>, vector<16x8x8xf32> -> vector<16x8x8xf32>
    "tpu.trace_stop"() : () -> ()
    %cst_13 = arith.constant dense<0xFF800000> : vector<16x8xf32>
    %25 = vector.multi_reduction <maximumf>, %24, %cst_13 [2] : vector<16x8x8xf32> to vector<16x8xf32>
    %26 = vector.shape_cast %25 : vector<16x8xf32> to vector<16x8x1xf32>
    %27 = vector.broadcast %26 : vector<16x8x1xf32> to vector<16x8x8xf32>
    %28 = arith.subf %24, %27 : vector<16x8x8xf32>
    %29 = math.exp %28 : vector<16x8x8xf32>
    %cst_14 = arith.constant dense<0.000000e+00> : vector<16x8xf32>
    %30 = vector.multi_reduction <add>, %29, %cst_14 [2] : vector<16x8x8xf32> to vector<16x8xf32>
    %31 = vector.shape_cast %30 : vector<16x8xf32> to vector<16x8x1xf32>
    %32 = tpu.reciprocal %31 {approx = true} : vector<16x8x1xf32> -> vector<16x8x1xf32>
    %33 = vector.broadcast %32 : vector<16x8x1xf32> to vector<16x8x8xf32>
    %34 = arith.mulf %29, %33 : vector<16x8x8xf32>
    %35 = arith.truncf %34 : vector<16x8x8xf32> to vector<16x8x8xbf16>
    %36 = arith.truncf %19 : vector<16x8x32xf32> to vector<16x8x32xbf16>
    "tpu.trace_start"() <{level = 10 : i32, message = "bqk,bkd->bqd"}> : () -> ()
    %cst_15 = arith.constant dense<0.000000e+00> : vector<16x8x32xf32>
    %37 = tpu.matmul %35, %36, %cst_15 {dimension_numbers = #tpu.dot_dimension_numbers<[2], [1], [1], [2], [0, 0, 0, 1, 1, 2], [0], [0]>} : vector<16x8x8xbf16>, vector<16x8x32xbf16>, vector<16x8x32xf32> -> vector<16x8x32xf32>
    "tpu.trace_stop"() : () -> ()
    %38 = vector.shape_cast %37 : vector<16x8x32xf32> to vector<128x32xf32>
    %39 = arith.truncf %38 : vector<128x32xf32> to vector<128x32xbf16>
    %c0_16 = arith.constant 0 : index
    %c0_17 = arith.constant 0 : index
    %40 = vector.load %arg7[%c0_16, %c0_17] : memref<32x32xbf16, #tpu.memory_space<vmem>>, vector<32x32xbf16>
    %cst_18 = arith.constant dense<0.000000e+00> : vector<128x32xf32>
    %41 = tpu.matmul %39, %40, %cst_18 {dimension_numbers = #tpu.dot_dimension_numbers<[1], [0], [0], [1], [0, 0, 1, 1], [], []>} : vector<128x32xbf16>, vector<32x32xbf16>, vector<128x32xf32> -> vector<128x32xf32>
    %c0_19 = arith.constant 0 : index
    %c0_20 = arith.constant 0 : index
    %42 = vector.load %arg8[%c0_19, %c0_20] : memref<1x32xf32, #tpu.memory_space<vmem>>, vector<1x32xf32>
    %43 = vector.broadcast %42 : vector<1x32xf32> to vector<128x32xf32>
    %44 = arith.addf %41, %43 : vector<128x32xf32>
    %45 = arith.addf %7, %44 : vector<128x32xf32>
    %cst_21 = arith.constant dense<0.000000e+00> : vector<128xf32>
    %46 = vector.multi_reduction <add>, %45, %cst_21 [1] : vector<128x32xf32> to vector<128xf32>
    %47 = vector.shape_cast %46 : vector<128xf32> to vector<128x1xf32>
    %cst_22 = arith.constant 3.200000e+01 : f32
    %48 = vector.broadcast %cst_22 : f32 to vector<128x1xf32>
    %49 = arith.divf %47, %48 : vector<128x1xf32>
    %50 = vector.broadcast %49 : vector<128x1xf32> to vector<128x32xf32>
    %51 = arith.subf %45, %50 : vector<128x32xf32>
    %52 = arith.mulf %51, %51 : vector<128x32xf32>
    %cst_23 = arith.constant dense<0.000000e+00> : vector<128xf32>
    %53 = vector.multi_reduction <add>, %52, %cst_23 [1] : vector<128x32xf32> to vector<128xf32>
    %54 = vector.shape_cast %53 : vector<128xf32> to vector<128x1xf32>
    %cst_24 = arith.constant 3.200000e+01 : f32
    %55 = vector.broadcast %cst_24 : f32 to vector<128x1xf32>
    %56 = arith.divf %54, %55 : vector<128x1xf32>
    %57 = vector.broadcast %49 : vector<128x1xf32> to vector<128x32xf32>
    %58 = arith.subf %45, %57 : vector<128x32xf32>
    %cst_25 = arith.constant 9.99999974E-6 : f32
    %59 = vector.broadcast %cst_25 : f32 to vector<128x1xf32>
    %60 = arith.addf %56, %59 : vector<128x1xf32>
    %61 = math.rsqrt %60 : vector<128x1xf32>
    %62 = vector.broadcast %61 : vector<128x1xf32> to vector<128x32xf32>
    %63 = arith.mulf %58, %62 : vector<128x32xf32>
    %c0_26 = arith.constant 0 : index
    %c0_27 = arith.constant 0 : index
    %64 = vector.load %arg9[%c0_26, %c0_27] : memref<1x32xf32, #tpu.memory_space<vmem>>, vector<1x32xf32>
    %65 = vector.broadcast %64 : vector<1x32xf32> to vector<128x32xf32>
    %66 = arith.mulf %63, %65 : vector<128x32xf32>
    %c0_28 = arith.constant 0 : index
    %c0_29 = arith.constant 0 : index
    %67 = vector.load %arg10[%c0_28, %c0_29] : memref<1x32xf32, #tpu.memory_space<vmem>>, vector<1x32xf32>
    %68 = vector.broadcast %67 : vector<1x32xf32> to vector<128x32xf32>
    %69 = arith.addf %66, %68 : vector<128x32xf32>
    %70 = arith.truncf %69 : vector<128x32xf32> to vector<128x32xbf16>
    %c0_30 = arith.constant 0 : index
    %c0_31 = arith.constant 0 : index
    %71 = vector.load %arg11[%c0_30, %c0_31] : memref<32x64xbf16, #tpu.memory_space<vmem>>, vector<32x64xbf16>
    %cst_32 = arith.constant dense<0.000000e+00> : vector<128x64xf32>
    %72 = tpu.matmul %70, %71, %cst_32 {dimension_numbers = #tpu.dot_dimension_numbers<[1], [0], [0], [1], [0, 0, 1, 1], [], []>} : vector<128x32xbf16>, vector<32x64xbf16>, vector<128x64xf32> -> vector<128x64xf32>
    %c0_33 = arith.constant 0 : index
    %c0_34 = arith.constant 0 : index
    %73 = vector.load %arg12[%c0_33, %c0_34] : memref<1x64xf32, #tpu.memory_space<vmem>>, vector<1x64xf32>
    %74 = vector.broadcast %73 : vector<1x64xf32> to vector<128x64xf32>
    %75 = arith.addf %72, %74 : vector<128x64xf32>
    %cst_35 = arith.constant 0.000000e+00 : f32
    %76 = vector.broadcast %cst_35 : f32 to vector<128x64xf32>
    %77 = arith.maximumf %75, %76 : vector<128x64xf32>
    %78 = arith.truncf %77 : vector<128x64xf32> to vector<128x64xbf16>
    %c0_36 = arith.constant 0 : index
    %c0_37 = arith.constant 0 : index
    %79 = vector.load %arg13[%c0_36, %c0_37] : memref<64x32xbf16, #tpu.memory_space<vmem>>, vector<64x32xbf16>
    %cst_38 = arith.constant dense<0.000000e+00> : vector<128x32xf32>
    %80 = tpu.matmul %78, %79, %cst_38 {dimension_numbers = #tpu.dot_dimension_numbers<[1], [0], [0], [1], [0, 0, 1, 1], [], []>} : vector<128x64xbf16>, vector<64x32xbf16>, vector<128x32xf32> -> vector<128x32xf32>
    %c0_39 = arith.constant 0 : index
    %c0_40 = arith.constant 0 : index
    %81 = vector.load %arg14[%c0_39, %c0_40] : memref<1x32xf32, #tpu.memory_space<vmem>>, vector<1x32xf32>
    %82 = vector.broadcast %81 : vector<1x32xf32> to vector<128x32xf32>
    %83 = arith.addf %80, %82 : vector<128x32xf32>
    %84 = arith.addf %69, %83 : vector<128x32xf32>
    %cst_41 = arith.constant dense<0.000000e+00> : vector<128xf32>
    %85 = vector.multi_reduction <add>, %84, %cst_41 [1] : vector<128x32xf32> to vector<128xf32>
    %86 = vector.shape_cast %85 : vector<128xf32> to vector<128x1xf32>
    %cst_42 = arith.constant 3.200000e+01 : f32
    %87 = vector.broadcast %cst_42 : f32 to vector<128x1xf32>
    %88 = arith.divf %86, %87 : vector<128x1xf32>
    %89 = vector.broadcast %88 : vector<128x1xf32> to vector<128x32xf32>
    %90 = arith.subf %84, %89 : vector<128x32xf32>
    %91 = arith.mulf %90, %90 : vector<128x32xf32>
    %cst_43 = arith.constant dense<0.000000e+00> : vector<128xf32>
    %92 = vector.multi_reduction <add>, %91, %cst_43 [1] : vector<128x32xf32> to vector<128xf32>
    %93 = vector.shape_cast %92 : vector<128xf32> to vector<128x1xf32>
    %cst_44 = arith.constant 3.200000e+01 : f32
    %94 = vector.broadcast %cst_44 : f32 to vector<128x1xf32>
    %95 = arith.divf %93, %94 : vector<128x1xf32>
    %96 = vector.broadcast %88 : vector<128x1xf32> to vector<128x32xf32>
    %97 = arith.subf %84, %96 : vector<128x32xf32>
    %cst_45 = arith.constant 9.99999974E-6 : f32
    %98 = vector.broadcast %cst_45 : f32 to vector<128x1xf32>
    %99 = arith.addf %95, %98 : vector<128x1xf32>
    %100 = math.rsqrt %99 : vector<128x1xf32>
    %101 = vector.broadcast %100 : vector<128x1xf32> to vector<128x32xf32>
    %102 = arith.mulf %97, %101 : vector<128x32xf32>
    %c0_46 = arith.constant 0 : index
    %c0_47 = arith.constant 0 : index
    %103 = vector.load %arg15[%c0_46, %c0_47] : memref<1x32xf32, #tpu.memory_space<vmem>>, vector<1x32xf32>
    %104 = vector.broadcast %103 : vector<1x32xf32> to vector<128x32xf32>
    %105 = arith.mulf %102, %104 : vector<128x32xf32>
    %c0_48 = arith.constant 0 : index
    %c0_49 = arith.constant 0 : index
    %106 = vector.load %arg16[%c0_48, %c0_49] : memref<1x32xf32, #tpu.memory_space<vmem>>, vector<1x32xf32>
    %107 = vector.broadcast %106 : vector<1x32xf32> to vector<128x32xf32>
    %108 = arith.addf %105, %107 : vector<128x32xf32>
    %c0_50 = arith.constant 0 : index
    %c0_51 = arith.constant 0 : index
    %c0_52 = arith.constant 0 : index
    %109 = vector.load %arg2[%c0_50, %c0_51, %c0_52] : memref<16x8x1xf32, #tpu.memory_space<vmem>>, vector<16x8x1xf32>
    %110 = vector.shape_cast %109 : vector<16x8x1xf32> to vector<128x1xf32>
    %c0_53 = arith.constant 0 : index
    %c0_54 = arith.constant 0 : index
    %111 = vector.load %arg17[%c0_53, %c0_54] : memref<1x32xf32, #tpu.memory_space<vmem>>, vector<1x32xf32>
    %112 = vector.broadcast %110 : vector<128x1xf32> to vector<128x32xf32>
    %113 = vector.broadcast %111 : vector<1x32xf32> to vector<128x32xf32>
    %114 = arith.mulf %112, %113 : vector<128x32xf32>
    %c0_55 = arith.constant 0 : index
    %c0_56 = arith.constant 0 : index
    %115 = vector.load %arg18[%c0_55, %c0_56] : memref<1x32xf32, #tpu.memory_space<vmem>>, vector<1x32xf32>
    %116 = vector.broadcast %115 : vector<1x32xf32> to vector<128x32xf32>
    %117 = arith.addf %114, %116 : vector<128x32xf32>
    %118 = arith.truncf %117 : vector<128x32xf32> to vector<128x32xbf16>
    %c0_57 = arith.constant 0 : index
    %c0_58 = arith.constant 0 : index
    %119 = vector.load %arg19[%c0_57, %c0_58] : memref<32x96xbf16, #tpu.memory_space<vmem>>, vector<32x96xbf16>
    %cst_59 = arith.constant dense<0.000000e+00> : vector<128x96xf32>
    %120 = tpu.matmul %118, %119, %cst_59 {dimension_numbers = #tpu.dot_dimension_numbers<[1], [0], [0], [1], [0, 0, 1, 1], [], []>} : vector<128x32xbf16>, vector<32x96xbf16>, vector<128x96xf32> -> vector<128x96xf32>
    %c0_60 = arith.constant 0 : index
    %c0_61 = arith.constant 0 : index
    %121 = vector.load %arg20[%c0_60, %c0_61] : memref<1x96xf32, #tpu.memory_space<vmem>>, vector<1x96xf32>
    %122 = vector.broadcast %121 : vector<1x96xf32> to vector<128x96xf32>
    %123 = arith.addf %120, %122 : vector<128x96xf32>
    %124 = vector.extract_strided_slice %123 {offsets = [0, 0], sizes = [128, 32], strides = [1, 1]} : vector<128x96xf32> to vector<128x32xf32>
    %125 = vector.shape_cast %124 : vector<128x32xf32> to vector<16x8x32xf32>
    %126 = vector.extract_strided_slice %123 {offsets = [0, 32], sizes = [128, 32], strides = [1, 1]} : vector<128x96xf32> to vector<128x32xf32>
    %127 = vector.shape_cast %126 : vector<128x32xf32> to vector<16x8x32xf32>
    %128 = vector.extract_strided_slice %123 {offsets = [0, 64], sizes = [128, 32], strides = [1, 1]} : vector<128x96xf32> to vector<128x32xf32>
    %129 = vector.shape_cast %128 : vector<128x32xf32> to vector<16x8x32xf32>
    %cst_62 = arith.constant 0.176776692 : f32
    %130 = vector.broadcast %cst_62 : f32 to vector<16x8x32xf32>
    %131 = arith.mulf %125, %130 : vector<16x8x32xf32>
    %132 = arith.truncf %131 : vector<16x8x32xf32> to vector<16x8x32xbf16>
    %133 = arith.truncf %127 : vector<16x8x32xf32> to vector<16x8x32xbf16>
    "tpu.trace_start"() <{level = 10 : i32, message = "bqd,bkd->bqk"}> : () -> ()
    %cst_63 = arith.constant dense<0.000000e+00> : vector<16x8x8xf32>
    %134 = tpu.matmul %132, %133, %cst_63 {dimension_numbers = #tpu.dot_dimension_numbers<[2], [2], [1], [1], [0, 0, 0, 1, 1, 1], [0], [0]>} : vector<16x8x32xbf16>, vector<16x8x32xbf16>, vector<16x8x8xf32> -> vector<16x8x8xf32>
    "tpu.trace_stop"() : () -> ()
    %135 = tpu.iota {dimensions = array<i32: 0>} : vector<8x8xi32>
    %136 = tpu.iota {dimensions = array<i32: 1>} : vector<8x8xi32>
    %137 = arith.cmpi sge, %135, %136 : vector<8x8xi32>
    %138 = vector.shape_cast %137 : vector<8x8xi1> to vector<1x8x8xi1>
    %cst_64 = arith.constant -1.000000e+09 : f32
    %139 = vector.shape_cast %138 : vector<1x8x8xi1> to vector<1x8x8xi1>
    %140 = vector.broadcast %139 : vector<1x8x8xi1> to vector<16x8x8xi1>
    %141 = vector.broadcast %cst_64 : f32 to vector<16x8x8xf32>
    %142 = arith.select %140, %134, %141 : vector<16x8x8xi1>, vector<16x8x8xf32>
    %cst_65 = arith.constant dense<0xFF800000> : vector<16x8xf32>
    %143 = vector.multi_reduction <maximumf>, %142, %cst_65 [2] : vector<16x8x8xf32> to vector<16x8xf32>
    %144 = vector.shape_cast %143 : vector<16x8xf32> to vector<16x8x1xf32>
    %145 = vector.broadcast %144 : vector<16x8x1xf32> to vector<16x8x8xf32>
    %146 = arith.subf %142, %145 : vector<16x8x8xf32>
    %147 = math.exp %146 : vector<16x8x8xf32>
    %cst_66 = arith.constant dense<0.000000e+00> : vector<16x8xf32>
    %148 = vector.multi_reduction <add>, %147, %cst_66 [2] : vector<16x8x8xf32> to vector<16x8xf32>
    %149 = vector.shape_cast %148 : vector<16x8xf32> to vector<16x8x1xf32>
    %150 = tpu.reciprocal %149 {approx = true} : vector<16x8x1xf32> -> vector<16x8x1xf32>
    %151 = vector.broadcast %150 : vector<16x8x1xf32> to vector<16x8x8xf32>
    %152 = arith.mulf %147, %151 : vector<16x8x8xf32>
    %153 = arith.truncf %152 : vector<16x8x8xf32> to vector<16x8x8xbf16>
    %154 = arith.truncf %129 : vector<16x8x32xf32> to vector<16x8x32xbf16>
    "tpu.trace_start"() <{level = 10 : i32, message = "bqk,bkd->bqd"}> : () -> ()
    %cst_67 = arith.constant dense<0.000000e+00> : vector<16x8x32xf32>
    %155 = tpu.matmul %153, %154, %cst_67 {dimension_numbers = #tpu.dot_dimension_numbers<[2], [1], [1], [2], [0, 0, 0, 1, 1, 2], [0], [0]>} : vector<16x8x8xbf16>, vector<16x8x32xbf16>, vector<16x8x32xf32> -> vector<16x8x32xf32>
    "tpu.trace_stop"() : () -> ()
    %156 = vector.shape_cast %155 : vector<16x8x32xf32> to vector<128x32xf32>
    %157 = arith.truncf %156 : vector<128x32xf32> to vector<128x32xbf16>
    %c0_68 = arith.constant 0 : index
    %c0_69 = arith.constant 0 : index
    %158 = vector.load %arg21[%c0_68, %c0_69] : memref<32x32xbf16, #tpu.memory_space<vmem>>, vector<32x32xbf16>
    %cst_70 = arith.constant dense<0.000000e+00> : vector<128x32xf32>
    %159 = tpu.matmul %157, %158, %cst_70 {dimension_numbers = #tpu.dot_dimension_numbers<[1], [0], [0], [1], [0, 0, 1, 1], [], []>} : vector<128x32xbf16>, vector<32x32xbf16>, vector<128x32xf32> -> vector<128x32xf32>
    %c0_71 = arith.constant 0 : index
    %c0_72 = arith.constant 0 : index
    %160 = vector.load %arg22[%c0_71, %c0_72] : memref<1x32xf32, #tpu.memory_space<vmem>>, vector<1x32xf32>
    %161 = vector.broadcast %160 : vector<1x32xf32> to vector<128x32xf32>
    %162 = arith.addf %159, %161 : vector<128x32xf32>
    %163 = arith.addf %117, %162 : vector<128x32xf32>
    %cst_73 = arith.constant dense<0.000000e+00> : vector<128xf32>
    %164 = vector.multi_reduction <add>, %163, %cst_73 [1] : vector<128x32xf32> to vector<128xf32>
    %165 = vector.shape_cast %164 : vector<128xf32> to vector<128x1xf32>
    %cst_74 = arith.constant 3.200000e+01 : f32
    %166 = vector.broadcast %cst_74 : f32 to vector<128x1xf32>
    %167 = arith.divf %165, %166 : vector<128x1xf32>
    %168 = vector.broadcast %167 : vector<128x1xf32> to vector<128x32xf32>
    %169 = arith.subf %163, %168 : vector<128x32xf32>
    %170 = arith.mulf %169, %169 : vector<128x32xf32>
    %cst_75 = arith.constant dense<0.000000e+00> : vector<128xf32>
    %171 = vector.multi_reduction <add>, %170, %cst_75 [1] : vector<128x32xf32> to vector<128xf32>
    %172 = vector.shape_cast %171 : vector<128xf32> to vector<128x1xf32>
    %cst_76 = arith.constant 3.200000e+01 : f32
    %173 = vector.broadcast %cst_76 : f32 to vector<128x1xf32>
    %174 = arith.divf %172, %173 : vector<128x1xf32>
    %175 = vector.broadcast %167 : vector<128x1xf32> to vector<128x32xf32>
    %176 = arith.subf %163, %175 : vector<128x32xf32>
    %cst_77 = arith.constant 9.99999974E-6 : f32
    %177 = vector.broadcast %cst_77 : f32 to vector<128x1xf32>
    %178 = arith.addf %174, %177 : vector<128x1xf32>
    %179 = math.rsqrt %178 : vector<128x1xf32>
    %180 = vector.broadcast %179 : vector<128x1xf32> to vector<128x32xf32>
    %181 = arith.mulf %176, %180 : vector<128x32xf32>
    %c0_78 = arith.constant 0 : index
    %c0_79 = arith.constant 0 : index
    %182 = vector.load %arg23[%c0_78, %c0_79] : memref<1x32xf32, #tpu.memory_space<vmem>>, vector<1x32xf32>
    %183 = vector.broadcast %182 : vector<1x32xf32> to vector<128x32xf32>
    %184 = arith.mulf %181, %183 : vector<128x32xf32>
    %c0_80 = arith.constant 0 : index
    %c0_81 = arith.constant 0 : index
    %185 = vector.load %arg24[%c0_80, %c0_81] : memref<1x32xf32, #tpu.memory_space<vmem>>, vector<1x32xf32>
    %186 = vector.broadcast %185 : vector<1x32xf32> to vector<128x32xf32>
    %187 = arith.addf %184, %186 : vector<128x32xf32>
    %188 = arith.truncf %187 : vector<128x32xf32> to vector<128x32xbf16>
    %c0_82 = arith.constant 0 : index
    %c0_83 = arith.constant 0 : index
    %189 = vector.load %arg25[%c0_82, %c0_83] : memref<32x32xbf16, #tpu.memory_space<vmem>>, vector<32x32xbf16>
    %cst_84 = arith.constant dense<0.000000e+00> : vector<128x32xf32>
    %190 = tpu.matmul %188, %189, %cst_84 {dimension_numbers = #tpu.dot_dimension_numbers<[1], [0], [0], [1], [0, 0, 1, 1], [], []>} : vector<128x32xbf16>, vector<32x32xbf16>, vector<128x32xf32> -> vector<128x32xf32>
    %c0_85 = arith.constant 0 : index
    %c0_86 = arith.constant 0 : index
    %191 = vector.load %arg26[%c0_85, %c0_86] : memref<1x32xf32, #tpu.memory_space<vmem>>, vector<1x32xf32>
    %192 = vector.broadcast %191 : vector<1x32xf32> to vector<128x32xf32>
    %193 = arith.addf %190, %192 : vector<128x32xf32>
    %194 = vector.shape_cast %193 : vector<128x32xf32> to vector<16x8x32xf32>
    %195 = arith.truncf %108 : vector<128x32xf32> to vector<128x32xbf16>
    %c0_87 = arith.constant 0 : index
    %c0_88 = arith.constant 0 : index
    %196 = vector.load %arg27[%c0_87, %c0_88] : memref<32x64xbf16, #tpu.memory_space<vmem>>, vector<32x64xbf16>
    %cst_89 = arith.constant dense<0.000000e+00> : vector<128x64xf32>
    %197 = tpu.matmul %195, %196, %cst_89 {dimension_numbers = #tpu.dot_dimension_numbers<[1], [0], [0], [1], [0, 0, 1, 1], [], []>} : vector<128x32xbf16>, vector<32x64xbf16>, vector<128x64xf32> -> vector<128x64xf32>
    %c0_90 = arith.constant 0 : index
    %c0_91 = arith.constant 0 : index
    %198 = vector.load %arg28[%c0_90, %c0_91] : memref<1x64xf32, #tpu.memory_space<vmem>>, vector<1x64xf32>
    %199 = vector.broadcast %198 : vector<1x64xf32> to vector<128x64xf32>
    %200 = arith.addf %197, %199 : vector<128x64xf32>
    %201 = vector.extract_strided_slice %200 {offsets = [0, 0], sizes = [128, 32], strides = [1, 1]} : vector<128x64xf32> to vector<128x32xf32>
    %202 = vector.shape_cast %201 : vector<128x32xf32> to vector<16x8x32xf32>
    %203 = vector.extract_strided_slice %200 {offsets = [0, 32], sizes = [128, 32], strides = [1, 1]} : vector<128x64xf32> to vector<128x32xf32>
    %204 = vector.shape_cast %203 : vector<128x32xf32> to vector<16x8x32xf32>
    %cst_92 = arith.constant 0.176776692 : f32
    %205 = vector.broadcast %cst_92 : f32 to vector<16x8x32xf32>
    %206 = arith.mulf %194, %205 : vector<16x8x32xf32>
    %207 = arith.truncf %206 : vector<16x8x32xf32> to vector<16x8x32xbf16>
    %208 = arith.truncf %202 : vector<16x8x32xf32> to vector<16x8x32xbf16>
    "tpu.trace_start"() <{level = 10 : i32, message = "bqd,bkd->bqk"}> : () -> ()
    %cst_93 = arith.constant dense<0.000000e+00> : vector<16x8x8xf32>
    %209 = tpu.matmul %207, %208, %cst_93 {dimension_numbers = #tpu.dot_dimension_numbers<[2], [2], [1], [1], [0, 0, 0, 1, 1, 1], [0], [0]>} : vector<16x8x32xbf16>, vector<16x8x32xbf16>, vector<16x8x8xf32> -> vector<16x8x8xf32>
    "tpu.trace_stop"() : () -> ()
    %cst_94 = arith.constant dense<0xFF800000> : vector<16x8xf32>
    %210 = vector.multi_reduction <maximumf>, %209, %cst_94 [2] : vector<16x8x8xf32> to vector<16x8xf32>
    %211 = vector.shape_cast %210 : vector<16x8xf32> to vector<16x8x1xf32>
    %212 = vector.broadcast %211 : vector<16x8x1xf32> to vector<16x8x8xf32>
    %213 = arith.subf %209, %212 : vector<16x8x8xf32>
    %214 = math.exp %213 : vector<16x8x8xf32>
    %cst_95 = arith.constant dense<0.000000e+00> : vector<16x8xf32>
    %215 = vector.multi_reduction <add>, %214, %cst_95 [2] : vector<16x8x8xf32> to vector<16x8xf32>
    %216 = vector.shape_cast %215 : vector<16x8xf32> to vector<16x8x1xf32>
    %217 = tpu.reciprocal %216 {approx = true} : vector<16x8x1xf32> -> vector<16x8x1xf32>
    %218 = vector.broadcast %217 : vector<16x8x1xf32> to vector<16x8x8xf32>
    %219 = arith.mulf %214, %218 : vector<16x8x8xf32>
    %220 = arith.truncf %219 : vector<16x8x8xf32> to vector<16x8x8xbf16>
    %221 = arith.truncf %204 : vector<16x8x32xf32> to vector<16x8x32xbf16>
    "tpu.trace_start"() <{level = 10 : i32, message = "bqk,bkd->bqd"}> : () -> ()
    %cst_96 = arith.constant dense<0.000000e+00> : vector<16x8x32xf32>
    %222 = tpu.matmul %220, %221, %cst_96 {dimension_numbers = #tpu.dot_dimension_numbers<[2], [1], [1], [2], [0, 0, 0, 1, 1, 2], [0], [0]>} : vector<16x8x8xbf16>, vector<16x8x32xbf16>, vector<16x8x32xf32> -> vector<16x8x32xf32>
    "tpu.trace_stop"() : () -> ()
    %223 = vector.shape_cast %222 : vector<16x8x32xf32> to vector<128x32xf32>
    %224 = arith.truncf %223 : vector<128x32xf32> to vector<128x32xbf16>
    %c0_97 = arith.constant 0 : index
    %c0_98 = arith.constant 0 : index
    %225 = vector.load %arg29[%c0_97, %c0_98] : memref<32x32xbf16, #tpu.memory_space<vmem>>, vector<32x32xbf16>
    %cst_99 = arith.constant dense<0.000000e+00> : vector<128x32xf32>
    %226 = tpu.matmul %224, %225, %cst_99 {dimension_numbers = #tpu.dot_dimension_numbers<[1], [0], [0], [1], [0, 0, 1, 1], [], []>} : vector<128x32xbf16>, vector<32x32xbf16>, vector<128x32xf32> -> vector<128x32xf32>
    %c0_100 = arith.constant 0 : index
    %c0_101 = arith.constant 0 : index
    %227 = vector.load %arg30[%c0_100, %c0_101] : memref<1x32xf32, #tpu.memory_space<vmem>>, vector<1x32xf32>
    %228 = vector.broadcast %227 : vector<1x32xf32> to vector<128x32xf32>
    %229 = arith.addf %226, %228 : vector<128x32xf32>
    %230 = arith.addf %187, %229 : vector<128x32xf32>
    %cst_102 = arith.constant dense<0.000000e+00> : vector<128xf32>
    %231 = vector.multi_reduction <add>, %230, %cst_102 [1] : vector<128x32xf32> to vector<128xf32>
    %232 = vector.shape_cast %231 : vector<128xf32> to vector<128x1xf32>
    %cst_103 = arith.constant 3.200000e+01 : f32
    %233 = vector.broadcast %cst_103 : f32 to vector<128x1xf32>
    %234 = arith.divf %232, %233 : vector<128x1xf32>
    %235 = vector.broadcast %234 : vector<128x1xf32> to vector<128x32xf32>
    %236 = arith.subf %230, %235 : vector<128x32xf32>
    %237 = arith.mulf %236, %236 : vector<128x32xf32>
    %cst_104 = arith.constant dense<0.000000e+00> : vector<128xf32>
    %238 = vector.multi_reduction <add>, %237, %cst_104 [1] : vector<128x32xf32> to vector<128xf32>
    %239 = vector.shape_cast %238 : vector<128xf32> to vector<128x1xf32>
    %cst_105 = arith.constant 3.200000e+01 : f32
    %240 = vector.broadcast %cst_105 : f32 to vector<128x1xf32>
    %241 = arith.divf %239, %240 : vector<128x1xf32>
    %242 = vector.broadcast %234 : vector<128x1xf32> to vector<128x32xf32>
    %243 = arith.subf %230, %242 : vector<128x32xf32>
    %cst_106 = arith.constant 9.99999974E-6 : f32
    %244 = vector.broadcast %cst_106 : f32 to vector<128x1xf32>
    %245 = arith.addf %241, %244 : vector<128x1xf32>
    %246 = math.rsqrt %245 : vector<128x1xf32>
    %247 = vector.broadcast %246 : vector<128x1xf32> to vector<128x32xf32>
    %248 = arith.mulf %243, %247 : vector<128x32xf32>
    %c0_107 = arith.constant 0 : index
    %c0_108 = arith.constant 0 : index
    %249 = vector.load %arg31[%c0_107, %c0_108] : memref<1x32xf32, #tpu.memory_space<vmem>>, vector<1x32xf32>
    %250 = vector.broadcast %249 : vector<1x32xf32> to vector<128x32xf32>
    %251 = arith.mulf %248, %250 : vector<128x32xf32>
    %c0_109 = arith.constant 0 : index
    %c0_110 = arith.constant 0 : index
    %252 = vector.load %arg32[%c0_109, %c0_110] : memref<1x32xf32, #tpu.memory_space<vmem>>, vector<1x32xf32>
    %253 = vector.broadcast %252 : vector<1x32xf32> to vector<128x32xf32>
    %254 = arith.addf %251, %253 : vector<128x32xf32>
    %255 = arith.truncf %254 : vector<128x32xf32> to vector<128x32xbf16>
    %c0_111 = arith.constant 0 : index
    %c0_112 = arith.constant 0 : index
    %256 = vector.load %arg33[%c0_111, %c0_112] : memref<32x64xbf16, #tpu.memory_space<vmem>>, vector<32x64xbf16>
    %cst_113 = arith.constant dense<0.000000e+00> : vector<128x64xf32>
    %257 = tpu.matmul %255, %256, %cst_113 {dimension_numbers = #tpu.dot_dimension_numbers<[1], [0], [0], [1], [0, 0, 1, 1], [], []>} : vector<128x32xbf16>, vector<32x64xbf16>, vector<128x64xf32> -> vector<128x64xf32>
    %c0_114 = arith.constant 0 : index
    %c0_115 = arith.constant 0 : index
    %258 = vector.load %arg34[%c0_114, %c0_115] : memref<1x64xf32, #tpu.memory_space<vmem>>, vector<1x64xf32>
    %259 = vector.broadcast %258 : vector<1x64xf32> to vector<128x64xf32>
    %260 = arith.addf %257, %259 : vector<128x64xf32>
    %cst_116 = arith.constant 0.000000e+00 : f32
    %261 = vector.broadcast %cst_116 : f32 to vector<128x64xf32>
    %262 = arith.maximumf %260, %261 : vector<128x64xf32>
    %263 = arith.truncf %262 : vector<128x64xf32> to vector<128x64xbf16>
    %c0_117 = arith.constant 0 : index
    %c0_118 = arith.constant 0 : index
    %264 = vector.load %arg35[%c0_117, %c0_118] : memref<64x32xbf16, #tpu.memory_space<vmem>>, vector<64x32xbf16>
    %cst_119 = arith.constant dense<0.000000e+00> : vector<128x32xf32>
    %265 = tpu.matmul %263, %264, %cst_119 {dimension_numbers = #tpu.dot_dimension_numbers<[1], [0], [0], [1], [0, 0, 1, 1], [], []>} : vector<128x64xbf16>, vector<64x32xbf16>, vector<128x32xf32> -> vector<128x32xf32>
    %c0_120 = arith.constant 0 : index
    %c0_121 = arith.constant 0 : index
    %266 = vector.load %arg36[%c0_120, %c0_121] : memref<1x32xf32, #tpu.memory_space<vmem>>, vector<1x32xf32>
    %267 = vector.broadcast %266 : vector<1x32xf32> to vector<128x32xf32>
    %268 = arith.addf %265, %267 : vector<128x32xf32>
    %269 = arith.addf %254, %268 : vector<128x32xf32>
    %cst_122 = arith.constant dense<0.000000e+00> : vector<128xf32>
    %270 = vector.multi_reduction <add>, %269, %cst_122 [1] : vector<128x32xf32> to vector<128xf32>
    %271 = vector.shape_cast %270 : vector<128xf32> to vector<128x1xf32>
    %cst_123 = arith.constant 3.200000e+01 : f32
    %272 = vector.broadcast %cst_123 : f32 to vector<128x1xf32>
    %273 = arith.divf %271, %272 : vector<128x1xf32>
    %274 = vector.broadcast %273 : vector<128x1xf32> to vector<128x32xf32>
    %275 = arith.subf %269, %274 : vector<128x32xf32>
    %276 = arith.mulf %275, %275 : vector<128x32xf32>
    %cst_124 = arith.constant dense<0.000000e+00> : vector<128xf32>
    %277 = vector.multi_reduction <add>, %276, %cst_124 [1] : vector<128x32xf32> to vector<128xf32>
    %278 = vector.shape_cast %277 : vector<128xf32> to vector<128x1xf32>
    %cst_125 = arith.constant 3.200000e+01 : f32
    %279 = vector.broadcast %cst_125 : f32 to vector<128x1xf32>
    %280 = arith.divf %278, %279 : vector<128x1xf32>
    %281 = vector.broadcast %273 : vector<128x1xf32> to vector<128x32xf32>
    %282 = arith.subf %269, %281 : vector<128x32xf32>
    %cst_126 = arith.constant 9.99999974E-6 : f32
    %283 = vector.broadcast %cst_126 : f32 to vector<128x1xf32>
    %284 = arith.addf %280, %283 : vector<128x1xf32>
    %285 = math.rsqrt %284 : vector<128x1xf32>
    %286 = vector.broadcast %285 : vector<128x1xf32> to vector<128x32xf32>
    %287 = arith.mulf %282, %286 : vector<128x32xf32>
    %c0_127 = arith.constant 0 : index
    %c0_128 = arith.constant 0 : index
    %288 = vector.load %arg37[%c0_127, %c0_128] : memref<1x32xf32, #tpu.memory_space<vmem>>, vector<1x32xf32>
    %289 = vector.broadcast %288 : vector<1x32xf32> to vector<128x32xf32>
    %290 = arith.mulf %287, %289 : vector<128x32xf32>
    %c0_129 = arith.constant 0 : index
    %c0_130 = arith.constant 0 : index
    %291 = vector.load %arg38[%c0_129, %c0_130] : memref<1x32xf32, #tpu.memory_space<vmem>>, vector<1x32xf32>
    %292 = vector.broadcast %291 : vector<1x32xf32> to vector<128x32xf32>
    %293 = arith.addf %290, %292 : vector<128x32xf32>
    %294 = vector.shape_cast %293 : vector<128x32xf32> to vector<16x8x32xf32>
    %c0_131 = arith.constant 0 : index
    %c0_132 = arith.constant 0 : index
    %295 = vector.load %arg39[%c0_131, %c0_132] : memref<1x32xf32, #tpu.memory_space<vmem>>, vector<1x32xf32>
    %296 = vector.shape_cast %295 : vector<1x32xf32> to vector<1x1x32xf32>
    %297 = vector.broadcast %296 : vector<1x1x32xf32> to vector<16x8x32xf32>
    %298 = arith.mulf %294, %297 : vector<16x8x32xf32>
    %cst_133 = arith.constant dense<0.000000e+00> : vector<16x8xf32>
    %299 = vector.multi_reduction <add>, %298, %cst_133 [2] : vector<16x8x32xf32> to vector<16x8xf32>
    %c0_134 = arith.constant 0 : index
    %c0_135 = arith.constant 0 : index
    %300 = vector.load %arg40[%c0_134, %c0_135] : memref<1x1xf32, #tpu.memory_space<vmem>>, vector<1x1xf32>
    %301 = vector.broadcast %300 : vector<1x1xf32> to vector<16x8xf32>
    %302 = arith.addf %299, %301 : vector<16x8xf32>
    %c0_136 = arith.constant 0 : index
    %c0_137 = arith.constant 0 : index
    %303 = vector.load %arg41[%c0_136, %c0_137] : memref<16x8xf32, #tpu.memory_space<vmem>>, vector<16x8xf32>
    tpu.vector_store %arg41[%c0_136, %c0_137], %302 {strides = array<i32>} : memref<16x8xf32, #tpu.memory_space<vmem>>, vector<16x8xf32>,
    return
  }
  func.func @transform_0(%arg0: i32) -> (i32, i32, i32) {
    %c0_i32 = arith.constant 0 : i32
    %c0_i32_0 = arith.constant 0 : i32
    %c0_i32_1 = arith.constant 0 : i32
    return %arg0, %c0_i32, %c0_i32_0 : i32, i32, i32
  }
  func.func @transform_1(%arg0: i32) -> (i32, i32, i32) {
    %c0_i32 = arith.constant 0 : i32
    %c0_i32_0 = arith.constant 0 : i32
    %c0_i32_1 = arith.constant 0 : i32
    return %arg0, %c0_i32, %c0_i32_0 : i32, i32, i32
  }
  func.func @transform_2(%arg0: i32) -> (i32, i32) {
    %c0_i32 = arith.constant 0 : i32
    %c0_i32_0 = arith.constant 0 : i32
    %c0_i32_1 = arith.constant 0 : i32
    return %c0_i32, %c0_i32_0 : i32, i32
  }
  func.func @transform_3(%arg0: i32) -> (i32, i32) {
    %c0_i32 = arith.constant 0 : i32
    %c0_i32_0 = arith.constant 0 : i32
    %c0_i32_1 = arith.constant 0 : i32
    return %c0_i32, %c0_i32_0 : i32, i32
  }
  func.func @transform_4(%arg0: i32) -> (i32, i32) {
    %c0_i32 = arith.constant 0 : i32
    %c0_i32_0 = arith.constant 0 : i32
    %c0_i32_1 = arith.constant 0 : i32
    return %c0_i32, %c0_i32_0 : i32, i32
  }
  func.func @transform_5(%arg0: i32) -> (i32, i32) {
    %c0_i32 = arith.constant 0 : i32
    %c0_i32_0 = arith.constant 0 : i32
    %c0_i32_1 = arith.constant 0 : i32
    return %c0_i32, %c0_i32_0 : i32, i32
  }
  func.func @transform_6(%arg0: i32) -> (i32, i32) {
    %c0_i32 = arith.constant 0 : i32
    %c0_i32_0 = arith.constant 0 : i32
    %c0_i32_1 = arith.constant 0 : i32
    return %c0_i32, %c0_i32_0 : i32, i32
  }
  func.func @transform_7(%arg0: i32) -> (i32, i32) {
    %c0_i32 = arith.constant 0 : i32
    %c0_i32_0 = arith.constant 0 : i32
    %c0_i32_1 = arith.constant 0 : i32
    return %c0_i32, %c0_i32_0 : i32, i32
  }
  func.func @transform_8(%arg0: i32) -> (i32, i32) {
    %c0_i32 = arith.constant 0 : i32
    %c0_i32_0 = arith.constant 0 : i32
    %c0_i32_1 = arith.constant 0 : i32
    return %c0_i32, %c0_i32_0 : i32, i32
  }
  func.func @transform_9(%arg0: i32) -> (i32, i32) {
    %c0_i32 = arith.constant 0 : i32
    %c0_i32_0 = arith.constant 0 : i32
    %c0_i32_1 = arith.constant 0 : i32
    return %c0_i32, %c0_i32_0 : i32, i32
  }
  func.func @transform_10(%arg0: i32) -> (i32, i32) {
    %c0_i32 = arith.constant 0 : i32
    %c0_i32_0 = arith.constant 0 : i32
    %c0_i32_1 = arith.constant 0 : i32
    return %c0_i32, %c0_i32_0 : i32, i32
  }
  func.func @transform_11(%arg0: i32) -> (i32, i32) {
    %c0_i32 = arith.constant 0 : i32
    %c0_i32_0 = arith.constant 0 : i32
    %c0_i32_1 = arith.constant 0 : i32
    return %c0_i32, %c0_i32_0 : i32, i32
  }
  func.func @transform_12(%arg0: i32) -> (i32, i32) {
    %c0_i32 = arith.constant 0 : i32
    %c0_i32_0 = arith.constant 0 : i32
    %c0_i32_1 = arith.constant 0 : i32
    return %c0_i32, %c0_i32_0 : i32, i32
  }
  func.func @transform_13(%arg0: i32) -> (i32, i32) {
    %c0_i32 = arith.constant 0 : i32
    %c0_i32_0 = arith.constant 0 : i32
    %c0_i32_1 = arith.constant 0 : i32
    return %c0_i32, %c0_i32_0 : i32, i32
  }
  func.func @transform_14(%arg0: i32) -> (i32, i32) {
    %c0_i32 = arith.constant 0 : i32
    %c0_i32_0 = arith.constant 0 : i32
    %c0_i32_1 = arith.constant 0 : i32
    return %c0_i32, %c0_i32_0 : i32, i32
  }
  func.func @transform_15(%arg0: i32) -> (i32, i32) {
    %c0_i32 = arith.constant 0 : i32
    %c0_i32_0 = arith.constant 0 : i32
    %c0_i32_1 = arith.constant 0 : i32
    return %c0_i32, %c0_i32_0 : i32, i32
  }
  func.func @transform_16(%arg0: i32) -> (i32, i32) {
    %c0_i32 = arith.constant 0 : i32
    %c0_i32_0 = arith.constant 0 : i32
    %c0_i32_1 = arith.constant 0 : i32
    return %c0_i32, %c0_i32_0 : i32, i32
  }
  func.func @transform_17(%arg0: i32) -> (i32, i32) {
    %c0_i32 = arith.constant 0 : i32
    %c0_i32_0 = arith.constant 0 : i32
    %c0_i32_1 = arith.constant 0 : i32
    return %c0_i32, %c0_i32_0 : i32, i32
  }
  func.func @transform_18(%arg0: i32) -> (i32, i32) {
    %c0_i32 = arith.constant 0 : i32
    %c0_i32_0 = arith.constant 0 : i32
    %c0_i32_1 = arith.constant 0 : i32
    return %c0_i32, %c0_i32_0 : i32, i32
  }
  func.func @transform_19(%arg0: i32) -> (i32, i32) {
    %c0_i32 = arith.constant 0 : i32
    %c0_i32_0 = arith.constant 0 : i32
    %c0_i32_1 = arith.constant 0 : i32
    return %c0_i32, %c0_i32_0 : i32, i32
  }
  func.func @transform_20(%arg0: i32) -> (i32, i32) {
    %c0_i32 = arith.constant 0 : i32
    %c0_i32_0 = arith.constant 0 : i32
    %c0_i32_1 = arith.constant 0 : i32
    return %c0_i32, %c0_i32_0 : i32, i32
  }
  func.func @transform_21(%arg0: i32) -> (i32, i32) {
    %c0_i32 = arith.constant 0 : i32
    %c0_i32_0 = arith.constant 0 : i32
    %c0_i32_1 = arith.constant 0 : i32
    return %c0_i32, %c0_i32_0 : i32, i32
  }
  func.func @transform_22(%arg0: i32) -> (i32, i32) {
    %c0_i32 = arith.constant 0 : i32
    %c0_i32_0 = arith.constant 0 : i32
    %c0_i32_1 = arith.constant 0 : i32
    return %c0_i32, %c0_i32_0 : i32, i32
  }
  func.func @transform_23(%arg0: i32) -> (i32, i32) {
    %c0_i32 = arith.constant 0 : i32
    %c0_i32_0 = arith.constant 0 : i32
    %c0_i32_1 = arith.constant 0 : i32
    return %c0_i32, %c0_i32_0 : i32, i32
  }
  func.func @transform_24(%arg0: i32) -> (i32, i32) {
    %c0_i32 = arith.constant 0 : i32
    %c0_i32_0 = arith.constant 0 : i32
    %c0_i32_1 = arith.constant 0 : i32
    return %c0_i32, %c0_i32_0 : i32, i32
  }
  func.func @transform_25(%arg0: i32) -> (i32, i32) {
    %c0_i32 = arith.constant 0 : i32
    %c0_i32_0 = arith.constant 0 : i32
    %c0_i32_1 = arith.constant 0 : i32
    return %c0_i32, %c0_i32_0 : i32, i32
  }
  func.func @transform_26(%arg0: i32) -> (i32, i32) {
    %c0_i32 = arith.constant 0 : i32
    %c0_i32_0 = arith.constant 0 : i32
    %c0_i32_1 = arith.constant 0 : i32
    return %c0_i32, %c0_i32_0 : i32, i32
  }
  func.func @transform_27(%arg0: i32) -> (i32, i32) {
    %c0_i32 = arith.constant 0 : i32
    %c0_i32_0 = arith.constant 0 : i32
    %c0_i32_1 = arith.constant 0 : i32
    return %c0_i32, %c0_i32_0 : i32, i32
  }
  func.func @transform_28(%arg0: i32) -> (i32, i32) {
    %c0_i32 = arith.constant 0 : i32
    %c0_i32_0 = arith.constant 0 : i32
    %c0_i32_1 = arith.constant 0 : i32
    return %c0_i32, %c0_i32_0 : i32, i32
  }
  func.func @transform_29(%arg0: i32) -> (i32, i32) {
    %c0_i32 = arith.constant 0 : i32
    %c0_i32_0 = arith.constant 0 : i32
    %c0_i32_1 = arith.constant 0 : i32
    return %c0_i32, %c0_i32_0 : i32, i32
  }
  func.func @transform_30(%arg0: i32) -> (i32, i32) {
    %c0_i32 = arith.constant 0 : i32
    %c0_i32_0 = arith.constant 0 : i32
    %c0_i32_1 = arith.constant 0 : i32
    return %c0_i32, %c0_i32_0 : i32, i32
  }
  func.func @transform_31(%arg0: i32) -> (i32, i32) {
    %c0_i32 = arith.constant 0 : i32
    %c0_i32_0 = arith.constant 0 : i32
    %c0_i32_1 = arith.constant 0 : i32
    return %c0_i32, %c0_i32_0 : i32, i32
  }
  func.func @transform_32(%arg0: i32) -> (i32, i32) {
    %c0_i32 = arith.constant 0 : i32
    %c0_i32_0 = arith.constant 0 : i32
    %c0_i32_1 = arith.constant 0 : i32
    return %c0_i32, %c0_i32_0 : i32, i32
  }
  func.func @transform_33(%arg0: i32) -> (i32, i32) {
    %c0_i32 = arith.constant 0 : i32
    %c0_i32_0 = arith.constant 0 : i32
    %c0_i32_1 = arith.constant 0 : i32
    return %c0_i32, %c0_i32_0 : i32, i32
  }
  func.func @transform_34(%arg0: i32) -> (i32, i32) {
    %c0_i32 = arith.constant 0 : i32
    %c0_i32_0 = arith.constant 0 : i32
    %c0_i32_1 = arith.constant 0 : i32
    return %c0_i32, %c0_i32_0 : i32, i32
  }
  func.func @transform_35(%arg0: i32) -> (i32, i32) {
    %c0_i32 = arith.constant 0 : i32
    %c0_i32_0 = arith.constant 0 : i32
    %c0_i32_1 = arith.constant 0 : i32
    return %c0_i32, %c0_i32_0 : i32, i32
  }
  func.func @transform_36(%arg0: i32) -> (i32, i32) {
    %c0_i32 = arith.constant 0 : i32
    %c0_i32_0 = arith.constant 0 : i32
    %c0_i32_1 = arith.constant 0 : i32
    return %c0_i32, %c0_i32_0 : i32, i32
  }
  func.func @transform_37(%arg0: i32) -> (i32, i32) {
    %c0_i32 = arith.constant 0 : i32
    %c0_i32_0 = arith.constant 0 : i32
    %c0_i32_1 = arith.constant 0 : i32
    return %c0_i32, %c0_i32_0 : i32, i32
  }
  func.func @transform_38(%arg0: i32) -> (i32, i32) {
    %c0_i32 = arith.constant 0 : i32
    %c0_i32_0 = arith.constant 0 : i32
    %c0_i32_1 = arith.constant 0 : i32
    return %c0_i32, %c0_i32_0 : i32, i32
  }
  func.func @transform_39(%arg0: i32) -> (i32, i32) {
    %c0_i32 = arith.constant 0 : i32
    %c0_i32_0 = arith.constant 0 : i32
    %c0_i32_1 = arith.constant 0 : i32
    return %c0_i32, %c0_i32_0 : i32, i32
  }
  func.func @transform_40(%arg0: i32) -> (i32, i32) {
    %c0_i32 = arith.constant 0 : i32
    %c0_i32_0 = arith.constant 0 : i32
    return %arg0, %c0_i32 : i32, i32
  }
}

</mosaic_0001>

<llo_original>
// kernel: proximal_forward.2
$region0: #{proximal_forward.2}
  #allocation0 [shape = 'u32[]', space=smem, size = 0x4, offset = 0x4, fixed_abs, tag = 'smem constant byte address 0x4 - core index']
  #allocation1 [shape = 'u32[144,128]{1,0:T(1,128)}', space=vmem, size = 0x12000, scoped, tag = 'internal scratch']
  %s0 = inlined_call_operand.vmem [shape: f32[2,16,16], index: 0, kind: input, shape index: {}]
  %s1 = inlined_call_operand.vmem [shape: f32[2,16,16], index: 1, kind: output, shape index: {}]
  %s2 = sld [smem:[#allocation0]]
  $region14: #{proximal_forward.2} parent=0
    _
  %s4 = ssub.s32 1, %s2
  %s5 = scalar_select 0, %s4, %s2
  // Predicated region
  $region2: #{proximal_forward.2} parent=0 // pred_check
    _
  $region3: #{proximal_forward.2} parent=0 // pred_check_branch
    %7 = sbr.rel (0) target = $region5
  $region4: #{proximal_forward.2} parent=0 // pred_region
    _
  $region5: #{proximal_forward.2} parent=0 // pred_fallthru
    _
  %v8 = vld [vmem:[%s0] sm:$0xff]
  %v9 = vld [vmem:[%s0 + $0x8] sm:$0xff]
  %v10 = vld [vmem:[%s0 + $0x10] sm:$0xff]
  %v11 = vld [vmem:[%s0 + $0x18] sm:$0xff]
  %vm12 = vcmask 130048
  %v13 = vsel %vm12, %v8, 0.0
  %14 = vadd.xlane.f32.xlu0 %v13
  %v15 = vpop.xlane.xlu0 %14
  %v16 = vsel %vm12, %v9, 0.0
  %17 = vadd.xlane.f32.xlu0 %v16
  %v18 = vpop.xlane.xlu0 %17
  %v19 = vsel %vm12, %v10, 0.0
  %20 = vadd.xlane.f32.xlu0 %v19
  %v21 = vpop.xlane.xlu0 %20
  %v22 = vsel %vm12, %v11, 0.0
  %23 = vadd.xlane.f32.xlu0 %v22
  %v24 = vpop.xlane.xlu0 %23
  %v25 = vrcp.pop 16.0
  %v26 = vmul.f32 %v15, %v25
  %v27 = vmul.f32 %v18, %v25
  %v28 = vmul.f32 %v21, %v25
  %v29 = vmul.f32 %v24, %v25
  %v30 = vsub.f32 %v8, %v26
  %v31 = vsub.f32 %v9, %v27
  %v32 = vsub.f32 %v10, %v28
  %v33 = vsub.f32 %v11, %v29
  %v34 = vmul.f32 %v30, %v30
  %v35 = vmul.f32 %v31, %v31
  %v36 = vmul.f32 %v32, %v32
  %v37 = vmul.f32 %v33, %v33
  %v38 = vsel %vm12, %v34, 0.0
  %39 = vadd.xlane.f32.xlu0 %v38
  %v40 = vpop.xlane.xlu0 %39
  %v41 = vsel %vm12, %v35, 0.0
  %42 = vadd.xlane.f32.xlu0 %v41
  %v43 = vpop.xlane.xlu0 %42
  %v44 = vsel %vm12, %v36, 0.0
  %45 = vadd.xlane.f32.xlu0 %v44
  %v46 = vpop.xlane.xlu0 %45
  %v47 = vsel %vm12, %v37, 0.0
  %48 = vadd.xlane.f32.xlu0 %v47
  %v49 = vpop.xlane.xlu0 %48
  %v50 = vadd.f32 %v40, 1e-08
  %v51 = vadd.f32 %v43, 1e-08
  %v52 = vadd.f32 %v46, 1e-08
  %v53 = vadd.f32 %v49, 1e-08
  %v54 = vrsqrt.pop %v50
  %v55 = vrsqrt.pop %v51
  %v56 = vrsqrt.pop %v52
  %v57 = vrsqrt.pop %v53
  %v58 = vmul.f32 %v30, %v54
  %v59 = vmul.f32 %v31, %v55
  %v60 = vmul.f32 %v32, %v56
  %v61 = vmul.f32 %v33, %v57
  %v63 = vsel %vm12, %v58, 0
  %v66 = vsel %vm12, %v59, 0
  %68 = vmatprep.subr.mxu0 0.0
  %69 = vmatpush1.xpose.msra.mxu0 %v63
  %70 = vmatprep.subr.mxu0 0.0
  %71 = vmatpush1.xpose.msra.mxu0 %v66
  %72 = vmatprep.subr.mxu0 0.0
  %73 = vmatpush1.xpose.msra.mxu0 0.0
  %74 = vmatprep.subr.mxu0 0.0
  %75 = vmatpush1.xpose.msra.mxu0 0.0
  %76 = vmatprep.subr.mxu0 0.0
  %77 = vmatpush1.xpose.msra.mxu0 0.0
  %78 = vmatprep.subr.mxu0 0.0
  %79 = vmatpush1.xpose.msra.mxu0 0.0
  %80 = vmatprep.subr.mxu0 0.0
  %81 = vmatpush1.xpose.msra.mxu0 0.0
  %82 = vmatprep.subr.mxu0 0.0
  %83 = vmatpush1.xpose.msra.mxu0 0.0
  %84 = vmatprep.subr.mxu0 0.0
  %85 = vmatpush1.xpose.msra.mxu0 0.0
  %86 = vmatprep.subr.mxu0 0.0
  %87 = vmatpush1.xpose.msra.mxu0 0.0
  %88 = vmatprep.subr.mxu0 0.0
  %89 = vmatpush1.xpose.msra.mxu0 0.0
  %90 = vmatprep.subr.mxu0 0.0
  %91 = vmatpush1.xpose.msra.mxu0 0.0
  %92 = vmatprep.subr.mxu0 0.0
  %93 = vmatpush1.xpose.msra.mxu0 0.0
  %94 = vmatprep.subr.mxu0 0.0
  %95 = vmatpush1.xpose.msra.mxu0 0.0
  %96 = vmatprep.subr.mxu0 0.0
  %97 = vmatpush1.xpose.msra.mxu0 0.0
  %98 = vmatprep.subr.mxu0 0.0
  %99 = vmatpush1.xpose.msra.mxu0 0.0
  %100 = vmatprep.subr.mxu0 0.0
  %101 = vmatpush1.xpose.msra.mxu0 0.0
  %102 = vmatprep.subr.mxu0 0.0
  %103 = vmatpush1.xpose.msra.mxu0 0.0
  %104 = vmatprep.subr.mxu0 0.0
  %105 = vmatpush1.xpose.msra.mxu0 0.0
  %106 = vmatprep.subr.mxu0 0.0
  %107 = vmatpush1.xpose.msra.mxu0 0.0
  %108 = vmatprep.subr.mxu0 0.0
  %109 = vmatpush1.xpose.msra.mxu0 0.0
  %110 = vmatprep.subr.mxu0 0.0
  %111 = vmatpush1.xpose.msra.mxu0 0.0
  %112 = vmatprep.subr.mxu0 0.0
  %113 = vmatpush1.xpose.msra.mxu0 0.0
  %114 = vmatprep.subr.mxu0 0.0
  %115 = vmatpush1.xpose.msra.mxu0 0.0
  %116 = vmatprep.subr.mxu0 0.0
  %117 = vmatpush1.xpose.msra.mxu0 0.0
  %118 = vmatprep.subr.mxu0 0.0
  %119 = vmatpush1.xpose.msra.mxu0 0.0
  %120 = vmatprep.subr.mxu0 0.0
  %121 = vmatpush1.xpose.msra.mxu0 0.0
  %122 = vmatprep.subr.mxu0 0.0
  %123 = vmatpush1.xpose.msra.mxu0 0.0
  %124 = vmatprep.subr.mxu0 0.0
  %125 = vmatpush1.xpose.msra.mxu0 0.0
  %126 = vmatprep.subr.mxu0 0.0
  %127 = vmatpush1.xpose.msra.mxu0 0.0
  %128 = vmatprep.subr.mxu0 0.0
  %129 = vmatpush1.xpose.msra.mxu0 0.0
  %130 = vmatprep.subr.mxu0 0.0
  %131 = vmatpush1.xpose.msra.mxu0 0.0
  %132 = vmatprep.mubr.f32.mxu0 0.0
  %133 = vmatmul.mubr.f32.gmra.mrb[0].mxu0 %v63
  %v134 = vpop.f32.mrb[0].mxu0
  %v135 = vadd.f32 0.0, %v134
  %v136 = vpop.f32.mrb[0].mxu0
  %137 = vmatprep.mubr.f32.mxu0 0.0
  %138 = vmatmul.mubr.f32.gmra.mrb[0].mxu0 %v66
  %v139 = vpop.f32.mrb[0].mxu0
  %v140 = vadd.f32 0.0, %v139
  %v141 = vpop.f32.mrb[0].mxu0
  %142 = vdwg.mxu0
  %v144 = vsel %vm12, %v60, 0
  %v147 = vsel %vm12, %v61, 0
  %149 = vmatprep.subr.mxu0 0.0
  %150 = vmatpush1.xpose.msra.mxu0 %v144
  %151 = vmatprep.subr.mxu0 0.0
  %152 = vmatpush1.xpose.msra.mxu0 %v147
  %153 = vmatprep.subr.mxu0 0.0
  %154 = vmatpush1.xpose.msra.mxu0 0.0
  %155 = vmatprep.subr.mxu0 0.0
  %156 = vmatpush1.xpose.msra.mxu0 0.0
  %157 = vmatprep.subr.mxu0 0.0
  %158 = vmatpush1.xpose.msra.mxu0 0.0
  %159 = vmatprep.subr.mxu0 0.0
  %160 = vmatpush1.xpose.msra.mxu0 0.0
  %161 = vmatprep.subr.mxu0 0.0
  %162 = vmatpush1.xpose.msra.mxu0 0.0
  %163 = vmatprep.subr.mxu0 0.0
  %164 = vmatpush1.xpose.msra.mxu0 0.0
  %165 = vmatprep.subr.mxu0 0.0
  %166 = vmatpush1.xpose.msra.mxu0 0.0
  %167 = vmatprep.subr.mxu0 0.0
  %168 = vmatpush1.xpose.msra.mxu0 0.0
  %169 = vmatprep.subr.mxu0 0.0
  %170 = vmatpush1.xpose.msra.mxu0 0.0
  %171 = vmatprep.subr.mxu0 0.0
  %172 = vmatpush1.xpose.msra.mxu0 0.0
  %173 = vmatprep.subr.mxu0 0.0
  %174 = vmatpush1.xpose.msra.mxu0 0.0
  %175 = vmatprep.subr.mxu0 0.0
  %176 = vmatpush1.xpose.msra.mxu0 0.0
  %177 = vmatprep.subr.mxu0 0.0
  %178 = vmatpush1.xpose.msra.mxu0 0.0
  %179 = vmatprep.subr.mxu0 0.0
  %180 = vmatpush1.xpose.msra.mxu0 0.0
  %181 = vmatprep.subr.mxu0 0.0
  %182 = vmatpush1.xpose.msra.mxu0 0.0
  %183 = vmatprep.subr.mxu0 0.0
  %184 = vmatpush1.xpose.msra.mxu0 0.0
  %185 = vmatprep.subr.mxu0 0.0
  %186 = vmatpush1.xpose.msra.mxu0 0.0
  %187 = vmatprep.subr.mxu0 0.0
  %188 = vmatpush1.xpose.msra.mxu0 0.0
  %189 = vmatprep.subr.mxu0 0.0
  %190 = vmatpush1.xpose.msra.mxu0 0.0
  %191 = vmatprep.subr.mxu0 0.0
  %192 = vmatpush1.xpose.msra.mxu0 0.0
  %193 = vmatprep.subr.mxu0 0.0
  %194 = vmatpush1.xpose.msra.mxu0 0.0
  %195 = vmatprep.subr.mxu0 0.0
  %196 = vmatpush1.xpose.msra.mxu0 0.0
  %197 = vmatprep.subr.mxu0 0.0
  %198 = vmatpush1.xpose.msra.mxu0 0.0
  %199 = vmatprep.subr.mxu0 0.0
  %200 = vmatpush1.xpose.msra.mxu0 0.0
  %201 = vmatprep.subr.mxu0 0.0
  %202 = vmatpush1.xpose.msra.mxu0 0.0
  %203 = vmatprep.subr.mxu0 0.0
  %204 = vmatpush1.xpose.msra.mxu0 0.0
  %205 = vmatprep.subr.mxu0 0.0
  %206 = vmatpush1.xpose.msra.mxu0 0.0
  %207 = vmatprep.subr.mxu0 0.0
  %208 = vmatpush1.xpose.msra.mxu0 0.0
  %209 = vmatprep.subr.mxu0 0.0
  %210 = vmatpush1.xpose.msra.mxu0 0.0
  %211 = vmatprep.subr.mxu0 0.0
  %212 = vmatpush1.xpose.msra.mxu0 0.0
  %213 = vmatprep.mubr.f32.mxu0 0.0
  %214 = vmatmul.mubr.f32.gmra.mrb[0].mxu0 %v144
  %v215 = vpop.f32.mrb[0].mxu0
  %v216 = vadd.f32 0.0, %v215
  %v217 = vpop.f32.mrb[0].mxu0
  %218 = vmatprep.mubr.f32.mxu0 0.0
  %219 = vmatmul.mubr.f32.gmra.mrb[0].mxu0 %v147
  %v220 = vpop.f32.mrb[0].mxu0
  %v221 = vadd.f32 0.0, %v220
  %v222 = vpop.f32.mrb[0].mxu0
  %223 = vdwg.mxu0
  %224 = vst.msk [vmem:[%s1] sm:$0xff] %vm12, %v135
  %225 = vst.msk [vmem:[%s1 + $0x8] sm:$0xff] %vm12, %v140
  %226 = vst.msk [vmem:[%s1 + $0x10] sm:$0xff] %vm12, %v216
  %227 = vst.msk [vmem:[%s1 + $0x18] sm:$0xff] %vm12, %v221
  // Predicated region
  $region6: #{proximal_forward.2} parent=0 // pred_check
    _
  $region7: #{proximal_forward.2} parent=0 // pred_check_branch
    %229 = sbr.rel (0) target = $region9
  $region8: #{proximal_forward.2} parent=0 // pred_region
    _
  $region9: #{proximal_forward.2} parent=0 // pred_fallthru
    _
  // Predicated region
  $region10: #{proximal_forward.2} parent=0 // pred_check
    _
  $region11: #{proximal_forward.2} parent=0 // pred_check_branch
    %231 = sbr.rel (0) target = $region13
  $region12: #{proximal_forward.2} parent=0 // pred_region
    _
  $region13: #{proximal_forward.2} parent=0 // pred_fallthru
    _

// kernel: proximal_forward.3
$region0: #{proximal_forward.3}
  #allocation0 [shape = 'u32[]', space=smem, size = 0x4, offset = 0x4, fixed_abs, tag = 'smem constant byte address 0x4 - core index']
  #allocation1 [shape = 'u32[144,128]{1,0:T(1,128)}', space=vmem, size = 0x12000, scoped, tag = 'internal scratch']
  #allocation2 [shape = 'f32[1,1]{1,0:T(1,128)S(1)}', space=vmem, size = 0x200, scoped, tag = 'scoped memory for proximal_forward.3']
  %s0 = inlined_call_operand.smem [shape: u32[41], index: -1, kind: input, shape index: {}]
  %s1 = sld [smem:[%s0]]
  %s2 = scalar_lea.smem %s0, 1
  %s3 = sld [smem:[%s2]]
  %s4 = scalar_lea.smem %s0, 2
  %s5 = sld [smem:[%s4]]
  %s6 = scalar_lea.smem %s0, 3
  %s7 = sld [smem:[%s6]]
  %s8 = scalar_lea.smem %s0, 4
  %s9 = sld [smem:[%s8]]
  %s10 = scalar_lea.smem %s0, 5
  %s11 = sld [smem:[%s10]]
  %s12 = scalar_lea.smem %s0, 6
  %s13 = sld [smem:[%s12]]
  %s14 = scalar_lea.smem %s0, 7
  %s15 = sld [smem:[%s14]]
  %s16 = scalar_lea.smem %s0, 8
  %s17 = sld [smem:[%s16]]
  %s18 = scalar_lea.smem %s0, 9
  %s19 = sld [smem:[%s18]]
  %s20 = scalar_lea.smem %s0, 10
  %s21 = sld [smem:[%s20]]
  %s22 = scalar_lea.smem %s0, 11
  %s23 = sld [smem:[%s22]]
  %s24 = scalar_lea.smem %s0, 12
  %s25 = sld [smem:[%s24]]
  %s26 = scalar_lea.smem %s0, 13
  %s27 = sld [smem:[%s26]]
  %s28 = scalar_lea.smem %s0, 14
  %s29 = sld [smem:[%s28]]
  %s30 = scalar_lea.smem %s0, 15
  %s31 = sld [smem:[%s30]]
  %s32 = scalar_lea.smem %s0, 16
  %s33 = sld [smem:[%s32]]
  %s34 = scalar_lea.smem %s0, 17
  %s35 = sld [smem:[%s34]]
  %s36 = scalar_lea.smem %s0, 18
  %s37 = sld [smem:[%s36]]
  %s38 = scalar_lea.smem %s0, 19
  %s39 = sld [smem:[%s38]]
  %s40 = scalar_lea.smem %s0, 20
  %s41 = sld [smem:[%s40]]
  %s42 = scalar_lea.smem %s0, 21
  %s43 = sld [smem:[%s42]]
  %s44 = scalar_lea.smem %s0, 22
  %s45 = sld [smem:[%s44]]
  %s46 = scalar_lea.smem %s0, 23
  %s47 = sld [smem:[%s46]]
  %s48 = scalar_lea.smem %s0, 24
  %s49 = sld [smem:[%s48]]
  %s50 = scalar_lea.smem %s0, 25
  %s51 = sld [smem:[%s50]]
  %s52 = scalar_lea.smem %s0, 26
  %s53 = sld [smem:[%s52]]
  %s54 = scalar_lea.smem %s0, 27
  %s55 = sld [smem:[%s54]]
  %s56 = scalar_lea.smem %s0, 28
  %s57 = sld [smem:[%s56]]
  %s58 = scalar_lea.smem %s0, 29
  %s59 = sld [smem:[%s58]]
  %s60 = scalar_lea.smem %s0, 30
  %s61 = sld [smem:[%s60]]
  %s62 = scalar_lea.smem %s0, 31
  %s63 = sld [smem:[%s62]]
  %s64 = scalar_lea.smem %s0, 32
  %s65 = sld [smem:[%s64]]
  %s66 = scalar_lea.smem %s0, 33
  %s67 = sld [smem:[%s66]]
  %s68 = scalar_lea.smem %s0, 34
  %s69 = sld [smem:[%s68]]
  %s70 = scalar_lea.smem %s0, 35
  %s71 = sld [smem:[%s70]]
  %s72 = scalar_lea.smem %s0, 36
  %s73 = sld [smem:[%s72]]
  %s74 = scalar_lea.smem %s0, 37
  %s75 = sld [smem:[%s74]]
  %s76 = scalar_lea.smem %s0, 38
  %s77 = sld [smem:[%s76]]
  %s78 = scalar_lea.smem %s0, 39
  %s79 = sld [smem:[%s78]]
  %s80 = scalar_lea.smem %s0, 40
  %s81 = sld [smem:[%s80]]
  %s82 = sld [smem:[#allocation0]]
  $region193: #{proximal_forward.3} parent=0
    _
  %s84 = ssub.s32 1, %s82
  %s85 = scalar_select 0, %s84, %s82
  %v86 = vstv %s79
  %87 = vst [vmem:[#allocation2] sm:$0x1] %v86
  loop: start=0, step=1, limit=4
  $region2: #{proximal_forward.3} parent=0 // loop_pre_header
    _
  $region3: #{proximal_forward.3} parent=0 // loop_header
    %s89 = sphi 0, %s93
    %p90 = scmp.ge.s32.totalorder %s89, 4
    %s99 = sphi 0, %s101
    %s102 = sphi 0, %s99
    %s103 = sphi 0, %s102
    %s119 = sphi 0, %s103
    %s125 = sphi 0, %s127
    %s128 = sphi 0, %s125
    %s129 = sphi 0, %s128
    %s145 = sphi 0, %s129
    %s149 = sphi 0, %s149
    %s151 = sphi 0, %s149
    %s152 = sphi 0, %s151
    %s166 = sphi 0, %s152
    %s170 = sphi 0, %s170
    %s172 = sphi 0, %s170
    %s173 = sphi 0, %s172
    %s187 = sphi 0, %s173
    %s191 = sphi 0, %s191
    %s193 = sphi 0, %s191
    %s194 = sphi 0, %s193
    %s208 = sphi 0, %s194
    %s212 = sphi 0, %s212
    %s214 = sphi 0, %s212
    %s215 = sphi 0, %s214
    %s229 = sphi 0, %s215
    %s233 = sphi 0, %s233
    %s235 = sphi 0, %s233
    %s236 = sphi 0, %s235
    %s250 = sphi 0, %s236
    %s254 = sphi 0, %s254
    %s256 = sphi 0, %s254
    %s257 = sphi 0, %s256
    %s271 = sphi 0, %s257
    %s275 = sphi 0, %s275
    %s277 = sphi 0, %s275
    %s278 = sphi 0, %s277
    %s292 = sphi 0, %s278
    %s296 = sphi 0, %s296
    %s298 = sphi 0, %s296
    %s299 = sphi 0, %s298
    %s313 = sphi 0, %s299
    %s317 = sphi 0, %s317
    %s319 = sphi 0, %s317
    %s320 = sphi 0, %s319
    %s334 = sphi 0, %s320
    %s338 = sphi 0, %s338
    %s340 = sphi 0, %s338
    %s341 = sphi 0, %s340
    %s355 = sphi 0, %s341
    %s359 = sphi 0, %s359
    %s361 = sphi 0, %s359
    %s362 = sphi 0, %s361
    %s376 = sphi 0, %s362
    %s380 = sphi 0, %s380
    %s382 = sphi 0, %s380
    %s383 = sphi 0, %s382
    %s397 = sphi 0, %s383
    %s401 = sphi 0, %s401
    %s403 = sphi 0, %s401
    %s404 = sphi 0, %s403
    %s418 = sphi 0, %s404
    %s422 = sphi 0, %s422
    %s424 = sphi 0, %s422
    %s425 = sphi 0, %s424
    %s439 = sphi 0, %s425
    %s443 = sphi 0, %s443
    %s445 = sphi 0, %s443
    %s446 = sphi 0, %s445
    %s460 = sphi 0, %s446
    %s464 = sphi 0, %s464
    %s466 = sphi 0, %s464
    %s467 = sphi 0, %s466
    %s481 = sphi 0, %s467
    %s485 = sphi 0, %s485
    %s487 = sphi 0, %s485
    %s488 = sphi 0, %s487
    %s502 = sphi 0, %s488
    %s506 = sphi 0, %s506
    %s508 = sphi 0, %s506
    %s509 = sphi 0, %s508
    %s523 = sphi 0, %s509
    %s527 = sphi 0, %s527
    %s529 = sphi 0, %s527
    %s530 = sphi 0, %s529
    %s544 = sphi 0, %s530
    %s548 = sphi 0, %s548
    %s550 = sphi 0, %s548
    %s551 = sphi 0, %s550
    %s565 = sphi 0, %s551
    %s569 = sphi 0, %s569
    %s571 = sphi 0, %s569
    %s572 = sphi 0, %s571
    %s586 = sphi 0, %s572
    %s590 = sphi 0, %s590
    %s592 = sphi 0, %s590
    %s593 = sphi 0, %s592
    %s607 = sphi 0, %s593
    %s611 = sphi 0, %s611
    %s613 = sphi 0, %s611
    %s614 = sphi 0, %s613
    %s628 = sphi 0, %s614
    %s632 = sphi 0, %s632
    %s634 = sphi 0, %s632
    %s635 = sphi 0, %s634
    %s649 = sphi 0, %s635
    %s653 = sphi 0, %s653
    %s655 = sphi 0, %s653
    %s656 = sphi 0, %s655
    %s670 = sphi 0, %s656
    %s674 = sphi 0, %s674
    %s676 = sphi 0, %s674
    %s677 = sphi 0, %s676
    %s691 = sphi 0, %s677
    %s695 = sphi 0, %s695
    %s697 = sphi 0, %s695
    %s698 = sphi 0, %s697
    %s712 = sphi 0, %s698
    %s716 = sphi 0, %s716
    %s718 = sphi 0, %s716
    %s719 = sphi 0, %s718
    %s733 = sphi 0, %s719
    %s737 = sphi 0, %s737
    %s739 = sphi 0, %s737
    %s740 = sphi 0, %s739
    %s754 = sphi 0, %s740
    %s758 = sphi 0, %s758
    %s760 = sphi 0, %s758
    %s761 = sphi 0, %s760
    %s775 = sphi 0, %s761
    %s779 = sphi 0, %s779
    %s781 = sphi 0, %s779
    %s782 = sphi 0, %s781
    %s796 = sphi 0, %s782
    %s800 = sphi 0, %s800
    %s802 = sphi 0, %s800
    %s803 = sphi 0, %s802
    %s817 = sphi 0, %s803
    %s821 = sphi 0, %s821
    %s823 = sphi 0, %s821
    %s824 = sphi 0, %s823
    %s838 = sphi 0, %s824
    %s842 = sphi 0, %s842
    %s844 = sphi 0, %s842
    %s845 = sphi 0, %s844
    %s859 = sphi 0, %s845
    %s863 = sphi 0, %s863
    %s865 = sphi 0, %s863
    %s866 = sphi 0, %s865
    %s880 = sphi 0, %s866
    %s884 = sphi 0, %s884
    %s886 = sphi 0, %s884
    %s887 = sphi 0, %s886
    %s901 = sphi 0, %s887
    %s905 = sphi 0, %s905
    %s907 = sphi 0, %s905
    %s908 = sphi 0, %s907
    %s922 = sphi 0, %s908
    %s926 = sphi 0, %s926
    %s928 = sphi 0, %s926
    %s929 = sphi 0, %s928
    %s943 = sphi 0, %s929
    %s949 = sphi 0, %s951
    %s952 = sphi 0, %s949
    %s953 = sphi 0, %s952
    %s969 = sphi 0, %s953
  $region4: #{proximal_forward.3} parent=0 // loop_header_branch
    %92 = sbr.rel (%p90) target = $region8
  $region5: #{proximal_forward.3} parent=0 // loop_body
    %s94 = ssub.s32 %s89, 1
    %s95 = ssub.s32 %s89, 2
    %s96 = sadd.s32 %s89, 1
    %s97 = ssub.s32 %s89, %s96
    %p98 = scmp.eq.s32.totalorder %s97, 0
    %s100 = sadd.s32 %s99, 1
    %s101 = scalar_select %p98, %s99, %s100
    %p104 = pneg %p98
    %p105 = scmp.eq.s32.totalorder %s89, 1
    %p106 = por %p104, %p105
    %p107 = scmp.ne.s32.totalorder %s99, %s102
    %p108 = scmp.eq.s32.totalorder %s89, 0
    %p109 = por %p107, %p108
    %p110 = scmp.ne.s32.totalorder %s99, %s102
    %p111 = scmp.eq.s32.totalorder %s94, 1
    %p112 = por %p110, %p111
    %p113 = scmp.ne.s32.totalorder %s102, %s103
    %p114 = scmp.eq.s32.totalorder %s94, 0
    %p115 = por %p113, %p114
    %p116 = scmp.ne.s32.totalorder %s102, %s103
    %p117 = scmp.eq.s32.totalorder %s95, 1
    %p118 = por %p116, %p117
    %p120 = scmp.ne.s32.totalorder %s103, %s119
    %p121 = scmp.eq.s32.totalorder %s95, 0
    %p122 = por %p120, %p121
    %s123 = ssub.s32 %s89, %s96
    %p124 = scmp.eq.s32.totalorder %s123, 0
    %s126 = sadd.s32 %s125, 1
    %s127 = scalar_select %p124, %s125, %s126
    %p130 = pneg %p124
    %p131 = scmp.eq.s32.totalorder %s89, 1
    %p132 = por %p130, %p131
    %p133 = scmp.ne.s32.totalorder %s125, %s128
    %p134 = scmp.eq.s32.totalorder %s89, 0
    %p135 = por %p133, %p134
    %p136 = scmp.ne.s32.totalorder %s125, %s128
    %p137 = scmp.eq.s32.totalorder %s94, 1
    %p138 = por %p136, %p137
    %p139 = scmp.ne.s32.totalorder %s128, %s129
    %p140 = scmp.eq.s32.totalorder %s94, 0
    %p141 = por %p139, %p140
    %p142 = scmp.ne.s32.totalorder %s128, %s129
    %p143 = scmp.eq.s32.totalorder %s95, 1
    %p144 = por %p142, %p143
    %p146 = scmp.ne.s32.totalorder %s129, %s145
    %p147 = scmp.eq.s32.totalorder %s95, 0
    %p148 = por %p146, %p147
    %s150 = sadd.s32 %s149, 1
    %p153 = scmp.eq.s32.totalorder %s89, 1
    %p154 = scmp.ne.s32.totalorder %s149, %s151
    %p155 = scmp.eq.s32.totalorder %s89, 0
    %p156 = por %p154, %p155
    %p157 = scmp.ne.s32.totalorder %s149, %s151
    %p158 = scmp.eq.s32.totalorder %s94, 1
    %p159 = por %p157, %p158
    %p160 = scmp.ne.s32.totalorder %s151, %s152
    %p161 = scmp.eq.s32.totalorder %s94, 0
    %p162 = por %p160, %p161
    %p163 = scmp.ne.s32.totalorder %s151, %s152
    %p164 = scmp.eq.s32.totalorder %s95, 1
    %p165 = por %p163, %p164
    %p167 = scmp.ne.s32.totalorder %s152, %s166
    %p168 = scmp.eq.s32.totalorder %s95, 0
    %p169 = por %p167, %p168
    %s171 = sadd.s32 %s170, 1
    %p174 = scmp.eq.s32.totalorder %s89, 1
    %p175 = scmp.ne.s32.totalorder %s170, %s172
    %p176 = scmp.eq.s32.totalorder %s89, 0
    %p177 = por %p175, %p176
    %p178 = scmp.ne.s32.totalorder %s170, %s172
    %p179 = scmp.eq.s32.totalorder %s94, 1
    %p180 = por %p178, %p179
    %p181 = scmp.ne.s32.totalorder %s172, %s173
    %p182 = scmp.eq.s32.totalorder %s94, 0
    %p183 = por %p181, %p182
    %p184 = scmp.ne.s32.totalorder %s172, %s173
    %p185 = scmp.eq.s32.totalorder %s95, 1
    %p186 = por %p184, %p185
    %p188 = scmp.ne.s32.totalorder %s173, %s187
    %p189 = scmp.eq.s32.totalorder %s95, 0
    %p190 = por %p188, %p189
    %s192 = sadd.s32 %s191, 1
    %p195 = scmp.eq.s32.totalorder %s89, 1
    %p196 = scmp.ne.s32.totalorder %s191, %s193
    %p197 = scmp.eq.s32.totalorder %s89, 0
    %p198 = por %p196, %p197
    %p199 = scmp.ne.s32.totalorder %s191, %s193
    %p200 = scmp.eq.s32.totalorder %s94, 1
    %p201 = por %p199, %p200
    %p202 = scmp.ne.s32.totalorder %s193, %s194
    %p203 = scmp.eq.s32.totalorder %s94, 0
    %p204 = por %p202, %p203
    %p205 = scmp.ne.s32.totalorder %s193, %s194
    %p206 = scmp.eq.s32.totalorder %s95, 1
    %p207 = por %p205, %p206
    %p209 = scmp.ne.s32.totalorder %s194, %s208
    %p210 = scmp.eq.s32.totalorder %s95, 0
    %p211 = por %p209, %p210
    %s213 = sadd.s32 %s212, 1
    %p216 = scmp.eq.s32.totalorder %s89, 1
    %p217 = scmp.ne.s32.totalorder %s212, %s214
    %p218 = scmp.eq.s32.totalorder %s89, 0
    %p219 = por %p217, %p218
    %p220 = scmp.ne.s32.totalorder %s212, %s214
    %p221 = scmp.eq.s32.totalorder %s94, 1
    %p222 = por %p220, %p221
    %p223 = scmp.ne.s32.totalorder %s214, %s215
    %p224 = scmp.eq.s32.totalorder %s94, 0
    %p225 = por %p223, %p224
    %p226 = scmp.ne.s32.totalorder %s214, %s215
    %p227 = scmp.eq.s32.totalorder %s95, 1
    %p228 = por %p226, %p227
    %p230 = scmp.ne.s32.totalorder %s215, %s229
    %p231 = scmp.eq.s32.totalorder %s95, 0
    %p232 = por %p230, %p231
    %s234 = sadd.s32 %s233, 1
    %p237 = scmp.eq.s32.totalorder %s89, 1
    %p238 = scmp.ne.s32.totalorder %s233, %s235
    %p239 = scmp.eq.s32.totalorder %s89, 0
    %p240 = por %p238, %p239
    %p241 = scmp.ne.s32.totalorder %s233, %s235
    %p242 = scmp.eq.s32.totalorder %s94, 1
    %p243 = por %p241, %p242
    %p244 = scmp.ne.s32.totalorder %s235, %s236
    %p245 = scmp.eq.s32.totalorder %s94, 0
    %p246 = por %p244, %p245
    %p247 = scmp.ne.s32.totalorder %s235, %s236
    %p248 = scmp.eq.s32.totalorder %s95, 1
    %p249 = por %p247, %p248
    %p251 = scmp.ne.s32.totalorder %s236, %s250
    %p252 = scmp.eq.s32.totalorder %s95, 0
    %p253 = por %p251, %p252
    %s255 = sadd.s32 %s254, 1
    %p258 = scmp.eq.s32.totalorder %s89, 1
    %p259 = scmp.ne.s32.totalorder %s254, %s256
    %p260 = scmp.eq.s32.totalorder %s89, 0
    %p261 = por %p259, %p260
    %p262 = scmp.ne.s32.totalorder %s254, %s256
    %p263 = scmp.eq.s32.totalorder %s94, 1
    %p264 = por %p262, %p263
    %p265 = scmp.ne.s32.totalorder %s256, %s257
    %p266 = scmp.eq.s32.totalorder %s94, 0
    %p267 = por %p265, %p266
    %p268 = scmp.ne.s32.totalorder %s256, %s257
    %p269 = scmp.eq.s32.totalorder %s95, 1
    %p270 = por %p268, %p269
    %p272 = scmp.ne.s32.totalorder %s257, %s271
    %p273 = scmp.eq.s32.totalorder %s95, 0
    %p274 = por %p272, %p273
    %s276 = sadd.s32 %s275, 1
    %p279 = scmp.eq.s32.totalorder %s89, 1
    %p280 = scmp.ne.s32.totalorder %s275, %s277
    %p281 = scmp.eq.s32.totalorder %s89, 0
    %p282 = por %p280, %p281
    %p283 = scmp.ne.s32.totalorder %s275, %s277
    %p284 = scmp.eq.s32.totalorder %s94, 1
    %p285 = por %p283, %p284
    %p286 = scmp.ne.s32.totalorder %s277, %s278
    %p287 = scmp.eq.s32.totalorder %s94, 0
    %p288 = por %p286, %p287
    %p289 = scmp.ne.s32.totalorder %s277, %s278
    %p290 = scmp.eq.s32.totalorder %s95, 1
    %p291 = por %p289, %p290
    %p293 = scmp.ne.s32.totalorder %s278, %s292
    %p294 = scmp.eq.s32.totalorder %s95, 0
    %p295 = por %p293, %p294
    %s297 = sadd.s32 %s296, 1
    %p300 = scmp.eq.s32.totalorder %s89, 1
    %p301 = scmp.ne.s32.totalorder %s296, %s298
    %p302 = scmp.eq.s32.totalorder %s89, 0
    %p303 = por %p301, %p302
    %p304 = scmp.ne.s32.totalorder %s296, %s298
    %p305 = scmp.eq.s32.totalorder %s94, 1
    %p306 = por %p304, %p305
    %p307 = scmp.ne.s32.totalorder %s298, %s299
    %p308 = scmp.eq.s32.totalorder %s94, 0
    %p309 = por %p307, %p308
    %p310 = scmp.ne.s32.totalorder %s298, %s299
    %p311 = scmp.eq.s32.totalorder %s95, 1
    %p312 = por %p310, %p311
    %p314 = scmp.ne.s32.totalorder %s299, %s313
    %p315 = scmp.eq.s32.totalorder %s95, 0
    %p316 = por %p314, %p315
    %s318 = sadd.s32 %s317, 1
    %p321 = scmp.eq.s32.totalorder %s89, 1
    %p322 = scmp.ne.s32.totalorder %s317, %s319
    %p323 = scmp.eq.s32.totalorder %s89, 0
    %p324 = por %p322, %p323
    %p325 = scmp.ne.s32.totalorder %s317, %s319
    %p326 = scmp.eq.s32.totalorder %s94, 1
    %p327 = por %p325, %p326
    %p328 = scmp.ne.s32.totalorder %s319, %s320
    %p329 = scmp.eq.s32.totalorder %s94, 0
    %p330 = por %p328, %p329
    %p331 = scmp.ne.s32.totalorder %s319, %s320
    %p332 = scmp.eq.s32.totalorder %s95, 1
    %p333 = por %p331, %p332
    %p335 = scmp.ne.s32.totalorder %s320, %s334
    %p336 = scmp.eq.s32.totalorder %s95, 0
    %p337 = por %p335, %p336
    %s339 = sadd.s32 %s338, 1
    %p342 = scmp.eq.s32.totalorder %s89, 1
    %p343 = scmp.ne.s32.totalorder %s338, %s340
    %p344 = scmp.eq.s32.totalorder %s89, 0
    %p345 = por %p343, %p344
    %p346 = scmp.ne.s32.totalorder %s338, %s340
    %p347 = scmp.eq.s32.totalorder %s94, 1
    %p348 = por %p346, %p347
    %p349 = scmp.ne.s32.totalorder %s340, %s341
    %p350 = scmp.eq.s32.totalorder %s94, 0
    %p351 = por %p349, %p350
    %p352 = scmp.ne.s32.totalorder %s340, %s341
    %p353 = scmp.eq.s32.totalorder %s95, 1
    %p354 = por %p352, %p353
    %p356 = scmp.ne.s32.totalorder %s341, %s355
    %p357 = scmp.eq.s32.totalorder %s95, 0
    %p358 = por %p356, %p357
    %s360 = sadd.s32 %s359, 1
    %p363 = scmp.eq.s32.totalorder %s89, 1
    %p364 = scmp.ne.s32.totalorder %s359, %s361
    %p365 = scmp.eq.s32.totalorder %s89, 0
    %p366 = por %p364, %p365
    %p367 = scmp.ne.s32.totalorder %s359, %s361
    %p368 = scmp.eq.s32.totalorder %s94, 1
    %p369 = por %p367, %p368
    %p370 = scmp.ne.s32.totalorder %s361, %s362
    %p371 = scmp.eq.s32.totalorder %s94, 0
    %p372 = por %p370, %p371
    %p373 = scmp.ne.s32.totalorder %s361, %s362
    %p374 = scmp.eq.s32.totalorder %s95, 1
    %p375 = por %p373, %p374
    %p377 = scmp.ne.s32.totalorder %s362, %s376
    %p378 = scmp.eq.s32.totalorder %s95, 0
    %p379 = por %p377, %p378
    %s381 = sadd.s32 %s380, 1
    %p384 = scmp.eq.s32.totalorder %s89, 1
    %p385 = scmp.ne.s32.totalorder %s380, %s382
    %p386 = scmp.eq.s32.totalorder %s89, 0
    %p387 = por %p385, %p386
    %p388 = scmp.ne.s32.totalorder %s380, %s382
    %p389 = scmp.eq.s32.totalorder %s94, 1
    %p390 = por %p388, %p389
    %p391 = scmp.ne.s32.totalorder %s382, %s383
    %p392 = scmp.eq.s32.totalorder %s94, 0
    %p393 = por %p391, %p392
    %p394 = scmp.ne.s32.totalorder %s382, %s383
    %p395 = scmp.eq.s32.totalorder %s95, 1
    %p396 = por %p394, %p395
    %p398 = scmp.ne.s32.totalorder %s383, %s397
    %p399 = scmp.eq.s32.totalorder %s95, 0
    %p400 = por %p398, %p399
    %s402 = sadd.s32 %s401, 1
    %p405 = scmp.eq.s32.totalorder %s89, 1
    %p406 = scmp.ne.s32.totalorder %s401, %s403
    %p407 = scmp.eq.s32.totalorder %s89, 0
    %p408 = por %p406, %p407
    %p409 = scmp.ne.s32.totalorder %s401, %s403
    %p410 = scmp.eq.s32.totalorder %s94, 1
    %p411 = por %p409, %p410
    %p412 = scmp.ne.s32.totalorder %s403, %s404
    %p413 = scmp.eq.s32.totalorder %s94, 0
    %p414 = por %p412, %p413
    %p415 = scmp.ne.s32.totalorder %s403, %s404
    %p416 = scmp.eq.s32.totalorder %s95, 1
    %p417 = por %p415, %p416
    %p419 = scmp.ne.s32.totalorder %s404, %s418
    %p420 = scmp.eq.s32.totalorder %s95, 0
    %p421 = por %p419, %p420
    %s423 = sadd.s32 %s422, 1
    %p426 = scmp.eq.s32.totalorder %s89, 1
    %p427 = scmp.ne.s32.totalorder %s422, %s424
    %p428 = scmp.eq.s32.totalorder %s89, 0
    %p429 = por %p427, %p428
    %p430 = scmp.ne.s32.totalorder %s422, %s424
    %p431 = scmp.eq.s32.totalorder %s94, 1
    %p432 = por %p430, %p431
    %p433 = scmp.ne.s32.totalorder %s424, %s425
    %p434 = scmp.eq.s32.totalorder %s94, 0
    %p435 = por %p433, %p434
    %p436 = scmp.ne.s32.totalorder %s424, %s425
    %p437 = scmp.eq.s32.totalorder %s95, 1
    %p438 = por %p436, %p437
    %p440 = scmp.ne.s32.totalorder %s425, %s439
    %p441 = scmp.eq.s32.totalorder %s95, 0
    %p442 = por %p440, %p441
    %s444 = sadd.s32 %s443, 1
    %p447 = scmp.eq.s32.totalorder %s89, 1
    %p448 = scmp.ne.s32.totalorder %s443, %s445
    %p449 = scmp.eq.s32.totalorder %s89, 0
    %p450 = por %p448, %p449
    %p451 = scmp.ne.s32.totalorder %s443, %s445
    %p452 = scmp.eq.s32.totalorder %s94, 1
    %p453 = por %p451, %p452
    %p454 = scmp.ne.s32.totalorder %s445, %s446
    %p455 = scmp.eq.s32.totalorder %s94, 0
    %p456 = por %p454, %p455
    %p457 = scmp.ne.s32.totalorder %s445, %s446
    %p458 = scmp.eq.s32.totalorder %s95, 1
    %p459 = por %p457, %p458
    %p461 = scmp.ne.s32.totalorder %s446, %s460
    %p462 = scmp.eq.s32.totalorder %s95, 0
    %p463 = por %p461, %p462
    %s465 = sadd.s32 %s464, 1
    %p468 = scmp.eq.s32.totalorder %s89, 1
    %p469 = scmp.ne.s32.totalorder %s464, %s466
    %p470 = scmp.eq.s32.totalorder %s89, 0
    %p471 = por %p469, %p470
    %p472 = scmp.ne.s32.totalorder %s464, %s466
    %p473 = scmp.eq.s32.totalorder %s94, 1
    %p474 = por %p472, %p473
    %p475 = scmp.ne.s32.totalorder %s466, %s467
    %p476 = scmp.eq.s32.totalorder %s94, 0
    %p477 = por %p475, %p476
    %p478 = scmp.ne.s32.totalorder %s466, %s467
    %p479 = scmp.eq.s32.totalorder %s95, 1
    %p480 = por %p478, %p479
    %p482 = scmp.ne.s32.totalorder %s467, %s481
    %p483 = scmp.eq.s32.totalorder %s95, 0
    %p484 = por %p482, %p483
    %s486 = sadd.s32 %s485, 1
    %p489 = scmp.eq.s32.totalorder %s89, 1
    %p490 = scmp.ne.s32.totalorder %s485, %s487
    %p491 = scmp.eq.s32.totalorder %s89, 0
    %p492 = por %p490, %p491
    %p493 = scmp.ne.s32.totalorder %s485, %s487
    %p494 = scmp.eq.s32.totalorder %s94, 1
    %p495 = por %p493, %p494
    %p496 = scmp.ne.s32.totalorder %s487, %s488
    %p497 = scmp.eq.s32.totalorder %s94, 0
    %p498 = por %p496, %p497
    %p499 = scmp.ne.s32.totalorder %s487, %s488
    %p500 = scmp.eq.s32.totalorder %s95, 1
    %p501 = por %p499, %p500
    %p503 = scmp.ne.s32.totalorder %s488, %s502
    %p504 = scmp.eq.s32.totalorder %s95, 0
    %p505 = por %p503, %p504
    %s507 = sadd.s32 %s506, 1
    %p510 = scmp.eq.s32.totalorder %s89, 1
    %p511 = scmp.ne.s32.totalorder %s506, %s508
    %p512 = scmp.eq.s32.totalorder %s89, 0
    %p513 = por %p511, %p512
    %p514 = scmp.ne.s32.totalorder %s506, %s508
    %p515 = scmp.eq.s32.totalorder %s94, 1
    %p516 = por %p514, %p515
    %p517 = scmp.ne.s32.totalorder %s508, %s509
    %p518 = scmp.eq.s32.totalorder %s94, 0
    %p519 = por %p517, %p518
    %p520 = scmp.ne.s32.totalorder %s508, %s509
    %p521 = scmp.eq.s32.totalorder %s95, 1
    %p522 = por %p520, %p521
    %p524 = scmp.ne.s32.totalorder %s509, %s523
    %p525 = scmp.eq.s32.totalorder %s95, 0
    %p526 = por %p524, %p525
    %s528 = sadd.s32 %s527, 1
    %p531 = scmp.eq.s32.totalorder %s89, 1
    %p532 = scmp.ne.s32.totalorder %s527, %s529
    %p533 = scmp.eq.s32.totalorder %s89, 0
    %p534 = por %p532, %p533
    %p535 = scmp.ne.s32.totalorder %s527, %s529
    %p536 = scmp.eq.s32.totalorder %s94, 1
    %p537 = por %p535, %p536
    %p538 = scmp.ne.s32.totalorder %s529, %s530
    %p539 = scmp.eq.s32.totalorder %s94, 0
    %p540 = por %p538, %p539
    %p541 = scmp.ne.s32.totalorder %s529, %s530
    %p542 = scmp.eq.s32.totalorder %s95, 1
    %p543 = por %p541, %p542
    %p545 = scmp.ne.s32.totalorder %s530, %s544
    %p546 = scmp.eq.s32.totalorder %s95, 0
    %p547 = por %p545, %p546
    %s549 = sadd.s32 %s548, 1
    %p552 = scmp.eq.s32.totalorder %s89, 1
    %p553 = scmp.ne.s32.totalorder %s548, %s550
    %p554 = scmp.eq.s32.totalorder %s89, 0
    %p555 = por %p553, %p554
    %p556 = scmp.ne.s32.totalorder %s548, %s550
    %p557 = scmp.eq.s32.totalorder %s94, 1
    %p558 = por %p556, %p557
    %p559 = scmp.ne.s32.totalorder %s550, %s551
    %p560 = scmp.eq.s32.totalorder %s94, 0
    %p561 = por %p559, %p560
    %p562 = scmp.ne.s32.totalorder %s550, %s551
    %p563 = scmp.eq.s32.totalorder %s95, 1
    %p564 = por %p562, %p563
    %p566 = scmp.ne.s32.totalorder %s551, %s565
    %p567 = scmp.eq.s32.totalorder %s95, 0
    %p568 = por %p566, %p567
    %s570 = sadd.s32 %s569, 1
    %p573 = scmp.eq.s32.totalorder %s89, 1
    %p574 = scmp.ne.s32.totalorder %s569, %s571
    %p575 = scmp.eq.s32.totalorder %s89, 0
    %p576 = por %p574, %p575
    %p577 = scmp.ne.s32.totalorder %s569, %s571
    %p578 = scmp.eq.s32.totalorder %s94, 1
    %p579 = por %p577, %p578
    %p580 = scmp.ne.s32.totalorder %s571, %s572
    %p581 = scmp.eq.s32.totalorder %s94, 0
    %p582 = por %p580, %p581
    %p583 = scmp.ne.s32.totalorder %s571, %s572
    %p584 = scmp.eq.s32.totalorder %s95, 1
    %p585 = por %p583, %p584
    %p587 = scmp.ne.s32.totalorder %s572, %s586
    %p588 = scmp.eq.s32.totalorder %s95, 0
    %p589 = por %p587, %p588
    %s591 = sadd.s32 %s590, 1
    %p594 = scmp.eq.s32.totalorder %s89, 1
    %p595 = scmp.ne.s32.totalorder %s590, %s592
    %p596 = scmp.eq.s32.totalorder %s89, 0
    %p597 = por %p595, %p596
    %p598 = scmp.ne.s32.totalorder %s590, %s592
    %p599 = scmp.eq.s32.totalorder %s94, 1
    %p600 = por %p598, %p599
    %p601 = scmp.ne.s32.totalorder %s592, %s593
    %p602 = scmp.eq.s32.totalorder %s94, 0
    %p603 = por %p601, %p602
    %p604 = scmp.ne.s32.totalorder %s592, %s593
    %p605 = scmp.eq.s32.totalorder %s95, 1
    %p606 = por %p604, %p605
    %p608 = scmp.ne.s32.totalorder %s593, %s607
    %p609 = scmp.eq.s32.totalorder %s95, 0
    %p610 = por %p608, %p609
    %s612 = sadd.s32 %s611, 1
    %p615 = scmp.eq.s32.totalorder %s89, 1
    %p616 = scmp.ne.s32.totalorder %s611, %s613
    %p617 = scmp.eq.s32.totalorder %s89, 0
    %p618 = por %p616, %p617
    %p619 = scmp.ne.s32.totalorder %s611, %s613
    %p620 = scmp.eq.s32.totalorder %s94, 1
    %p621 = por %p619, %p620
    %p622 = scmp.ne.s32.totalorder %s613, %s614
    %p623 = scmp.eq.s32.totalorder %s94, 0
    %p624 = por %p622, %p623
    %p625 = scmp.ne.s32.totalorder %s613, %s614
    %p626 = scmp.eq.s32.totalorder %s95, 1
    %p627 = por %p625, %p626
    %p629 = scmp.ne.s32.totalorder %s614, %s628
    %p630 = scmp.eq.s32.totalorder %s95, 0
    %p631 = por %p629, %p630
    %s633 = sadd.s32 %s632, 1
    %p636 = scmp.eq.s32.totalorder %s89, 1
    %p637 = scmp.ne.s32.totalorder %s632, %s634
    %p638 = scmp.eq.s32.totalorder %s89, 0
    %p639 = por %p637, %p638
    %p640 = scmp.ne.s32.totalorder %s632, %s634
    %p641 = scmp.eq.s32.totalorder %s94, 1
    %p642 = por %p640, %p641
    %p643 = scmp.ne.s32.totalorder %s634, %s635
    %p644 = scmp.eq.s32.totalorder %s94, 0
    %p645 = por %p643, %p644
    %p646 = scmp.ne.s32.totalorder %s634, %s635
    %p647 = scmp.eq.s32.totalorder %s95, 1
    %p648 = por %p646, %p647
    %p650 = scmp.ne.s32.totalorder %s635, %s649
    %p651 = scmp.eq.s32.totalorder %s95, 0
    %p652 = por %p650, %p651
    %s654 = sadd.s32 %s653, 1
    %p657 = scmp.eq.s32.totalorder %s89, 1
    %p658 = scmp.ne.s32.totalorder %s653, %s655
    %p659 = scmp.eq.s32.totalorder %s89, 0
    %p660 = por %p658, %p659
    %p661 = scmp.ne.s32.totalorder %s653, %s655
    %p662 = scmp.eq.s32.totalorder %s94, 1
    %p663 = por %p661, %p662
    %p664 = scmp.ne.s32.totalorder %s655, %s656
    %p665 = scmp.eq.s32.totalorder %s94, 0
    %p666 = por %p664, %p665
    %p667 = scmp.ne.s32.totalorder %s655, %s656
    %p668 = scmp.eq.s32.totalorder %s95, 1
    %p669 = por %p667, %p668
    %p671 = scmp.ne.s32.totalorder %s656, %s670
    %p672 = scmp.eq.s32.totalorder %s95, 0
    %p673 = por %p671, %p672
    %s675 = sadd.s32 %s674, 1
    %p678 = scmp.eq.s32.totalorder %s89, 1
    %p679 = scmp.ne.s32.totalorder %s674, %s676
    %p680 = scmp.eq.s32.totalorder %s89, 0
    %p681 = por %p679, %p680
    %p682 = scmp.ne.s32.totalorder %s674, %s676
    %p683 = scmp.eq.s32.totalorder %s94, 1
    %p684 = por %p682, %p683
    %p685 = scmp.ne.s32.totalorder %s676, %s677
    %p686 = scmp.eq.s32.totalorder %s94, 0
    %p687 = por %p685, %p686
    %p688 = scmp.ne.s32.totalorder %s676, %s677
    %p689 = scmp.eq.s32.totalorder %s95, 1
    %p690 = por %p688, %p689
    %p692 = scmp.ne.s32.totalorder %s677, %s691
    %p693 = scmp.eq.s32.totalorder %s95, 0
    %p694 = por %p692, %p693
    %s696 = sadd.s32 %s695, 1
    %p699 = scmp.eq.s32.totalorder %s89, 1
    %p700 = scmp.ne.s32.totalorder %s695, %s697
    %p701 = scmp.eq.s32.totalorder %s89, 0
    %p702 = por %p700, %p701
    %p703 = scmp.ne.s32.totalorder %s695, %s697
    %p704 = scmp.eq.s32.totalorder %s94, 1
    %p705 = por %p703, %p704
    %p706 = scmp.ne.s32.totalorder %s697, %s698
    %p707 = scmp.eq.s32.totalorder %s94, 0
    %p708 = por %p706, %p707
    %p709 = scmp.ne.s32.totalorder %s697, %s698
    %p710 = scmp.eq.s32.totalorder %s95, 1
    %p711 = por %p709, %p710
    %p713 = scmp.ne.s32.totalorder %s698, %s712
    %p714 = scmp.eq.s32.totalorder %s95, 0
    %p715 = por %p713, %p714
    %s717 = sadd.s32 %s716, 1
    %p720 = scmp.eq.s32.totalorder %s89, 1
    %p721 = scmp.ne.s32.totalorder %s716, %s718
    %p722 = scmp.eq.s32.totalorder %s89, 0
    %p723 = por %p721, %p722
    %p724 = scmp.ne.s32.totalorder %s716, %s718
    %p725 = scmp.eq.s32.totalorder %s94, 1
    %p726 = por %p724, %p725
    %p727 = scmp.ne.s32.totalorder %s718, %s719
    %p728 = scmp.eq.s32.totalorder %s94, 0
    %p729 = por %p727, %p728
    %p730 = scmp.ne.s32.totalorder %s718, %s719
    %p731 = scmp.eq.s32.totalorder %s95, 1
    %p732 = por %p730, %p731
    %p734 = scmp.ne.s32.totalorder %s719, %s733
    %p735 = scmp.eq.s32.totalorder %s95, 0
    %p736 = por %p734, %p735
    %s738 = sadd.s32 %s737, 1
    %p741 = scmp.eq.s32.totalorder %s89, 1
    %p742 = scmp.ne.s32.totalorder %s737, %s739
    %p743 = scmp.eq.s32.totalorder %s89, 0
    %p744 = por %p742, %p743
    %p745 = scmp.ne.s32.totalorder %s737, %s739
    %p746 = scmp.eq.s32.totalorder %s94, 1
    %p747 = por %p745, %p746
    %p748 = scmp.ne.s32.totalorder %s739, %s740
    %p749 = scmp.eq.s32.totalorder %s94, 0
    %p750 = por %p748, %p749
    %p751 = scmp.ne.s32.totalorder %s739, %s740
    %p752 = scmp.eq.s32.totalorder %s95, 1
    %p753 = por %p751, %p752
    %p755 = scmp.ne.s32.totalorder %s740, %s754
    %p756 = scmp.eq.s32.totalorder %s95, 0
    %p757 = por %p755, %p756
    %s759 = sadd.s32 %s758, 1
    %p762 = scmp.eq.s32.totalorder %s89, 1
    %p763 = scmp.ne.s32.totalorder %s758, %s760
    %p764 = scmp.eq.s32.totalorder %s89, 0
    %p765 = por %p763, %p764
    %p766 = scmp.ne.s32.totalorder %s758, %s760
    %p767 = scmp.eq.s32.totalorder %s94, 1
    %p768 = por %p766, %p767
    %p769 = scmp.ne.s32.totalorder %s760, %s761
    %p770 = scmp.eq.s32.totalorder %s94, 0
    %p771 = por %p769, %p770
    %p772 = scmp.ne.s32.totalorder %s760, %s761
    %p773 = scmp.eq.s32.totalorder %s95, 1
    %p774 = por %p772, %p773
    %p776 = scmp.ne.s32.totalorder %s761, %s775
    %p777 = scmp.eq.s32.totalorder %s95, 0
    %p778 = por %p776, %p777
    %s780 = sadd.s32 %s779, 1
    %p783 = scmp.eq.s32.totalorder %s89, 1
    %p784 = scmp.ne.s32.totalorder %s779, %s781
    %p785 = scmp.eq.s32.totalorder %s89, 0
    %p786 = por %p784, %p785
    %p787 = scmp.ne.s32.totalorder %s779, %s781
    %p788 = scmp.eq.s32.totalorder %s94, 1
    %p789 = por %p787, %p788
    %p790 = scmp.ne.s32.totalorder %s781, %s782
    %p791 = scmp.eq.s32.totalorder %s94, 0
    %p792 = por %p790, %p791
    %p793 = scmp.ne.s32.totalorder %s781, %s782
    %p794 = scmp.eq.s32.totalorder %s95, 1
    %p795 = por %p793, %p794
    %p797 = scmp.ne.s32.totalorder %s782, %s796
    %p798 = scmp.eq.s32.totalorder %s95, 0
    %p799 = por %p797, %p798
    %s801 = sadd.s32 %s800, 1
    %p804 = scmp.eq.s32.totalorder %s89, 1
    %p805 = scmp.ne.s32.totalorder %s800, %s802
    %p806 = scmp.eq.s32.totalorder %s89, 0
    %p807 = por %p805, %p806
    %p808 = scmp.ne.s32.totalorder %s800, %s802
    %p809 = scmp.eq.s32.totalorder %s94, 1
    %p810 = por %p808, %p809
    %p811 = scmp.ne.s32.totalorder %s802, %s803
    %p812 = scmp.eq.s32.totalorder %s94, 0
    %p813 = por %p811, %p812
    %p814 = scmp.ne.s32.totalorder %s802, %s803
    %p815 = scmp.eq.s32.totalorder %s95, 1
    %p816 = por %p814, %p815
    %p818 = scmp.ne.s32.totalorder %s803, %s817
    %p819 = scmp.eq.s32.totalorder %s95, 0
    %p820 = por %p818, %p819
    %s822 = sadd.s32 %s821, 1
    %p825 = scmp.eq.s32.totalorder %s89, 1
    %p826 = scmp.ne.s32.totalorder %s821, %s823
    %p827 = scmp.eq.s32.totalorder %s89, 0
    %p828 = por %p826, %p827
    %p829 = scmp.ne.s32.totalorder %s821, %s823
    %p830 = scmp.eq.s32.totalorder %s94, 1
    %p831 = por %p829, %p830
    %p832 = scmp.ne.s32.totalorder %s823, %s824
    %p833 = scmp.eq.s32.totalorder %s94, 0
    %p834 = por %p832, %p833
    %p835 = scmp.ne.s32.totalorder %s823, %s824
    %p836 = scmp.eq.s32.totalorder %s95, 1
    %p837 = por %p835, %p836
    %p839 = scmp.ne.s32.totalorder %s824, %s838
    %p840 = scmp.eq.s32.totalorder %s95, 0
    %p841 = por %p839, %p840
    %s843 = sadd.s32 %s842, 1
    %p846 = scmp.eq.s32.totalorder %s89, 1
    %p847 = scmp.ne.s32.totalorder %s842, %s844
    %p848 = scmp.eq.s32.totalorder %s89, 0
    %p849 = por %p847, %p848
    %p850 = scmp.ne.s32.totalorder %s842, %s844
    %p851 = scmp.eq.s32.totalorder %s94, 1
    %p852 = por %p850, %p851
    %p853 = scmp.ne.s32.totalorder %s844, %s845
    %p854 = scmp.eq.s32.totalorder %s94, 0
    %p855 = por %p853, %p854
    %p856 = scmp.ne.s32.totalorder %s844, %s845
    %p857 = scmp.eq.s32.totalorder %s95, 1
    %p858 = por %p856, %p857
    %p860 = scmp.ne.s32.totalorder %s845, %s859
    %p861 = scmp.eq.s32.totalorder %s95, 0
    %p862 = por %p860, %p861
    %s864 = sadd.s32 %s863, 1
    %p867 = scmp.eq.s32.totalorder %s89, 1
    %p868 = scmp.ne.s32.totalorder %s863, %s865
    %p869 = scmp.eq.s32.totalorder %s89, 0
    %p870 = por %p868, %p869
    %p871 = scmp.ne.s32.totalorder %s863, %s865
    %p872 = scmp.eq.s32.totalorder %s94, 1
    %p873 = por %p871, %p872
    %p874 = scmp.ne.s32.totalorder %s865, %s866
    %p875 = scmp.eq.s32.totalorder %s94, 0
    %p876 = por %p874, %p875
    %p877 = scmp.ne.s32.totalorder %s865, %s866
    %p878 = scmp.eq.s32.totalorder %s95, 1
    %p879 = por %p877, %p878
    %p881 = scmp.ne.s32.totalorder %s866, %s880
    %p882 = scmp.eq.s32.totalorder %s95, 0
    %p883 = por %p881, %p882
    %s885 = sadd.s32 %s884, 1
    %p888 = scmp.eq.s32.totalorder %s89, 1
    %p889 = scmp.ne.s32.totalorder %s884, %s886
    %p890 = scmp.eq.s32.totalorder %s89, 0
    %p891 = por %p889, %p890
    %p892 = scmp.ne.s32.totalorder %s884, %s886
    %p893 = scmp.eq.s32.totalorder %s94, 1
    %p894 = por %p892, %p893
    %p895 = scmp.ne.s32.totalorder %s886, %s887
    %p896 = scmp.eq.s32.totalorder %s94, 0
    %p897 = por %p895, %p896
    %p898 = scmp.ne.s32.totalorder %s886, %s887
    %p899 = scmp.eq.s32.totalorder %s95, 1
    %p900 = por %p898, %p899
    %p902 = scmp.ne.s32.totalorder %s887, %s901
    %p903 = scmp.eq.s32.totalorder %s95, 0
    %p904 = por %p902, %p903
    %s906 = sadd.s32 %s905, 1
    %p909 = scmp.eq.s32.totalorder %s89, 1
    %p910 = scmp.ne.s32.totalorder %s905, %s907
    %p911 = scmp.eq.s32.totalorder %s89, 0
    %p912 = por %p910, %p911
    %p913 = scmp.ne.s32.totalorder %s905, %s907
    %p914 = scmp.eq.s32.totalorder %s94, 1
    %p915 = por %p913, %p914
    %p916 = scmp.ne.s32.totalorder %s907, %s908
    %p917 = scmp.eq.s32.totalorder %s94, 0
    %p918 = por %p916, %p917
    %p919 = scmp.ne.s32.totalorder %s907, %s908
    %p920 = scmp.eq.s32.totalorder %s95, 1
    %p921 = por %p919, %p920
    %p923 = scmp.ne.s32.totalorder %s908, %s922
    %p924 = scmp.eq.s32.totalorder %s95, 0
    %p925 = por %p923, %p924
    %s927 = sadd.s32 %s926, 1
    %p930 = scmp.eq.s32.totalorder %s89, 1
    %p931 = scmp.ne.s32.totalorder %s926, %s928
    %p932 = scmp.eq.s32.totalorder %s89, 0
    %p933 = por %p931, %p932
    %p934 = scmp.ne.s32.totalorder %s926, %s928
    %p935 = scmp.eq.s32.totalorder %s94, 1
    %p936 = por %p934, %p935
    %p937 = scmp.ne.s32.totalorder %s928, %s929
    %p938 = scmp.eq.s32.totalorder %s94, 0
    %p939 = por %p937, %p938
    %p940 = scmp.ne.s32.totalorder %s928, %s929
    %p941 = scmp.eq.s32.totalorder %s95, 1
    %p942 = por %p940, %p941
    %p944 = scmp.ne.s32.totalorder %s929, %s943
    %p945 = scmp.eq.s32.totalorder %s95, 0
    %p946 = por %p944, %p945
    %s947 = ssub.s32 %s89, %s96
    %p948 = scmp.eq.s32.totalorder %s947, 0
    %s950 = sadd.s32 %s949, 1
    %s951 = scalar_select %p948, %s949, %s950
    %p954 = pneg %p948
    %p955 = scmp.eq.s32.totalorder %s89, 1
    %p956 = por %p954, %p955
    %p957 = scmp.ne.s32.totalorder %s949, %s952
    %p958 = scmp.eq.s32.totalorder %s89, 0
    %p959 = por %p957, %p958
    %p960 = scmp.ne.s32.totalorder %s949, %s952
    %p961 = scmp.eq.s32.totalorder %s94, 1
    %p962 = por %p960, %p961
    %p963 = scmp.ne.s32.totalorder %s952, %s953
    %p964 = scmp.eq.s32.totalorder %s94, 0
    %p965 = por %p963, %p964
    %p966 = scmp.ne.s32.totalorder %s952, %s953
    %p967 = scmp.eq.s32.totalorder %s95, 1
    %p968 = por %p966, %p967
    %p970 = scmp.ne.s32.totalorder %s953, %s969
    %p971 = scmp.eq.s32.totalorder %s95, 0
    %p972 = por %p970, %p971
    %p973 = scmp.le.s32.totalorder 1, %s89
    %p974 = scmp.lt.s32.totalorder %s89, 3
    %p975 = pnand %p973, %p974
    %p976 = pneg %p975
    // Predicated region
    $region9: #{proximal_forward.3} parent=5 // pred_check
      _
    $region10: #{proximal_forward.3} parent=5 // pred_check_branch
      %978 = sbr.rel (%p975) target = $region12
    $region11: #{proximal_forward.3} parent=5 // pred_region
      %s979 = ssub.s32 %s89, 1
      // Predicated region
      $region13: #{proximal_forward.3} parent=11 // pred_check
        %p980 = pneg %p162
      $region14: #{proximal_forward.3} parent=11 // pred_check_branch
        %982 = sbr.rel (%p980) target = $region16
      $region15: #{proximal_forward.3} parent=11 // pred_region
        _
      $region16: #{proximal_forward.3} parent=11 // pred_fallthru
        _
      // Predicated region
      $region17: #{proximal_forward.3} parent=11 // pred_check
        %p983 = pneg %p183
      $region18: #{proximal_forward.3} parent=11 // pred_check_branch
        %985 = sbr.rel (%p983) target = $region20
      $region19: #{proximal_forward.3} parent=11 // pred_region
        _
      $region20: #{proximal_forward.3} parent=11 // pred_fallthru
        _
      // Predicated region
      $region21: #{proximal_forward.3} parent=11 // pred_check
        %p986 = pneg %p204
      $region22: #{proximal_forward.3} parent=11 // pred_check_branch
        %988 = sbr.rel (%p986) target = $region24
      $region23: #{proximal_forward.3} parent=11 // pred_region
        _
      $region24: #{proximal_forward.3} parent=11 // pred_fallthru
        _
      // Predicated region
      $region25: #{proximal_forward.3} parent=11 // pred_check
        %p989 = pneg %p225
      $region26: #{proximal_forward.3} parent=11 // pred_check_branch
        %991 = sbr.rel (%p989) target = $region28
      $region27: #{proximal_forward.3} parent=11 // pred_region
        _
      $region28: #{proximal_forward.3} parent=11 // pred_fallthru
        _
      // Predicated region
      $region29: #{proximal_forward.3} parent=11 // pred_check
        %p992 = pneg %p246
      $region30: #{proximal_forward.3} parent=11 // pred_check_branch
        %994 = sbr.rel (%p992) target = $region32
      $region31: #{proximal_forward.3} parent=11 // pred_region
        _
      $region32: #{proximal_forward.3} parent=11 // pred_fallthru
        _
      // Predicated region
      $region33: #{proximal_forward.3} parent=11 // pred_check
        %p995 = pneg %p267
      $region34: #{proximal_forward.3} parent=11 // pred_check_branch
        %997 = sbr.rel (%p995) target = $region36
      $region35: #{proximal_forward.3} parent=11 // pred_region
        _
      $region36: #{proximal_forward.3} parent=11 // pred_fallthru
        _
      // Predicated region
      $region37: #{proximal_forward.3} parent=11 // pred_check
        %p998 = pneg %p288
      $region38: #{proximal_forward.3} parent=11 // pred_check_branch
        %1000 = sbr.rel (%p998) target = $region40
      $region39: #{proximal_forward.3} parent=11 // pred_region
        _
      $region40: #{proximal_forward.3} parent=11 // pred_fallthru
        _
      // Predicated region
      $region41: #{proximal_forward.3} parent=11 // pred_check
        %p1001 = pneg %p309
      $region42: #{proximal_forward.3} parent=11 // pred_check_branch
        %1003 = sbr.rel (%p1001) target = $region44
      $region43: #{proximal_forward.3} parent=11 // pred_region
        _
      $region44: #{proximal_forward.3} parent=11 // pred_fallthru
        _
      // Predicated region
      $region45: #{proximal_forward.3} parent=11 // pred_check
        %p1004 = pneg %p330
      $region46: #{proximal_forward.3} parent=11 // pred_check_branch
        %1006 = sbr.rel (%p1004) target = $region48
      $region47: #{proximal_forward.3} parent=11 // pred_region
        _
      $region48: #{proximal_forward.3} parent=11 // pred_fallthru
        _
      // Predicated region
      $region49: #{proximal_forward.3} parent=11 // pred_check
        %p1007 = pneg %p351
      $region50: #{proximal_forward.3} parent=11 // pred_check_branch
        %1009 = sbr.rel (%p1007) target = $region52
      $region51: #{proximal_forward.3} parent=11 // pred_region
        _
      $region52: #{proximal_forward.3} parent=11 // pred_fallthru
        _
      // Predicated region
      $region53: #{proximal_forward.3} parent=11 // pred_check
        %p1010 = pneg %p372
      $region54: #{proximal_forward.3} parent=11 // pred_check_branch
        %1012 = sbr.rel (%p1010) target = $region56
      $region55: #{proximal_forward.3} parent=11 // pred_region
        _
      $region56: #{proximal_forward.3} parent=11 // pred_fallthru
        _
      // Predicated region
      $region57: #{proximal_forward.3} parent=11 // pred_check
        %p1013 = pneg %p393
      $region58: #{proximal_forward.3} parent=11 // pred_check_branch
        %1015 = sbr.rel (%p1013) target = $region60
      $region59: #{proximal_forward.3} parent=11 // pred_region
        _
      $region60: #{proximal_forward.3} parent=11 // pred_fallthru
        _
      // Predicated region
      $region61: #{proximal_forward.3} parent=11 // pred_check
        %p1016 = pneg %p414
      $region62: #{proximal_forward.3} parent=11 // pred_check_branch
        %1018 = sbr.rel (%p1016) target = $region64
      $region63: #{proximal_forward.3} parent=11 // pred_region
        _
      $region64: #{proximal_forward.3} parent=11 // pred_fallthru
        _
      // Predicated region
      $region65: #{proximal_forward.3} parent=11 // pred_check
        %p1019 = pneg %p435
      $region66: #{proximal_forward.3} parent=11 // pred_check_branch
        %1021 = sbr.rel (%p1019) target = $region68
      $region67: #{proximal_forward.3} parent=11 // pred_region
        _
      $region68: #{proximal_forward.3} parent=11 // pred_fallthru
        _
      // Predicated region
      $region69: #{proximal_forward.3} parent=11 // pred_check
        %p1022 = pneg %p456
      $region70: #{proximal_forward.3} parent=11 // pred_check_branch
        %1024 = sbr.rel (%p1022) target = $region72
      $region71: #{proximal_forward.3} parent=11 // pred_region
        _
      $region72: #{proximal_forward.3} parent=11 // pred_fallthru
        _
      // Predicated region
      $region73: #{proximal_forward.3} parent=11 // pred_check
        %p1025 = pneg %p477
      $region74: #{proximal_forward.3} parent=11 // pred_check_branch
        %1027 = sbr.rel (%p1025) target = $region76
      $region75: #{proximal_forward.3} parent=11 // pred_region
        _
      $region76: #{proximal_forward.3} parent=11 // pred_fallthru
        _
      // Predicated region
      $region77: #{proximal_forward.3} parent=11 // pred_check
        %p1028 = pneg %p498
      $region78: #{proximal_forward.3} parent=11 // pred_check_branch
        %1030 = sbr.rel (%p1028) target = $region80
      $region79: #{proximal_forward.3} parent=11 // pred_region
        _
      $region80: #{proximal_forward.3} parent=11 // pred_fallthru
        _
      // Predicated region
      $region81: #{proximal_forward.3} parent=11 // pred_check
        %p1031 = pneg %p519
      $region82: #{proximal_forward.3} parent=11 // pred_check_branch
        %1033 = sbr.rel (%p1031) target = $region84
      $region83: #{proximal_forward.3} parent=11 // pred_region
        _
      $region84: #{proximal_forward.3} parent=11 // pred_fallthru
        _
      // Predicated region
      $region85: #{proximal_forward.3} parent=11 // pred_check
        %p1034 = pneg %p540
      $region86: #{proximal_forward.3} parent=11 // pred_check_branch
        %1036 = sbr.rel (%p1034) target = $region88
      $region87: #{proximal_forward.3} parent=11 // pred_region
        _
      $region88: #{proximal_forward.3} parent=11 // pred_fallthru
        _
      // Predicated region
      $region89: #{proximal_forward.3} parent=11 // pred_check
        %p1037 = pneg %p561
      $region90: #{proximal_forward.3} parent=11 // pred_check_branch
        %1039 = sbr.rel (%p1037) target = $region92
      $region91: #{proximal_forward.3} parent=11 // pred_region
        _
      $region92: #{proximal_forward.3} parent=11 // pred_fallthru
        _
      // Predicated region
      $region93: #{proximal_forward.3} parent=11 // pred_check
        %p1040 = pneg %p582
      $region94: #{proximal_forward.3} parent=11 // pred_check_branch
        %1042 = sbr.rel (%p1040) target = $region96
      $region95: #{proximal_forward.3} parent=11 // pred_region
        _
      $region96: #{proximal_forward.3} parent=11 // pred_fallthru
        _
      // Predicated region
      $region97: #{proximal_forward.3} parent=11 // pred_check
        %p1043 = pneg %p603
      $region98: #{proximal_forward.3} parent=11 // pred_check_branch
        %1045 = sbr.rel (%p1043) target = $region100
      $region99: #{proximal_forward.3} parent=11 // pred_region
        _
      $region100: #{proximal_forward.3} parent=11 // pred_fallthru
        _
      // Predicated region
      $region101: #{proximal_forward.3} parent=11 // pred_check
        %p1046 = pneg %p624
      $region102: #{proximal_forward.3} parent=11 // pred_check_branch
        %1048 = sbr.rel (%p1046) target = $region104
      $region103: #{proximal_forward.3} parent=11 // pred_region
        _
      $region104: #{proximal_forward.3} parent=11 // pred_fallthru
        _
      // Predicated region
      $region105: #{proximal_forward.3} parent=11 // pred_check
        %p1049 = pneg %p645
      $region106: #{proximal_forward.3} parent=11 // pred_check_branch
        %1051 = sbr.rel (%p1049) target = $region108
      $region107: #{proximal_forward.3} parent=11 // pred_region
        _
      $region108: #{proximal_forward.3} parent=11 // pred_fallthru
        _
      // Predicated region
      $region109: #{proximal_forward.3} parent=11 // pred_check
        %p1052 = pneg %p666
      $region110: #{proximal_forward.3} parent=11 // pred_check_branch
        %1054 = sbr.rel (%p1052) target = $region112
      $region111: #{proximal_forward.3} parent=11 // pred_region
        _
      $region112: #{proximal_forward.3} parent=11 // pred_fallthru
        _
      // Predicated region
      $region113: #{proximal_forward.3} parent=11 // pred_check
        %p1055 = pneg %p687
      $region114: #{proximal_forward.3} parent=11 // pred_check_branch
        %1057 = sbr.rel (%p1055) target = $region116
      $region115: #{proximal_forward.3} parent=11 // pred_region
        _
      $region116: #{proximal_forward.3} parent=11 // pred_fallthru
        _
      // Predicated region
      $region117: #{proximal_forward.3} parent=11 // pred_check
        %p1058 = pneg %p708
      $region118: #{proximal_forward.3} parent=11 // pred_check_branch
        %1060 = sbr.rel (%p1058) target = $region120
      $region119: #{proximal_forward.3} parent=11 // pred_region
        _
      $region120: #{proximal_forward.3} parent=11 // pred_fallthru
        _
      // Predicated region
      $region121: #{proximal_forward.3} parent=11 // pred_check
        %p1061 = pneg %p729
      $region122: #{proximal_forward.3} parent=11 // pred_check_branch
        %1063 = sbr.rel (%p1061) target = $region124
      $region123: #{proximal_forward.3} parent=11 // pred_region
        _
      $region124: #{proximal_forward.3} parent=11 // pred_fallthru
        _
      // Predicated region
      $region125: #{proximal_forward.3} parent=11 // pred_check
        %p1064 = pneg %p750
      $region126: #{proximal_forward.3} parent=11 // pred_check_branch
        %1066 = sbr.rel (%p1064) target = $region128
      $region127: #{proximal_forward.3} parent=11 // pred_region
        _
      $region128: #{proximal_forward.3} parent=11 // pred_fallthru
        _
      // Predicated region
      $region129: #{proximal_forward.3} parent=11 // pred_check
        %p1067 = pneg %p771
      $region130: #{proximal_forward.3} parent=11 // pred_check_branch
        %1069 = sbr.rel (%p1067) target = $region132
      $region131: #{proximal_forward.3} parent=11 // pred_region
        _
      $region132: #{proximal_forward.3} parent=11 // pred_fallthru
        _
      // Predicated region
      $region133: #{proximal_forward.3} parent=11 // pred_check
        %p1070 = pneg %p792
      $region134: #{proximal_forward.3} parent=11 // pred_check_branch
        %1072 = sbr.rel (%p1070) target = $region136
      $region135: #{proximal_forward.3} parent=11 // pred_region
        _
      $region136: #{proximal_forward.3} parent=11 // pred_fallthru
        _
      // Predicated region
      $region137: #{proximal_forward.3} parent=11 // pred_check
        %p1073 = pneg %p813
      $region138: #{proximal_forward.3} parent=11 // pred_check_branch
        %1075 = sbr.rel (%p1073) target = $region140
      $region139: #{proximal_forward.3} parent=11 // pred_region
        _
      $region140: #{proximal_forward.3} parent=11 // pred_fallthru
        _
      // Predicated region
      $region141: #{proximal_forward.3} parent=11 // pred_check
        %p1076 = pneg %p834
      $region142: #{proximal_forward.3} parent=11 // pred_check_branch
        %1078 = sbr.rel (%p1076) target = $region144
      $region143: #{proximal_forward.3} parent=11 // pred_region
        _
      $region144: #{proximal_forward.3} parent=11 // pred_fallthru
        _
      // Predicated region
      $region145: #{proximal_forward.3} parent=11 // pred_check
        %p1079 = pneg %p855
      $region146: #{proximal_forward.3} parent=11 // pred_check_branch
        %1081 = sbr.rel (%p1079) target = $region148
      $region147: #{proximal_forward.3} parent=11 // pred_region
        _
      $region148: #{proximal_forward.3} parent=11 // pred_fallthru
        _
      // Predicated region
      $region149: #{proximal_forward.3} parent=11 // pred_check
        %p1082 = pneg %p876
      $region150: #{proximal_forward.3} parent=11 // pred_check_branch
        %1084 = sbr.rel (%p1082) target = $region152
      $region151: #{proximal_forward.3} parent=11 // pred_region
        _
      $region152: #{proximal_forward.3} parent=11 // pred_fallthru
        _
      // Predicated region
      $region153: #{proximal_forward.3} parent=11 // pred_check
        %p1085 = pneg %p897
      $region154: #{proximal_forward.3} parent=11 // pred_check_branch
        %1087 = sbr.rel (%p1085) target = $region156
      $region155: #{proximal_forward.3} parent=11 // pred_region
        _
      $region156: #{proximal_forward.3} parent=11 // pred_fallthru
        _
      // Predicated region
      $region157: #{proximal_forward.3} parent=11 // pred_check
        %p1088 = pneg %p918
      $region158: #{proximal_forward.3} parent=11 // pred_check_branch
        %1090 = sbr.rel (%p1088) target = $region160
      $region159: #{proximal_forward.3} parent=11 // pred_region
        _
      $region160: #{proximal_forward.3} parent=11 // pred_fallthru
        _
      // Predicated region
      $region161: #{proximal_forward.3} parent=11 // pred_check
        %p1091 = pneg %p939
      $region162: #{proximal_forward.3} parent=11 // pred_check_branch
        %1093 = sbr.rel (%p1091) target = $region164
      $region163: #{proximal_forward.3} parent=11 // pred_region
        _
      $region164: #{proximal_forward.3} parent=11 // pred_fallthru
        _
    $region12: #{proximal_forward.3} parent=5 // pred_fallthru
      _
    %p1094 = scmp.lt.s32.totalorder %s89, 2
    // Predicated region
    $region165: #{proximal_forward.3} parent=5 // pred_check
      %p1095 = pneg %p1094
    $region166: #{proximal_forward.3} parent=5 // pred_check_branch
      %1097 = sbr.rel (%p1095) target = $region168
    $region167: #{proximal_forward.3} parent=5 // pred_region
      // Predicated region
      $region169: #{proximal_forward.3} parent=167 // pred_check
        %p1098 = pneg %p109
      $region170: #{proximal_forward.3} parent=167 // pred_check_branch
        %1100 = sbr.rel (%p1098) target = $region172
      $region171: #{proximal_forward.3} parent=167 // pred_region
        %s1101 = smul.u32 16, %s89
        %p1102 = scmp.lt.s32.totalorder %s1101, 31
        %s1103 = scalar_select %p1102, %s1101, 31
        %s1104 = smul.addr %s1103, 8
        %s1105 = scalar_lea.vmem %s1, %s1104
        %s1106 = smul.u32 16, %s89
      $region172: #{proximal_forward.3} parent=167 // pred_fallthru
        _
      // Predicated region
      $region173: #{proximal_forward.3} parent=167 // pred_check
        %p1107 = pneg %p135
      $region174: #{proximal_forward.3} parent=167 // pred_check_branch
        %1109 = sbr.rel (%p1107) target = $region176
      $region175: #{proximal_forward.3} parent=167 // pred_region
        %s1110 = smul.u32 16, %s89
        %p1111 = scmp.lt.s32.totalorder %s1110, 31
        %s1112 = scalar_select %p1111, %s1110, 31
        %s1113 = smul.addr %s1112, 8
        %s1114 = scalar_lea.vmem %s3, %s1113
        %s1115 = smul.u32 16, %s89
      $region176: #{proximal_forward.3} parent=167 // pred_fallthru
        _
    $region168: #{proximal_forward.3} parent=5 // pred_fallthru
      _
    %p1116 = scmp.le.s32.totalorder 1, %s89
    %p1117 = scmp.lt.s32.totalorder %s89, 3
    %p1118 = pnand %p1116, %p1117
    %p1119 = pneg %p1118
    // Predicated region
    $region177: #{proximal_forward.3} parent=5 // pred_check
      _
    $region178: #{proximal_forward.3} parent=5 // pred_check_branch
      %1121 = sbr.rel (%p1118) target = $region180
    $region179: #{proximal_forward.3} parent=5 // pred_region
      %s1122 = ssub.s32 %s89, 1
      %s1123 = smul.u32 16, %s94
      %p1124 = scmp.lt.s32.totalorder %s1123, 31
      %s1125 = scalar_select %p1124, %s1123, 31
      %s1126 = smul.addr %s1125, 8
      %s1127 = scalar_lea.vmem %s1, %s1126
      %p1128 = pneg %p115
      %p1129 = pneg %p112
      %s1130 = smul.u32 16, %s94
      %p1131 = scmp.lt.s32.totalorder %s1130, 31
      %s1132 = scalar_select %p1131, %s1130, 31
      %s1133 = smul.addr %s1132, 8
      %s1134 = scalar_lea.vmem %s3, %s1133
      %p1135 = pneg %p141
      %p1136 = pneg %p138
      %p1137 = pneg %p162
      %p1138 = pneg %p159
      %p1139 = pneg %p183
      %p1140 = pneg %p180
      %p1141 = pneg %p204
      %p1142 = pneg %p201
      %p1143 = pneg %p225
      %p1144 = pneg %p222
      %p1145 = pneg %p246
      %p1146 = pneg %p243
      %p1147 = pneg %p267
      %p1148 = pneg %p264
      %p1149 = pneg %p288
      %p1150 = pneg %p285
      %p1151 = pneg %p309
      %p1152 = pneg %p306
      %p1153 = pneg %p330
      %p1154 = pneg %p327
      %p1155 = pneg %p351
      %p1156 = pneg %p348
      %p1157 = pneg %p372
      %p1158 = pneg %p369
      %p1159 = pneg %p393
      %p1160 = pneg %p390
      %p1161 = pneg %p414
      %p1162 = pneg %p411
      %p1163 = pneg %p435
      %p1164 = pneg %p432
      %p1165 = pneg %p456
      %p1166 = pneg %p453
      %p1167 = pneg %p477
      %p1168 = pneg %p474
      %p1169 = pneg %p498
      %p1170 = pneg %p495
      %p1171 = pneg %p519
      %p1172 = pneg %p516
      %p1173 = pneg %p540
      %p1174 = pneg %p537
      %p1175 = pneg %p561
      %p1176 = pneg %p558
      %p1177 = pneg %p582
      %p1178 = pneg %p579
      %p1179 = pneg %p603
      %p1180 = pneg %p600
      %p1181 = pneg %p624
      %p1182 = pneg %p621
      %p1183 = pneg %p645
      %p1184 = pneg %p642
      %p1185 = pneg %p666
      %p1186 = pneg %p663
      %p1187 = pneg %p687
      %p1188 = pneg %p684
      %p1189 = pneg %p708
      %p1190 = pneg %p705
      %p1191 = pneg %p729
      %p1192 = pneg %p726
      %p1193 = pneg %p750
      %p1194 = pneg %p747
      %p1195 = pneg %p771
      %p1196 = pneg %p768
      %p1197 = pneg %p792
      %p1198 = pneg %p789
      %p1199 = pneg %p813
      %p1200 = pneg %p810
      %p1201 = pneg %p834
      %p1202 = pneg %p831
      %p1203 = pneg %p855
      %p1204 = pneg %p852
      %p1205 = pneg %p876
      %p1206 = pneg %p873
      %p1207 = pneg %p897
      %p1208 = pneg %p894
      %p1209 = pneg %p918
      %p1210 = pneg %p915
      %p1211 = pneg %p939
      %p1212 = pneg %p936
      %p1213 = pneg %p965
      %p1214 = pneg %p962
      %s1215 = smul.u32 2, %s94
      %p1216 = scmp.lt.s32.totalorder %s1215, 3
      %s1217 = scalar_select %p1216, %s1215, 3
      %s1218 = smul.addr %s1217, 8
      %s1219 = scalar_lea.vmem %s81, %s1218
      %s1220 = smul.u32 16, %s94
      %p1221 = scmp.lt.s32.totalorder %s1220, 31
      %s1222 = scalar_select %p1221, %s1220, 31
      %s1223 = smul.addr %s1222, 8
      %s1224 = scalar_lea.vmem %s1, %s1223
      %s1225 = smul.u32 16, %s94
      %s1226 = smul.u32 16, %s94
      %p1227 = scmp.lt.s32.totalorder %s1226, 31
      %s1228 = scalar_select %p1227, %s1226, 31
      %s1229 = smul.addr %s1228, 8
      %s1230 = scalar_lea.vmem %s3, %s1229
      %s1231 = smul.u32 16, %s94
      %s1232 = smul.u32 2, %s94
      %p1233 = scmp.lt.s32.totalorder %s1232, 3
      %s1234 = scalar_select %p1233, %s1232, 3
      %s1235 = smul.addr %s1234, 8
      %s1236 = scalar_lea.vmem %s81, %s1235
      %s1237 = smul.u32 2, %s94
      %v1239 = vld [vmem:[%s1224] sm:$0xff]
      %v1240 = vld [vmem:[%s1224 + $0x8] sm:$0xff]
      %v1241 = vld [vmem:[%s1224 + $0x10] sm:$0xff]
      %v1242 = vld [vmem:[%s1224 + $0x18] sm:$0xff]
      %v1243 = vld [vmem:[%s1224 + $0x20] sm:$0xff]
      %v1244 = vld [vmem:[%s1224 + $0x28] sm:$0xff]
      %v1245 = vld [vmem:[%s1224 + $0x30] sm:$0xff]
      %v1246 = vld [vmem:[%s1224 + $0x38] sm:$0xff]
      %v1247 = vld [vmem:[%s1224 + $0x40] sm:$0xff]
      %v1248 = vld [vmem:[%s1224 + $0x48] sm:$0xff]
      %v1249 = vld [vmem:[%s1224 + $0x50] sm:$0xff]
      %v1250 = vld [vmem:[%s1224 + $0x58] sm:$0xff]
      %v1251 = vld [vmem:[%s1224 + $0x60] sm:$0xff]
      %v1252 = vld [vmem:[%s1224 + $0x68] sm:$0xff]
      %v1253 = vld [vmem:[%s1224 + $0x70] sm:$0xff]
      %v1254 = vld [vmem:[%s1224 + $0x78] sm:$0xff]
      %v1255 = vpack.c.bf16 %v1240, %v1239
      %v1256 = vpack.c.bf16 %v1242, %v1241
      %v1257 = vpack.c.bf16 %v1244, %v1243
      %v1258 = vpack.c.bf16 %v1246, %v1245
      %v1259 = vpack.c.bf16 %v1248, %v1247
      %v1260 = vpack.c.bf16 %v1250, %v1249
      %v1261 = vpack.c.bf16 %v1252, %v1251
      %v1262 = vpack.c.bf16 %v1254, %v1253
      %v1263 = vld [vmem:[%s5] sm:$0x3]
      %v1264 = vld [vmem:[%s7] sm:$0x1]
      %v1266 = vlaneseq
      %v1267 = vshrl.u32 %v1266, 7
      %v1268 = vsub.s32 0, %v1267
      %v1269 = vrot.slane %v1264, %v1268
      %vm1271 = vcmask 31744
      %v1273 = vsel %vm1271, %v1255, 0
      %v1276 = vsel %vm1271, %v1256, 0
      %v1279 = vsel %vm1271, %v1257, 0
      %v1282 = vsel %vm1271, %v1258, 0
      %v1285 = vsel %vm1271, %v1259, 0
      %v1288 = vsel %vm1271, %v1260, 0
      %v1291 = vsel %vm1271, %v1261, 0
      %v1294 = vsel %vm1271, %v1262, 0
      %vm1296 = vcmask 1041408
      %v1298 = vsel %vm1296, %v1263, 0
      %1300 = vmatprep.subr.bf16.mxu0 0
      %1301 = vmatpush1.bf16.msra.mxu0 %v1298
      %1302 = vmatprep.subr.bf16.mxu0 0
      %1303 = vmatpush1.bf16.msra.mxu0 0
      %1304 = vmatprep.subr.bf16.mxu0 0
      %1305 = vmatpush1.bf16.msra.mxu0 0
      %1306 = vmatprep.subr.bf16.mxu0 0
      %1307 = vmatpush1.bf16.msra.mxu0 0
      %1308 = vmatprep.subr.bf16.mxu0 0
      %1309 = vmatpush1.bf16.msra.mxu0 0
      %1310 = vmatprep.subr.bf16.mxu0 0
      %1311 = vmatpush1.bf16.msra.mxu0 0
      %1312 = vmatprep.subr.bf16.mxu0 0
      %1313 = vmatpush1.bf16.msra.mxu0 0
      %1314 = vmatprep.subr.bf16.mxu0 0
      %1315 = vmatpush1.bf16.msra.mxu0 0
      %1316 = vmatprep.subr.bf16.mxu0 0
      %1317 = vmatpush1.bf16.msra.mxu0 0
      %1318 = vmatprep.subr.bf16.mxu0 0
      %1319 = vmatpush1.bf16.msra.mxu0 0
      %1320 = vmatprep.subr.bf16.mxu0 0
      %1321 = vmatpush1.bf16.msra.mxu0 0
      %1322 = vmatprep.subr.bf16.mxu0 0
      %1323 = vmatpush1.bf16.msra.mxu0 0
      %1324 = vmatprep.subr.bf16.mxu0 0
      %1325 = vmatpush1.bf16.msra.mxu0 0
      %1326 = vmatprep.subr.bf16.mxu0 0
      %1327 = vmatpush1.bf16.msra.mxu0 0
      %1328 = vmatprep.subr.bf16.mxu0 0
      %1329 = vmatpush1.bf16.msra.mxu0 0
      %1330 = vmatprep.subr.bf16.mxu0 0
      %1331 = vmatpush1.bf16.msra.mxu0 0
      %1332 = vmatprep.mubr.bf16.mxu0 0
      %1333 = vmatmul.mubr.bf16.gmra.mrb[0].mxu0 %v1273
      %v1334 = vpop.f32.mrb[0].mxu0
      %v1335 = vadd.f32 %v1269, %v1334
      %v1336 = vpop.f32.mrb[0].mxu0
      %v1337 = vpop.f32.mrb[0].mxu0
      %v1338 = vadd.f32 %v1269, %v1337
      %v1339 = vpop.f32.mrb[0].mxu0
      %1340 = vmatprep.mubr.bf16.mxu0 0
      %1341 = vmatmul.mubr.bf16.gmra.mrb[0].mxu0 %v1276
      %v1342 = vpop.f32.mrb[0].mxu0
      %v1343 = vadd.f32 %v1269, %v1342
      %v1344 = vpop.f32.mrb[0].mxu0
      %v1345 = vpop.f32.mrb[0].mxu0
      %v1346 = vadd.f32 %v1269, %v1345
      %v1347 = vpop.f32.mrb[0].mxu0
      %1348 = vmatprep.mubr.bf16.mxu0 0
      %1349 = vmatmul.mubr.bf16.gmra.mrb[0].mxu0 %v1279
      %v1350 = vpop.f32.mrb[0].mxu0
      %v1351 = vadd.f32 %v1269, %v1350
      %v1352 = vpop.f32.mrb[0].mxu0
      %v1353 = vpop.f32.mrb[0].mxu0
      %v1354 = vadd.f32 %v1269, %v1353
      %v1355 = vpop.f32.mrb[0].mxu0
      %1356 = vmatprep.mubr.bf16.mxu0 0
      %1357 = vmatmul.mubr.bf16.gmra.mrb[0].mxu0 %v1282
      %v1358 = vpop.f32.mrb[0].mxu0
      %v1359 = vadd.f32 %v1269, %v1358
      %v1360 = vpop.f32.mrb[0].mxu0
      %v1361 = vpop.f32.mrb[0].mxu0
      %v1362 = vadd.f32 %v1269, %v1361
      %v1363 = vpop.f32.mrb[0].mxu0
      %1364 = vmatprep.mubr.bf16.mxu0 0
      %1365 = vmatmul.mubr.bf16.gmra.mrb[0].mxu0 %v1285
      %v1366 = vpop.f32.mrb[0].mxu0
      %v1367 = vadd.f32 %v1269, %v1366
      %v1368 = vpop.f32.mrb[0].mxu0
      %v1369 = vpop.f32.mrb[0].mxu0
      %v1370 = vadd.f32 %v1269, %v1369
      %v1371 = vpop.f32.mrb[0].mxu0
      %1372 = vmatprep.mubr.bf16.mxu0 0
      %1373 = vmatmul.mubr.bf16.gmra.mrb[0].mxu0 %v1288
      %v1374 = vpop.f32.mrb[0].mxu0
      %v1375 = vadd.f32 %v1269, %v1374
      %v1376 = vpop.f32.mrb[0].mxu0
      %v1377 = vpop.f32.mrb[0].mxu0
      %v1378 = vadd.f32 %v1269, %v1377
      %v1379 = vpop.f32.mrb[0].mxu0
      %1380 = vmatprep.mubr.bf16.mxu0 0
      %1381 = vmatmul.mubr.bf16.gmra.mrb[0].mxu0 %v1291
      %v1382 = vpop.f32.mrb[0].mxu0
      %v1383 = vadd.f32 %v1269, %v1382
      %v1384 = vpop.f32.mrb[0].mxu0
      %v1385 = vpop.f32.mrb[0].mxu0
      %v1386 = vadd.f32 %v1269, %v1385
      %v1387 = vpop.f32.mrb[0].mxu0
      %1388 = vmatprep.mubr.bf16.mxu0 0
      %1389 = vmatmul.mubr.bf16.gmra.mrb[0].mxu0 %v1294
      %v1390 = vpop.f32.mrb[0].mxu0
      %v1391 = vadd.f32 %v1269, %v1390
      %v1392 = vpop.f32.mrb[0].mxu0
      %v1393 = vpop.f32.mrb[0].mxu0
      %v1394 = vadd.f32 %v1269, %v1393
      %v1395 = vpop.f32.mrb[0].mxu0
      %1396 = vdwg.mxu0
      %v1397 = vpack.c.bf16 %v1338, %v1335
      %v1398 = vpack.c.bf16 %v1346, %v1343
      %v1399 = vpack.c.bf16 %v1354, %v1351
      %v1400 = vpack.c.bf16 %v1362, %v1359
      %v1401 = vpack.c.bf16 %v1370, %v1367
      %v1402 = vpack.c.bf16 %v1378, %v1375
      %v1403 = vpack.c.bf16 %v1386, %v1383
      %v1404 = vpack.c.bf16 %v1394, %v1391
      %v1405 = vld [vmem:[%s9] sm:$0xf]
      %v1406 = vld [vmem:[%s9 + $0x4] sm:$0xf]
      %v1407 = vld [vmem:[%s9 + $0x8] sm:$0xf]
      %v1408 = vld [vmem:[%s9 + $0xc] sm:$0xf]
      %v1409 = vld [vmem:[%s11] sm:$0x1]
      %v1411 = vlaneseq
      %v1412 = vshrl.u32 %v1411, 7
      %v1413 = vsub.s32 0, %v1412
      %v1414 = vrot.slane %v1409, %v1413
      %v1420 = vunpack.c.l.b16 %v1405
      %v1421 = vunpack.c.l.b16 %v1406
      %v1422 = vunpack.c.l.b16 %v1407
      %v1423 = vunpack.c.l.b16 %v1408
      %v1424 = vpack.c.b16 %v1421, %v1420
      %v1425 = vpack.c.b16 %v1423, %v1422
      %vm1428 = vcmask 261120
      %v1430 = vsel %vm1428, %v1397, 0
      %v1433 = vsel %vm1428, %v1398, 0
      %v1436 = vsel %vm1428, %v1399, 0
      %v1439 = vsel %vm1428, %v1400, 0
      %v1442 = vsel %vm1428, %v1401, 0
      %v1445 = vsel %vm1428, %v1402, 0
      %v1448 = vsel %vm1428, %v1403, 0
      %v1451 = vsel %vm1428, %v1404, 0
      %1453 = vmatprep.subr.bf16.mxu0 0
      %1454 = vmatpush1.bf16.msra.mxu0 %v1424
      %1455 = vmatprep.subr.bf16.mxu0 0
      %1456 = vmatpush1.bf16.msra.mxu0 %v1425
      %1457 = vmatprep.subr.bf16.mxu0 0
      %1458 = vmatpush1.bf16.msra.mxu0 0
      %1459 = vmatprep.subr.bf16.mxu0 0
      %1460 = vmatpush1.bf16.msra.mxu0 0
      %1461 = vmatprep.subr.bf16.mxu0 0
      %1462 = vmatpush1.bf16.msra.mxu0 0
      %1463 = vmatprep.subr.bf16.mxu0 0
      %1464 = vmatpush1.bf16.msra.mxu0 0
      %1465 = vmatprep.subr.bf16.mxu0 0
      %1466 = vmatpush1.bf16.msra.mxu0 0
      %1467 = vmatprep.subr.bf16.mxu0 0
      %1468 = vmatpush1.bf16.msra.mxu0 0
      %1469 = vmatprep.subr.bf16.mxu0 0
      %1470 = vmatpush1.bf16.msra.mxu0 0
      %1471 = vmatprep.subr.bf16.mxu0 0
      %1472 = vmatpush1.bf16.msra.mxu0 0
      %1473 = vmatprep.subr.bf16.mxu0 0
      %1474 = vmatpush1.bf16.msra.mxu0 0
      %1475 = vmatprep.subr.bf16.mxu0 0
      %1476 = vmatpush1.bf16.msra.mxu0 0
      %1477 = vmatprep.subr.bf16.mxu0 0
      %1478 = vmatpush1.bf16.msra.mxu0 0
      %1479 = vmatprep.subr.bf16.mxu0 0
      %1480 = vmatpush1.bf16.msra.mxu0 0
      %1481 = vmatprep.subr.bf16.mxu0 0
      %1482 = vmatpush1.bf16.msra.mxu0 0
      %1483 = vmatprep.subr.bf16.mxu0 0
      %1484 = vmatpush1.bf16.msra.mxu0 0
      %1485 = vmatprep.mubr.bf16.mxu0 0
      %1486 = vmatmul.mubr.bf16.gmra.mrb[0].mxu0 %v1430
      %v1487 = vpop.f32.mrb[0].mxu0
      %v1488 = vadd.f32 %v1414, %v1487
      %v1489 = vpop.f32.mrb[0].mxu0
      %v1490 = vpop.f32.mrb[0].mxu0
      %v1491 = vadd.f32 %v1414, %v1490
      %v1492 = vpop.f32.mrb[0].mxu0
      %1493 = vmatprep.mubr.bf16.mxu0 0
      %1494 = vmatmul.mubr.bf16.gmra.mrb[0].mxu0 %v1433
      %v1495 = vpop.f32.mrb[0].mxu0
      %v1496 = vadd.f32 %v1414, %v1495
      %v1497 = vpop.f32.mrb[0].mxu0
      %v1498 = vpop.f32.mrb[0].mxu0
      %v1499 = vadd.f32 %v1414, %v1498
      %v1500 = vpop.f32.mrb[0].mxu0
      %1501 = vmatprep.mubr.bf16.mxu0 0
      %1502 = vmatmul.mubr.bf16.gmra.mrb[0].mxu0 %v1436
      %v1503 = vpop.f32.mrb[0].mxu0
      %v1504 = vadd.f32 %v1414, %v1503
      %v1505 = vpop.f32.mrb[0].mxu0
      %v1506 = vpop.f32.mrb[0].mxu0
      %v1507 = vadd.f32 %v1414, %v1506
      %v1508 = vpop.f32.mrb[0].mxu0
      %1509 = vmatprep.mubr.bf16.mxu0 0
      %1510 = vmatmul.mubr.bf16.gmra.mrb[0].mxu0 %v1439
      %v1511 = vpop.f32.mrb[0].mxu0
      %v1512 = vadd.f32 %v1414, %v1511
      %v1513 = vpop.f32.mrb[0].mxu0
      %v1514 = vpop.f32.mrb[0].mxu0
      %v1515 = vadd.f32 %v1414, %v1514
      %v1516 = vpop.f32.mrb[0].mxu0
      %1517 = vmatprep.mubr.bf16.mxu0 0
      %1518 = vmatmul.mubr.bf16.gmra.mrb[0].mxu0 %v1442
      %v1519 = vpop.f32.mrb[0].mxu0
      %v1520 = vadd.f32 %v1414, %v1519
      %v1521 = vpop.f32.mrb[0].mxu0
      %v1522 = vpop.f32.mrb[0].mxu0
      %v1523 = vadd.f32 %v1414, %v1522
      %v1524 = vpop.f32.mrb[0].mxu0
      %1525 = vmatprep.mubr.bf16.mxu0 0
      %1526 = vmatmul.mubr.bf16.gmra.mrb[0].mxu0 %v1445
      %v1527 = vpop.f32.mrb[0].mxu0
      %v1528 = vadd.f32 %v1414, %v1527
      %v1529 = vpop.f32.mrb[0].mxu0
      %v1530 = vpop.f32.mrb[0].mxu0
      %v1531 = vadd.f32 %v1414, %v1530
      %v1532 = vpop.f32.mrb[0].mxu0
      %1533 = vmatprep.mubr.bf16.mxu0 0
      %1534 = vmatmul.mubr.bf16.gmra.mrb[0].mxu0 %v1448
      %v1535 = vpop.f32.mrb[0].mxu0
      %v1536 = vadd.f32 %v1414, %v1535
      %v1537 = vpop.f32.mrb[0].mxu0
      %v1538 = vpop.f32.mrb[0].mxu0
      %v1539 = vadd.f32 %v1414, %v1538
      %v1540 = vpop.f32.mrb[0].mxu0
      %1541 = vmatprep.mubr.bf16.mxu0 0
      %1542 = vmatmul.mubr.bf16.gmra.mrb[0].mxu0 %v1451
      %v1543 = vpop.f32.mrb[0].mxu0
      %v1544 = vadd.f32 %v1414, %v1543
      %v1545 = vpop.f32.mrb[0].mxu0
      %v1546 = vpop.f32.mrb[0].mxu0
      %v1547 = vadd.f32 %v1414, %v1546
      %v1548 = vpop.f32.mrb[0].mxu0
      %1549 = vdwg.mxu0
      %v1550 = vmul.f32 %v1488, 0.17677669
      %v1551 = vmul.f32 %v1491, 0.17677669
      %v1552 = vmul.f32 %v1496, 0.17677669
      %v1553 = vmul.f32 %v1499, 0.17677669
      %v1554 = vmul.f32 %v1504, 0.17677669
      %v1555 = vmul.f32 %v1507, 0.17677669
      %v1556 = vmul.f32 %v1512, 0.17677669
      %v1557 = vmul.f32 %v1515, 0.17677669
      %v1558 = vmul.f32 %v1520, 0.17677669
      %v1559 = vmul.f32 %v1523, 0.17677669
      %v1560 = vmul.f32 %v1528, 0.17677669
      %v1561 = vmul.f32 %v1531, 0.17677669
      %v1562 = vmul.f32 %v1536, 0.17677669
      %v1563 = vmul.f32 %v1539, 0.17677669
      %v1564 = vmul.f32 %v1544, 0.17677669
      %v1565 = vmul.f32 %v1547, 0.17677669
      %v1566 = vpack.c.bf16 %v1550, %v1550
      %v1567 = vpack.c.bf16 %v1551, %v1551
      %v1568 = vpack.c.bf16 %v1552, %v1552
      %v1569 = vpack.c.bf16 %v1553, %v1553
      %v1570 = vpack.c.bf16 %v1554, %v1554
      %v1571 = vpack.c.bf16 %v1555, %v1555
      %v1572 = vpack.c.bf16 %v1556, %v1556
      %v1573 = vpack.c.bf16 %v1557, %v1557
      %v1574 = vpack.c.bf16 %v1558, %v1558
      %v1575 = vpack.c.bf16 %v1559, %v1559
      %v1576 = vpack.c.bf16 %v1560, %v1560
      %v1577 = vpack.c.bf16 %v1561, %v1561
      %v1578 = vpack.c.bf16 %v1562, %v1562
      %v1579 = vpack.c.bf16 %v1563, %v1563
      %v1580 = vpack.c.bf16 %v1564, %v1564
      %v1581 = vpack.c.bf16 %v1565, %v1565
      %v1582 = vpack.c.bf16 %v1488, %v1488
      %v1583 = vpack.c.bf16 %v1491, %v1491
      %v1584 = vpack.c.bf16 %v1496, %v1496
      %v1585 = vpack.c.bf16 %v1499, %v1499
      %v1586 = vpack.c.bf16 %v1504, %v1504
      %v1587 = vpack.c.bf16 %v1507, %v1507
      %v1588 = vpack.c.bf16 %v1512, %v1512
      %v1589 = vpack.c.bf16 %v1515, %v1515
      %v1590 = vpack.c.bf16 %v1520, %v1520
      %v1591 = vpack.c.bf16 %v1523, %v1523
      %v1592 = vpack.c.bf16 %v1528, %v1528
      %v1593 = vpack.c.bf16 %v1531, %v1531
      %v1594 = vpack.c.bf16 %v1536, %v1536
      %v1595 = vpack.c.bf16 %v1539, %v1539
      %v1596 = vpack.c.bf16 %v1544, %v1544
      %v1597 = vpack.c.bf16 %v1547, %v1547
      %1599 = vrot.lane.b32.xlu0 %v1582, 96
      %v1600 = vpop.permute.xlu0 %1599
      %v1602 = vsel %vm1428, %v1566, 0
      %v1605 = vsel %vm1428, %v1600, 0
      %1607 = vmatprep.subr.bf16.mxu0 0
      %1608 = vmatpush1.bf16.xpose.msra.mxu0 %v1605
      %1609 = vmatprep.subr.bf16.mxu0 0
      %1610 = vmatpush1.bf16.xpose.msra.mxu0 0
      %1611 = vmatprep.subr.bf16.mxu0 0
      %1612 = vmatpush1.bf16.xpose.msra.mxu0 0
      %1613 = vmatprep.subr.bf16.mxu0 0
      %1614 = vmatpush1.bf16.xpose.msra.mxu0 0
      %1615 = vmatprep.subr.bf16.mxu0 0
      %1616 = vmatpush1.bf16.xpose.msra.mxu0 0
      %1617 = vmatprep.subr.bf16.mxu0 0
      %1618 = vmatpush1.bf16.xpose.msra.mxu0 0
      %1619 = vmatprep.subr.bf16.mxu0 0
      %1620 = vmatpush1.bf16.xpose.msra.mxu0 0
      %1621 = vmatprep.subr.bf16.mxu0 0
      %1622 = vmatpush1.bf16.xpose.msra.mxu0 0
      %1623 = vmatprep.subr.bf16.mxu0 0
      %1624 = vmatpush1.bf16.xpose.msra.mxu0 0
      %1625 = vmatprep.subr.bf16.mxu0 0
      %1626 = vmatpush1.bf16.xpose.msra.mxu0 0
      %1627 = vmatprep.subr.bf16.mxu0 0
      %1628 = vmatpush1.bf16.xpose.msra.mxu0 0
      %1629 = vmatprep.subr.bf16.mxu0 0
      %1630 = vmatpush1.bf16.xpose.msra.mxu0 0
      %1631 = vmatprep.subr.bf16.mxu0 0
      %1632 = vmatpush1.bf16.xpose.msra.mxu0 0
      %1633 = vmatprep.subr.bf16.mxu0 0
      %1634 = vmatpush1.bf16.xpose.msra.mxu0 0
      %1635 = vmatprep.subr.bf16.mxu0 0
      %1636 = vmatpush1.bf16.xpose.msra.mxu0 0
      %1637 = vmatprep.subr.bf16.mxu0 0
      %1638 = vmatpush1.bf16.xpose.msra.mxu0 0
      %1639 = vmatprep.mubr.bf16.mxu0 0
      %1640 = vmatmul.mubr.bf16.gmra.mrb[0].mxu0 %v1602
      %v1641 = vpop.f32.mrb[0].mxu0
      %v1642 = vadd.f32 0.0, %v1641
      %v1643 = vpop.f32.mrb[0].mxu0
      %v1644 = vpop.f32.mrb[0].mxu0
      %v1645 = vpop.f32.mrb[0].mxu0
      %1646 = vdwg.mxu0
      %1648 = vrot.lane.b32.xlu0 %v1583, 96
      %v1649 = vpop.permute.xlu0 %1648
      %v1651 = vsel %vm1428, %v1567, 0
      %v1654 = vsel %vm1428, %v1649, 0
      %1656 = vmatprep.subr.bf16.mxu0 0
      %1657 = vmatpush1.bf16.xpose.msra.mxu0 %v1654
      %1658 = vmatprep.subr.bf16.mxu0 0
      %1659 = vmatpush1.bf16.xpose.msra.mxu0 0
      %1660 = vmatprep.subr.bf16.mxu0 0
      %1661 = vmatpush1.bf16.xpose.msra.mxu0 0
      %1662 = vmatprep.subr.bf16.mxu0 0
      %1663 = vmatpush1.bf16.xpose.msra.mxu0 0
      %1664 = vmatprep.subr.bf16.mxu0 0
      %1665 = vmatpush1.bf16.xpose.msra.mxu0 0
      %1666 = vmatprep.subr.bf16.mxu0 0
      %1667 = vmatpush1.bf16.xpose.msra.mxu0 0
      %1668 = vmatprep.subr.bf16.mxu0 0
      %1669 = vmatpush1.bf16.xpose.msra.mxu0 0
      %1670 = vmatprep.subr.bf16.mxu0 0
      %1671 = vmatpush1.bf16.xpose.msra.mxu0 0
      %1672 = vmatprep.subr.bf16.mxu0 0
      %1673 = vmatpush1.bf16.xpose.msra.mxu0 0
      %1674 = vmatprep.subr.bf16.mxu0 0
      %1675 = vmatpush1.bf16.xpose.msra.mxu0 0
      %1676 = vmatprep.subr.bf16.mxu0 0
      %1677 = vmatpush1.bf16.xpose.msra.mxu0 0
      %1678 = vmatprep.subr.bf16.mxu0 0
      %1679 = vmatpush1.bf16.xpose.msra.mxu0 0
      %1680 = vmatprep.subr.bf16.mxu0 0
      %1681 = vmatpush1.bf16.xpose.msra.mxu0 0
      %1682 = vmatprep.subr.bf16.mxu0 0
      %1683 = vmatpush1.bf16.xpose.msra.mxu0 0
      %1684 = vmatprep.subr.bf16.mxu0 0
      %1685 = vmatpush1.bf16.xpose.msra.mxu0 0
      %1686 = vmatprep.subr.bf16.mxu0 0
      %1687 = vmatpush1.bf16.xpose.msra.mxu0 0
      %1688 = vmatprep.mubr.bf16.mxu0 0
      %1689 = vmatmul.mubr.bf16.gmra.mrb[0].mxu0 %v1651
      %v1690 = vpop.f32.mrb[0].mxu0
      %v1691 = vadd.f32 0.0, %v1690
      %v1692 = vpop.f32.mrb[0].mxu0
      %v1693 = vpop.f32.mrb[0].mxu0
      %v1694 = vpop.f32.mrb[0].mxu0
      %1695 = vdwg.mxu0
      %1697 = vrot.lane.b32.xlu0 %v1584, 96
      %v1698 = vpop.permute.xlu0 %1697
      %v1700 = vsel %vm1428, %v1568, 0
      %v1703 = vsel %vm1428, %v1698, 0
      %1705 = vmatprep.subr.bf16.mxu0 0
      %1706 = vmatpush1.bf16.xpose.msra.mxu0 %v1703
      %1707 = vmatprep.subr.bf16.mxu0 0
      %1708 = vmatpush1.bf16.xpose.msra.mxu0 0
      %1709 = vmatprep.subr.bf16.mxu0 0
      %1710 = vmatpush1.bf16.xpose.msra.mxu0 0
      %1711 = vmatprep.subr.bf16.mxu0 0
      %1712 = vmatpush1.bf16.xpose.msra.mxu0 0
      %1713 = vmatprep.subr.bf16.mxu0 0
      %1714 = vmatpush1.bf16.xpose.msra.mxu0 0
      %1715 = vmatprep.subr.bf16.mxu0 0
      %1716 = vmatpush1.bf16.xpose.msra.mxu0 0
      %1717 = vmatprep.subr.bf16.mxu0 0
      %1718 = vmatpush1.bf16.xpose.msra.mxu0 0
      %1719 = vmatprep.subr.bf16.mxu0 0
      %1720 = vmatpush1.bf16.xpose.msra.mxu0 0
      %1721 = vmatprep.subr.bf16.mxu0 0
      %1722 = vmatpush1.bf16.xpose.msra.mxu0 0
      %1723 = vmatprep.subr.bf16.mxu0 0
      %1724 = vmatpush1.bf16.xpose.msra.mxu0 0
      %1725 = vmatprep.subr.bf16.mxu0 0
      %1726 = vmatpush1.bf16.xpose.msra.mxu0 0
      %1727 = vmatprep.subr.bf16.mxu0 0
      %1728 = vmatpush1.bf16.xpose.msra.mxu0 0
      %1729 = vmatprep.subr.bf16.mxu0 0
      %1730 = vmatpush1.bf16.xpose.msra.mxu0 0
      %1731 = vmatprep.subr.bf16.mxu0 0
      %1732 = vmatpush1.bf16.xpose.msra.mxu0 0
      %1733 = vmatprep.subr.bf16.mxu0 0
      %1734 = vmatpush1.bf16.xpose.msra.mxu0 0
      %1735 = vmatprep.subr.bf16.mxu0 0
      %1736 = vmatpush1.bf16.xpose.msra.mxu0 0
      %1737 = vmatprep.mubr.bf16.mxu0 0
      %1738 = vmatmul.mubr.bf16.gmra.mrb[0].mxu0 %v1700
      %v1739 = vpop.f32.mrb[0].mxu0
      %v1740 = vadd.f32 0.0, %v1739
      %v1741 = vpop.f32.mrb[0].mxu0
      %v1742 = vpop.f32.mrb[0].mxu0
      %v1743 = vpop.f32.mrb[0].mxu0
      %1744 = vdwg.mxu0
      %1746 = vrot.lane.b32.xlu0 %v1585, 96
      %v1747 = vpop.permute.xlu0 %1746
      %v1749 = vsel %vm1428, %v1569, 0
      %v1752 = vsel %vm1428, %v1747, 0
      %1754 = vmatprep.subr.bf16.mxu0 0
      %1755 = vmatpush1.bf16.xpose.msra.mxu0 %v1752
      %1756 = vmatprep.subr.bf16.mxu0 0
      %1757 = vmatpush1.bf16.xpose.msra.mxu0 0
      %1758 = vmatprep.subr.bf16.mxu0 0
      %1759 = vmatpush1.bf16.xpose.msra.mxu0 0
      %1760 = vmatprep.subr.bf16.mxu0 0
      %1761 = vmatpush1.bf16.xpose.msra.mxu0 0
      %1762 = vmatprep.subr.bf16.mxu0 0
      %1763 = vmatpush1.bf16.xpose.msra.mxu0 0
      %1764 = vmatprep.subr.bf16.mxu0 0
      %1765 = vmatpush1.bf16.xpose.msra.mxu0 0
      %1766 = vmatprep.subr.bf16.mxu0 0
      %1767 = vmatpush1.bf16.xpose.msra.mxu0 0
      %1768 = vmatprep.subr.bf16.mxu0 0
      %1769 = vmatpush1.bf16.xpose.msra.mxu0 0
      %1770 = vmatprep.subr.bf16.mxu0 0
      %1771 = vmatpush1.bf16.xpose.msra.mxu0 0
      %1772 = vmatprep.subr.bf16.mxu0 0
      %1773 = vmatpush1.bf16.xpose.msra.mxu0 0
      %1774 = vmatprep.subr.bf16.mxu0 0
      %1775 = vmatpush1.bf16.xpose.msra.mxu0 0
      %1776 = vmatprep.subr.bf16.mxu0 0
      %1777 = vmatpush1.bf16.xpose.msra.mxu0 0
      %1778 = vmatprep.subr.bf16.mxu0 0
      %1779 = vmatpush1.bf16.xpose.msra.mxu0 0
      %1780 = vmatprep.subr.bf16.mxu0 0
      %1781 = vmatpush1.bf16.xpose.msra.mxu0 0
      %1782 = vmatprep.subr.bf16.mxu0 0
      %1783 = vmatpush1.bf16.xpose.msra.mxu0 0
      %1784 = vmatprep.subr.bf16.mxu0 0
      %1785 = vmatpush1.bf16.xpose.msra.mxu0 0
      %1786 = vmatprep.mubr.bf16.mxu0 0
      %1787 = vmatmul.mubr.bf16.gmra.mrb[0].mxu0 %v1749
      %v1788 = vpop.f32.mrb[0].mxu0
      %v1789 = vadd.f32 0.0, %v1788
      %v1790 = vpop.f32.mrb[0].mxu0
      %v1791 = vpop.f32.mrb[0].mxu0
      %v1792 = vpop.f32.mrb[0].mxu0
      %1793 = vdwg.mxu0
      %1795 = vrot.lane.b32.xlu0 %v1586, 96
      %v1796 = vpop.permute.xlu0 %1795
      %v1798 = vsel %vm1428, %v1570, 0
      %v1801 = vsel %vm1428, %v1796, 0
      %1803 = vmatprep.subr.bf16.mxu0 0
      %1804 = vmatpush1.bf16.xpose.msra.mxu0 %v1801
      %1805 = vmatprep.subr.bf16.mxu0 0
      %1806 = vmatpush1.bf16.xpose.msra.mxu0 0
      %1807 = vmatprep.subr.bf16.mxu0 0
      %1808 = vmatpush1.bf16.xpose.msra.mxu0 0
      %1809 = vmatprep.subr.bf16.mxu0 0
      %1810 = vmatpush1.bf16.xpose.msra.mxu0 0
      %1811 = vmatprep.subr.bf16.mxu0 0
      %1812 = vmatpush1.bf16.xpose.msra.mxu0 0
      %1813 = vmatprep.subr.bf16.mxu0 0
      %1814 = vmatpush1.bf16.xpose.msra.mxu0 0
      %1815 = vmatprep.subr.bf16.mxu0 0
      %1816 = vmatpush1.bf16.xpose.msra.mxu0 0
      %1817 = vmatprep.subr.bf16.mxu0 0
      %1818 = vmatpush1.bf16.xpose.msra.mxu0 0
      %1819 = vmatprep.subr.bf16.mxu0 0
      %1820 = vmatpush1.bf16.xpose.msra.mxu0 0
      %1821 = vmatprep.subr.bf16.mxu0 0
      %1822 = vmatpush1.bf16.xpose.msra.mxu0 0
      %1823 = vmatprep.subr.bf16.mxu0 0
      %1824 = vmatpush1.bf16.xpose.msra.mxu0 0
      %1825 = vmatprep.subr.bf16.mxu0 0
      %1826 = vmatpush1.bf16.xpose.msra.mxu0 0
      %1827 = vmatprep.subr.bf16.mxu0 0
      %1828 = vmatpush1.bf16.xpose.msra.mxu0 0
      %1829 = vmatprep.subr.bf16.mxu0 0
      %1830 = vmatpush1.bf16.xpose.msra.mxu0 0
      %1831 = vmatprep.subr.bf16.mxu0 0
      %1832 = vmatpush1.bf16.xpose.msra.mxu0 0
      %1833 = vmatprep.subr.bf16.mxu0 0
      %1834 = vmatpush1.bf16.xpose.msra.mxu0 0
      %1835 = vmatprep.mubr.bf16.mxu0 0
      %1836 = vmatmul.mubr.bf16.gmra.mrb[0].mxu0 %v1798
      %v1837 = vpop.f32.mrb[0].mxu0
      %v1838 = vadd.f32 0.0, %v1837
      %v1839 = vpop.f32.mrb[0].mxu0
      %v1840 = vpop.f32.mrb[0].mxu0
      %v1841 = vpop.f32.mrb[0].mxu0
      %1842 = vdwg.mxu0
      %1844 = vrot.lane.b32.xlu0 %v1587, 96
      %v1845 = vpop.permute.xlu0 %1844
      %v1847 = vsel %vm1428, %v1571, 0
      %v1850 = vsel %vm1428, %v1845, 0
      %1852 = vmatprep.subr.bf16.mxu0 0
      %1853 = vmatpush1.bf16.xpose.msra.mxu0 %v1850
      %1854 = vmatprep.subr.bf16.mxu0 0
      %1855 = vmatpush1.bf16.xpose.msra.mxu0 0
      %1856 = vmatprep.subr.bf16.mxu0 0
      %1857 = vmatpush1.bf16.xpose.msra.mxu0 0
      %1858 = vmatprep.subr.bf16.mxu0 0
      %1859 = vmatpush1.bf16.xpose.msra.mxu0 0
      %1860 = vmatprep.subr.bf16.mxu0 0
      %1861 = vmatpush1.bf16.xpose.msra.mxu0 0
      %1862 = vmatprep.subr.bf16.mxu0 0
      %1863 = vmatpush1.bf16.xpose.msra.mxu0 0
      %1864 = vmatprep.subr.bf16.mxu0 0
      %1865 = vmatpush1.bf16.xpose.msra.mxu0 0
      %1866 = vmatprep.subr.bf16.mxu0 0
      %1867 = vmatpush1.bf16.xpose.msra.mxu0 0
      %1868 = vmatprep.subr.bf16.mxu0 0
      %1869 = vmatpush1.bf16.xpose.msra.mxu0 0
      %1870 = vmatprep.subr.bf16.mxu0 0
      %1871 = vmatpush1.bf16.xpose.msra.mxu0 0
      %1872 = vmatprep.subr.bf16.mxu0 0
      %1873 = vmatpush1.bf16.xpose.msra.mxu0 0
      %1874 = vmatprep.subr.bf16.mxu0 0
      %1875 = vmatpush1.bf16.xpose.msra.mxu0 0
      %1876 = vmatprep.subr.bf16.mxu0 0
      %1877 = vmatpush1.bf16.xpose.msra.mxu0 0
      %1878 = vmatprep.subr.bf16.mxu0 0
      %1879 = vmatpush1.bf16.xpose.msra.mxu0 0
      %1880 = vmatprep.subr.bf16.mxu0 0
      %1881 = vmatpush1.bf16.xpose.msra.mxu0 0
      %1882 = vmatprep.subr.bf16.mxu0 0
      %1883 = vmatpush1.bf16.xpose.msra.mxu0 0
      %1884 = vmatprep.mubr.bf16.mxu0 0
      %1885 = vmatmul.mubr.bf16.gmra.mrb[0].mxu0 %v1847
      %v1886 = vpop.f32.mrb[0].mxu0
      %v1887 = vadd.f32 0.0, %v1886
      %v1888 = vpop.f32.mrb[0].mxu0
      %v1889 = vpop.f32.mrb[0].mxu0
      %v1890 = vpop.f32.mrb[0].mxu0
      %1891 = vdwg.mxu0
      %1893 = vrot.lane.b32.xlu0 %v1588, 96
      %v1894 = vpop.permute.xlu0 %1893
      %v1896 = vsel %vm1428, %v1572, 0
      %v1899 = vsel %vm1428, %v1894, 0
      %1901 = vmatprep.subr.bf16.mxu0 0
      %1902 = vmatpush1.bf16.xpose.msra.mxu0 %v1899
      %1903 = vmatprep.subr.bf16.mxu0 0
      %1904 = vmatpush1.bf16.xpose.msra.mxu0 0
      %1905 = vmatprep.subr.bf16.mxu0 0
      %1906 = vmatpush1.bf16.xpose.msra.mxu0 0
      %1907 = vmatprep.subr.bf16.mxu0 0
      %1908 = vmatpush1.bf16.xpose.msra.mxu0 0
      %1909 = vmatprep.subr.bf16.mxu0 0
      %1910 = vmatpush1.bf16.xpose.msra.mxu0 0
      %1911 = vmatprep.subr.bf16.mxu0 0
      %1912 = vmatpush1.bf16.xpose.msra.mxu0 0
      %1913 = vmatprep.subr.bf16.mxu0 0
      %1914 = vmatpush1.bf16.xpose.msra.mxu0 0
      %1915 = vmatprep.subr.bf16.mxu0 0
      %1916 = vmatpush1.bf16.xpose.msra.mxu0 0
      %1917 = vmatprep.subr.bf16.mxu0 0
      %1918 = vmatpush1.bf16.xpose.msra.mxu0 0
      %1919 = vmatprep.subr.bf16.mxu0 0
      %1920 = vmatpush1.bf16.xpose.msra.mxu0 0
      %1921 = vmatprep.subr.bf16.mxu0 0
      %1922 = vmatpush1.bf16.xpose.msra.mxu0 0
      %1923 = vmatprep.subr.bf16.mxu0 0
      %1924 = vmatpush1.bf16.xpose.msra.mxu0 0
      %1925 = vmatprep.subr.bf16.mxu0 0
      %1926 = vmatpush1.bf16.xpose.msra.mxu0 0
      %1927 = vmatprep.subr.bf16.mxu0 0
      %1928 = vmatpush1.bf16.xpose.msra.mxu0 0
      %1929 = vmatprep.subr.bf16.mxu0 0
      %1930 = vmatpush1.bf16.xpose.msra.mxu0 0
      %1931 = vmatprep.subr.bf16.mxu0 0
      %1932 = vmatpush1.bf16.xpose.msra.mxu0 0
      %1933 = vmatprep.mubr.bf16.mxu0 0
      %1934 = vmatmul.mubr.bf16.gmra.mrb[0].mxu0 %v1896
      %v1935 = vpop.f32.mrb[0].mxu0
      %v1936 = vadd.f32 0.0, %v1935
      %v1937 = vpop.f32.mrb[0].mxu0
      %v1938 = vpop.f32.mrb[0].mxu0
      %v1939 = vpop.f32.mrb[0].mxu0
      %1940 = vdwg.mxu0
      %1942 = vrot.lane.b32.xlu0 %v1589, 96
      %v1943 = vpop.permute.xlu0 %1942
      %v1945 = vsel %vm1428, %v1573, 0
      %v1948 = vsel %vm1428, %v1943, 0
      %1950 = vmatprep.subr.bf16.mxu0 0
      %1951 = vmatpush1.bf16.xpose.msra.mxu0 %v1948
      %1952 = vmatprep.subr.bf16.mxu0 0
      %1953 = vmatpush1.bf16.xpose.msra.mxu0 0
      %1954 = vmatprep.subr.bf16.mxu0 0
      %1955 = vmatpush1.bf16.xpose.msra.mxu0 0
      %1956 = vmatprep.subr.bf16.mxu0 0
      %1957 = vmatpush1.bf16.xpose.msra.mxu0 0
      %1958 = vmatprep.subr.bf16.mxu0 0
      %1959 = vmatpush1.bf16.xpose.msra.mxu0 0
      %1960 = vmatprep.subr.bf16.mxu0 0
      %1961 = vmatpush1.bf16.xpose.msra.mxu0 0
      %1962 = vmatprep.subr.bf16.mxu0 0
      %1963 = vmatpush1.bf16.xpose.msra.mxu0 0
      %1964 = vmatprep.subr.bf16.mxu0 0
      %1965 = vmatpush1.bf16.xpose.msra.mxu0 0
      %1966 = vmatprep.subr.bf16.mxu0 0
      %1967 = vmatpush1.bf16.xpose.msra.mxu0 0
      %1968 = vmatprep.subr.bf16.mxu0 0
      %1969 = vmatpush1.bf16.xpose.msra.mxu0 0
      %1970 = vmatprep.subr.bf16.mxu0 0
      %1971 = vmatpush1.bf16.xpose.msra.mxu0 0
      %1972 = vmatprep.subr.bf16.mxu0 0
      %1973 = vmatpush1.bf16.xpose.msra.mxu0 0
      %1974 = vmatprep.subr.bf16.mxu0 0
      %1975 = vmatpush1.bf16.xpose.msra.mxu0 0
      %1976 = vmatprep.subr.bf16.mxu0 0
      %1977 = vmatpush1.bf16.xpose.msra.mxu0 0
      %1978 = vmatprep.subr.bf16.mxu0 0
      %1979 = vmatpush1.bf16.xpose.msra.mxu0 0
      %1980 = vmatprep.subr.bf16.mxu0 0
      %1981 = vmatpush1.bf16.xpose.msra.mxu0 0
      %1982 = vmatprep.mubr.bf16.mxu0 0
      %1983 = vmatmul.mubr.bf16.gmra.mrb[0].mxu0 %v1945
      %v1984 = vpop.f32.mrb[0].mxu0
      %v1985 = vadd.f32 0.0, %v1984
      %v1986 = vpop.f32.mrb[0].mxu0
      %v1987 = vpop.f32.mrb[0].mxu0
      %v1988 = vpop.f32.mrb[0].mxu0
      %1989 = vdwg.mxu0
      %1991 = vrot.lane.b32.xlu0 %v1590, 96
      %v1992 = vpop.permute.xlu0 %1991
      %v1994 = vsel %vm1428, %v1574, 0
      %v1997 = vsel %vm1428, %v1992, 0
      %1999 = vmatprep.subr.bf16.mxu0 0
      %2000 = vmatpush1.bf16.xpose.msra.mxu0 %v1997
      %2001 = vmatprep.subr.bf16.mxu0 0
      %2002 = vmatpush1.bf16.xpose.msra.mxu0 0
      %2003 = vmatprep.subr.bf16.mxu0 0
      %2004 = vmatpush1.bf16.xpose.msra.mxu0 0
      %2005 = vmatprep.subr.bf16.mxu0 0
      %2006 = vmatpush1.bf16.xpose.msra.mxu0 0
      %2007 = vmatprep.subr.bf16.mxu0 0
      %2008 = vmatpush1.bf16.xpose.msra.mxu0 0
      %2009 = vmatprep.subr.bf16.mxu0 0
      %2010 = vmatpush1.bf16.xpose.msra.mxu0 0
      %2011 = vmatprep.subr.bf16.mxu0 0
      %2012 = vmatpush1.bf16.xpose.msra.mxu0 0
      %2013 = vmatprep.subr.bf16.mxu0 0
      %2014 = vmatpush1.bf16.xpose.msra.mxu0 0
      %2015 = vmatprep.subr.bf16.mxu0 0
      %2016 = vmatpush1.bf16.xpose.msra.mxu0 0
      %2017 = vmatprep.subr.bf16.mxu0 0
      %2018 = vmatpush1.bf16.xpose.msra.mxu0 0
      %2019 = vmatprep.subr.bf16.mxu0 0
      %2020 = vmatpush1.bf16.xpose.msra.mxu0 0
      %2021 = vmatprep.subr.bf16.mxu0 0
      %2022 = vmatpush1.bf16.xpose.msra.mxu0 0
      %2023 = vmatprep.subr.bf16.mxu0 0
      %2024 = vmatpush1.bf16.xpose.msra.mxu0 0
      %2025 = vmatprep.subr.bf16.mxu0 0
      %2026 = vmatpush1.bf16.xpose.msra.mxu0 0
      %2027 = vmatprep.subr.bf16.mxu0 0
      %2028 = vmatpush1.bf16.xpose.msra.mxu0 0
      %2029 = vmatprep.subr.bf16.mxu0 0
      %2030 = vmatpush1.bf16.xpose.msra.mxu0 0
      %2031 = vmatprep.mubr.bf16.mxu0 0
      %2032 = vmatmul.mubr.bf16.gmra.mrb[0].mxu0 %v1994
      %v2033 = vpop.f32.mrb[0].mxu0
      %v2034 = vadd.f32 0.0, %v2033
      %v2035 = vpop.f32.mrb[0].mxu0
      %v2036 = vpop.f32.mrb[0].mxu0
      %v2037 = vpop.f32.mrb[0].mxu0
      %2038 = vdwg.mxu0
      %2040 = vrot.lane.b32.xlu0 %v1591, 96
      %v2041 = vpop.permute.xlu0 %2040
      %v2043 = vsel %vm1428, %v1575, 0
      %v2046 = vsel %vm1428, %v2041, 0
      %2048 = vmatprep.subr.bf16.mxu0 0
      %2049 = vmatpush1.bf16.xpose.msra.mxu0 %v2046
      %2050 = vmatprep.subr.bf16.mxu0 0
      %2051 = vmatpush1.bf16.xpose.msra.mxu0 0
      %2052 = vmatprep.subr.bf16.mxu0 0
      %2053 = vmatpush1.bf16.xpose.msra.mxu0 0
      %2054 = vmatprep.subr.bf16.mxu0 0
      %2055 = vmatpush1.bf16.xpose.msra.mxu0 0
      %2056 = vmatprep.subr.bf16.mxu0 0
      %2057 = vmatpush1.bf16.xpose.msra.mxu0 0
      %2058 = vmatprep.subr.bf16.mxu0 0
      %2059 = vmatpush1.bf16.xpose.msra.mxu0 0
      %2060 = vmatprep.subr.bf16.mxu0 0
      %2061 = vmatpush1.bf16.xpose.msra.mxu0 0
      %2062 = vmatprep.subr.bf16.mxu0 0
      %2063 = vmatpush1.bf16.xpose.msra.mxu0 0
      %2064 = vmatprep.subr.bf16.mxu0 0
      %2065 = vmatpush1.bf16.xpose.msra.mxu0 0
      %2066 = vmatprep.subr.bf16.mxu0 0
      %2067 = vmatpush1.bf16.xpose.msra.mxu0 0
      %2068 = vmatprep.subr.bf16.mxu0 0
      %2069 = vmatpush1.bf16.xpose.msra.mxu0 0
      %2070 = vmatprep.subr.bf16.mxu0 0
      %2071 = vmatpush1.bf16.xpose.msra.mxu0 0
      %2072 = vmatprep.subr.bf16.mxu0 0
      %2073 = vmatpush1.bf16.xpose.msra.mxu0 0
      %2074 = vmatprep.subr.bf16.mxu0 0
      %2075 = vmatpush1.bf16.xpose.msra.mxu0 0
      %2076 = vmatprep.subr.bf16.mxu0 0
      %2077 = vmatpush1.bf16.xpose.msra.mxu0 0
      %2078 = vmatprep.subr.bf16.mxu0 0
      %2079 = vmatpush1.bf16.xpose.msra.mxu0 0
      %2080 = vmatprep.mubr.bf16.mxu0 0
      %2081 = vmatmul.mubr.bf16.gmra.mrb[0].mxu0 %v2043
      %v2082 = vpop.f32.mrb[0].mxu0
      %v2083 = vadd.f32 0.0, %v2082
      %v2084 = vpop.f32.mrb[0].mxu0
      %v2085 = vpop.f32.mrb[0].mxu0
      %v2086 = vpop.f32.mrb[0].mxu0
      %2087 = vdwg.mxu0
      %2089 = vrot.lane.b32.xlu0 %v1592, 96
      %v2090 = vpop.permute.xlu0 %2089
      %v2092 = vsel %vm1428, %v1576, 0
      %v2095 = vsel %vm1428, %v2090, 0
      %2097 = vmatprep.subr.bf16.mxu0 0
      %2098 = vmatpush1.bf16.xpose.msra.mxu0 %v2095
      %2099 = vmatprep.subr.bf16.mxu0 0
      %2100 = vmatpush1.bf16.xpose.msra.mxu0 0
      %2101 = vmatprep.subr.bf16.mxu0 0
      %2102 = vmatpush1.bf16.xpose.msra.mxu0 0
      %2103 = vmatprep.subr.bf16.mxu0 0
      %2104 = vmatpush1.bf16.xpose.msra.mxu0 0
      %2105 = vmatprep.subr.bf16.mxu0 0
      %2106 = vmatpush1.bf16.xpose.msra.mxu0 0
      %2107 = vmatprep.subr.bf16.mxu0 0
      %2108 = vmatpush1.bf16.xpose.msra.mxu0 0
      %2109 = vmatprep.subr.bf16.mxu0 0
      %2110 = vmatpush1.bf16.xpose.msra.mxu0 0
      %2111 = vmatprep.subr.bf16.mxu0 0
      %2112 = vmatpush1.bf16.xpose.msra.mxu0 0
      %2113 = vmatprep.subr.bf16.mxu0 0
      %2114 = vmatpush1.bf16.xpose.msra.mxu0 0
      %2115 = vmatprep.subr.bf16.mxu0 0
      %2116 = vmatpush1.bf16.xpose.msra.mxu0 0
      %2117 = vmatprep.subr.bf16.mxu0 0
      %2118 = vmatpush1.bf16.xpose.msra.mxu0 0
      %2119 = vmatprep.subr.bf16.mxu0 0
      %2120 = vmatpush1.bf16.xpose.msra.mxu0 0
      %2121 = vmatprep.subr.bf16.mxu0 0
      %2122 = vmatpush1.bf16.xpose.msra.mxu0 0
      %2123 = vmatprep.subr.bf16.mxu0 0
      %2124 = vmatpush1.bf16.xpose.msra.mxu0 0
      %2125 = vmatprep.subr.bf16.mxu0 0
      %2126 = vmatpush1.bf16.xpose.msra.mxu0 0
      %2127 = vmatprep.subr.bf16.mxu0 0
      %2128 = vmatpush1.bf16.xpose.msra.mxu0 0
      %2129 = vmatprep.mubr.bf16.mxu0 0
      %2130 = vmatmul.mubr.bf16.gmra.mrb[0].mxu0 %v2092
      %v2131 = vpop.f32.mrb[0].mxu0
      %v2132 = vadd.f32 0.0, %v2131
      %v2133 = vpop.f32.mrb[0].mxu0
      %v2134 = vpop.f32.mrb[0].mxu0
      %v2135 = vpop.f32.mrb[0].mxu0
      %2136 = vdwg.mxu0
      %2138 = vrot.lane.b32.xlu0 %v1593, 96
      %v2139 = vpop.permute.xlu0 %2138
      %v2141 = vsel %vm1428, %v1577, 0
      %v2144 = vsel %vm1428, %v2139, 0
      %2146 = vmatprep.subr.bf16.mxu0 0
      %2147 = vmatpush1.bf16.xpose.msra.mxu0 %v2144
      %2148 = vmatprep.subr.bf16.mxu0 0
      %2149 = vmatpush1.bf16.xpose.msra.mxu0 0
      %2150 = vmatprep.subr.bf16.mxu0 0
      %2151 = vmatpush1.bf16.xpose.msra.mxu0 0
      %2152 = vmatprep.subr.bf16.mxu0 0
      %2153 = vmatpush1.bf16.xpose.msra.mxu0 0
      %2154 = vmatprep.subr.bf16.mxu0 0
      %2155 = vmatpush1.bf16.xpose.msra.mxu0 0
      %2156 = vmatprep.subr.bf16.mxu0 0
      %2157 = vmatpush1.bf16.xpose.msra.mxu0 0
      %2158 = vmatprep.subr.bf16.mxu0 0
      %2159 = vmatpush1.bf16.xpose.msra.mxu0 0
      %2160 = vmatprep.subr.bf16.mxu0 0
      %2161 = vmatpush1.bf16.xpose.msra.mxu0 0
      %2162 = vmatprep.subr.bf16.mxu0 0
      %2163 = vmatpush1.bf16.xpose.msra.mxu0 0
      %2164 = vmatprep.subr.bf16.mxu0 0
      %2165 = vmatpush1.bf16.xpose.msra.mxu0 0
      %2166 = vmatprep.subr.bf16.mxu0 0
      %2167 = vmatpush1.bf16.xpose.msra.mxu0 0
      %2168 = vmatprep.subr.bf16.mxu0 0
      %2169 = vmatpush1.bf16.xpose.msra.mxu0 0
      %2170 = vmatprep.subr.bf16.mxu0 0
      %2171 = vmatpush1.bf16.xpose.msra.mxu0 0
      %2172 = vmatprep.subr.bf16.mxu0 0
      %2173 = vmatpush1.bf16.xpose.msra.mxu0 0
      %2174 = vmatprep.subr.bf16.mxu0 0
      %2175 = vmatpush1.bf16.xpose.msra.mxu0 0
      %2176 = vmatprep.subr.bf16.mxu0 0
      %2177 = vmatpush1.bf16.xpose.msra.mxu0 0
      %2178 = vmatprep.mubr.bf16.mxu0 0
      %2179 = vmatmul.mubr.bf16.gmra.mrb[0].mxu0 %v2141
      %v2180 = vpop.f32.mrb[0].mxu0
      %v2181 = vadd.f32 0.0, %v2180
      %v2182 = vpop.f32.mrb[0].mxu0
      %v2183 = vpop.f32.mrb[0].mxu0
      %v2184 = vpop.f32.mrb[0].mxu0
      %2185 = vdwg.mxu0
      %2187 = vrot.lane.b32.xlu0 %v1594, 96
      %v2188 = vpop.permute.xlu0 %2187
      %v2190 = vsel %vm1428, %v1578, 0
      %v2193 = vsel %vm1428, %v2188, 0
      %2195 = vmatprep.subr.bf16.mxu0 0
      %2196 = vmatpush1.bf16.xpose.msra.mxu0 %v2193
      %2197 = vmatprep.subr.bf16.mxu0 0
      %2198 = vmatpush1.bf16.xpose.msra.mxu0 0
      %2199 = vmatprep.subr.bf16.mxu0 0
      %2200 = vmatpush1.bf16.xpose.msra.mxu0 0
      %2201 = vmatprep.subr.bf16.mxu0 0
      %2202 = vmatpush1.bf16.xpose.msra.mxu0 0
      %2203 = vmatprep.subr.bf16.mxu0 0
      %2204 = vmatpush1.bf16.xpose.msra.mxu0 0
      %2205 = vmatprep.subr.bf16.mxu0 0
      %2206 = vmatpush1.bf16.xpose.msra.mxu0 0
      %2207 = vmatprep.subr.bf16.mxu0 0
      %2208 = vmatpush1.bf16.xpose.msra.mxu0 0
      %2209 = vmatprep.subr.bf16.mxu0 0
      %2210 = vmatpush1.bf16.xpose.msra.mxu0 0
      %2211 = vmatprep.subr.bf16.mxu0 0
      %2212 = vmatpush1.bf16.xpose.msra.mxu0 0
      %2213 = vmatprep.subr.bf16.mxu0 0
      %2214 = vmatpush1.bf16.xpose.msra.mxu0 0
      %2215 = vmatprep.subr.bf16.mxu0 0
      %2216 = vmatpush1.bf16.xpose.msra.mxu0 0
      %2217 = vmatprep.subr.bf16.mxu0 0
      %2218 = vmatpush1.bf16.xpose.msra.mxu0 0
      %2219 = vmatprep.subr.bf16.mxu0 0
      %2220 = vmatpush1.bf16.xpose.msra.mxu0 0
      %2221 = vmatprep.subr.bf16.mxu0 0
      %2222 = vmatpush1.bf16.xpose.msra.mxu0 0
      %2223 = vmatprep.subr.bf16.mxu0 0
      %2224 = vmatpush1.bf16.xpose.msra.mxu0 0
      %2225 = vmatprep.subr.bf16.mxu0 0
      %2226 = vmatpush1.bf16.xpose.msra.mxu0 0
      %2227 = vmatprep.mubr.bf16.mxu0 0
      %2228 = vmatmul.mubr.bf16.gmra.mrb[0].mxu0 %v2190
      %v2229 = vpop.f32.mrb[0].mxu0
      %v2230 = vadd.f32 0.0, %v2229
      %v2231 = vpop.f32.mrb[0].mxu0
      %v2232 = vpop.f32.mrb[0].mxu0
      %v2233 = vpop.f32.mrb[0].mxu0
      %2234 = vdwg.mxu0
      %2236 = vrot.lane.b32.xlu0 %v1595, 96
      %v2237 = vpop.permute.xlu0 %2236
      %v2239 = vsel %vm1428, %v1579, 0
      %v2242 = vsel %vm1428, %v2237, 0
      %2244 = vmatprep.subr.bf16.mxu0 0
      %2245 = vmatpush1.bf16.xpose.msra.mxu0 %v2242
      %2246 = vmatprep.subr.bf16.mxu0 0
      %2247 = vmatpush1.bf16.xpose.msra.mxu0 0
      %2248 = vmatprep.subr.bf16.mxu0 0
      %2249 = vmatpush1.bf16.xpose.msra.mxu0 0
      %2250 = vmatprep.subr.bf16.mxu0 0
      %2251 = vmatpush1.bf16.xpose.msra.mxu0 0
      %2252 = vmatprep.subr.bf16.mxu0 0
      %2253 = vmatpush1.bf16.xpose.msra.mxu0 0
      %2254 = vmatprep.subr.bf16.mxu0 0
      %2255 = vmatpush1.bf16.xpose.msra.mxu0 0
      %2256 = vmatprep.subr.bf16.mxu0 0
      %2257 = vmatpush1.bf16.xpose.msra.mxu0 0
      %2258 = vmatprep.subr.bf16.mxu0 0
      %2259 = vmatpush1.bf16.xpose.msra.mxu0 0
      %2260 = vmatprep.subr.bf16.mxu0 0
      %2261 = vmatpush1.bf16.xpose.msra.mxu0 0
      %2262 = vmatprep.subr.bf16.mxu0 0
      %2263 = vmatpush1.bf16.xpose.msra.mxu0 0
      %2264 = vmatprep.subr.bf16.mxu0 0
      %2265 = vmatpush1.bf16.xpose.msra.mxu0 0
      %2266 = vmatprep.subr.bf16.mxu0 0
      %2267 = vmatpush1.bf16.xpose.msra.mxu0 0
      %2268 = vmatprep.subr.bf16.mxu0 0
      %2269 = vmatpush1.bf16.xpose.msra.mxu0 0
      %2270 = vmatprep.subr.bf16.mxu0 0
      %2271 = vmatpush1.bf16.xpose.msra.mxu0 0
      %2272 = vmatprep.subr.bf16.mxu0 0
      %2273 = vmatpush1.bf16.xpose.msra.mxu0 0
      %2274 = vmatprep.subr.bf16.mxu0 0
      %2275 = vmatpush1.bf16.xpose.msra.mxu0 0
      %2276 = vmatprep.mubr.bf16.mxu0 0
      %2277 = vmatmul.mubr.bf16.gmra.mrb[0].mxu0 %v2239
      %v2278 = vpop.f32.mrb[0].mxu0
      %v2279 = vadd.f32 0.0, %v2278
      %v2280 = vpop.f32.mrb[0].mxu0
      %v2281 = vpop.f32.mrb[0].mxu0
      %v2282 = vpop.f32.mrb[0].mxu0
      %2283 = vdwg.mxu0
      %2285 = vrot.lane.b32.xlu0 %v1596, 96
      %v2286 = vpop.permute.xlu0 %2285
      %v2288 = vsel %vm1428, %v1580, 0
      %v2291 = vsel %vm1428, %v2286, 0
      %2293 = vmatprep.subr.bf16.mxu0 0
      %2294 = vmatpush1.bf16.xpose.msra.mxu0 %v2291
      %2295 = vmatprep.subr.bf16.mxu0 0
      %2296 = vmatpush1.bf16.xpose.msra.mxu0 0
      %2297 = vmatprep.subr.bf16.mxu0 0
      %2298 = vmatpush1.bf16.xpose.msra.mxu0 0
      %2299 = vmatprep.subr.bf16.mxu0 0
      %2300 = vmatpush1.bf16.xpose.msra.mxu0 0
      %2301 = vmatprep.subr.bf16.mxu0 0
      %2302 = vmatpush1.bf16.xpose.msra.mxu0 0
      %2303 = vmatprep.subr.bf16.mxu0 0
      %2304 = vmatpush1.bf16.xpose.msra.mxu0 0
      %2305 = vmatprep.subr.bf16.mxu0 0
      %2306 = vmatpush1.bf16.xpose.msra.mxu0 0
      %2307 = vmatprep.subr.bf16.mxu0 0
      %2308 = vmatpush1.bf16.xpose.msra.mxu0 0
      %2309 = vmatprep.subr.bf16.mxu0 0
      %2310 = vmatpush1.bf16.xpose.msra.mxu0 0
      %2311 = vmatprep.subr.bf16.mxu0 0
      %2312 = vmatpush1.bf16.xpose.msra.mxu0 0
      %2313 = vmatprep.subr.bf16.mxu0 0
      %2314 = vmatpush1.bf16.xpose.msra.mxu0 0
      %2315 = vmatprep.subr.bf16.mxu0 0
      %2316 = vmatpush1.bf16.xpose.msra.mxu0 0
      %2317 = vmatprep.subr.bf16.mxu0 0
      %2318 = vmatpush1.bf16.xpose.msra.mxu0 0
      %2319 = vmatprep.subr.bf16.mxu0 0
      %2320 = vmatpush1.bf16.xpose.msra.mxu0 0
      %2321 = vmatprep.subr.bf16.mxu0 0
      %2322 = vmatpush1.bf16.xpose.msra.mxu0 0
      %2323 = vmatprep.subr.bf16.mxu0 0
      %2324 = vmatpush1.bf16.xpose.msra.mxu0 0
      %2325 = vmatprep.mubr.bf16.mxu0 0
      %2326 = vmatmul.mubr.bf16.gmra.mrb[0].mxu0 %v2288
      %v2327 = vpop.f32.mrb[0].mxu0
      %v2328 = vadd.f32 0.0, %v2327
      %v2329 = vpop.f32.mrb[0].mxu0
      %v2330 = vpop.f32.mrb[0].mxu0
      %v2331 = vpop.f32.mrb[0].mxu0
      %2332 = vdwg.mxu0
      %2334 = vrot.lane.b32.xlu0 %v1597, 96
      %v2335 = vpop.permute.xlu0 %2334
      %v2337 = vsel %vm1428, %v1581, 0
      %v2340 = vsel %vm1428, %v2335, 0
      %2342 = vmatprep.subr.bf16.mxu0 0
      %2343 = vmatpush1.bf16.xpose.msra.mxu0 %v2340
      %2344 = vmatprep.subr.bf16.mxu0 0
      %2345 = vmatpush1.bf16.xpose.msra.mxu0 0
      %2346 = vmatprep.subr.bf16.mxu0 0
      %2347 = vmatpush1.bf16.xpose.msra.mxu0 0
      %2348 = vmatprep.subr.bf16.mxu0 0
      %2349 = vmatpush1.bf16.xpose.msra.mxu0 0
      %2350 = vmatprep.subr.bf16.mxu0 0
      %2351 = vmatpush1.bf16.xpose.msra.mxu0 0
      %2352 = vmatprep.subr.bf16.mxu0 0
      %2353 = vmatpush1.bf16.xpose.msra.mxu0 0
      %2354 = vmatprep.subr.bf16.mxu0 0
      %2355 = vmatpush1.bf16.xpose.msra.mxu0 0
      %2356 = vmatprep.subr.bf16.mxu0 0
      %2357 = vmatpush1.bf16.xpose.msra.mxu0 0
      %2358 = vmatprep.subr.bf16.mxu0 0
      %2359 = vmatpush1.bf16.xpose.msra.mxu0 0
      %2360 = vmatprep.subr.bf16.mxu0 0
      %2361 = vmatpush1.bf16.xpose.msra.mxu0 0
      %2362 = vmatprep.subr.bf16.mxu0 0
      %2363 = vmatpush1.bf16.xpose.msra.mxu0 0
      %2364 = vmatprep.subr.bf16.mxu0 0
      %2365 = vmatpush1.bf16.xpose.msra.mxu0 0
      %2366 = vmatprep.subr.bf16.mxu0 0
      %2367 = vmatpush1.bf16.xpose.msra.mxu0 0
      %2368 = vmatprep.subr.bf16.mxu0 0
      %2369 = vmatpush1.bf16.xpose.msra.mxu0 0
      %2370 = vmatprep.subr.bf16.mxu0 0
      %2371 = vmatpush1.bf16.xpose.msra.mxu0 0
      %2372 = vmatprep.subr.bf16.mxu0 0
      %2373 = vmatpush1.bf16.xpose.msra.mxu0 0
      %2374 = vmatprep.mubr.bf16.mxu0 0
      %2375 = vmatmul.mubr.bf16.gmra.mrb[0].mxu0 %v2337
      %v2376 = vpop.f32.mrb[0].mxu0
      %v2377 = vadd.f32 0.0, %v2376
      %v2378 = vpop.f32.mrb[0].mxu0
      %v2379 = vpop.f32.mrb[0].mxu0
      %v2380 = vpop.f32.mrb[0].mxu0
      %2381 = vdwg.mxu0
      %vm2382 = vcmask 64512
      %v2383 = vsel %vm2382, %v1642, -inf
      %2384 = vmax.xlane.f32.xlu0 %v2383
      %v2385 = vpop.xlane.xlu0 %2384
      %v2386 = vsel %vm2382, %v1691, -inf
      %2387 = vmax.xlane.f32.xlu0 %v2386
      %v2388 = vpop.xlane.xlu0 %2387
      %v2389 = vsel %vm2382, %v1740, -inf
      %2390 = vmax.xlane.f32.xlu0 %v2389
      %v2391 = vpop.xlane.xlu0 %2390
      %v2392 = vsel %vm2382, %v1789, -inf
      %2393 = vmax.xlane.f32.xlu0 %v2392
      %v2394 = vpop.xlane.xlu0 %2393
      %v2395 = vsel %vm2382, %v1838, -inf
      %2396 = vmax.xlane.f32.xlu0 %v2395
      %v2397 = vpop.xlane.xlu0 %2396
      %v2398 = vsel %vm2382, %v1887, -inf
      %2399 = vmax.xlane.f32.xlu0 %v2398
      %v2400 = vpop.xlane.xlu0 %2399
      %v2401 = vsel %vm2382, %v1936, -inf
      %2402 = vmax.xlane.f32.xlu0 %v2401
      %v2403 = vpop.xlane.xlu0 %2402
      %v2404 = vsel %vm2382, %v1985, -inf
      %2405 = vmax.xlane.f32.xlu0 %v2404
      %v2406 = vpop.xlane.xlu0 %2405
      %v2407 = vsel %vm2382, %v2034, -inf
      %2408 = vmax.xlane.f32.xlu0 %v2407
      %v2409 = vpop.xlane.xlu0 %2408
      %v2410 = vsel %vm2382, %v2083, -inf
      %2411 = vmax.xlane.f32.xlu0 %v2410
      %v2412 = vpop.xlane.xlu0 %2411
      %v2413 = vsel %vm2382, %v2132, -inf
      %2414 = vmax.xlane.f32.xlu0 %v2413
      %v2415 = vpop.xlane.xlu0 %2414
      %v2416 = vsel %vm2382, %v2181, -inf
      %2417 = vmax.xlane.f32.xlu0 %v2416
      %v2418 = vpop.xlane.xlu0 %2417
      %v2419 = vsel %vm2382, %v2230, -inf
      %2420 = vmax.xlane.f32.xlu0 %v2419
      %v2421 = vpop.xlane.xlu0 %2420
      %v2422 = vsel %vm2382, %v2279, -inf
      %2423 = vmax.xlane.f32.xlu0 %v2422
      %v2424 = vpop.xlane.xlu0 %2423
      %v2425 = vsel %vm2382, %v2328, -inf
      %2426 = vmax.xlane.f32.xlu0 %v2425
      %v2427 = vpop.xlane.xlu0 %2426
      %v2428 = vsel %vm2382, %v2377, -inf
      %2429 = vmax.xlane.f32.xlu0 %v2428
      %v2430 = vpop.xlane.xlu0 %2429
      %v2431 = vsub.f32 %v1642, %v2385
      %v2432 = vsub.f32 %v1691, %v2388
      %v2433 = vsub.f32 %v1740, %v2391
      %v2434 = vsub.f32 %v1789, %v2394
      %v2435 = vsub.f32 %v1838, %v2397
      %v2436 = vsub.f32 %v1887, %v2400
      %v2437 = vsub.f32 %v1936, %v2403
      %v2438 = vsub.f32 %v1985, %v2406
      %v2439 = vsub.f32 %v2034, %v2409
      %v2440 = vsub.f32 %v2083, %v2412
      %v2441 = vsub.f32 %v2132, %v2415
      %v2442 = vsub.f32 %v2181, %v2418
      %v2443 = vsub.f32 %v2230, %v2421
      %v2444 = vsub.f32 %v2279, %v2424
      %v2445 = vsub.f32 %v2328, %v2427
      %v2446 = vsub.f32 %v2377, %v2430
      %v2447 = vmul.f32 %v2431, 1.442695
      %v2448 = vpow.pop %v2447
      %v2449 = vmul.f32 %v2432, 1.442695
      %v2450 = vpow.pop %v2449
      %v2451 = vmul.f32 %v2433, 1.442695
      %v2452 = vpow.pop %v2451
      %v2453 = vmul.f32 %v2434, 1.442695
      %v2454 = vpow.pop %v2453
      %v2455 = vmul.f32 %v2435, 1.442695
      %v2456 = vpow.pop %v2455
      %v2457 = vmul.f32 %v2436, 1.442695
      %v2458 = vpow.pop %v2457
      %v2459 = vmul.f32 %v2437, 1.442695
      %v2460 = vpow.pop %v2459
      %v2461 = vmul.f32 %v2438, 1.442695
      %v2462 = vpow.pop %v2461
      %v2463 = vmul.f32 %v2439, 1.442695
      %v2464 = vpow.pop %v2463
      %v2465 = vmul.f32 %v2440, 1.442695
      %v2466 = vpow.pop %v2465
      %v2467 = vmul.f32 %v2441, 1.442695
      %v2468 = vpow.pop %v2467
      %v2469 = vmul.f32 %v2442, 1.442695
      %v2470 = vpow.pop %v2469
      %v2471 = vmul.f32 %v2443, 1.442695
      %v2472 = vpow.pop %v2471
      %v2473 = vmul.f32 %v2444, 1.442695
      %v2474 = vpow.pop %v2473
      %v2475 = vmul.f32 %v2445, 1.442695
      %v2476 = vpow.pop %v2475
      %v2477 = vmul.f32 %v2446, 1.442695
      %v2478 = vpow.pop %v2477
      %v2479 = vsel %vm2382, %v2448, 0.0
      %2480 = vadd.xlane.f32.xlu0 %v2479
      %v2481 = vpop.xlane.xlu0 %2480
      %v2482 = vsel %vm2382, %v2450, 0.0
      %2483 = vadd.xlane.f32.xlu0 %v2482
      %v2484 = vpop.xlane.xlu0 %2483
      %v2485 = vsel %vm2382, %v2452, 0.0
      %2486 = vadd.xlane.f32.xlu0 %v2485
      %v2487 = vpop.xlane.xlu0 %2486
      %v2488 = vsel %vm2382, %v2454, 0.0
      %2489 = vadd.xlane.f32.xlu0 %v2488
      %v2490 = vpop.xlane.xlu0 %2489
      %v2491 = vsel %vm2382, %v2456, 0.0
      %2492 = vadd.xlane.f32.xlu0 %v2491
      %v2493 = vpop.xlane.xlu0 %2492
      %v2494 = vsel %vm2382, %v2458, 0.0
      %2495 = vadd.xlane.f32.xlu0 %v2494
      %v2496 = vpop.xlane.xlu0 %2495
      %v2497 = vsel %vm2382, %v2460, 0.0
      %2498 = vadd.xlane.f32.xlu0 %v2497
      %v2499 = vpop.xlane.xlu0 %2498
      %v2500 = vsel %vm2382, %v2462, 0.0
      %2501 = vadd.xlane.f32.xlu0 %v2500
      %v2502 = vpop.xlane.xlu0 %2501
      %v2503 = vsel %vm2382, %v2464, 0.0
      %2504 = vadd.xlane.f32.xlu0 %v2503
      %v2505 = vpop.xlane.xlu0 %2504
      %v2506 = vsel %vm2382, %v2466, 0.0
      %2507 = vadd.xlane.f32.xlu0 %v2506
      %v2508 = vpop.xlane.xlu0 %2507
      %v2509 = vsel %vm2382, %v2468, 0.0
      %2510 = vadd.xlane.f32.xlu0 %v2509
      %v2511 = vpop.xlane.xlu0 %2510
      %v2512 = vsel %vm2382, %v2470, 0.0
      %2513 = vadd.xlane.f32.xlu0 %v2512
      %v2514 = vpop.xlane.xlu0 %2513
      %v2515 = vsel %vm2382, %v2472, 0.0
      %2516 = vadd.xlane.f32.xlu0 %v2515
      %v2517 = vpop.xlane.xlu0 %2516
      %v2518 = vsel %vm2382, %v2474, 0.0
      %2519 = vadd.xlane.f32.xlu0 %v2518
      %v2520 = vpop.xlane.xlu0 %2519
      %v2521 = vsel %vm2382, %v2476, 0.0
      %2522 = vadd.xlane.f32.xlu0 %v2521
      %v2523 = vpop.xlane.xlu0 %2522
      %v2524 = vsel %vm2382, %v2478, 0.0
      %2525 = vadd.xlane.f32.xlu0 %v2524
      %v2526 = vpop.xlane.xlu0 %2525
      %v2527 = vrcp.pop %v2481
      %v2528 = vrcp.pop %v2484
      %v2529 = vrcp.pop %v2487
      %v2530 = vrcp.pop %v2490
      %v2531 = vrcp.pop %v2493
      %v2532 = vrcp.pop %v2496
      %v2533 = vrcp.pop %v2499
      %v2534 = vrcp.pop %v2502
      %v2535 = vrcp.pop %v2505
      %v2536 = vrcp.pop %v2508
      %v2537 = vrcp.pop %v2511
      %v2538 = vrcp.pop %v2514
      %v2539 = vrcp.pop %v2517
      %v2540 = vrcp.pop %v2520
      %v2541 = vrcp.pop %v2523
      %v2542 = vrcp.pop %v2526
      %v2543 = vmul.f32 %v2448, %v2527
      %v2544 = vmul.f32 %v2450, %v2528
      %v2545 = vmul.f32 %v2452, %v2529
      %v2546 = vmul.f32 %v2454, %v2530
      %v2547 = vmul.f32 %v2456, %v2531
      %v2548 = vmul.f32 %v2458, %v2532
      %v2549 = vmul.f32 %v2460, %v2533
      %v2550 = vmul.f32 %v2462, %v2534
      %v2551 = vmul.f32 %v2464, %v2535
      %v2552 = vmul.f32 %v2466, %v2536
      %v2553 = vmul.f32 %v2468, %v2537
      %v2554 = vmul.f32 %v2470, %v2538
      %v2555 = vmul.f32 %v2472, %v2539
      %v2556 = vmul.f32 %v2474, %v2540
      %v2557 = vmul.f32 %v2476, %v2541
      %v2558 = vmul.f32 %v2478, %v2542
      %v2559 = vpack.c.bf16 %v2543, %v2543
      %v2560 = vpack.c.bf16 %v2544, %v2544
      %v2561 = vpack.c.bf16 %v2545, %v2545
      %v2562 = vpack.c.bf16 %v2546, %v2546
      %v2563 = vpack.c.bf16 %v2547, %v2547
      %v2564 = vpack.c.bf16 %v2548, %v2548
      %v2565 = vpack.c.bf16 %v2549, %v2549
      %v2566 = vpack.c.bf16 %v2550, %v2550
      %v2567 = vpack.c.bf16 %v2551, %v2551
      %v2568 = vpack.c.bf16 %v2552, %v2552
      %v2569 = vpack.c.bf16 %v2553, %v2553
      %v2570 = vpack.c.bf16 %v2554, %v2554
      %v2571 = vpack.c.bf16 %v2555, %v2555
      %v2572 = vpack.c.bf16 %v2556, %v2556
      %v2573 = vpack.c.bf16 %v2557, %v2557
      %v2574 = vpack.c.bf16 %v2558, %v2558
      %2575 = vrot.lane.b32.xlu0 %v1582, 64
      %v2576 = vpop.permute.xlu0 %2575
      %v2578 = vsel %vm2382, %v2559, 0
      %vm2580 = vcmask 1043456
      %v2582 = vsel %vm2580, %v2576, 0
      %2584 = vmatprep.subr.bf16.mxu0 0
      %2585 = vmatpush1.bf16.msra.mxu0 %v2582
      %2586 = vmatprep.subr.bf16.mxu0 0
      %2587 = vmatpush1.bf16.msra.mxu0 0
      %2588 = vmatprep.subr.bf16.mxu0 0
      %2589 = vmatpush1.bf16.msra.mxu0 0
      %2590 = vmatprep.subr.bf16.mxu0 0
      %2591 = vmatpush1.bf16.msra.mxu0 0
      %2592 = vmatprep.subr.bf16.mxu0 0
      %2593 = vmatpush1.bf16.msra.mxu0 0
      %2594 = vmatprep.subr.bf16.mxu0 0
      %2595 = vmatpush1.bf16.msra.mxu0 0
      %2596 = vmatprep.subr.bf16.mxu0 0
      %2597 = vmatpush1.bf16.msra.mxu0 0
      %2598 = vmatprep.subr.bf16.mxu0 0
      %2599 = vmatpush1.bf16.msra.mxu0 0
      %2600 = vmatprep.subr.bf16.mxu0 0
      %2601 = vmatpush1.bf16.msra.mxu0 0
      %2602 = vmatprep.subr.bf16.mxu0 0
      %2603 = vmatpush1.bf16.msra.mxu0 0
      %2604 = vmatprep.subr.bf16.mxu0 0
      %2605 = vmatpush1.bf16.msra.mxu0 0
      %2606 = vmatprep.subr.bf16.mxu0 0
      %2607 = vmatpush1.bf16.msra.mxu0 0
      %2608 = vmatprep.subr.bf16.mxu0 0
      %2609 = vmatpush1.bf16.msra.mxu0 0
      %2610 = vmatprep.subr.bf16.mxu0 0
      %2611 = vmatpush1.bf16.msra.mxu0 0
      %2612 = vmatprep.subr.bf16.mxu0 0
      %2613 = vmatpush1.bf16.msra.mxu0 0
      %2614 = vmatprep.subr.bf16.mxu0 0
      %2615 = vmatpush1.bf16.msra.mxu0 0
      %2616 = vmatprep.mubr.bf16.mxu0 0
      %2617 = vmatmul.mubr.bf16.gmra.mrb[0].mxu0 %v2578
      %v2618 = vpop.f32.mrb[0].mxu0
      %v2619 = vadd.f32 0.0, %v2618
      %v2620 = vpop.f32.mrb[0].mxu0
      %v2621 = vpop.f32.mrb[0].mxu0
      %v2622 = vpop.f32.mrb[0].mxu0
      %2623 = vdwg.mxu0
      %2624 = vrot.lane.b32.xlu0 %v1583, 64
      %v2625 = vpop.permute.xlu0 %2624
      %v2627 = vsel %vm2382, %v2560, 0
      %v2630 = vsel %vm2580, %v2625, 0
      %2632 = vmatprep.subr.bf16.mxu0 0
      %2633 = vmatpush1.bf16.msra.mxu0 %v2630
      %2634 = vmatprep.subr.bf16.mxu0 0
      %2635 = vmatpush1.bf16.msra.mxu0 0
      %2636 = vmatprep.subr.bf16.mxu0 0
      %2637 = vmatpush1.bf16.msra.mxu0 0
      %2638 = vmatprep.subr.bf16.mxu0 0
      %2639 = vmatpush1.bf16.msra.mxu0 0
      %2640 = vmatprep.subr.bf16.mxu0 0
      %2641 = vmatpush1.bf16.msra.mxu0 0
      %2642 = vmatprep.subr.bf16.mxu0 0
      %2643 = vmatpush1.bf16.msra.mxu0 0
      %2644 = vmatprep.subr.bf16.mxu0 0
      %2645 = vmatpush1.bf16.msra.mxu0 0
      %2646 = vmatprep.subr.bf16.mxu0 0
      %2647 = vmatpush1.bf16.msra.mxu0 0
      %2648 = vmatprep.subr.bf16.mxu0 0
      %2649 = vmatpush1.bf16.msra.mxu0 0
      %2650 = vmatprep.subr.bf16.mxu0 0
      %2651 = vmatpush1.bf16.msra.mxu0 0
      %2652 = vmatprep.subr.bf16.mxu0 0
      %2653 = vmatpush1.bf16.msra.mxu0 0
      %2654 = vmatprep.subr.bf16.mxu0 0
      %2655 = vmatpush1.bf16.msra.mxu0 0
      %2656 = vmatprep.subr.bf16.mxu0 0
      %2657 = vmatpush1.bf16.msra.mxu0 0
      %2658 = vmatprep.subr.bf16.mxu0 0
      %2659 = vmatpush1.bf16.msra.mxu0 0
      %2660 = vmatprep.subr.bf16.mxu0 0
      %2661 = vmatpush1.bf16.msra.mxu0 0
      %2662 = vmatprep.subr.bf16.mxu0 0
      %2663 = vmatpush1.bf16.msra.mxu0 0
      %2664 = vmatprep.mubr.bf16.mxu0 0
      %2665 = vmatmul.mubr.bf16.gmra.mrb[0].mxu0 %v2627
      %v2666 = vpop.f32.mrb[0].mxu0
      %v2667 = vadd.f32 0.0, %v2666
      %v2668 = vpop.f32.mrb[0].mxu0
      %v2669 = vpop.f32.mrb[0].mxu0
      %v2670 = vpop.f32.mrb[0].mxu0
      %2671 = vdwg.mxu0
      %2672 = vrot.lane.b32.xlu0 %v1584, 64
      %v2673 = vpop.permute.xlu0 %2672
      %v2675 = vsel %vm2382, %v2561, 0
      %v2678 = vsel %vm2580, %v2673, 0
      %2680 = vmatprep.subr.bf16.mxu0 0
      %2681 = vmatpush1.bf16.msra.mxu0 %v2678
      %2682 = vmatprep.subr.bf16.mxu0 0
      %2683 = vmatpush1.bf16.msra.mxu0 0
      %2684 = vmatprep.subr.bf16.mxu0 0
      %2685 = vmatpush1.bf16.msra.mxu0 0
      %2686 = vmatprep.subr.bf16.mxu0 0
      %2687 = vmatpush1.bf16.msra.mxu0 0
      %2688 = vmatprep.subr.bf16.mxu0 0
      %2689 = vmatpush1.bf16.msra.mxu0 0
      %2690 = vmatprep.subr.bf16.mxu0 0
      %2691 = vmatpush1.bf16.msra.mxu0 0
      %2692 = vmatprep.subr.bf16.mxu0 0
      %2693 = vmatpush1.bf16.msra.mxu0 0
      %2694 = vmatprep.subr.bf16.mxu0 0
      %2695 = vmatpush1.bf16.msra.mxu0 0
      %2696 = vmatprep.subr.bf16.mxu0 0
      %2697 = vmatpush1.bf16.msra.mxu0 0
      %2698 = vmatprep.subr.bf16.mxu0 0
      %2699 = vmatpush1.bf16.msra.mxu0 0
      %2700 = vmatprep.subr.bf16.mxu0 0
      %2701 = vmatpush1.bf16.msra.mxu0 0
      %2702 = vmatprep.subr.bf16.mxu0 0
      %2703 = vmatpush1.bf16.msra.mxu0 0
      %2704 = vmatprep.subr.bf16.mxu0 0
      %2705 = vmatpush1.bf16.msra.mxu0 0
      %2706 = vmatprep.subr.bf16.mxu0 0
      %2707 = vmatpush1.bf16.msra.mxu0 0
      %2708 = vmatprep.subr.bf16.mxu0 0
      %2709 = vmatpush1.bf16.msra.mxu0 0
      %2710 = vmatprep.subr.bf16.mxu0 0
      %2711 = vmatpush1.bf16.msra.mxu0 0
      %2712 = vmatprep.mubr.bf16.mxu0 0
      %2713 = vmatmul.mubr.bf16.gmra.mrb[0].mxu0 %v2675
      %v2714 = vpop.f32.mrb[0].mxu0
      %v2715 = vadd.f32 0.0, %v2714
      %v2716 = vpop.f32.mrb[0].mxu0
      %v2717 = vpop.f32.mrb[0].mxu0
      %v2718 = vpop.f32.mrb[0].mxu0
      %2719 = vdwg.mxu0
      %2720 = vrot.lane.b32.xlu0 %v1585, 64
      %v2721 = vpop.permute.xlu0 %2720
      %v2723 = vsel %vm2382, %v2562, 0
      %v2726 = vsel %vm2580, %v2721, 0
      %2728 = vmatprep.subr.bf16.mxu0 0
      %2729 = vmatpush1.bf16.msra.mxu0 %v2726
      %2730 = vmatprep.subr.bf16.mxu0 0
      %2731 = vmatpush1.bf16.msra.mxu0 0
      %2732 = vmatprep.subr.bf16.mxu0 0
      %2733 = vmatpush1.bf16.msra.mxu0 0
      %2734 = vmatprep.subr.bf16.mxu0 0
      %2735 = vmatpush1.bf16.msra.mxu0 0
      %2736 = vmatprep.subr.bf16.mxu0 0
      %2737 = vmatpush1.bf16.msra.mxu0 0
      %2738 = vmatprep.subr.bf16.mxu0 0
      %2739 = vmatpush1.bf16.msra.mxu0 0
      %2740 = vmatprep.subr.bf16.mxu0 0
      %2741 = vmatpush1.bf16.msra.mxu0 0
      %2742 = vmatprep.subr.bf16.mxu0 0
      %2743 = vmatpush1.bf16.msra.mxu0 0
      %2744 = vmatprep.subr.bf16.mxu0 0
      %2745 = vmatpush1.bf16.msra.mxu0 0
      %2746 = vmatprep.subr.bf16.mxu0 0
      %2747 = vmatpush1.bf16.msra.mxu0 0
      %2748 = vmatprep.subr.bf16.mxu0 0
      %2749 = vmatpush1.bf16.msra.mxu0 0
      %2750 = vmatprep.subr.bf16.mxu0 0
      %2751 = vmatpush1.bf16.msra.mxu0 0
      %2752 = vmatprep.subr.bf16.mxu0 0
      %2753 = vmatpush1.bf16.msra.mxu0 0
      %2754 = vmatprep.subr.bf16.mxu0 0
      %2755 = vmatpush1.bf16.msra.mxu0 0
      %2756 = vmatprep.subr.bf16.mxu0 0
      %2757 = vmatpush1.bf16.msra.mxu0 0
      %2758 = vmatprep.subr.bf16.mxu0 0
      %2759 = vmatpush1.bf16.msra.mxu0 0
      %2760 = vmatprep.mubr.bf16.mxu0 0
      %2761 = vmatmul.mubr.bf16.gmra.mrb[0].mxu0 %v2723
      %v2762 = vpop.f32.mrb[0].mxu0
      %v2763 = vadd.f32 0.0, %v2762
      %v2764 = vpop.f32.mrb[0].mxu0
      %v2765 = vpop.f32.mrb[0].mxu0
      %v2766 = vpop.f32.mrb[0].mxu0
      %2767 = vdwg.mxu0
      %2768 = vrot.lane.b32.xlu0 %v1586, 64
      %v2769 = vpop.permute.xlu0 %2768
      %v2771 = vsel %vm2382, %v2563, 0
      %v2774 = vsel %vm2580, %v2769, 0
      %2776 = vmatprep.subr.bf16.mxu0 0
      %2777 = vmatpush1.bf16.msra.mxu0 %v2774
      %2778 = vmatprep.subr.bf16.mxu0 0
      %2779 = vmatpush1.bf16.msra.mxu0 0
      %2780 = vmatprep.subr.bf16.mxu0 0
      %2781 = vmatpush1.bf16.msra.mxu0 0
      %2782 = vmatprep.subr.bf16.mxu0 0
      %2783 = vmatpush1.bf16.msra.mxu0 0
      %2784 = vmatprep.subr.bf16.mxu0 0
      %2785 = vmatpush1.bf16.msra.mxu0 0
      %2786 = vmatprep.subr.bf16.mxu0 0
      %2787 = vmatpush1.bf16.msra.mxu0 0
      %2788 = vmatprep.subr.bf16.mxu0 0
      %2789 = vmatpush1.bf16.msra.mxu0 0
      %2790 = vmatprep.subr.bf16.mxu0 0
      %2791 = vmatpush1.bf16.msra.mxu0 0
      %2792 = vmatprep.subr.bf16.mxu0 0
      %2793 = vmatpush1.bf16.msra.mxu0 0
      %2794 = vmatprep.subr.bf16.mxu0 0
      %2795 = vmatpush1.bf16.msra.mxu0 0
      %2796 = vmatprep.subr.bf16.mxu0 0
      %2797 = vmatpush1.bf16.msra.mxu0 0
      %2798 = vmatprep.subr.bf16.mxu0 0
      %2799 = vmatpush1.bf16.msra.mxu0 0
      %2800 = vmatprep.subr.bf16.mxu0 0
      %2801 = vmatpush1.bf16.msra.mxu0 0
      %2802 = vmatprep.subr.bf16.mxu0 0
      %2803 = vmatpush1.bf16.msra.mxu0 0
      %2804 = vmatprep.subr.bf16.mxu0 0
      %2805 = vmatpush1.bf16.msra.mxu0 0
      %2806 = vmatprep.subr.bf16.mxu0 0
      %2807 = vmatpush1.bf16.msra.mxu0 0
      %2808 = vmatprep.mubr.bf16.mxu0 0
      %2809 = vmatmul.mubr.bf16.gmra.mrb[0].mxu0 %v2771
      %v2810 = vpop.f32.mrb[0].mxu0
      %v2811 = vadd.f32 0.0, %v2810
      %v2812 = vpop.f32.mrb[0].mxu0
      %v2813 = vpop.f32.mrb[0].mxu0
      %v2814 = vpop.f32.mrb[0].mxu0
      %2815 = vdwg.mxu0
      %2816 = vrot.lane.b32.xlu0 %v1587, 64
      %v2817 = vpop.permute.xlu0 %2816
      %v2819 = vsel %vm2382, %v2564, 0
      %v2822 = vsel %vm2580, %v2817, 0
      %2824 = vmatprep.subr.bf16.mxu0 0
      %2825 = vmatpush1.bf16.msra.mxu0 %v2822
      %2826 = vmatprep.subr.bf16.mxu0 0
      %2827 = vmatpush1.bf16.msra.mxu0 0
      %2828 = vmatprep.subr.bf16.mxu0 0
      %2829 = vmatpush1.bf16.msra.mxu0 0
      %2830 = vmatprep.subr.bf16.mxu0 0
      %2831 = vmatpush1.bf16.msra.mxu0 0
      %2832 = vmatprep.subr.bf16.mxu0 0
      %2833 = vmatpush1.bf16.msra.mxu0 0
      %2834 = vmatprep.subr.bf16.mxu0 0
      %2835 = vmatpush1.bf16.msra.mxu0 0
      %2836 = vmatprep.subr.bf16.mxu0 0
      %2837 = vmatpush1.bf16.msra.mxu0 0
      %2838 = vmatprep.subr.bf16.mxu0 0
      %2839 = vmatpush1.bf16.msra.mxu0 0
      %2840 = vmatprep.subr.bf16.mxu0 0
      %2841 = vmatpush1.bf16.msra.mxu0 0
      %2842 = vmatprep.subr.bf16.mxu0 0
      %2843 = vmatpush1.bf16.msra.mxu0 0
      %2844 = vmatprep.subr.bf16.mxu0 0
      %2845 = vmatpush1.bf16.msra.mxu0 0
      %2846 = vmatprep.subr.bf16.mxu0 0
      %2847 = vmatpush1.bf16.msra.mxu0 0
      %2848 = vmatprep.subr.bf16.mxu0 0
      %2849 = vmatpush1.bf16.msra.mxu0 0
      %2850 = vmatprep.subr.bf16.mxu0 0
      %2851 = vmatpush1.bf16.msra.mxu0 0
      %2852 = vmatprep.subr.bf16.mxu0 0
      %2853 = vmatpush1.bf16.msra.mxu0 0
      %2854 = vmatprep.subr.bf16.mxu0 0
      %2855 = vmatpush1.bf16.msra.mxu0 0
      %2856 = vmatprep.mubr.bf16.mxu0 0
      %2857 = vmatmul.mubr.bf16.gmra.mrb[0].mxu0 %v2819
      %v2858 = vpop.f32.mrb[0].mxu0
      %v2859 = vadd.f32 0.0, %v2858
      %v2860 = vpop.f32.mrb[0].mxu0
      %v2861 = vpop.f32.mrb[0].mxu0
      %v2862 = vpop.f32.mrb[0].mxu0
      %2863 = vdwg.mxu0
      %2864 = vrot.lane.b32.xlu0 %v1588, 64
      %v2865 = vpop.permute.xlu0 %2864
      %v2867 = vsel %vm2382, %v2565, 0
      %v2870 = vsel %vm2580, %v2865, 0
      %2872 = vmatprep.subr.bf16.mxu0 0
      %2873 = vmatpush1.bf16.msra.mxu0 %v2870
      %2874 = vmatprep.subr.bf16.mxu0 0
      %2875 = vmatpush1.bf16.msra.mxu0 0
      %2876 = vmatprep.subr.bf16.mxu0 0
      %2877 = vmatpush1.bf16.msra.mxu0 0
      %2878 = vmatprep.subr.bf16.mxu0 0
      %2879 = vmatpush1.bf16.msra.mxu0 0
      %2880 = vmatprep.subr.bf16.mxu0 0
      %2881 = vmatpush1.bf16.msra.mxu0 0
      %2882 = vmatprep.subr.bf16.mxu0 0
      %2883 = vmatpush1.bf16.msra.mxu0 0
      %2884 = vmatprep.subr.bf16.mxu0 0
      %2885 = vmatpush1.bf16.msra.mxu0 0
      %2886 = vmatprep.subr.bf16.mxu0 0
      %2887 = vmatpush1.bf16.msra.mxu0 0
      %2888 = vmatprep.subr.bf16.mxu0 0
      %2889 = vmatpush1.bf16.msra.mxu0 0
      %2890 = vmatprep.subr.bf16.mxu0 0
      %2891 = vmatpush1.bf16.msra.mxu0 0
      %2892 = vmatprep.subr.bf16.mxu0 0
      %2893 = vmatpush1.bf16.msra.mxu0 0
      %2894 = vmatprep.subr.bf16.mxu0 0
      %2895 = vmatpush1.bf16.msra.mxu0 0
      %2896 = vmatprep.subr.bf16.mxu0 0
      %2897 = vmatpush1.bf16.msra.mxu0 0
      %2898 = vmatprep.subr.bf16.mxu0 0
      %2899 = vmatpush1.bf16.msra.mxu0 0
      %2900 = vmatprep.subr.bf16.mxu0 0
      %2901 = vmatpush1.bf16.msra.mxu0 0
      %2902 = vmatprep.subr.bf16.mxu0 0
      %2903 = vmatpush1.bf16.msra.mxu0 0
      %2904 = vmatprep.mubr.bf16.mxu0 0
      %2905 = vmatmul.mubr.bf16.gmra.mrb[0].mxu0 %v2867
      %v2906 = vpop.f32.mrb[0].mxu0
      %v2907 = vadd.f32 0.0, %v2906
      %v2908 = vpop.f32.mrb[0].mxu0
      %v2909 = vpop.f32.mrb[0].mxu0
      %v2910 = vpop.f32.mrb[0].mxu0
      %2911 = vdwg.mxu0
      %2912 = vrot.lane.b32.xlu0 %v1589, 64
      %v2913 = vpop.permute.xlu0 %2912
      %v2915 = vsel %vm2382, %v2566, 0
      %v2918 = vsel %vm2580, %v2913, 0
      %2920 = vmatprep.subr.bf16.mxu0 0
      %2921 = vmatpush1.bf16.msra.mxu0 %v2918
      %2922 = vmatprep.subr.bf16.mxu0 0
      %2923 = vmatpush1.bf16.msra.mxu0 0
      %2924 = vmatprep.subr.bf16.mxu0 0
      %2925 = vmatpush1.bf16.msra.mxu0 0
      %2926 = vmatprep.subr.bf16.mxu0 0
      %2927 = vmatpush1.bf16.msra.mxu0 0
      %2928 = vmatprep.subr.bf16.mxu0 0
      %2929 = vmatpush1.bf16.msra.mxu0 0
      %2930 = vmatprep.subr.bf16.mxu0 0
      %2931 = vmatpush1.bf16.msra.mxu0 0
      %2932 = vmatprep.subr.bf16.mxu0 0
      %2933 = vmatpush1.bf16.msra.mxu0 0
      %2934 = vmatprep.subr.bf16.mxu0 0
      %2935 = vmatpush1.bf16.msra.mxu0 0
      %2936 = vmatprep.subr.bf16.mxu0 0
      %2937 = vmatpush1.bf16.msra.mxu0 0
      %2938 = vmatprep.subr.bf16.mxu0 0
      %2939 = vmatpush1.bf16.msra.mxu0 0
      %2940 = vmatprep.subr.bf16.mxu0 0
      %2941 = vmatpush1.bf16.msra.mxu0 0
      %2942 = vmatprep.subr.bf16.mxu0 0
      %2943 = vmatpush1.bf16.msra.mxu0 0
      %2944 = vmatprep.subr.bf16.mxu0 0
      %2945 = vmatpush1.bf16.msra.mxu0 0
      %2946 = vmatprep.subr.bf16.mxu0 0
      %2947 = vmatpush1.bf16.msra.mxu0 0
      %2948 = vmatprep.subr.bf16.mxu0 0
      %2949 = vmatpush1.bf16.msra.mxu0 0
      %2950 = vmatprep.subr.bf16.mxu0 0
      %2951 = vmatpush1.bf16.msra.mxu0 0
      %2952 = vmatprep.mubr.bf16.mxu0 0
      %2953 = vmatmul.mubr.bf16.gmra.mrb[0].mxu0 %v2915
      %v2954 = vpop.f32.mrb[0].mxu0
      %v2955 = vadd.f32 0.0, %v2954
      %v2956 = vpop.f32.mrb[0].mxu0
      %v2957 = vpop.f32.mrb[0].mxu0
      %v2958 = vpop.f32.mrb[0].mxu0
      %2959 = vdwg.mxu0
      %2960 = vrot.lane.b32.xlu0 %v1590, 64
      %v2961 = vpop.permute.xlu0 %2960
      %v2963 = vsel %vm2382, %v2567, 0
      %v2966 = vsel %vm2580, %v2961, 0
      %2968 = vmatprep.subr.bf16.mxu0 0
      %2969 = vmatpush1.bf16.msra.mxu0 %v2966
      %2970 = vmatprep.subr.bf16.mxu0 0
      %2971 = vmatpush1.bf16.msra.mxu0 0
      %2972 = vmatprep.subr.bf16.mxu0 0
      %2973 = vmatpush1.bf16.msra.mxu0 0
      %2974 = vmatprep.subr.bf16.mxu0 0
      %2975 = vmatpush1.bf16.msra.mxu0 0
      %2976 = vmatprep.subr.bf16.mxu0 0
      %2977 = vmatpush1.bf16.msra.mxu0 0
      %2978 = vmatprep.subr.bf16.mxu0 0
      %2979 = vmatpush1.bf16.msra.mxu0 0
      %2980 = vmatprep.subr.bf16.mxu0 0
      %2981 = vmatpush1.bf16.msra.mxu0 0
      %2982 = vmatprep.subr.bf16.mxu0 0
      %2983 = vmatpush1.bf16.msra.mxu0 0
      %2984 = vmatprep.subr.bf16.mxu0 0
      %2985 = vmatpush1.bf16.msra.mxu0 0
      %2986 = vmatprep.subr.bf16.mxu0 0
      %2987 = vmatpush1.bf16.msra.mxu0 0
      %2988 = vmatprep.subr.bf16.mxu0 0
      %2989 = vmatpush1.bf16.msra.mxu0 0
      %2990 = vmatprep.subr.bf16.mxu0 0
      %2991 = vmatpush1.bf16.msra.mxu0 0
      %2992 = vmatprep.subr.bf16.mxu0 0
      %2993 = vmatpush1.bf16.msra.mxu0 0
      %2994 = vmatprep.subr.bf16.mxu0 0
      %2995 = vmatpush1.bf16.msra.mxu0 0
      %2996 = vmatprep.subr.bf16.mxu0 0
      %2997 = vmatpush1.bf16.msra.mxu0 0
      %2998 = vmatprep.subr.bf16.mxu0 0
      %2999 = vmatpush1.bf16.msra.mxu0 0
      %3000 = vmatprep.mubr.bf16.mxu0 0
      %3001 = vmatmul.mubr.bf16.gmra.mrb[0].mxu0 %v2963
      %v3002 = vpop.f32.mrb[0].mxu0
      %v3003 = vadd.f32 0.0, %v3002
      %v3004 = vpop.f32.mrb[0].mxu0
      %v3005 = vpop.f32.mrb[0].mxu0
      %v3006 = vpop.f32.mrb[0].mxu0
      %3007 = vdwg.mxu0
      %3008 = vrot.lane.b32.xlu0 %v1591, 64
      %v3009 = vpop.permute.xlu0 %3008
      %v3011 = vsel %vm2382, %v2568, 0
      %v3014 = vsel %vm2580, %v3009, 0
      %3016 = vmatprep.subr.bf16.mxu0 0
      %3017 = vmatpush1.bf16.msra.mxu0 %v3014
      %3018 = vmatprep.subr.bf16.mxu0 0
      %3019 = vmatpush1.bf16.msra.mxu0 0
      %3020 = vmatprep.subr.bf16.mxu0 0
      %3021 = vmatpush1.bf16.msra.mxu0 0
      %3022 = vmatprep.subr.bf16.mxu0 0
      %3023 = vmatpush1.bf16.msra.mxu0 0
      %3024 = vmatprep.subr.bf16.mxu0 0
      %3025 = vmatpush1.bf16.msra.mxu0 0
      %3026 = vmatprep.subr.bf16.mxu0 0
      %3027 = vmatpush1.bf16.msra.mxu0 0
      %3028 = vmatprep.subr.bf16.mxu0 0
      %3029 = vmatpush1.bf16.msra.mxu0 0
      %3030 = vmatprep.subr.bf16.mxu0 0
      %3031 = vmatpush1.bf16.msra.mxu0 0
      %3032 = vmatprep.subr.bf16.mxu0 0
      %3033 = vmatpush1.bf16.msra.mxu0 0
      %3034 = vmatprep.subr.bf16.mxu0 0
      %3035 = vmatpush1.bf16.msra.mxu0 0
      %3036 = vmatprep.subr.bf16.mxu0 0
      %3037 = vmatpush1.bf16.msra.mxu0 0
      %3038 = vmatprep.subr.bf16.mxu0 0
      %3039 = vmatpush1.bf16.msra.mxu0 0
      %3040 = vmatprep.subr.bf16.mxu0 0
      %3041 = vmatpush1.bf16.msra.mxu0 0
      %3042 = vmatprep.subr.bf16.mxu0 0
      %3043 = vmatpush1.bf16.msra.mxu0 0
      %3044 = vmatprep.subr.bf16.mxu0 0
      %3045 = vmatpush1.bf16.msra.mxu0 0
      %3046 = vmatprep.subr.bf16.mxu0 0
      %3047 = vmatpush1.bf16.msra.mxu0 0
      %3048 = vmatprep.mubr.bf16.mxu0 0
      %3049 = vmatmul.mubr.bf16.gmra.mrb[0].mxu0 %v3011
      %v3050 = vpop.f32.mrb[0].mxu0
      %v3051 = vadd.f32 0.0, %v3050
      %v3052 = vpop.f32.mrb[0].mxu0
      %v3053 = vpop.f32.mrb[0].mxu0
      %v3054 = vpop.f32.mrb[0].mxu0
      %3055 = vdwg.mxu0
      %3056 = vrot.lane.b32.xlu0 %v1592, 64
      %v3057 = vpop.permute.xlu0 %3056
      %v3059 = vsel %vm2382, %v2569, 0
      %v3062 = vsel %vm2580, %v3057, 0
      %3064 = vmatprep.subr.bf16.mxu0 0
      %3065 = vmatpush1.bf16.msra.mxu0 %v3062
      %3066 = vmatprep.subr.bf16.mxu0 0
      %3067 = vmatpush1.bf16.msra.mxu0 0
      %3068 = vmatprep.subr.bf16.mxu0 0
      %3069 = vmatpush1.bf16.msra.mxu0 0
      %3070 = vmatprep.subr.bf16.mxu0 0
      %3071 = vmatpush1.bf16.msra.mxu0 0
      %3072 = vmatprep.subr.bf16.mxu0 0
      %3073 = vmatpush1.bf16.msra.mxu0 0
      %3074 = vmatprep.subr.bf16.mxu0 0
      %3075 = vmatpush1.bf16.msra.mxu0 0
      %3076 = vmatprep.subr.bf16.mxu0 0
      %3077 = vmatpush1.bf16.msra.mxu0 0
      %3078 = vmatprep.subr.bf16.mxu0 0
      %3079 = vmatpush1.bf16.msra.mxu0 0
      %3080 = vmatprep.subr.bf16.mxu0 0
      %3081 = vmatpush1.bf16.msra.mxu0 0
      %3082 = vmatprep.subr.bf16.mxu0 0
      %3083 = vmatpush1.bf16.msra.mxu0 0
      %3084 = vmatprep.subr.bf16.mxu0 0
      %3085 = vmatpush1.bf16.msra.mxu0 0
      %3086 = vmatprep.subr.bf16.mxu0 0
      %3087 = vmatpush1.bf16.msra.mxu0 0
      %3088 = vmatprep.subr.bf16.mxu0 0
      %3089 = vmatpush1.bf16.msra.mxu0 0
      %3090 = vmatprep.subr.bf16.mxu0 0
      %3091 = vmatpush1.bf16.msra.mxu0 0
      %3092 = vmatprep.subr.bf16.mxu0 0
      %3093 = vmatpush1.bf16.msra.mxu0 0
      %3094 = vmatprep.subr.bf16.mxu0 0
      %3095 = vmatpush1.bf16.msra.mxu0 0
      %3096 = vmatprep.mubr.bf16.mxu0 0
      %3097 = vmatmul.mubr.bf16.gmra.mrb[0].mxu0 %v3059
      %v3098 = vpop.f32.mrb[0].mxu0
      %v3099 = vadd.f32 0.0, %v3098
      %v3100 = vpop.f32.mrb[0].mxu0
      %v3101 = vpop.f32.mrb[0].mxu0
      %v3102 = vpop.f32.mrb[0].mxu0
      %3103 = vdwg.mxu0
      %3104 = vrot.lane.b32.xlu0 %v1593, 64
      %v3105 = vpop.permute.xlu0 %3104
      %v3107 = vsel %vm2382, %v2570, 0
      %v3110 = vsel %vm2580, %v3105, 0
      %3112 = vmatprep.subr.bf16.mxu0 0
      %3113 = vmatpush1.bf16.msra.mxu0 %v3110
      %3114 = vmatprep.subr.bf16.mxu0 0
      %3115 = vmatpush1.bf16.msra.mxu0 0
      %3116 = vmatprep.subr.bf16.mxu0 0
      %3117 = vmatpush1.bf16.msra.mxu0 0
      %3118 = vmatprep.subr.bf16.mxu0 0
      %3119 = vmatpush1.bf16.msra.mxu0 0
      %3120 = vmatprep.subr.bf16.mxu0 0
      %3121 = vmatpush1.bf16.msra.mxu0 0
      %3122 = vmatprep.subr.bf16.mxu0 0
      %3123 = vmatpush1.bf16.msra.mxu0 0
      %3124 = vmatprep.subr.bf16.mxu0 0
      %3125 = vmatpush1.bf16.msra.mxu0 0
      %3126 = vmatprep.subr.bf16.mxu0 0
      %3127 = vmatpush1.bf16.msra.mxu0 0
      %3128 = vmatprep.subr.bf16.mxu0 0
      %3129 = vmatpush1.bf16.msra.mxu0 0
      %3130 = vmatprep.subr.bf16.mxu0 0
      %3131 = vmatpush1.bf16.msra.mxu0 0
      %3132 = vmatprep.subr.bf16.mxu0 0
      %3133 = vmatpush1.bf16.msra.mxu0 0
      %3134 = vmatprep.subr.bf16.mxu0 0
      %3135 = vmatpush1.bf16.msra.mxu0 0
      %3136 = vmatprep.subr.bf16.mxu0 0
      %3137 = vmatpush1.bf16.msra.mxu0 0
      %3138 = vmatprep.subr.bf16.mxu0 0
      %3139 = vmatpush1.bf16.msra.mxu0 0
      %3140 = vmatprep.subr.bf16.mxu0 0
      %3141 = vmatpush1.bf16.msra.mxu0 0
      %3142 = vmatprep.subr.bf16.mxu0 0
      %3143 = vmatpush1.bf16.msra.mxu0 0
      %3144 = vmatprep.mubr.bf16.mxu0 0
      %3145 = vmatmul.mubr.bf16.gmra.mrb[0].mxu0 %v3107
      %v3146 = vpop.f32.mrb[0].mxu0
      %v3147 = vadd.f32 0.0, %v3146
      %v3148 = vpop.f32.mrb[0].mxu0
      %v3149 = vpop.f32.mrb[0].mxu0
      %v3150 = vpop.f32.mrb[0].mxu0
      %3151 = vdwg.mxu0
      %3152 = vrot.lane.b32.xlu0 %v1594, 64
      %v3153 = vpop.permute.xlu0 %3152
      %v3155 = vsel %vm2382, %v2571, 0
      %v3158 = vsel %vm2580, %v3153, 0
      %3160 = vmatprep.subr.bf16.mxu0 0
      %3161 = vmatpush1.bf16.msra.mxu0 %v3158
      %3162 = vmatprep.subr.bf16.mxu0 0
      %3163 = vmatpush1.bf16.msra.mxu0 0
      %3164 = vmatprep.subr.bf16.mxu0 0
      %3165 = vmatpush1.bf16.msra.mxu0 0
      %3166 = vmatprep.subr.bf16.mxu0 0
      %3167 = vmatpush1.bf16.msra.mxu0 0
      %3168 = vmatprep.subr.bf16.mxu0 0
      %3169 = vmatpush1.bf16.msra.mxu0 0
      %3170 = vmatprep.subr.bf16.mxu0 0
      %3171 = vmatpush1.bf16.msra.mxu0 0
      %3172 = vmatprep.subr.bf16.mxu0 0
      %3173 = vmatpush1.bf16.msra.mxu0 0
      %3174 = vmatprep.subr.bf16.mxu0 0
      %3175 = vmatpush1.bf16.msra.mxu0 0
      %3176 = vmatprep.subr.bf16.mxu0 0
      %3177 = vmatpush1.bf16.msra.mxu0 0
      %3178 = vmatprep.subr.bf16.mxu0 0
      %3179 = vmatpush1.bf16.msra.mxu0 0
      %3180 = vmatprep.subr.bf16.mxu0 0
      %3181 = vmatpush1.bf16.msra.mxu0 0
      %3182 = vmatprep.subr.bf16.mxu0 0
      %3183 = vmatpush1.bf16.msra.mxu0 0
      %3184 = vmatprep.subr.bf16.mxu0 0
      %3185 = vmatpush1.bf16.msra.mxu0 0
      %3186 = vmatprep.subr.bf16.mxu0 0
      %3187 = vmatpush1.bf16.msra.mxu0 0
      %3188 = vmatprep.subr.bf16.mxu0 0
      %3189 = vmatpush1.bf16.msra.mxu0 0
      %3190 = vmatprep.subr.bf16.mxu0 0
      %3191 = vmatpush1.bf16.msra.mxu0 0
      %3192 = vmatprep.mubr.bf16.mxu0 0
      %3193 = vmatmul.mubr.bf16.gmra.mrb[0].mxu0 %v3155
      %v3194 = vpop.f32.mrb[0].mxu0
      %v3195 = vadd.f32 0.0, %v3194
      %v3196 = vpop.f32.mrb[0].mxu0
      %v3197 = vpop.f32.mrb[0].mxu0
      %v3198 = vpop.f32.mrb[0].mxu0
      %3199 = vdwg.mxu0
      %3200 = vrot.lane.b32.xlu0 %v1595, 64
      %v3201 = vpop.permute.xlu0 %3200
      %v3203 = vsel %vm2382, %v2572, 0
      %v3206 = vsel %vm2580, %v3201, 0
      %3208 = vmatprep.subr.bf16.mxu0 0
      %3209 = vmatpush1.bf16.msra.mxu0 %v3206
      %3210 = vmatprep.subr.bf16.mxu0 0
      %3211 = vmatpush1.bf16.msra.mxu0 0
      %3212 = vmatprep.subr.bf16.mxu0 0
      %3213 = vmatpush1.bf16.msra.mxu0 0
      %3214 = vmatprep.subr.bf16.mxu0 0
      %3215 = vmatpush1.bf16.msra.mxu0 0
      %3216 = vmatprep.subr.bf16.mxu0 0
      %3217 = vmatpush1.bf16.msra.mxu0 0
      %3218 = vmatprep.subr.bf16.mxu0 0
      %3219 = vmatpush1.bf16.msra.mxu0 0
      %3220 = vmatprep.subr.bf16.mxu0 0
      %3221 = vmatpush1.bf16.msra.mxu0 0
      %3222 = vmatprep.subr.bf16.mxu0 0
      %3223 = vmatpush1.bf16.msra.mxu0 0
      %3224 = vmatprep.subr.bf16.mxu0 0
      %3225 = vmatpush1.bf16.msra.mxu0 0
      %3226 = vmatprep.subr.bf16.mxu0 0
      %3227 = vmatpush1.bf16.msra.mxu0 0
      %3228 = vmatprep.subr.bf16.mxu0 0
      %3229 = vmatpush1.bf16.msra.mxu0 0
      %3230 = vmatprep.subr.bf16.mxu0 0
      %3231 = vmatpush1.bf16.msra.mxu0 0
      %3232 = vmatprep.subr.bf16.mxu0 0
      %3233 = vmatpush1.bf16.msra.mxu0 0
      %3234 = vmatprep.subr.bf16.mxu0 0
      %3235 = vmatpush1.bf16.msra.mxu0 0
      %3236 = vmatprep.subr.bf16.mxu0 0
      %3237 = vmatpush1.bf16.msra.mxu0 0
      %3238 = vmatprep.subr.bf16.mxu0 0
      %3239 = vmatpush1.bf16.msra.mxu0 0
      %3240 = vmatprep.mubr.bf16.mxu0 0
      %3241 = vmatmul.mubr.bf16.gmra.mrb[0].mxu0 %v3203
      %v3242 = vpop.f32.mrb[0].mxu0
      %v3243 = vadd.f32 0.0, %v3242
      %v3244 = vpop.f32.mrb[0].mxu0
      %v3245 = vpop.f32.mrb[0].mxu0
      %v3246 = vpop.f32.mrb[0].mxu0
      %3247 = vdwg.mxu0
      %3248 = vrot.lane.b32.xlu0 %v1596, 64
      %v3249 = vpop.permute.xlu0 %3248
      %v3251 = vsel %vm2382, %v2573, 0
      %v3254 = vsel %vm2580, %v3249, 0
      %3256 = vmatprep.subr.bf16.mxu0 0
      %3257 = vmatpush1.bf16.msra.mxu0 %v3254
      %3258 = vmatprep.subr.bf16.mxu0 0
      %3259 = vmatpush1.bf16.msra.mxu0 0
      %3260 = vmatprep.subr.bf16.mxu0 0
      %3261 = vmatpush1.bf16.msra.mxu0 0
      %3262 = vmatprep.subr.bf16.mxu0 0
      %3263 = vmatpush1.bf16.msra.mxu0 0
      %3264 = vmatprep.subr.bf16.mxu0 0
      %3265 = vmatpush1.bf16.msra.mxu0 0
      %3266 = vmatprep.subr.bf16.mxu0 0
      %3267 = vmatpush1.bf16.msra.mxu0 0
      %3268 = vmatprep.subr.bf16.mxu0 0
      %3269 = vmatpush1.bf16.msra.mxu0 0
      %3270 = vmatprep.subr.bf16.mxu0 0
      %3271 = vmatpush1.bf16.msra.mxu0 0
      %3272 = vmatprep.subr.bf16.mxu0 0
      %3273 = vmatpush1.bf16.msra.mxu0 0
      %3274 = vmatprep.subr.bf16.mxu0 0
      %3275 = vmatpush1.bf16.msra.mxu0 0
      %3276 = vmatprep.subr.bf16.mxu0 0
      %3277 = vmatpush1.bf16.msra.mxu0 0
      %3278 = vmatprep.subr.bf16.mxu0 0
      %3279 = vmatpush1.bf16.msra.mxu0 0
      %3280 = vmatprep.subr.bf16.mxu0 0
      %3281 = vmatpush1.bf16.msra.mxu0 0
      %3282 = vmatprep.subr.bf16.mxu0 0
      %3283 = vmatpush1.bf16.msra.mxu0 0
      %3284 = vmatprep.subr.bf16.mxu0 0
      %3285 = vmatpush1.bf16.msra.mxu0 0
      %3286 = vmatprep.subr.bf16.mxu0 0
      %3287 = vmatpush1.bf16.msra.mxu0 0
      %3288 = vmatprep.mubr.bf16.mxu0 0
      %3289 = vmatmul.mubr.bf16.gmra.mrb[0].mxu0 %v3251
      %v3290 = vpop.f32.mrb[0].mxu0
      %v3291 = vadd.f32 0.0, %v3290
      %v3292 = vpop.f32.mrb[0].mxu0
      %v3293 = vpop.f32.mrb[0].mxu0
      %v3294 = vpop.f32.mrb[0].mxu0
      %3295 = vdwg.mxu0
      %3296 = vrot.lane.b32.xlu0 %v1597, 64
      %v3297 = vpop.permute.xlu0 %3296
      %v3299 = vsel %vm2382, %v2574, 0
      %v3302 = vsel %vm2580, %v3297, 0
      %3304 = vmatprep.subr.bf16.mxu0 0
      %3305 = vmatpush1.bf16.msra.mxu0 %v3302
      %3306 = vmatprep.subr.bf16.mxu0 0
      %3307 = vmatpush1.bf16.msra.mxu0 0
      %3308 = vmatprep.subr.bf16.mxu0 0
      %3309 = vmatpush1.bf16.msra.mxu0 0
      %3310 = vmatprep.subr.bf16.mxu0 0
      %3311 = vmatpush1.bf16.msra.mxu0 0
      %3312 = vmatprep.subr.bf16.mxu0 0
      %3313 = vmatpush1.bf16.msra.mxu0 0
      %3314 = vmatprep.subr.bf16.mxu0 0
      %3315 = vmatpush1.bf16.msra.mxu0 0
      %3316 = vmatprep.subr.bf16.mxu0 0
      %3317 = vmatpush1.bf16.msra.mxu0 0
      %3318 = vmatprep.subr.bf16.mxu0 0
      %3319 = vmatpush1.bf16.msra.mxu0 0
      %3320 = vmatprep.subr.bf16.mxu0 0
      %3321 = vmatpush1.bf16.msra.mxu0 0
      %3322 = vmatprep.subr.bf16.mxu0 0
      %3323 = vmatpush1.bf16.msra.mxu0 0
      %3324 = vmatprep.subr.bf16.mxu0 0
      %3325 = vmatpush1.bf16.msra.mxu0 0
      %3326 = vmatprep.subr.bf16.mxu0 0
      %3327 = vmatpush1.bf16.msra.mxu0 0
      %3328 = vmatprep.subr.bf16.mxu0 0
      %3329 = vmatpush1.bf16.msra.mxu0 0
      %3330 = vmatprep.subr.bf16.mxu0 0
      %3331 = vmatpush1.bf16.msra.mxu0 0
      %3332 = vmatprep.subr.bf16.mxu0 0
      %3333 = vmatpush1.bf16.msra.mxu0 0
      %3334 = vmatprep.subr.bf16.mxu0 0
      %3335 = vmatpush1.bf16.msra.mxu0 0
      %3336 = vmatprep.mubr.bf16.mxu0 0
      %3337 = vmatmul.mubr.bf16.gmra.mrb[0].mxu0 %v3299
      %v3338 = vpop.f32.mrb[0].mxu0
      %v3339 = vadd.f32 0.0, %v3338
      %v3340 = vpop.f32.mrb[0].mxu0
      %v3341 = vpop.f32.mrb[0].mxu0
      %v3342 = vpop.f32.mrb[0].mxu0
      %3343 = vdwg.mxu0
      %v3344 = vpack.c.bf16 %v2667, %v2619
      %v3345 = vpack.c.bf16 %v2763, %v2715
      %v3346 = vpack.c.bf16 %v2859, %v2811
      %v3347 = vpack.c.bf16 %v2955, %v2907
      %v3348 = vpack.c.bf16 %v3051, %v3003
      %v3349 = vpack.c.bf16 %v3147, %v3099
      %v3350 = vpack.c.bf16 %v3243, %v3195
      %v3351 = vpack.c.bf16 %v3339, %v3291
      %v3352 = vld [vmem:[%s13] sm:$0xf]
      %v3353 = vld [vmem:[%s13 + $0x4] sm:$0xf]
      %v3354 = vld [vmem:[%s13 + $0x8] sm:$0xf]
      %v3355 = vld [vmem:[%s13 + $0xc] sm:$0xf]
      %v3356 = vld [vmem:[%s15] sm:$0x1]
      %v3358 = vlaneseq
      %v3359 = vshrl.u32 %v3358, 7
      %v3360 = vsub.s32 0, %v3359
      %v3361 = vrot.slane %v3356, %v3360
      %v3367 = vunpack.c.l.b16 %v3352
      %v3368 = vunpack.c.l.b16 %v3353
      %v3369 = vunpack.c.l.b16 %v3354
      %v3370 = vunpack.c.l.b16 %v3355
      %v3371 = vpack.c.b16 %v3368, %v3367
      %v3372 = vpack.c.b16 %v3370, %v3369
      %v3376 = vsel %vm1428, %v3344, 0
      %v3379 = vsel %vm1428, %v3345, 0
      %v3382 = vsel %vm1428, %v3346, 0
      %v3385 = vsel %vm1428, %v3347, 0
      %v3388 = vsel %vm1428, %v3348, 0
      %v3391 = vsel %vm1428, %v3349, 0
      %v3394 = vsel %vm1428, %v3350, 0
      %v3397 = vsel %vm1428, %v3351, 0
      %3399 = vmatprep.subr.bf16.mxu0 0
      %3400 = vmatpush1.bf16.msra.mxu0 %v3371
      %3401 = vmatprep.subr.bf16.mxu0 0
      %3402 = vmatpush1.bf16.msra.mxu0 %v3372
      %3403 = vmatprep.subr.bf16.mxu0 0
      %3404 = vmatpush1.bf16.msra.mxu0 0
      %3405 = vmatprep.subr.bf16.mxu0 0
      %3406 = vmatpush1.bf16.msra.mxu0 0
      %3407 = vmatprep.subr.bf16.mxu0 0
      %3408 = vmatpush1.bf16.msra.mxu0 0
      %3409 = vmatprep.subr.bf16.mxu0 0
      %3410 = vmatpush1.bf16.msra.mxu0 0
      %3411 = vmatprep.subr.bf16.mxu0 0
      %3412 = vmatpush1.bf16.msra.mxu0 0
      %3413 = vmatprep.subr.bf16.mxu0 0
      %3414 = vmatpush1.bf16.msra.mxu0 0
      %3415 = vmatprep.subr.bf16.mxu0 0
      %3416 = vmatpush1.bf16.msra.mxu0 0
      %3417 = vmatprep.subr.bf16.mxu0 0
      %3418 = vmatpush1.bf16.msra.mxu0 0
      %3419 = vmatprep.subr.bf16.mxu0 0
      %3420 = vmatpush1.bf16.msra.mxu0 0
      %3421 = vmatprep.subr.bf16.mxu0 0
      %3422 = vmatpush1.bf16.msra.mxu0 0
      %3423 = vmatprep.subr.bf16.mxu0 0
      %3424 = vmatpush1.bf16.msra.mxu0 0
      %3425 = vmatprep.subr.bf16.mxu0 0
      %3426 = vmatpush1.bf16.msra.mxu0 0
      %3427 = vmatprep.subr.bf16.mxu0 0
      %3428 = vmatpush1.bf16.msra.mxu0 0
      %3429 = vmatprep.subr.bf16.mxu0 0
      %3430 = vmatpush1.bf16.msra.mxu0 0
      %3431 = vmatprep.mubr.bf16.mxu0 0
      %3432 = vmatmul.mubr.bf16.gmra.mrb[0].mxu0 %v3376
      %v3433 = vpop.f32.mrb[0].mxu0
      %v3434 = vadd.f32 %v3361, %v3433
      %v3435 = vpop.f32.mrb[0].mxu0
      %v3436 = vpop.f32.mrb[0].mxu0
      %v3437 = vadd.f32 %v3361, %v3436
      %v3438 = vpop.f32.mrb[0].mxu0
      %3439 = vmatprep.mubr.bf16.mxu0 0
      %3440 = vmatmul.mubr.bf16.gmra.mrb[0].mxu0 %v3379
      %v3441 = vpop.f32.mrb[0].mxu0
      %v3442 = vadd.f32 %v3361, %v3441
      %v3443 = vpop.f32.mrb[0].mxu0
      %v3444 = vpop.f32.mrb[0].mxu0
      %v3445 = vadd.f32 %v3361, %v3444
      %v3446 = vpop.f32.mrb[0].mxu0
      %3447 = vmatprep.mubr.bf16.mxu0 0
      %3448 = vmatmul.mubr.bf16.gmra.mrb[0].mxu0 %v3382
      %v3449 = vpop.f32.mrb[0].mxu0
      %v3450 = vadd.f32 %v3361, %v3449
      %v3451 = vpop.f32.mrb[0].mxu0
      %v3452 = vpop.f32.mrb[0].mxu0
      %v3453 = vadd.f32 %v3361, %v3452
      %v3454 = vpop.f32.mrb[0].mxu0
      %3455 = vmatprep.mubr.bf16.mxu0 0
      %3456 = vmatmul.mubr.bf16.gmra.mrb[0].mxu0 %v3385
      %v3457 = vpop.f32.mrb[0].mxu0
      %v3458 = vadd.f32 %v3361, %v3457
      %v3459 = vpop.f32.mrb[0].mxu0
      %v3460 = vpop.f32.mrb[0].mxu0
      %v3461 = vadd.f32 %v3361, %v3460
      %v3462 = vpop.f32.mrb[0].mxu0
      %3463 = vmatprep.mubr.bf16.mxu0 0
      %3464 = vmatmul.mubr.bf16.gmra.mrb[0].mxu0 %v3388
      %v3465 = vpop.f32.mrb[0].mxu0
      %v3466 = vadd.f32 %v3361, %v3465
      %v3467 = vpop.f32.mrb[0].mxu0
      %v3468 = vpop.f32.mrb[0].mxu0
      %v3469 = vadd.f32 %v3361, %v3468
      %v3470 = vpop.f32.mrb[0].mxu0
      %3471 = vmatprep.mubr.bf16.mxu0 0
      %3472 = vmatmul.mubr.bf16.gmra.mrb[0].mxu0 %v3391
      %v3473 = vpop.f32.mrb[0].mxu0
      %v3474 = vadd.f32 %v3361, %v3473
      %v3475 = vpop.f32.mrb[0].mxu0
      %v3476 = vpop.f32.mrb[0].mxu0
      %v3477 = vadd.f32 %v3361, %v3476
      %v3478 = vpop.f32.mrb[0].mxu0
      %3479 = vmatprep.mubr.bf16.mxu0 0
      %3480 = vmatmul.mubr.bf16.gmra.mrb[0].mxu0 %v3394
      %v3481 = vpop.f32.mrb[0].mxu0
      %v3482 = vadd.f32 %v3361, %v3481
      %v3483 = vpop.f32.mrb[0].mxu0
      %v3484 = vpop.f32.mrb[0].mxu0
      %v3485 = vadd.f32 %v3361, %v3484
      %v3486 = vpop.f32.mrb[0].mxu0
      %3487 = vmatprep.mubr.bf16.mxu0 0
      %3488 = vmatmul.mubr.bf16.gmra.mrb[0].mxu0 %v3397
      %v3489 = vpop.f32.mrb[0].mxu0
      %v3490 = vadd.f32 %v3361, %v3489
      %v3491 = vpop.f32.mrb[0].mxu0
      %v3492 = vpop.f32.mrb[0].mxu0
      %v3493 = vadd.f32 %v3361, %v3492
      %v3494 = vpop.f32.mrb[0].mxu0
      %3495 = vdwg.mxu0
      %v3496 = vadd.f32 %v1335, %v3434
      %v3497 = vadd.f32 %v1338, %v3437
      %v3498 = vadd.f32 %v1343, %v3442
      %v3499 = vadd.f32 %v1346, %v3445
      %v3500 = vadd.f32 %v1351, %v3450
      %v3501 = vadd.f32 %v1354, %v3453
      %v3502 = vadd.f32 %v1359, %v3458
      %v3503 = vadd.f32 %v1362, %v3461
      %v3504 = vadd.f32 %v1367, %v3466
      %v3505 = vadd.f32 %v1370, %v3469
      %v3506 = vadd.f32 %v1375, %v3474
      %v3507 = vadd.f32 %v1378, %v3477
      %v3508 = vadd.f32 %v1383, %v3482
      %v3509 = vadd.f32 %v1386, %v3485
      %v3510 = vadd.f32 %v1391, %v3490
      %v3511 = vadd.f32 %v1394, %v3493
      %v3512 = vsel %vm1428, %v3496, 0.0
      %3513 = vadd.xlane.f32.xlu0 %v3512
      %v3514 = vpop.xlane.xlu0 %3513
      %v3515 = vsel %vm1428, %v3497, 0.0
      %3516 = vadd.xlane.f32.xlu0 %v3515
      %v3517 = vpop.xlane.xlu0 %3516
      %v3518 = vsel %vm1428, %v3498, 0.0
      %3519 = vadd.xlane.f32.xlu0 %v3518
      %v3520 = vpop.xlane.xlu0 %3519
      %v3521 = vsel %vm1428, %v3499, 0.0
      %3522 = vadd.xlane.f32.xlu0 %v3521
      %v3523 = vpop.xlane.xlu0 %3522
      %v3524 = vsel %vm1428, %v3500, 0.0
      %3525 = vadd.xlane.f32.xlu0 %v3524
      %v3526 = vpop.xlane.xlu0 %3525
      %v3527 = vsel %vm1428, %v3501, 0.0
      %3528 = vadd.xlane.f32.xlu0 %v3527
      %v3529 = vpop.xlane.xlu0 %3528
      %v3530 = vsel %vm1428, %v3502, 0.0
      %3531 = vadd.xlane.f32.xlu0 %v3530
      %v3532 = vpop.xlane.xlu0 %3531
      %v3533 = vsel %vm1428, %v3503, 0.0
      %3534 = vadd.xlane.f32.xlu0 %v3533
      %v3535 = vpop.xlane.xlu0 %3534
      %v3536 = vsel %vm1428, %v3504, 0.0
      %3537 = vadd.xlane.f32.xlu0 %v3536
      %v3538 = vpop.xlane.xlu0 %3537
      %v3539 = vsel %vm1428, %v3505, 0.0
      %3540 = vadd.xlane.f32.xlu0 %v3539
      %v3541 = vpop.xlane.xlu0 %3540
      %v3542 = vsel %vm1428, %v3506, 0.0
      %3543 = vadd.xlane.f32.xlu0 %v3542
      %v3544 = vpop.xlane.xlu0 %3543
      %v3545 = vsel %vm1428, %v3507, 0.0
      %3546 = vadd.xlane.f32.xlu0 %v3545
      %v3547 = vpop.xlane.xlu0 %3546
      %v3548 = vsel %vm1428, %v3508, 0.0
      %3549 = vadd.xlane.f32.xlu0 %v3548
      %v3550 = vpop.xlane.xlu0 %3549
      %v3551 = vsel %vm1428, %v3509, 0.0
      %3552 = vadd.xlane.f32.xlu0 %v3551
      %v3553 = vpop.xlane.xlu0 %3552
      %v3554 = vsel %vm1428, %v3510, 0.0
      %3555 = vadd.xlane.f32.xlu0 %v3554
      %v3556 = vpop.xlane.xlu0 %3555
      %v3557 = vsel %vm1428, %v3511, 0.0
      %3558 = vadd.xlane.f32.xlu0 %v3557
      %v3559 = vpop.xlane.xlu0 %3558
      %v3560 = vrcp.pop 32.0
      %v3561 = vmul.f32 %v3514, %v3560
      %v3562 = vmul.f32 %v3517, %v3560
      %v3563 = vmul.f32 %v3520, %v3560
      %v3564 = vmul.f32 %v3523, %v3560
      %v3565 = vmul.f32 %v3526, %v3560
      %v3566 = vmul.f32 %v3529, %v3560
      %v3567 = vmul.f32 %v3532, %v3560
      %v3568 = vmul.f32 %v3535, %v3560
      %v3569 = vmul.f32 %v3538, %v3560
      %v3570 = vmul.f32 %v3541, %v3560
      %v3571 = vmul.f32 %v3544, %v3560
      %v3572 = vmul.f32 %v3547, %v3560
      %v3573 = vmul.f32 %v3550, %v3560
      %v3574 = vmul.f32 %v3553, %v3560
      %v3575 = vmul.f32 %v3556, %v3560
      %v3576 = vmul.f32 %v3559, %v3560
      %v3577 = vsub.f32 %v3496, %v3561
      %v3578 = vsub.f32 %v3497, %v3562
      %v3579 = vsub.f32 %v3498, %v3563
      %v3580 = vsub.f32 %v3499, %v3564
      %v3581 = vsub.f32 %v3500, %v3565
      %v3582 = vsub.f32 %v3501, %v3566
      %v3583 = vsub.f32 %v3502, %v3567
      %v3584 = vsub.f32 %v3503, %v3568
      %v3585 = vsub.f32 %v3504, %v3569
      %v3586 = vsub.f32 %v3505, %v3570
      %v3587 = vsub.f32 %v3506, %v3571
      %v3588 = vsub.f32 %v3507, %v3572
      %v3589 = vsub.f32 %v3508, %v3573
      %v3590 = vsub.f32 %v3509, %v3574
      %v3591 = vsub.f32 %v3510, %v3575
      %v3592 = vsub.f32 %v3511, %v3576
      %v3593 = vmul.f32 %v3577, %v3577
      %v3594 = vmul.f32 %v3578, %v3578
      %v3595 = vmul.f32 %v3579, %v3579
      %v3596 = vmul.f32 %v3580, %v3580
      %v3597 = vmul.f32 %v3581, %v3581
      %v3598 = vmul.f32 %v3582, %v3582
      %v3599 = vmul.f32 %v3583, %v3583
      %v3600 = vmul.f32 %v3584, %v3584
      %v3601 = vmul.f32 %v3585, %v3585
      %v3602 = vmul.f32 %v3586, %v3586
      %v3603 = vmul.f32 %v3587, %v3587
      %v3604 = vmul.f32 %v3588, %v3588
      %v3605 = vmul.f32 %v3589, %v3589
      %v3606 = vmul.f32 %v3590, %v3590
      %v3607 = vmul.f32 %v3591, %v3591
      %v3608 = vmul.f32 %v3592, %v3592
      %v3609 = vsel %vm1428, %v3593, 0.0
      %3610 = vadd.xlane.f32.xlu0 %v3609
      %v3611 = vpop.xlane.xlu0 %3610
      %v3612 = vsel %vm1428, %v3594, 0.0
      %3613 = vadd.xlane.f32.xlu0 %v3612
      %v3614 = vpop.xlane.xlu0 %3613
      %v3615 = vsel %vm1428, %v3595, 0.0
      %3616 = vadd.xlane.f32.xlu0 %v3615
      %v3617 = vpop.xlane.xlu0 %3616
      %v3618 = vsel %vm1428, %v3596, 0.0
      %3619 = vadd.xlane.f32.xlu0 %v3618
      %v3620 = vpop.xlane.xlu0 %3619
      %v3621 = vsel %vm1428, %v3597, 0.0
      %3622 = vadd.xlane.f32.xlu0 %v3621
      %v3623 = vpop.xlane.xlu0 %3622
      %v3624 = vsel %vm1428, %v3598, 0.0
      %3625 = vadd.xlane.f32.xlu0 %v3624
      %v3626 = vpop.xlane.xlu0 %3625
      %v3627 = vsel %vm1428, %v3599, 0.0
      %3628 = vadd.xlane.f32.xlu0 %v3627
      %v3629 = vpop.xlane.xlu0 %3628
      %v3630 = vsel %vm1428, %v3600, 0.0
      %3631 = vadd.xlane.f32.xlu0 %v3630
      %v3632 = vpop.xlane.xlu0 %3631
      %v3633 = vsel %vm1428, %v3601, 0.0
      %3634 = vadd.xlane.f32.xlu0 %v3633
      %v3635 = vpop.xlane.xlu0 %3634
      %v3636 = vsel %vm1428, %v3602, 0.0
      %3637 = vadd.xlane.f32.xlu0 %v3636
      %v3638 = vpop.xlane.xlu0 %3637
      %v3639 = vsel %vm1428, %v3603, 0.0
      %3640 = vadd.xlane.f32.xlu0 %v3639
      %v3641 = vpop.xlane.xlu0 %3640
      %v3642 = vsel %vm1428, %v3604, 0.0
      %3643 = vadd.xlane.f32.xlu0 %v3642
      %v3644 = vpop.xlane.xlu0 %3643
      %v3645 = vsel %vm1428, %v3605, 0.0
      %3646 = vadd.xlane.f32.xlu0 %v3645
      %v3647 = vpop.xlane.xlu0 %3646
      %v3648 = vsel %vm1428, %v3606, 0.0
      %3649 = vadd.xlane.f32.xlu0 %v3648
      %v3650 = vpop.xlane.xlu0 %3649
      %v3651 = vsel %vm1428, %v3607, 0.0
      %3652 = vadd.xlane.f32.xlu0 %v3651
      %v3653 = vpop.xlane.xlu0 %3652
      %v3654 = vsel %vm1428, %v3608, 0.0
      %3655 = vadd.xlane.f32.xlu0 %v3654
      %v3656 = vpop.xlane.xlu0 %3655
      %v3657 = vmul.f32 %v3611, %v3560
      %v3658 = vmul.f32 %v3614, %v3560
      %v3659 = vmul.f32 %v3617, %v3560
      %v3660 = vmul.f32 %v3620, %v3560
      %v3661 = vmul.f32 %v3623, %v3560
      %v3662 = vmul.f32 %v3626, %v3560
      %v3663 = vmul.f32 %v3629, %v3560
      %v3664 = vmul.f32 %v3632, %v3560
      %v3665 = vmul.f32 %v3635, %v3560
      %v3666 = vmul.f32 %v3638, %v3560
      %v3667 = vmul.f32 %v3641, %v3560
      %v3668 = vmul.f32 %v3644, %v3560
      %v3669 = vmul.f32 %v3647, %v3560
      %v3670 = vmul.f32 %v3650, %v3560
      %v3671 = vmul.f32 %v3653, %v3560
      %v3672 = vmul.f32 %v3656, %v3560
      %v3673 = vadd.f32 %v3657, 1e-05
      %v3674 = vadd.f32 %v3658, 1e-05
      %v3675 = vadd.f32 %v3659, 1e-05
      %v3676 = vadd.f32 %v3660, 1e-05
      %v3677 = vadd.f32 %v3661, 1e-05
      %v3678 = vadd.f32 %v3662, 1e-05
      %v3679 = vadd.f32 %v3663, 1e-05
      %v3680 = vadd.f32 %v3664, 1e-05
      %v3681 = vadd.f32 %v3665, 1e-05
      %v3682 = vadd.f32 %v3666, 1e-05
      %v3683 = vadd.f32 %v3667, 1e-05
      %v3684 = vadd.f32 %v3668, 1e-05
      %v3685 = vadd.f32 %v3669, 1e-05
      %v3686 = vadd.f32 %v3670, 1e-05
      %v3687 = vadd.f32 %v3671, 1e-05
      %v3688 = vadd.f32 %v3672, 1e-05
      %v3689 = vrsqrt.pop %v3673
      %v3690 = vrsqrt.pop %v3674
      %v3691 = vrsqrt.pop %v3675
      %v3692 = vrsqrt.pop %v3676
      %v3693 = vrsqrt.pop %v3677
      %v3694 = vrsqrt.pop %v3678
      %v3695 = vrsqrt.pop %v3679
      %v3696 = vrsqrt.pop %v3680
      %v3697 = vrsqrt.pop %v3681
      %v3698 = vrsqrt.pop %v3682
      %v3699 = vrsqrt.pop %v3683
      %v3700 = vrsqrt.pop %v3684
      %v3701 = vrsqrt.pop %v3685
      %v3702 = vrsqrt.pop %v3686
      %v3703 = vrsqrt.pop %v3687
      %v3704 = vrsqrt.pop %v3688
      %v3705 = vmul.f32 %v3577, %v3689
      %v3706 = vmul.f32 %v3578, %v3690
      %v3707 = vmul.f32 %v3579, %v3691
      %v3708 = vmul.f32 %v3580, %v3692
      %v3709 = vmul.f32 %v3581, %v3693
      %v3710 = vmul.f32 %v3582, %v3694
      %v3711 = vmul.f32 %v3583, %v3695
      %v3712 = vmul.f32 %v3584, %v3696
      %v3713 = vmul.f32 %v3585, %v3697
      %v3714 = vmul.f32 %v3586, %v3698
      %v3715 = vmul.f32 %v3587, %v3699
      %v3716 = vmul.f32 %v3588, %v3700
      %v3717 = vmul.f32 %v3589, %v3701
      %v3718 = vmul.f32 %v3590, %v3702
      %v3719 = vmul.f32 %v3591, %v3703
      %v3720 = vmul.f32 %v3592, %v3704
      %v3721 = vld [vmem:[%s17] sm:$0x1]
      %v3723 = vlaneseq
      %v3724 = vshrl.u32 %v3723, 7
      %v3725 = vsub.s32 0, %v3724
      %v3726 = vrot.slane %v3721, %v3725
      %v3728 = vmul.f32 %v3705, %v3726
      %v3729 = vmul.f32 %v3706, %v3726
      %v3730 = vmul.f32 %v3707, %v3726
      %v3731 = vmul.f32 %v3708, %v3726
      %v3732 = vmul.f32 %v3709, %v3726
      %v3733 = vmul.f32 %v3710, %v3726
      %v3734 = vmul.f32 %v3711, %v3726
      %v3735 = vmul.f32 %v3712, %v3726
      %v3736 = vmul.f32 %v3713, %v3726
      %v3737 = vmul.f32 %v3714, %v3726
      %v3738 = vmul.f32 %v3715, %v3726
      %v3739 = vmul.f32 %v3716, %v3726
      %v3740 = vmul.f32 %v3717, %v3726
      %v3741 = vmul.f32 %v3718, %v3726
      %v3742 = vmul.f32 %v3719, %v3726
      %v3743 = vmul.f32 %v3720, %v3726
      %v3744 = vld [vmem:[%s19] sm:$0x1]
      %v3746 = vlaneseq
      %v3747 = vshrl.u32 %v3746, 7
      %v3748 = vsub.s32 0, %v3747
      %v3749 = vrot.slane %v3744, %v3748
      %v3751 = vadd.f32 %v3728, %v3749
      %v3752 = vadd.f32 %v3729, %v3749
      %v3753 = vadd.f32 %v3730, %v3749
      %v3754 = vadd.f32 %v3731, %v3749
      %v3755 = vadd.f32 %v3732, %v3749
      %v3756 = vadd.f32 %v3733, %v3749
      %v3757 = vadd.f32 %v3734, %v3749
      %v3758 = vadd.f32 %v3735, %v3749
      %v3759 = vadd.f32 %v3736, %v3749
      %v3760 = vadd.f32 %v3737, %v3749
      %v3761 = vadd.f32 %v3738, %v3749
      %v3762 = vadd.f32 %v3739, %v3749
      %v3763 = vadd.f32 %v3740, %v3749
      %v3764 = vadd.f32 %v3741, %v3749
      %v3765 = vadd.f32 %v3742, %v3749
      %v3766 = vadd.f32 %v3743, %v3749
      %v3767 = vpack.c.bf16 %v3752, %v3751
      %v3768 = vpack.c.bf16 %v3754, %v3753
      %v3769 = vpack.c.bf16 %v3756, %v3755
      %v3770 = vpack.c.bf16 %v3758, %v3757
      %v3771 = vpack.c.bf16 %v3760, %v3759
      %v3772 = vpack.c.bf16 %v3762, %v3761
      %v3773 = vpack.c.bf16 %v3764, %v3763
      %v3774 = vpack.c.bf16 %v3766, %v3765
      %v3775 = vld [vmem:[%s21] sm:$0xf]
      %v3776 = vld [vmem:[%s21 + $0x4] sm:$0xf]
      %v3777 = vld [vmem:[%s21 + $0x8] sm:$0xf]
      %v3778 = vld [vmem:[%s21 + $0xc] sm:$0xf]
      %v3779 = vld [vmem:[%s23] sm:$0x1]
      %v3781 = vlaneseq
      %v3782 = vshrl.u32 %v3781, 7
      %v3783 = vsub.s32 0, %v3782
      %v3784 = vrot.slane %v3779, %v3783
      %v3790 = vunpack.c.l.b16 %v3775
      %v3791 = vunpack.c.l.b16 %v3776
      %v3792 = vunpack.c.l.b16 %v3777
      %v3793 = vunpack.c.l.b16 %v3778
      %v3794 = vpack.c.b16 %v3791, %v3790
      %v3795 = vpack.c.b16 %v3793, %v3792
      %v3799 = vsel %vm1428, %v3767, 0
      %v3802 = vsel %vm1428, %v3768, 0
      %v3805 = vsel %vm1428, %v3769, 0
      %v3808 = vsel %vm1428, %v3770, 0
      %v3811 = vsel %vm1428, %v3771, 0
      %v3814 = vsel %vm1428, %v3772, 0
      %v3817 = vsel %vm1428, %v3773, 0
      %v3820 = vsel %vm1428, %v3774, 0
      %3822 = vmatprep.subr.bf16.mxu0 0
      %3823 = vmatpush1.bf16.msra.mxu0 %v3794
      %3824 = vmatprep.subr.bf16.mxu0 0
      %3825 = vmatpush1.bf16.msra.mxu0 %v3795
      %3826 = vmatprep.subr.bf16.mxu0 0
      %3827 = vmatpush1.bf16.msra.mxu0 0
      %3828 = vmatprep.subr.bf16.mxu0 0
      %3829 = vmatpush1.bf16.msra.mxu0 0
      %3830 = vmatprep.subr.bf16.mxu0 0
      %3831 = vmatpush1.bf16.msra.mxu0 0
      %3832 = vmatprep.subr.bf16.mxu0 0
      %3833 = vmatpush1.bf16.msra.mxu0 0
      %3834 = vmatprep.subr.bf16.mxu0 0
      %3835 = vmatpush1.bf16.msra.mxu0 0
      %3836 = vmatprep.subr.bf16.mxu0 0
      %3837 = vmatpush1.bf16.msra.mxu0 0
      %3838 = vmatprep.subr.bf16.mxu0 0
      %3839 = vmatpush1.bf16.msra.mxu0 0
      %3840 = vmatprep.subr.bf16.mxu0 0
      %3841 = vmatpush1.bf16.msra.mxu0 0
      %3842 = vmatprep.subr.bf16.mxu0 0
      %3843 = vmatpush1.bf16.msra.mxu0 0
      %3844 = vmatprep.subr.bf16.mxu0 0
      %3845 = vmatpush1.bf16.msra.mxu0 0
      %3846 = vmatprep.subr.bf16.mxu0 0
      %3847 = vmatpush1.bf16.msra.mxu0 0
      %3848 = vmatprep.subr.bf16.mxu0 0
      %3849 = vmatpush1.bf16.msra.mxu0 0
      %3850 = vmatprep.subr.bf16.mxu0 0
      %3851 = vmatpush1.bf16.msra.mxu0 0
      %3852 = vmatprep.subr.bf16.mxu0 0
      %3853 = vmatpush1.bf16.msra.mxu0 0
      %3854 = vmatprep.mubr.bf16.mxu0 0
      %3855 = vmatmul.mubr.bf16.gmra.mrb[0].mxu0 %v3799
      %v3856 = vpop.f32.mrb[0].mxu0
      %v3857 = vadd.f32 %v3784, %v3856
      %v3858 = vpop.f32.mrb[0].mxu0
      %v3859 = vpop.f32.mrb[0].mxu0
      %v3860 = vadd.f32 %v3784, %v3859
      %v3861 = vpop.f32.mrb[0].mxu0
      %3862 = vmatprep.mubr.bf16.mxu0 0
      %3863 = vmatmul.mubr.bf16.gmra.mrb[0].mxu0 %v3802
      %v3864 = vpop.f32.mrb[0].mxu0
      %v3865 = vadd.f32 %v3784, %v3864
      %v3866 = vpop.f32.mrb[0].mxu0
      %v3867 = vpop.f32.mrb[0].mxu0
      %v3868 = vadd.f32 %v3784, %v3867
      %v3869 = vpop.f32.mrb[0].mxu0
      %3870 = vmatprep.mubr.bf16.mxu0 0
      %3871 = vmatmul.mubr.bf16.gmra.mrb[0].mxu0 %v3805
      %v3872 = vpop.f32.mrb[0].mxu0
      %v3873 = vadd.f32 %v3784, %v3872
      %v3874 = vpop.f32.mrb[0].mxu0
      %v3875 = vpop.f32.mrb[0].mxu0
      %v3876 = vadd.f32 %v3784, %v3875
      %v3877 = vpop.f32.mrb[0].mxu0
      %3878 = vmatprep.mubr.bf16.mxu0 0
      %3879 = vmatmul.mubr.bf16.gmra.mrb[0].mxu0 %v3808
      %v3880 = vpop.f32.mrb[0].mxu0
      %v3881 = vadd.f32 %v3784, %v3880
      %v3882 = vpop.f32.mrb[0].mxu0
      %v3883 = vpop.f32.mrb[0].mxu0
      %v3884 = vadd.f32 %v3784, %v3883
      %v3885 = vpop.f32.mrb[0].mxu0
      %3886 = vmatprep.mubr.bf16.mxu0 0
      %3887 = vmatmul.mubr.bf16.gmra.mrb[0].mxu0 %v3811
      %v3888 = vpop.f32.mrb[0].mxu0
      %v3889 = vadd.f32 %v3784, %v3888
      %v3890 = vpop.f32.mrb[0].mxu0
      %v3891 = vpop.f32.mrb[0].mxu0
      %v3892 = vadd.f32 %v3784, %v3891
      %v3893 = vpop.f32.mrb[0].mxu0
      %3894 = vmatprep.mubr.bf16.mxu0 0
      %3895 = vmatmul.mubr.bf16.gmra.mrb[0].mxu0 %v3814
      %v3896 = vpop.f32.mrb[0].mxu0
      %v3897 = vadd.f32 %v3784, %v3896
      %v3898 = vpop.f32.mrb[0].mxu0
      %v3899 = vpop.f32.mrb[0].mxu0
      %v3900 = vadd.f32 %v3784, %v3899
      %v3901 = vpop.f32.mrb[0].mxu0
      %3902 = vmatprep.mubr.bf16.mxu0 0
      %3903 = vmatmul.mubr.bf16.gmra.mrb[0].mxu0 %v3817
      %v3904 = vpop.f32.mrb[0].mxu0
      %v3905 = vadd.f32 %v3784, %v3904
      %v3906 = vpop.f32.mrb[0].mxu0
      %v3907 = vpop.f32.mrb[0].mxu0
      %v3908 = vadd.f32 %v3784, %v3907
      %v3909 = vpop.f32.mrb[0].mxu0
      %3910 = vmatprep.mubr.bf16.mxu0 0
      %3911 = vmatmul.mubr.bf16.gmra.mrb[0].mxu0 %v3820
      %v3912 = vpop.f32.mrb[0].mxu0
      %v3913 = vadd.f32 %v3784, %v3912
      %v3914 = vpop.f32.mrb[0].mxu0
      %v3915 = vpop.f32.mrb[0].mxu0
      %v3916 = vadd.f32 %v3784, %v3915
      %v3917 = vpop.f32.mrb[0].mxu0
      %3918 = vdwg.mxu0
      %v3919 = vmax.f32 %v3857, 0.0
      %v3920 = vmax.f32 %v3860, 0.0
      %v3921 = vmax.f32 %v3865, 0.0
      %v3922 = vmax.f32 %v3868, 0.0
      %v3923 = vmax.f32 %v3873, 0.0
      %v3924 = vmax.f32 %v3876, 0.0
      %v3925 = vmax.f32 %v3881, 0.0
      %v3926 = vmax.f32 %v3884, 0.0
      %v3927 = vmax.f32 %v3889, 0.0
      %v3928 = vmax.f32 %v3892, 0.0
      %v3929 = vmax.f32 %v3897, 0.0
      %v3930 = vmax.f32 %v3900, 0.0
      %v3931 = vmax.f32 %v3905, 0.0
      %v3932 = vmax.f32 %v3908, 0.0
      %v3933 = vmax.f32 %v3913, 0.0
      %v3934 = vmax.f32 %v3916, 0.0
      %v3935 = vpack.c.bf16 %v3920, %v3919
      %v3936 = vpack.c.bf16 %v3922, %v3921
      %v3937 = vpack.c.bf16 %v3924, %v3923
      %v3938 = vpack.c.bf16 %v3926, %v3925
      %v3939 = vpack.c.bf16 %v3928, %v3927
      %v3940 = vpack.c.bf16 %v3930, %v3929
      %v3941 = vpack.c.bf16 %v3932, %v3931
      %v3942 = vpack.c.bf16 %v3934, %v3933
      %v3943 = vld [vmem:[%s25] sm:$0xf]
      %v3944 = vld [vmem:[%s25 + $0x4] sm:$0xf]
      %v3945 = vld [vmem:[%s25 + $0x8] sm:$0xf]
      %v3946 = vld [vmem:[%s25 + $0xc] sm:$0xf]
      %v3947 = vld [vmem:[%s25 + $0x10] sm:$0xf]
      %v3948 = vld [vmem:[%s25 + $0x14] sm:$0xf]
      %v3949 = vld [vmem:[%s25 + $0x18] sm:$0xf]
      %v3950 = vld [vmem:[%s25 + $0x1c] sm:$0xf]
      %v3951 = vld [vmem:[%s27] sm:$0x1]
      %v3953 = vlaneseq
      %v3954 = vshrl.u32 %v3953, 7
      %v3955 = vsub.s32 0, %v3954
      %v3956 = vrot.slane %v3951, %v3955
      %v3966 = vunpack.c.l.b16 %v3943
      %v3967 = vunpack.c.l.b16 %v3944
      %v3968 = vunpack.c.l.b16 %v3945
      %v3969 = vunpack.c.l.b16 %v3946
      %v3970 = vunpack.c.l.b16 %v3947
      %v3971 = vunpack.c.l.b16 %v3948
      %v3972 = vunpack.c.l.b16 %v3949
      %v3973 = vunpack.c.l.b16 %v3950
      %v3974 = vpack.c.b16 %v3967, %v3966
      %v3975 = vpack.c.b16 %v3969, %v3968
      %v3976 = vpack.c.b16 %v3971, %v3970
      %v3977 = vpack.c.b16 %v3973, %v3972
      %vm3982 = vcmask 523264
      %v3984 = vsel %vm3982, %v3935, 0
      %v3987 = vsel %vm3982, %v3936, 0
      %v3990 = vsel %vm3982, %v3937, 0
      %v3993 = vsel %vm3982, %v3938, 0
      %v3996 = vsel %vm3982, %v3939, 0
      %v3999 = vsel %vm3982, %v3940, 0
      %v4002 = vsel %vm3982, %v3941, 0
      %v4005 = vsel %vm3982, %v3942, 0
      %4007 = vmatprep.subr.bf16.mxu0 0
      %4008 = vmatpush1.bf16.msra.mxu0 %v3974
      %4009 = vmatprep.subr.bf16.mxu0 0
      %4010 = vmatpush1.bf16.msra.mxu0 %v3975
      %4011 = vmatprep.subr.bf16.mxu0 0
      %4012 = vmatpush1.bf16.msra.mxu0 %v3976
      %4013 = vmatprep.subr.bf16.mxu0 0
      %4014 = vmatpush1.bf16.msra.mxu0 %v3977
      %4015 = vmatprep.subr.bf16.mxu0 0
      %4016 = vmatpush1.bf16.msra.mxu0 0
      %4017 = vmatprep.subr.bf16.mxu0 0
      %4018 = vmatpush1.bf16.msra.mxu0 0
      %4019 = vmatprep.subr.bf16.mxu0 0
      %4020 = vmatpush1.bf16.msra.mxu0 0
      %4021 = vmatprep.subr.bf16.mxu0 0
      %4022 = vmatpush1.bf16.msra.mxu0 0
      %4023 = vmatprep.subr.bf16.mxu0 0
      %4024 = vmatpush1.bf16.msra.mxu0 0
      %4025 = vmatprep.subr.bf16.mxu0 0
      %4026 = vmatpush1.bf16.msra.mxu0 0
      %4027 = vmatprep.subr.bf16.mxu0 0
      %4028 = vmatpush1.bf16.msra.mxu0 0
      %4029 = vmatprep.subr.bf16.mxu0 0
      %4030 = vmatpush1.bf16.msra.mxu0 0
      %4031 = vmatprep.subr.bf16.mxu0 0
      %4032 = vmatpush1.bf16.msra.mxu0 0
      %4033 = vmatprep.subr.bf16.mxu0 0
      %4034 = vmatpush1.bf16.msra.mxu0 0
      %4035 = vmatprep.subr.bf16.mxu0 0
      %4036 = vmatpush1.bf16.msra.mxu0 0
      %4037 = vmatprep.subr.bf16.mxu0 0
      %4038 = vmatpush1.bf16.msra.mxu0 0
      %4039 = vmatprep.mubr.bf16.mxu0 0
      %4040 = vmatmul.mubr.bf16.gmra.mrb[0].mxu0 %v3984
      %v4041 = vpop.f32.mrb[0].mxu0
      %v4042 = vadd.f32 %v3956, %v4041
      %v4043 = vpop.f32.mrb[0].mxu0
      %v4044 = vpop.f32.mrb[0].mxu0
      %v4045 = vadd.f32 %v3956, %v4044
      %v4046 = vpop.f32.mrb[0].mxu0
      %4047 = vmatprep.mubr.bf16.mxu0 0
      %4048 = vmatmul.mubr.bf16.gmra.mrb[0].mxu0 %v3987
      %v4049 = vpop.f32.mrb[0].mxu0
      %v4050 = vadd.f32 %v3956, %v4049
      %v4051 = vpop.f32.mrb[0].mxu0
      %v4052 = vpop.f32.mrb[0].mxu0
      %v4053 = vadd.f32 %v3956, %v4052
      %v4054 = vpop.f32.mrb[0].mxu0
      %4055 = vmatprep.mubr.bf16.mxu0 0
      %4056 = vmatmul.mubr.bf16.gmra.mrb[0].mxu0 %v3990
      %v4057 = vpop.f32.mrb[0].mxu0
      %v4058 = vadd.f32 %v3956, %v4057
      %v4059 = vpop.f32.mrb[0].mxu0
      %v4060 = vpop.f32.mrb[0].mxu0
      %v4061 = vadd.f32 %v3956, %v4060
      %v4062 = vpop.f32.mrb[0].mxu0
      %4063 = vmatprep.mubr.bf16.mxu0 0
      %4064 = vmatmul.mubr.bf16.gmra.mrb[0].mxu0 %v3993
      %v4065 = vpop.f32.mrb[0].mxu0
      %v4066 = vadd.f32 %v3956, %v4065
      %v4067 = vpop.f32.mrb[0].mxu0
      %v4068 = vpop.f32.mrb[0].mxu0
      %v4069 = vadd.f32 %v3956, %v4068
      %v4070 = vpop.f32.mrb[0].mxu0
      %4071 = vmatprep.mubr.bf16.mxu0 0
      %4072 = vmatmul.mubr.bf16.gmra.mrb[0].mxu0 %v3996
      %v4073 = vpop.f32.mrb[0].mxu0
      %v4074 = vadd.f32 %v3956, %v4073
      %v4075 = vpop.f32.mrb[0].mxu0
      %v4076 = vpop.f32.mrb[0].mxu0
      %v4077 = vadd.f32 %v3956, %v4076
      %v4078 = vpop.f32.mrb[0].mxu0
      %4079 = vmatprep.mubr.bf16.mxu0 0
      %4080 = vmatmul.mubr.bf16.gmra.mrb[0].mxu0 %v3999
      %v4081 = vpop.f32.mrb[0].mxu0
      %v4082 = vadd.f32 %v3956, %v4081
      %v4083 = vpop.f32.mrb[0].mxu0
      %v4084 = vpop.f32.mrb[0].mxu0
      %v4085 = vadd.f32 %v3956, %v4084
      %v4086 = vpop.f32.mrb[0].mxu0
      %4087 = vmatprep.mubr.bf16.mxu0 0
      %4088 = vmatmul.mubr.bf16.gmra.mrb[0].mxu0 %v4002
      %v4089 = vpop.f32.mrb[0].mxu0
      %v4090 = vadd.f32 %v3956, %v4089
      %v4091 = vpop.f32.mrb[0].mxu0
      %v4092 = vpop.f32.mrb[0].mxu0
      %v4093 = vadd.f32 %v3956, %v4092
      %v4094 = vpop.f32.mrb[0].mxu0
      %4095 = vmatprep.mubr.bf16.mxu0 0
      %4096 = vmatmul.mubr.bf16.gmra.mrb[0].mxu0 %v4005
      %v4097 = vpop.f32.mrb[0].mxu0
      %v4098 = vadd.f32 %v3956, %v4097
      %v4099 = vpop.f32.mrb[0].mxu0
      %v4100 = vpop.f32.mrb[0].mxu0
      %v4101 = vadd.f32 %v3956, %v4100
      %v4102 = vpop.f32.mrb[0].mxu0
      %4103 = vdwg.mxu0
      %v4104 = vadd.f32 %v3751, %v4042
      %v4105 = vadd.f32 %v3752, %v4045
      %v4106 = vadd.f32 %v3753, %v4050
      %v4107 = vadd.f32 %v3754, %v4053
      %v4108 = vadd.f32 %v3755, %v4058
      %v4109 = vadd.f32 %v3756, %v4061
      %v4110 = vadd.f32 %v3757, %v4066
      %v4111 = vadd.f32 %v3758, %v4069
      %v4112 = vadd.f32 %v3759, %v4074
      %v4113 = vadd.f32 %v3760, %v4077
      %v4114 = vadd.f32 %v3761, %v4082
      %v4115 = vadd.f32 %v3762, %v4085
      %v4116 = vadd.f32 %v3763, %v4090
      %v4117 = vadd.f32 %v3764, %v4093
      %v4118 = vadd.f32 %v3765, %v4098
      %v4119 = vadd.f32 %v3766, %v4101
      %v4120 = vsel %vm1428, %v4104, 0.0
      %4121 = vadd.xlane.f32.xlu0 %v4120
      %v4122 = vpop.xlane.xlu0 %4121
      %v4123 = vsel %vm1428, %v4105, 0.0
      %4124 = vadd.xlane.f32.xlu0 %v4123
      %v4125 = vpop.xlane.xlu0 %4124
      %v4126 = vsel %vm1428, %v4106, 0.0
      %4127 = vadd.xlane.f32.xlu0 %v4126
      %v4128 = vpop.xlane.xlu0 %4127
      %v4129 = vsel %vm1428, %v4107, 0.0
      %4130 = vadd.xlane.f32.xlu0 %v4129
      %v4131 = vpop.xlane.xlu0 %4130
      %v4132 = vsel %vm1428, %v4108, 0.0
      %4133 = vadd.xlane.f32.xlu0 %v4132
      %v4134 = vpop.xlane.xlu0 %4133
      %v4135 = vsel %vm1428, %v4109, 0.0
      %4136 = vadd.xlane.f32.xlu0 %v4135
      %v4137 = vpop.xlane.xlu0 %4136
      %v4138 = vsel %vm1428, %v4110, 0.0
      %4139 = vadd.xlane.f32.xlu0 %v4138
      %v4140 = vpop.xlane.xlu0 %4139
      %v4141 = vsel %vm1428, %v4111, 0.0
      %4142 = vadd.xlane.f32.xlu0 %v4141
      %v4143 = vpop.xlane.xlu0 %4142
      %v4144 = vsel %vm1428, %v4112, 0.0
      %4145 = vadd.xlane.f32.xlu0 %v4144
      %v4146 = vpop.xlane.xlu0 %4145
      %v4147 = vsel %vm1428, %v4113, 0.0
      %4148 = vadd.xlane.f32.xlu0 %v4147
      %v4149 = vpop.xlane.xlu0 %4148
      %v4150 = vsel %vm1428, %v4114, 0.0
      %4151 = vadd.xlane.f32.xlu0 %v4150
      %v4152 = vpop.xlane.xlu0 %4151
      %v4153 = vsel %vm1428, %v4115, 0.0
      %4154 = vadd.xlane.f32.xlu0 %v4153
      %v4155 = vpop.xlane.xlu0 %4154
      %v4156 = vsel %vm1428, %v4116, 0.0
      %4157 = vadd.xlane.f32.xlu0 %v4156
      %v4158 = vpop.xlane.xlu0 %4157
      %v4159 = vsel %vm1428, %v4117, 0.0
      %4160 = vadd.xlane.f32.xlu0 %v4159
      %v4161 = vpop.xlane.xlu0 %4160
      %v4162 = vsel %vm1428, %v4118, 0.0
      %4163 = vadd.xlane.f32.xlu0 %v4162
      %v4164 = vpop.xlane.xlu0 %4163
      %v4165 = vsel %vm1428, %v4119, 0.0
      %4166 = vadd.xlane.f32.xlu0 %v4165
      %v4167 = vpop.xlane.xlu0 %4166
      %v4168 = vmul.f32 %v4122, %v3560
      %v4169 = vmul.f32 %v4125, %v3560
      %v4170 = vmul.f32 %v4128, %v3560
      %v4171 = vmul.f32 %v4131, %v3560
      %v4172 = vmul.f32 %v4134, %v3560
      %v4173 = vmul.f32 %v4137, %v3560
      %v4174 = vmul.f32 %v4140, %v3560
      %v4175 = vmul.f32 %v4143, %v3560
      %v4176 = vmul.f32 %v4146, %v3560
      %v4177 = vmul.f32 %v4149, %v3560
      %v4178 = vmul.f32 %v4152, %v3560
      %v4179 = vmul.f32 %v4155, %v3560
      %v4180 = vmul.f32 %v4158, %v3560
      %v4181 = vmul.f32 %v4161, %v3560
      %v4182 = vmul.f32 %v4164, %v3560
      %v4183 = vmul.f32 %v4167, %v3560
      %v4184 = vsub.f32 %v4104, %v4168
      %v4185 = vsub.f32 %v4105, %v4169
      %v4186 = vsub.f32 %v4106, %v4170
      %v4187 = vsub.f32 %v4107, %v4171
      %v4188 = vsub.f32 %v4108, %v4172
      %v4189 = vsub.f32 %v4109, %v4173
      %v4190 = vsub.f32 %v4110, %v4174
      %v4191 = vsub.f32 %v4111, %v4175
      %v4192 = vsub.f32 %v4112, %v4176
      %v4193 = vsub.f32 %v4113, %v4177
      %v4194 = vsub.f32 %v4114, %v4178
      %v4195 = vsub.f32 %v4115, %v4179
      %v4196 = vsub.f32 %v4116, %v4180
      %v4197 = vsub.f32 %v4117, %v4181
      %v4198 = vsub.f32 %v4118, %v4182
      %v4199 = vsub.f32 %v4119, %v4183
      %v4200 = vmul.f32 %v4184, %v4184
      %v4201 = vmul.f32 %v4185, %v4185
      %v4202 = vmul.f32 %v4186, %v4186
      %v4203 = vmul.f32 %v4187, %v4187
      %v4204 = vmul.f32 %v4188, %v4188
      %v4205 = vmul.f32 %v4189, %v4189
      %v4206 = vmul.f32 %v4190, %v4190
      %v4207 = vmul.f32 %v4191, %v4191
      %v4208 = vmul.f32 %v4192, %v4192
      %v4209 = vmul.f32 %v4193, %v4193
      %v4210 = vmul.f32 %v4194, %v4194
      %v4211 = vmul.f32 %v4195, %v4195
      %v4212 = vmul.f32 %v4196, %v4196
      %v4213 = vmul.f32 %v4197, %v4197
      %v4214 = vmul.f32 %v4198, %v4198
      %v4215 = vmul.f32 %v4199, %v4199
      %v4216 = vsel %vm1428, %v4200, 0.0
      %4217 = vadd.xlane.f32.xlu0 %v4216
      %v4218 = vpop.xlane.xlu0 %4217
      %v4219 = vsel %vm1428, %v4201, 0.0
      %4220 = vadd.xlane.f32.xlu0 %v4219
      %v4221 = vpop.xlane.xlu0 %4220
      %v4222 = vsel %vm1428, %v4202, 0.0
      %4223 = vadd.xlane.f32.xlu0 %v4222
      %v4224 = vpop.xlane.xlu0 %4223
      %v4225 = vsel %vm1428, %v4203, 0.0
      %4226 = vadd.xlane.f32.xlu0 %v4225
      %v4227 = vpop.xlane.xlu0 %4226
      %v4228 = vsel %vm1428, %v4204, 0.0
      %4229 = vadd.xlane.f32.xlu0 %v4228
      %v4230 = vpop.xlane.xlu0 %4229
      %v4231 = vsel %vm1428, %v4205, 0.0
      %4232 = vadd.xlane.f32.xlu0 %v4231
      %v4233 = vpop.xlane.xlu0 %4232
      %v4234 = vsel %vm1428, %v4206, 0.0
      %4235 = vadd.xlane.f32.xlu0 %v4234
      %v4236 = vpop.xlane.xlu0 %4235
      %v4237 = vsel %vm1428, %v4207, 0.0
      %4238 = vadd.xlane.f32.xlu0 %v4237
      %v4239 = vpop.xlane.xlu0 %4238
      %v4240 = vsel %vm1428, %v4208, 0.0
      %4241 = vadd.xlane.f32.xlu0 %v4240
      %v4242 = vpop.xlane.xlu0 %4241
      %v4243 = vsel %vm1428, %v4209, 0.0
      %4244 = vadd.xlane.f32.xlu0 %v4243
      %v4245 = vpop.xlane.xlu0 %4244
      %v4246 = vsel %vm1428, %v4210, 0.0
      %4247 = vadd.xlane.f32.xlu0 %v4246
      %v4248 = vpop.xlane.xlu0 %4247
      %v4249 = vsel %vm1428, %v4211, 0.0
      %4250 = vadd.xlane.f32.xlu0 %v4249
      %v4251 = vpop.xlane.xlu0 %4250
      %v4252 = vsel %vm1428, %v4212, 0.0
      %4253 = vadd.xlane.f32.xlu0 %v4252
      %v4254 = vpop.xlane.xlu0 %4253
      %v4255 = vsel %vm1428, %v4213, 0.0
      %4256 = vadd.xlane.f32.xlu0 %v4255
      %v4257 = vpop.xlane.xlu0 %4256
      %v4258 = vsel %vm1428, %v4214, 0.0
      %4259 = vadd.xlane.f32.xlu0 %v4258
      %v4260 = vpop.xlane.xlu0 %4259
      %v4261 = vsel %vm1428, %v4215, 0.0
      %4262 = vadd.xlane.f32.xlu0 %v4261
      %v4263 = vpop.xlane.xlu0 %4262
      %v4264 = vmul.f32 %v4218, %v3560
      %v4265 = vmul.f32 %v4221, %v3560
      %v4266 = vmul.f32 %v4224, %v3560
      %v4267 = vmul.f32 %v4227, %v3560
      %v4268 = vmul.f32 %v4230, %v3560
      %v4269 = vmul.f32 %v4233, %v3560
      %v4270 = vmul.f32 %v4236, %v3560
      %v4271 = vmul.f32 %v4239, %v3560
      %v4272 = vmul.f32 %v4242, %v3560
      %v4273 = vmul.f32 %v4245, %v3560
      %v4274 = vmul.f32 %v4248, %v3560
      %v4275 = vmul.f32 %v4251, %v3560
      %v4276 = vmul.f32 %v4254, %v3560
      %v4277 = vmul.f32 %v4257, %v3560
      %v4278 = vmul.f32 %v4260, %v3560
      %v4279 = vmul.f32 %v4263, %v3560
      %v4280 = vadd.f32 %v4264, 1e-05
      %v4281 = vadd.f32 %v4265, 1e-05
      %v4282 = vadd.f32 %v4266, 1e-05
      %v4283 = vadd.f32 %v4267, 1e-05
      %v4284 = vadd.f32 %v4268, 1e-05
      %v4285 = vadd.f32 %v4269, 1e-05
      %v4286 = vadd.f32 %v4270, 1e-05
      %v4287 = vadd.f32 %v4271, 1e-05
      %v4288 = vadd.f32 %v4272, 1e-05
      %v4289 = vadd.f32 %v4273, 1e-05
      %v4290 = vadd.f32 %v4274, 1e-05
      %v4291 = vadd.f32 %v4275, 1e-05
      %v4292 = vadd.f32 %v4276, 1e-05
      %v4293 = vadd.f32 %v4277, 1e-05
      %v4294 = vadd.f32 %v4278, 1e-05
      %v4295 = vadd.f32 %v4279, 1e-05
      %v4296 = vrsqrt.pop %v4280
      %v4297 = vrsqrt.pop %v4281
      %v4298 = vrsqrt.pop %v4282
      %v4299 = vrsqrt.pop %v4283
      %v4300 = vrsqrt.pop %v4284
      %v4301 = vrsqrt.pop %v4285
      %v4302 = vrsqrt.pop %v4286
      %v4303 = vrsqrt.pop %v4287
      %v4304 = vrsqrt.pop %v4288
      %v4305 = vrsqrt.pop %v4289
      %v4306 = vrsqrt.pop %v4290
      %v4307 = vrsqrt.pop %v4291
      %v4308 = vrsqrt.pop %v4292
      %v4309 = vrsqrt.pop %v4293
      %v4310 = vrsqrt.pop %v4294
      %v4311 = vrsqrt.pop %v4295
      %v4312 = vmul.f32 %v4184, %v4296
      %v4313 = vmul.f32 %v4185, %v4297
      %v4314 = vmul.f32 %v4186, %v4298
      %v4315 = vmul.f32 %v4187, %v4299
      %v4316 = vmul.f32 %v4188, %v4300
      %v4317 = vmul.f32 %v4189, %v4301
      %v4318 = vmul.f32 %v4190, %v4302
      %v4319 = vmul.f32 %v4191, %v4303
      %v4320 = vmul.f32 %v4192, %v4304
      %v4321 = vmul.f32 %v4193, %v4305
      %v4322 = vmul.f32 %v4194, %v4306
      %v4323 = vmul.f32 %v4195, %v4307
      %v4324 = vmul.f32 %v4196, %v4308
      %v4325 = vmul.f32 %v4197, %v4309
      %v4326 = vmul.f32 %v4198, %v4310
      %v4327 = vmul.f32 %v4199, %v4311
      %v4328 = vld [vmem:[%s29] sm:$0x1]
      %v4330 = vlaneseq
      %v4331 = vshrl.u32 %v4330, 7
      %v4332 = vsub.s32 0, %v4331
      %v4333 = vrot.slane %v4328, %v4332
      %v4335 = vmul.f32 %v4312, %v4333
      %v4336 = vmul.f32 %v4313, %v4333
      %v4337 = vmul.f32 %v4314, %v4333
      %v4338 = vmul.f32 %v4315, %v4333
      %v4339 = vmul.f32 %v4316, %v4333
      %v4340 = vmul.f32 %v4317, %v4333
      %v4341 = vmul.f32 %v4318, %v4333
      %v4342 = vmul.f32 %v4319, %v4333
      %v4343 = vmul.f32 %v4320, %v4333
      %v4344 = vmul.f32 %v4321, %v4333
      %v4345 = vmul.f32 %v4322, %v4333
      %v4346 = vmul.f32 %v4323, %v4333
      %v4347 = vmul.f32 %v4324, %v4333
      %v4348 = vmul.f32 %v4325, %v4333
      %v4349 = vmul.f32 %v4326, %v4333
      %v4350 = vmul.f32 %v4327, %v4333
      %v4351 = vld [vmem:[%s31] sm:$0x1]
      %v4353 = vlaneseq
      %v4354 = vshrl.u32 %v4353, 7
      %v4355 = vsub.s32 0, %v4354
      %v4356 = vrot.slane %v4351, %v4355
      %v4358 = vadd.f32 %v4335, %v4356
      %v4359 = vadd.f32 %v4336, %v4356
      %v4360 = vadd.f32 %v4337, %v4356
      %v4361 = vadd.f32 %v4338, %v4356
      %v4362 = vadd.f32 %v4339, %v4356
      %v4363 = vadd.f32 %v4340, %v4356
      %v4364 = vadd.f32 %v4341, %v4356
      %v4365 = vadd.f32 %v4342, %v4356
      %v4366 = vadd.f32 %v4343, %v4356
      %v4367 = vadd.f32 %v4344, %v4356
      %v4368 = vadd.f32 %v4345, %v4356
      %v4369 = vadd.f32 %v4346, %v4356
      %v4370 = vadd.f32 %v4347, %v4356
      %v4371 = vadd.f32 %v4348, %v4356
      %v4372 = vadd.f32 %v4349, %v4356
      %v4373 = vadd.f32 %v4350, %v4356
      %v4374 = vld [vmem:[%s1230] sm:$0xff]
      %v4375 = vld [vmem:[%s1230 + $0x8] sm:$0xff]
      %v4376 = vld [vmem:[%s1230 + $0x10] sm:$0xff]
      %v4377 = vld [vmem:[%s1230 + $0x18] sm:$0xff]
      %v4378 = vld [vmem:[%s1230 + $0x20] sm:$0xff]
      %v4379 = vld [vmem:[%s1230 + $0x28] sm:$0xff]
      %v4380 = vld [vmem:[%s1230 + $0x30] sm:$0xff]
      %v4381 = vld [vmem:[%s1230 + $0x38] sm:$0xff]
      %v4382 = vld [vmem:[%s1230 + $0x40] sm:$0xff]
      %v4383 = vld [vmem:[%s1230 + $0x48] sm:$0xff]
      %v4384 = vld [vmem:[%s1230 + $0x50] sm:$0xff]
      %v4385 = vld [vmem:[%s1230 + $0x58] sm:$0xff]
      %v4386 = vld [vmem:[%s1230 + $0x60] sm:$0xff]
      %v4387 = vld [vmem:[%s1230 + $0x68] sm:$0xff]
      %v4388 = vld [vmem:[%s1230 + $0x70] sm:$0xff]
      %v4389 = vld [vmem:[%s1230 + $0x78] sm:$0xff]
      %v4390 = vld [vmem:[%s33] sm:$0x1]
      %4392 = vset.pattern.permute.xlu0 0
      %4393 = vperm.xlu0 %4392, %v4374
      %v4394 = vpop.permute.xlu0 %4393
      %4397 = vset.pattern.permute.xlu0 0
      %4398 = vperm.xlu0 %4397, %v4375
      %v4399 = vpop.permute.xlu0 %4398
      %4402 = vset.pattern.permute.xlu0 0
      %4403 = vperm.xlu0 %4402, %v4376
      %v4404 = vpop.permute.xlu0 %4403
      %4407 = vset.pattern.permute.xlu0 0
      %4408 = vperm.xlu0 %4407, %v4377
      %v4409 = vpop.permute.xlu0 %4408
      %4412 = vset.pattern.permute.xlu0 0
      %4413 = vperm.xlu0 %4412, %v4378
      %v4414 = vpop.permute.xlu0 %4413
      %4417 = vset.pattern.permute.xlu0 0
      %4418 = vperm.xlu0 %4417, %v4379
      %v4419 = vpop.permute.xlu0 %4418
      %4422 = vset.pattern.permute.xlu0 0
      %4423 = vperm.xlu0 %4422, %v4380
      %v4424 = vpop.permute.xlu0 %4423
      %4427 = vset.pattern.permute.xlu0 0
      %4428 = vperm.xlu0 %4427, %v4381
      %v4429 = vpop.permute.xlu0 %4428
      %4432 = vset.pattern.permute.xlu0 0
      %4433 = vperm.xlu0 %4432, %v4382
      %v4434 = vpop.permute.xlu0 %4433
      %4437 = vset.pattern.permute.xlu0 0
      %4438 = vperm.xlu0 %4437, %v4383
      %v4439 = vpop.permute.xlu0 %4438
      %4442 = vset.pattern.permute.xlu0 0
      %4443 = vperm.xlu0 %4442, %v4384
      %v4444 = vpop.permute.xlu0 %4443
      %4447 = vset.pattern.permute.xlu0 0
      %4448 = vperm.xlu0 %4447, %v4385
      %v4449 = vpop.permute.xlu0 %4448
      %4452 = vset.pattern.permute.xlu0 0
      %4453 = vperm.xlu0 %4452, %v4386
      %v4454 = vpop.permute.xlu0 %4453
      %4457 = vset.pattern.permute.xlu0 0
      %4458 = vperm.xlu0 %4457, %v4387
      %v4459 = vpop.permute.xlu0 %4458
      %4462 = vset.pattern.permute.xlu0 0
      %4463 = vperm.xlu0 %4462, %v4388
      %v4464 = vpop.permute.xlu0 %4463
      %4467 = vset.pattern.permute.xlu0 0
      %4468 = vperm.xlu0 %4467, %v4389
      %v4469 = vpop.permute.xlu0 %4468
      %v4472 = vlaneseq
      %v4473 = vshrl.u32 %v4472, 7
      %v4474 = vsub.s32 0, %v4473
      %v4475 = vrot.slane %v4390, %v4474
      %v4477 = vmul.f32 %v4394, %v4475
      %v4478 = vmul.f32 %v4399, %v4475
      %v4479 = vmul.f32 %v4404, %v4475
      %v4480 = vmul.f32 %v4409, %v4475
      %v4481 = vmul.f32 %v4414, %v4475
      %v4482 = vmul.f32 %v4419, %v4475
      %v4483 = vmul.f32 %v4424, %v4475
      %v4484 = vmul.f32 %v4429, %v4475
      %v4485 = vmul.f32 %v4434, %v4475
      %v4486 = vmul.f32 %v4439, %v4475
      %v4487 = vmul.f32 %v4444, %v4475
      %v4488 = vmul.f32 %v4449, %v4475
      %v4489 = vmul.f32 %v4454, %v4475
      %v4490 = vmul.f32 %v4459, %v4475
      %v4491 = vmul.f32 %v4464, %v4475
      %v4492 = vmul.f32 %v4469, %v4475
      %v4493 = vld [vmem:[%s35] sm:$0x1]
      %v4495 = vlaneseq
      %v4496 = vshrl.u32 %v4495, 7
      %v4497 = vsub.s32 0, %v4496
      %v4498 = vrot.slane %v4493, %v4497
      %v4500 = vadd.f32 %v4477, %v4498
      %v4501 = vadd.f32 %v4478, %v4498
      %v4502 = vadd.f32 %v4479, %v4498
      %v4503 = vadd.f32 %v4480, %v4498
      %v4504 = vadd.f32 %v4481, %v4498
      %v4505 = vadd.f32 %v4482, %v4498
      %v4506 = vadd.f32 %v4483, %v4498
      %v4507 = vadd.f32 %v4484, %v4498
      %v4508 = vadd.f32 %v4485, %v4498
      %v4509 = vadd.f32 %v4486, %v4498
      %v4510 = vadd.f32 %v4487, %v4498
      %v4511 = vadd.f32 %v4488, %v4498
      %v4512 = vadd.f32 %v4489, %v4498
      %v4513 = vadd.f32 %v4490, %v4498
      %v4514 = vadd.f32 %v4491, %v4498
      %v4515 = vadd.f32 %v4492, %v4498
      %v4516 = vpack.c.bf16 %v4501, %v4500
      %v4517 = vpack.c.bf16 %v4503, %v4502
      %v4518 = vpack.c.bf16 %v4505, %v4504
      %v4519 = vpack.c.bf16 %v4507, %v4506
      %v4520 = vpack.c.bf16 %v4509, %v4508
      %v4521 = vpack.c.bf16 %v4511, %v4510
      %v4522 = vpack.c.bf16 %v4513, %v4512
      %v4523 = vpack.c.bf16 %v4515, %v4514
      %v4524 = vld [vmem:[%s37] sm:$0xf]
      %v4525 = vld [vmem:[%s37 + $0x4] sm:$0xf]
      %v4526 = vld [vmem:[%s37 + $0x8] sm:$0xf]
      %v4527 = vld [vmem:[%s37 + $0xc] sm:$0xf]
      %v4528 = vld [vmem:[%s39] sm:$0x1]
      %v4530 = vlaneseq
      %v4531 = vshrl.u32 %v4530, 7
      %v4532 = vsub.s32 0, %v4531
      %v4533 = vrot.slane %v4528, %v4532
      %v4539 = vunpack.c.l.b16 %v4524
      %v4540 = vunpack.c.l.b16 %v4525
      %v4541 = vunpack.c.l.b16 %v4526
      %v4542 = vunpack.c.l.b16 %v4527
      %v4543 = vpack.c.b16 %v4540, %v4539
      %v4544 = vpack.c.b16 %v4542, %v4541
      %v4548 = vsel %vm1428, %v4516, 0
      %v4551 = vsel %vm1428, %v4517, 0
      %v4554 = vsel %vm1428, %v4518, 0
      %v4557 = vsel %vm1428, %v4519, 0
      %v4560 = vsel %vm1428, %v4520, 0
      %v4563 = vsel %vm1428, %v4521, 0
      %v4566 = vsel %vm1428, %v4522, 0
      %v4569 = vsel %vm1428, %v4523, 0
      %4571 = vmatprep.subr.bf16.mxu0 0
      %4572 = vmatpush1.bf16.msra.mxu0 %v4543
      %4573 = vmatprep.subr.bf16.mxu0 0
      %4574 = vmatpush1.bf16.msra.mxu0 %v4544
      %4575 = vmatprep.subr.bf16.mxu0 0
      %4576 = vmatpush1.bf16.msra.mxu0 0
      %4577 = vmatprep.subr.bf16.mxu0 0
      %4578 = vmatpush1.bf16.msra.mxu0 0
      %4579 = vmatprep.subr.bf16.mxu0 0
      %4580 = vmatpush1.bf16.msra.mxu0 0
      %4581 = vmatprep.subr.bf16.mxu0 0
      %4582 = vmatpush1.bf16.msra.mxu0 0
      %4583 = vmatprep.subr.bf16.mxu0 0
      %4584 = vmatpush1.bf16.msra.mxu0 0
      %4585 = vmatprep.subr.bf16.mxu0 0
      %4586 = vmatpush1.bf16.msra.mxu0 0
      %4587 = vmatprep.subr.bf16.mxu0 0
      %4588 = vmatpush1.bf16.msra.mxu0 0
      %4589 = vmatprep.subr.bf16.mxu0 0
      %4590 = vmatpush1.bf16.msra.mxu0 0
      %4591 = vmatprep.subr.bf16.mxu0 0
      %4592 = vmatpush1.bf16.msra.mxu0 0
      %4593 = vmatprep.subr.bf16.mxu0 0
      %4594 = vmatpush1.bf16.msra.mxu0 0
      %4595 = vmatprep.subr.bf16.mxu0 0
      %4596 = vmatpush1.bf16.msra.mxu0 0
      %4597 = vmatprep.subr.bf16.mxu0 0
      %4598 = vmatpush1.bf16.msra.mxu0 0
      %4599 = vmatprep.subr.bf16.mxu0 0
      %4600 = vmatpush1.bf16.msra.mxu0 0
      %4601 = vmatprep.subr.bf16.mxu0 0
      %4602 = vmatpush1.bf16.msra.mxu0 0
      %4603 = vmatprep.mubr.bf16.mxu0 0
      %4604 = vmatmul.mubr.bf16.gmra.mrb[0].mxu0 %v4548
      %v4605 = vpop.f32.mrb[0].mxu0
      %v4606 = vadd.f32 %v4533, %v4605
      %v4607 = vpop.f32.mrb[0].mxu0
      %v4608 = vpop.f32.mrb[0].mxu0
      %v4609 = vadd.f32 %v4533, %v4608
      %v4610 = vpop.f32.mrb[0].mxu0
      %4611 = vmatprep.mubr.bf16.mxu0 0
      %4612 = vmatmul.mubr.bf16.gmra.mrb[0].mxu0 %v4551
      %v4613 = vpop.f32.mrb[0].mxu0
      %v4614 = vadd.f32 %v4533, %v4613
      %v4615 = vpop.f32.mrb[0].mxu0
      %v4616 = vpop.f32.mrb[0].mxu0
      %v4617 = vadd.f32 %v4533, %v4616
      %v4618 = vpop.f32.mrb[0].mxu0
      %4619 = vmatprep.mubr.bf16.mxu0 0
      %4620 = vmatmul.mubr.bf16.gmra.mrb[0].mxu0 %v4554
      %v4621 = vpop.f32.mrb[0].mxu0
      %v4622 = vadd.f32 %v4533, %v4621
      %v4623 = vpop.f32.mrb[0].mxu0
      %v4624 = vpop.f32.mrb[0].mxu0
      %v4625 = vadd.f32 %v4533, %v4624
      %v4626 = vpop.f32.mrb[0].mxu0
      %4627 = vmatprep.mubr.bf16.mxu0 0
      %4628 = vmatmul.mubr.bf16.gmra.mrb[0].mxu0 %v4557
      %v4629 = vpop.f32.mrb[0].mxu0
      %v4630 = vadd.f32 %v4533, %v4629
      %v4631 = vpop.f32.mrb[0].mxu0
      %v4632 = vpop.f32.mrb[0].mxu0
      %v4633 = vadd.f32 %v4533, %v4632
      %v4634 = vpop.f32.mrb[0].mxu0
      %4635 = vmatprep.mubr.bf16.mxu0 0
      %4636 = vmatmul.mubr.bf16.gmra.mrb[0].mxu0 %v4560
      %v4637 = vpop.f32.mrb[0].mxu0
      %v4638 = vadd.f32 %v4533, %v4637
      %v4639 = vpop.f32.mrb[0].mxu0
      %v4640 = vpop.f32.mrb[0].mxu0
      %v4641 = vadd.f32 %v4533, %v4640
      %v4642 = vpop.f32.mrb[0].mxu0
      %4643 = vmatprep.mubr.bf16.mxu0 0
      %4644 = vmatmul.mubr.bf16.gmra.mrb[0].mxu0 %v4563
      %v4645 = vpop.f32.mrb[0].mxu0
      %v4646 = vadd.f32 %v4533, %v4645
      %v4647 = vpop.f32.mrb[0].mxu0
      %v4648 = vpop.f32.mrb[0].mxu0
      %v4649 = vadd.f32 %v4533, %v4648
      %v4650 = vpop.f32.mrb[0].mxu0
      %4651 = vmatprep.mubr.bf16.mxu0 0
      %4652 = vmatmul.mubr.bf16.gmra.mrb[0].mxu0 %v4566
      %v4653 = vpop.f32.mrb[0].mxu0
      %v4654 = vadd.f32 %v4533, %v4653
      %v4655 = vpop.f32.mrb[0].mxu0
      %v4656 = vpop.f32.mrb[0].mxu0
      %v4657 = vadd.f32 %v4533, %v4656
      %v4658 = vpop.f32.mrb[0].mxu0
      %4659 = vmatprep.mubr.bf16.mxu0 0
      %4660 = vmatmul.mubr.bf16.gmra.mrb[0].mxu0 %v4569
      %v4661 = vpop.f32.mrb[0].mxu0
      %v4662 = vadd.f32 %v4533, %v4661
      %v4663 = vpop.f32.mrb[0].mxu0
      %v4664 = vpop.f32.mrb[0].mxu0
      %v4665 = vadd.f32 %v4533, %v4664
      %v4666 = vpop.f32.mrb[0].mxu0
      %4667 = vdwg.mxu0
      %v4668 = vmul.f32 %v4606, 0.17677669
      %v4669 = vmul.f32 %v4609, 0.17677669
      %v4670 = vmul.f32 %v4614, 0.17677669
      %v4671 = vmul.f32 %v4617, 0.17677669
      %v4672 = vmul.f32 %v4622, 0.17677669
      %v4673 = vmul.f32 %v4625, 0.17677669
      %v4674 = vmul.f32 %v4630, 0.17677669
      %v4675 = vmul.f32 %v4633, 0.17677669
      %v4676 = vmul.f32 %v4638, 0.17677669
      %v4677 = vmul.f32 %v4641, 0.17677669
      %v4678 = vmul.f32 %v4646, 0.17677669
      %v4679 = vmul.f32 %v4649, 0.17677669
      %v4680 = vmul.f32 %v4654, 0.17677669
      %v4681 = vmul.f32 %v4657, 0.17677669
      %v4682 = vmul.f32 %v4662, 0.17677669
      %v4683 = vmul.f32 %v4665, 0.17677669
      %v4684 = vpack.c.bf16 %v4668, %v4668
      %v4685 = vpack.c.bf16 %v4669, %v4669
      %v4686 = vpack.c.bf16 %v4670, %v4670
      %v4687 = vpack.c.bf16 %v4671, %v4671
      %v4688 = vpack.c.bf16 %v4672, %v4672
      %v4689 = vpack.c.bf16 %v4673, %v4673
      %v4690 = vpack.c.bf16 %v4674, %v4674
      %v4691 = vpack.c.bf16 %v4675, %v4675
      %v4692 = vpack.c.bf16 %v4676, %v4676
      %v4693 = vpack.c.bf16 %v4677, %v4677
      %v4694 = vpack.c.bf16 %v4678, %v4678
      %v4695 = vpack.c.bf16 %v4679, %v4679
      %v4696 = vpack.c.bf16 %v4680, %v4680
      %v4697 = vpack.c.bf16 %v4681, %v4681
      %v4698 = vpack.c.bf16 %v4682, %v4682
      %v4699 = vpack.c.bf16 %v4683, %v4683
      %v4700 = vpack.c.bf16 %v4606, %v4606
      %v4701 = vpack.c.bf16 %v4609, %v4609
      %v4702 = vpack.c.bf16 %v4614, %v4614
      %v4703 = vpack.c.bf16 %v4617, %v4617
      %v4704 = vpack.c.bf16 %v4622, %v4622
      %v4705 = vpack.c.bf16 %v4625, %v4625
      %v4706 = vpack.c.bf16 %v4630, %v4630
      %v4707 = vpack.c.bf16 %v4633, %v4633
      %v4708 = vpack.c.bf16 %v4638, %v4638
      %v4709 = vpack.c.bf16 %v4641, %v4641
      %v4710 = vpack.c.bf16 %v4646, %v4646
      %v4711 = vpack.c.bf16 %v4649, %v4649
      %v4712 = vpack.c.bf16 %v4654, %v4654
      %v4713 = vpack.c.bf16 %v4657, %v4657
      %v4714 = vpack.c.bf16 %v4662, %v4662
      %v4715 = vpack.c.bf16 %v4665, %v4665
      %4717 = vrot.lane.b32.xlu0 %v4700, 96
      %v4718 = vpop.permute.xlu0 %4717
      %v4720 = vsel %vm1428, %v4684, 0
      %v4723 = vsel %vm1428, %v4718, 0
      %4725 = vmatprep.subr.bf16.mxu0 0
      %4726 = vmatpush1.bf16.xpose.msra.mxu0 %v4723
      %4727 = vmatprep.subr.bf16.mxu0 0
      %4728 = vmatpush1.bf16.xpose.msra.mxu0 0
      %4729 = vmatprep.subr.bf16.mxu0 0
      %4730 = vmatpush1.bf16.xpose.msra.mxu0 0
      %4731 = vmatprep.subr.bf16.mxu0 0
      %4732 = vmatpush1.bf16.xpose.msra.mxu0 0
      %4733 = vmatprep.subr.bf16.mxu0 0
      %4734 = vmatpush1.bf16.xpose.msra.mxu0 0
      %4735 = vmatprep.subr.bf16.mxu0 0
      %4736 = vmatpush1.bf16.xpose.msra.mxu0 0
      %4737 = vmatprep.subr.bf16.mxu0 0
      %4738 = vmatpush1.bf16.xpose.msra.mxu0 0
      %4739 = vmatprep.subr.bf16.mxu0 0
      %4740 = vmatpush1.bf16.xpose.msra.mxu0 0
      %4741 = vmatprep.subr.bf16.mxu0 0
      %4742 = vmatpush1.bf16.xpose.msra.mxu0 0
      %4743 = vmatprep.subr.bf16.mxu0 0
      %4744 = vmatpush1.bf16.xpose.msra.mxu0 0
      %4745 = vmatprep.subr.bf16.mxu0 0
      %4746 = vmatpush1.bf16.xpose.msra.mxu0 0
      %4747 = vmatprep.subr.bf16.mxu0 0
      %4748 = vmatpush1.bf16.xpose.msra.mxu0 0
      %4749 = vmatprep.subr.bf16.mxu0 0
      %4750 = vmatpush1.bf16.xpose.msra.mxu0 0
      %4751 = vmatprep.subr.bf16.mxu0 0
      %4752 = vmatpush1.bf16.xpose.msra.mxu0 0
      %4753 = vmatprep.subr.bf16.mxu0 0
      %4754 = vmatpush1.bf16.xpose.msra.mxu0 0
      %4755 = vmatprep.subr.bf16.mxu0 0
      %4756 = vmatpush1.bf16.xpose.msra.mxu0 0
      %4757 = vmatprep.mubr.bf16.mxu0 0
      %4758 = vmatmul.mubr.bf16.gmra.mrb[0].mxu0 %v4720
      %v4759 = vpop.f32.mrb[0].mxu0
      %v4760 = vadd.f32 0.0, %v4759
      %v4761 = vpop.f32.mrb[0].mxu0
      %v4762 = vpop.f32.mrb[0].mxu0
      %v4763 = vpop.f32.mrb[0].mxu0
      %4764 = vdwg.mxu0
      %4766 = vrot.lane.b32.xlu0 %v4701, 96
      %v4767 = vpop.permute.xlu0 %4766
      %v4769 = vsel %vm1428, %v4685, 0
      %v4772 = vsel %vm1428, %v4767, 0
      %4774 = vmatprep.subr.bf16.mxu0 0
      %4775 = vmatpush1.bf16.xpose.msra.mxu0 %v4772
      %4776 = vmatprep.subr.bf16.mxu0 0
      %4777 = vmatpush1.bf16.xpose.msra.mxu0 0
      %4778 = vmatprep.subr.bf16.mxu0 0
      %4779 = vmatpush1.bf16.xpose.msra.mxu0 0
      %4780 = vmatprep.subr.bf16.mxu0 0
      %4781 = vmatpush1.bf16.xpose.msra.mxu0 0
      %4782 = vmatprep.subr.bf16.mxu0 0
      %4783 = vmatpush1.bf16.xpose.msra.mxu0 0
      %4784 = vmatprep.subr.bf16.mxu0 0
      %4785 = vmatpush1.bf16.xpose.msra.mxu0 0
      %4786 = vmatprep.subr.bf16.mxu0 0
      %4787 = vmatpush1.bf16.xpose.msra.mxu0 0
      %4788 = vmatprep.subr.bf16.mxu0 0
      %4789 = vmatpush1.bf16.xpose.msra.mxu0 0
      %4790 = vmatprep.subr.bf16.mxu0 0
      %4791 = vmatpush1.bf16.xpose.msra.mxu0 0
      %4792 = vmatprep.subr.bf16.mxu0 0
      %4793 = vmatpush1.bf16.xpose.msra.mxu0 0
      %4794 = vmatprep.subr.bf16.mxu0 0
      %4795 = vmatpush1.bf16.xpose.msra.mxu0 0
      %4796 = vmatprep.subr.bf16.mxu0 0
      %4797 = vmatpush1.bf16.xpose.msra.mxu0 0
      %4798 = vmatprep.subr.bf16.mxu0 0
      %4799 = vmatpush1.bf16.xpose.msra.mxu0 0
      %4800 = vmatprep.subr.bf16.mxu0 0
      %4801 = vmatpush1.bf16.xpose.msra.mxu0 0
      %4802 = vmatprep.subr.bf16.mxu0 0
      %4803 = vmatpush1.bf16.xpose.msra.mxu0 0
      %4804 = vmatprep.subr.bf16.mxu0 0
      %4805 = vmatpush1.bf16.xpose.msra.mxu0 0
      %4806 = vmatprep.mubr.bf16.mxu0 0
      %4807 = vmatmul.mubr.bf16.gmra.mrb[0].mxu0 %v4769
      %v4808 = vpop.f32.mrb[0].mxu0
      %v4809 = vadd.f32 0.0, %v4808
      %v4810 = vpop.f32.mrb[0].mxu0
      %v4811 = vpop.f32.mrb[0].mxu0
      %v4812 = vpop.f32.mrb[0].mxu0
      %4813 = vdwg.mxu0
      %4815 = vrot.lane.b32.xlu0 %v4702, 96
      %v4816 = vpop.permute.xlu0 %4815
      %v4818 = vsel %vm1428, %v4686, 0
      %v4821 = vsel %vm1428, %v4816, 0
      %4823 = vmatprep.subr.bf16.mxu0 0
      %4824 = vmatpush1.bf16.xpose.msra.mxu0 %v4821
      %4825 = vmatprep.subr.bf16.mxu0 0
      %4826 = vmatpush1.bf16.xpose.msra.mxu0 0
      %4827 = vmatprep.subr.bf16.mxu0 0
      %4828 = vmatpush1.bf16.xpose.msra.mxu0 0
      %4829 = vmatprep.subr.bf16.mxu0 0
      %4830 = vmatpush1.bf16.xpose.msra.mxu0 0
      %4831 = vmatprep.subr.bf16.mxu0 0
      %4832 = vmatpush1.bf16.xpose.msra.mxu0 0
      %4833 = vmatprep.subr.bf16.mxu0 0
      %4834 = vmatpush1.bf16.xpose.msra.mxu0 0
      %4835 = vmatprep.subr.bf16.mxu0 0
      %4836 = vmatpush1.bf16.xpose.msra.mxu0 0
      %4837 = vmatprep.subr.bf16.mxu0 0
      %4838 = vmatpush1.bf16.xpose.msra.mxu0 0
      %4839 = vmatprep.subr.bf16.mxu0 0
      %4840 = vmatpush1.bf16.xpose.msra.mxu0 0
      %4841 = vmatprep.subr.bf16.mxu0 0
      %4842 = vmatpush1.bf16.xpose.msra.mxu0 0
      %4843 = vmatprep.subr.bf16.mxu0 0
      %4844 = vmatpush1.bf16.xpose.msra.mxu0 0
      %4845 = vmatprep.subr.bf16.mxu0 0
      %4846 = vmatpush1.bf16.xpose.msra.mxu0 0
      %4847 = vmatprep.subr.bf16.mxu0 0
      %4848 = vmatpush1.bf16.xpose.msra.mxu0 0
      %4849 = vmatprep.subr.bf16.mxu0 0
      %4850 = vmatpush1.bf16.xpose.msra.mxu0 0
      %4851 = vmatprep.subr.bf16.mxu0 0
      %4852 = vmatpush1.bf16.xpose.msra.mxu0 0
      %4853 = vmatprep.subr.bf16.mxu0 0
      %4854 = vmatpush1.bf16.xpose.msra.mxu0 0
      %4855 = vmatprep.mubr.bf16.mxu0 0
      %4856 = vmatmul.mubr.bf16.gmra.mrb[0].mxu0 %v4818
      %v4857 = vpop.f32.mrb[0].mxu0
      %v4858 = vadd.f32 0.0, %v4857
      %v4859 = vpop.f32.mrb[0].mxu0
      %v4860 = vpop.f32.mrb[0].mxu0
      %v4861 = vpop.f32.mrb[0].mxu0
      %4862 = vdwg.mxu0
      %4864 = vrot.lane.b32.xlu0 %v4703, 96
      %v4865 = vpop.permute.xlu0 %4864
      %v4867 = vsel %vm1428, %v4687, 0
      %v4870 = vsel %vm1428, %v4865, 0
      %4872 = vmatprep.subr.bf16.mxu0 0
      %4873 = vmatpush1.bf16.xpose.msra.mxu0 %v4870
      %4874 = vmatprep.subr.bf16.mxu0 0
      %4875 = vmatpush1.bf16.xpose.msra.mxu0 0
      %4876 = vmatprep.subr.bf16.mxu0 0
      %4877 = vmatpush1.bf16.xpose.msra.mxu0 0
      %4878 = vmatprep.subr.bf16.mxu0 0
      %4879 = vmatpush1.bf16.xpose.msra.mxu0 0
      %4880 = vmatprep.subr.bf16.mxu0 0
      %4881 = vmatpush1.bf16.xpose.msra.mxu0 0
      %4882 = vmatprep.subr.bf16.mxu0 0
      %4883 = vmatpush1.bf16.xpose.msra.mxu0 0
      %4884 = vmatprep.subr.bf16.mxu0 0
      %4885 = vmatpush1.bf16.xpose.msra.mxu0 0
      %4886 = vmatprep.subr.bf16.mxu0 0
      %4887 = vmatpush1.bf16.xpose.msra.mxu0 0
      %4888 = vmatprep.subr.bf16.mxu0 0
      %4889 = vmatpush1.bf16.xpose.msra.mxu0 0
      %4890 = vmatprep.subr.bf16.mxu0 0
      %4891 = vmatpush1.bf16.xpose.msra.mxu0 0
      %4892 = vmatprep.subr.bf16.mxu0 0
      %4893 = vmatpush1.bf16.xpose.msra.mxu0 0
      %4894 = vmatprep.subr.bf16.mxu0 0
      %4895 = vmatpush1.bf16.xpose.msra.mxu0 0
      %4896 = vmatprep.subr.bf16.mxu0 0
      %4897 = vmatpush1.bf16.xpose.msra.mxu0 0
      %4898 = vmatprep.subr.bf16.mxu0 0
      %4899 = vmatpush1.bf16.xpose.msra.mxu0 0
      %4900 = vmatprep.subr.bf16.mxu0 0
      %4901 = vmatpush1.bf16.xpose.msra.mxu0 0
      %4902 = vmatprep.subr.bf16.mxu0 0
      %4903 = vmatpush1.bf16.xpose.msra.mxu0 0
      %4904 = vmatprep.mubr.bf16.mxu0 0
      %4905 = vmatmul.mubr.bf16.gmra.mrb[0].mxu0 %v4867
      %v4906 = vpop.f32.mrb[0].mxu0
      %v4907 = vadd.f32 0.0, %v4906
      %v4908 = vpop.f32.mrb[0].mxu0
      %v4909 = vpop.f32.mrb[0].mxu0
      %v4910 = vpop.f32.mrb[0].mxu0
      %4911 = vdwg.mxu0
      %4913 = vrot.lane.b32.xlu0 %v4704, 96
      %v4914 = vpop.permute.xlu0 %4913
      %v4916 = vsel %vm1428, %v4688, 0
      %v4919 = vsel %vm1428, %v4914, 0
      %4921 = vmatprep.subr.bf16.mxu0 0
      %4922 = vmatpush1.bf16.xpose.msra.mxu0 %v4919
      %4923 = vmatprep.subr.bf16.mxu0 0
      %4924 = vmatpush1.bf16.xpose.msra.mxu0 0
      %4925 = vmatprep.subr.bf16.mxu0 0
      %4926 = vmatpush1.bf16.xpose.msra.mxu0 0
      %4927 = vmatprep.subr.bf16.mxu0 0
      %4928 = vmatpush1.bf16.xpose.msra.mxu0 0
      %4929 = vmatprep.subr.bf16.mxu0 0
      %4930 = vmatpush1.bf16.xpose.msra.mxu0 0
      %4931 = vmatprep.subr.bf16.mxu0 0
      %4932 = vmatpush1.bf16.xpose.msra.mxu0 0
      %4933 = vmatprep.subr.bf16.mxu0 0
      %4934 = vmatpush1.bf16.xpose.msra.mxu0 0
      %4935 = vmatprep.subr.bf16.mxu0 0
      %4936 = vmatpush1.bf16.xpose.msra.mxu0 0
      %4937 = vmatprep.subr.bf16.mxu0 0
      %4938 = vmatpush1.bf16.xpose.msra.mxu0 0
      %4939 = vmatprep.subr.bf16.mxu0 0
      %4940 = vmatpush1.bf16.xpose.msra.mxu0 0
      %4941 = vmatprep.subr.bf16.mxu0 0
      %4942 = vmatpush1.bf16.xpose.msra.mxu0 0
      %4943 = vmatprep.subr.bf16.mxu0 0
      %4944 = vmatpush1.bf16.xpose.msra.mxu0 0
      %4945 = vmatprep.subr.bf16.mxu0 0
      %4946 = vmatpush1.bf16.xpose.msra.mxu0 0
      %4947 = vmatprep.subr.bf16.mxu0 0
      %4948 = vmatpush1.bf16.xpose.msra.mxu0 0
      %4949 = vmatprep.subr.bf16.mxu0 0
      %4950 = vmatpush1.bf16.xpose.msra.mxu0 0
      %4951 = vmatprep.subr.bf16.mxu0 0
      %4952 = vmatpush1.bf16.xpose.msra.mxu0 0
      %4953 = vmatprep.mubr.bf16.mxu0 0
      %4954 = vmatmul.mubr.bf16.gmra.mrb[0].mxu0 %v4916
      %v4955 = vpop.f32.mrb[0].mxu0
      %v4956 = vadd.f32 0.0, %v4955
      %v4957 = vpop.f32.mrb[0].mxu0
      %v4958 = vpop.f32.mrb[0].mxu0
      %v4959 = vpop.f32.mrb[0].mxu0
      %4960 = vdwg.mxu0
      %4962 = vrot.lane.b32.xlu0 %v4705, 96
      %v4963 = vpop.permute.xlu0 %4962
      %v4965 = vsel %vm1428, %v4689, 0
      %v4968 = vsel %vm1428, %v4963, 0
      %4970 = vmatprep.subr.bf16.mxu0 0
      %4971 = vmatpush1.bf16.xpose.msra.mxu0 %v4968
      %4972 = vmatprep.subr.bf16.mxu0 0
      %4973 = vmatpush1.bf16.xpose.msra.mxu0 0
      %4974 = vmatprep.subr.bf16.mxu0 0
      %4975 = vmatpush1.bf16.xpose.msra.mxu0 0
      %4976 = vmatprep.subr.bf16.mxu0 0
      %4977 = vmatpush1.bf16.xpose.msra.mxu0 0
      %4978 = vmatprep.subr.bf16.mxu0 0
      %4979 = vmatpush1.bf16.xpose.msra.mxu0 0
      %4980 = vmatprep.subr.bf16.mxu0 0
      %4981 = vmatpush1.bf16.xpose.msra.mxu0 0
      %4982 = vmatprep.subr.bf16.mxu0 0
      %4983 = vmatpush1.bf16.xpose.msra.mxu0 0
      %4984 = vmatprep.subr.bf16.mxu0 0
      %4985 = vmatpush1.bf16.xpose.msra.mxu0 0
      %4986 = vmatprep.subr.bf16.mxu0 0
      %4987 = vmatpush1.bf16.xpose.msra.mxu0 0
      %4988 = vmatprep.subr.bf16.mxu0 0
      %4989 = vmatpush1.bf16.xpose.msra.mxu0 0
      %4990 = vmatprep.subr.bf16.mxu0 0
      %4991 = vmatpush1.bf16.xpose.msra.mxu0 0
      %4992 = vmatprep.subr.bf16.mxu0 0
      %4993 = vmatpush1.bf16.xpose.msra.mxu0 0
      %4994 = vmatprep.subr.bf16.mxu0 0
      %4995 = vmatpush1.bf16.xpose.msra.mxu0 0
      %4996 = vmatprep.subr.bf16.mxu0 0
      %4997 = vmatpush1.bf16.xpose.msra.mxu0 0
      %4998 = vmatprep.subr.bf16.mxu0 0
      %4999 = vmatpush1.bf16.xpose.msra.mxu0 0
      %5000 = vmatprep.subr.bf16.mxu0 0
      %5001 = vmatpush1.bf16.xpose.msra.mxu0 0
      %5002 = vmatprep.mubr.bf16.mxu0 0
      %5003 = vmatmul.mubr.bf16.gmra.mrb[0].mxu0 %v4965
      %v5004 = vpop.f32.mrb[0].mxu0
      %v5005 = vadd.f32 0.0, %v5004
      %v5006 = vpop.f32.mrb[0].mxu0
      %v5007 = vpop.f32.mrb[0].mxu0
      %v5008 = vpop.f32.mrb[0].mxu0
      %5009 = vdwg.mxu0
      %5011 = vrot.lane.b32.xlu0 %v4706, 96
      %v5012 = vpop.permute.xlu0 %5011
      %v5014 = vsel %vm1428, %v4690, 0
      %v5017 = vsel %vm1428, %v5012, 0
      %5019 = vmatprep.subr.bf16.mxu0 0
      %5020 = vmatpush1.bf16.xpose.msra.mxu0 %v5017
      %5021 = vmatprep.subr.bf16.mxu0 0
      %5022 = vmatpush1.bf16.xpose.msra.mxu0 0
      %5023 = vmatprep.subr.bf16.mxu0 0
      %5024 = vmatpush1.bf16.xpose.msra.mxu0 0
      %5025 = vmatprep.subr.bf16.mxu0 0
      %5026 = vmatpush1.bf16.xpose.msra.mxu0 0
      %5027 = vmatprep.subr.bf16.mxu0 0
      %5028 = vmatpush1.bf16.xpose.msra.mxu0 0
      %5029 = vmatprep.subr.bf16.mxu0 0
      %5030 = vmatpush1.bf16.xpose.msra.mxu0 0
      %5031 = vmatprep.subr.bf16.mxu0 0
      %5032 = vmatpush1.bf16.xpose.msra.mxu0 0
      %5033 = vmatprep.subr.bf16.mxu0 0
      %5034 = vmatpush1.bf16.xpose.msra.mxu0 0
      %5035 = vmatprep.subr.bf16.mxu0 0
      %5036 = vmatpush1.bf16.xpose.msra.mxu0 0
      %5037 = vmatprep.subr.bf16.mxu0 0
      %5038 = vmatpush1.bf16.xpose.msra.mxu0 0
      %5039 = vmatprep.subr.bf16.mxu0 0
      %5040 = vmatpush1.bf16.xpose.msra.mxu0 0
      %5041 = vmatprep.subr.bf16.mxu0 0
      %5042 = vmatpush1.bf16.xpose.msra.mxu0 0
      %5043 = vmatprep.subr.bf16.mxu0 0
      %5044 = vmatpush1.bf16.xpose.msra.mxu0 0
      %5045 = vmatprep.subr.bf16.mxu0 0
      %5046 = vmatpush1.bf16.xpose.msra.mxu0 0
      %5047 = vmatprep.subr.bf16.mxu0 0
      %5048 = vmatpush1.bf16.xpose.msra.mxu0 0
      %5049 = vmatprep.subr.bf16.mxu0 0
      %5050 = vmatpush1.bf16.xpose.msra.mxu0 0
      %5051 = vmatprep.mubr.bf16.mxu0 0
      %5052 = vmatmul.mubr.bf16.gmra.mrb[0].mxu0 %v5014
      %v5053 = vpop.f32.mrb[0].mxu0
      %v5054 = vadd.f32 0.0, %v5053
      %v5055 = vpop.f32.mrb[0].mxu0
      %v5056 = vpop.f32.mrb[0].mxu0
      %v5057 = vpop.f32.mrb[0].mxu0
      %5058 = vdwg.mxu0
      %5060 = vrot.lane.b32.xlu0 %v4707, 96
      %v5061 = vpop.permute.xlu0 %5060
      %v5063 = vsel %vm1428, %v4691, 0
      %v5066 = vsel %vm1428, %v5061, 0
      %5068 = vmatprep.subr.bf16.mxu0 0
      %5069 = vmatpush1.bf16.xpose.msra.mxu0 %v5066
      %5070 = vmatprep.subr.bf16.mxu0 0
      %5071 = vmatpush1.bf16.xpose.msra.mxu0 0
      %5072 = vmatprep.subr.bf16.mxu0 0
      %5073 = vmatpush1.bf16.xpose.msra.mxu0 0
      %5074 = vmatprep.subr.bf16.mxu0 0
      %5075 = vmatpush1.bf16.xpose.msra.mxu0 0
      %5076 = vmatprep.subr.bf16.mxu0 0
      %5077 = vmatpush1.bf16.xpose.msra.mxu0 0
      %5078 = vmatprep.subr.bf16.mxu0 0
      %5079 = vmatpush1.bf16.xpose.msra.mxu0 0
      %5080 = vmatprep.subr.bf16.mxu0 0
      %5081 = vmatpush1.bf16.xpose.msra.mxu0 0
      %5082 = vmatprep.subr.bf16.mxu0 0
      %5083 = vmatpush1.bf16.xpose.msra.mxu0 0
      %5084 = vmatprep.subr.bf16.mxu0 0
      %5085 = vmatpush1.bf16.xpose.msra.mxu0 0
      %5086 = vmatprep.subr.bf16.mxu0 0
      %5087 = vmatpush1.bf16.xpose.msra.mxu0 0
      %5088 = vmatprep.subr.bf16.mxu0 0
      %5089 = vmatpush1.bf16.xpose.msra.mxu0 0
      %5090 = vmatprep.subr.bf16.mxu0 0
      %5091 = vmatpush1.bf16.xpose.msra.mxu0 0
      %5092 = vmatprep.subr.bf16.mxu0 0
      %5093 = vmatpush1.bf16.xpose.msra.mxu0 0
      %5094 = vmatprep.subr.bf16.mxu0 0
      %5095 = vmatpush1.bf16.xpose.msra.mxu0 0
      %5096 = vmatprep.subr.bf16.mxu0 0
      %5097 = vmatpush1.bf16.xpose.msra.mxu0 0
      %5098 = vmatprep.subr.bf16.mxu0 0
      %5099 = vmatpush1.bf16.xpose.msra.mxu0 0
      %5100 = vmatprep.mubr.bf16.mxu0 0
      %5101 = vmatmul.mubr.bf16.gmra.mrb[0].mxu0 %v5063
      %v5102 = vpop.f32.mrb[0].mxu0
      %v5103 = vadd.f32 0.0, %v5102
      %v5104 = vpop.f32.mrb[0].mxu0
      %v5105 = vpop.f32.mrb[0].mxu0
      %v5106 = vpop.f32.mrb[0].mxu0
      %5107 = vdwg.mxu0
      %5109 = vrot.lane.b32.xlu0 %v4708, 96
      %v5110 = vpop.permute.xlu0 %5109
      %v5112 = vsel %vm1428, %v4692, 0
      %v5115 = vsel %vm1428, %v5110, 0
      %5117 = vmatprep.subr.bf16.mxu0 0
      %5118 = vmatpush1.bf16.xpose.msra.mxu0 %v5115
      %5119 = vmatprep.subr.bf16.mxu0 0
      %5120 = vmatpush1.bf16.xpose.msra.mxu0 0
      %5121 = vmatprep.subr.bf16.mxu0 0
      %5122 = vmatpush1.bf16.xpose.msra.mxu0 0
      %5123 = vmatprep.subr.bf16.mxu0 0
      %5124 = vmatpush1.bf16.xpose.msra.mxu0 0
      %5125 = vmatprep.subr.bf16.mxu0 0
      %5126 = vmatpush1.bf16.xpose.msra.mxu0 0
      %5127 = vmatprep.subr.bf16.mxu0 0
      %5128 = vmatpush1.bf16.xpose.msra.mxu0 0
      %5129 = vmatprep.subr.bf16.mxu0 0
      %5130 = vmatpush1.bf16.xpose.msra.mxu0 0
      %5131 = vmatprep.subr.bf16.mxu0 0
      %5132 = vmatpush1.bf16.xpose.msra.mxu0 0
      %5133 = vmatprep.subr.bf16.mxu0 0
      %5134 = vmatpush1.bf16.xpose.msra.mxu0 0
      %5135 = vmatprep.subr.bf16.mxu0 0
      %5136 = vmatpush1.bf16.xpose.msra.mxu0 0
      %5137 = vmatprep.subr.bf16.mxu0 0
      %5138 = vmatpush1.bf16.xpose.msra.mxu0 0
      %5139 = vmatprep.subr.bf16.mxu0 0
      %5140 = vmatpush1.bf16.xpose.msra.mxu0 0
      %5141 = vmatprep.subr.bf16.mxu0 0
      %5142 = vmatpush1.bf16.xpose.msra.mxu0 0
      %5143 = vmatprep.subr.bf16.mxu0 0
      %5144 = vmatpush1.bf16.xpose.msra.mxu0 0
      %5145 = vmatprep.subr.bf16.mxu0 0
      %5146 = vmatpush1.bf16.xpose.msra.mxu0 0
      %5147 = vmatprep.subr.bf16.mxu0 0
      %5148 = vmatpush1.bf16.xpose.msra.mxu0 0
      %5149 = vmatprep.mubr.bf16.mxu0 0
      %5150 = vmatmul.mubr.bf16.gmra.mrb[0].mxu0 %v5112
      %v5151 = vpop.f32.mrb[0].mxu0
      %v5152 = vadd.f32 0.0, %v5151
      %v5153 = vpop.f32.mrb[0].mxu0
      %v5154 = vpop.f32.mrb[0].mxu0
      %v5155 = vpop.f32.mrb[0].mxu0
      %5156 = vdwg.mxu0
      %5158 = vrot.lane.b32.xlu0 %v4709, 96
      %v5159 = vpop.permute.xlu0 %5158
      %v5161 = vsel %vm1428, %v4693, 0
      %v5164 = vsel %vm1428, %v5159, 0
      %5166 = vmatprep.subr.bf16.mxu0 0
      %5167 = vmatpush1.bf16.xpose.msra.mxu0 %v5164
      %5168 = vmatprep.subr.bf16.mxu0 0
      %5169 = vmatpush1.bf16.xpose.msra.mxu0 0
      %5170 = vmatprep.subr.bf16.mxu0 0
      %5171 = vmatpush1.bf16.xpose.msra.mxu0 0
      %5172 = vmatprep.subr.bf16.mxu0 0
      %5173 = vmatpush1.bf16.xpose.msra.mxu0 0
      %5174 = vmatprep.subr.bf16.mxu0 0
      %5175 = vmatpush1.bf16.xpose.msra.mxu0 0
      %5176 = vmatprep.subr.bf16.mxu0 0
      %5177 = vmatpush1.bf16.xpose.msra.mxu0 0
      %5178 = vmatprep.subr.bf16.mxu0 0
      %5179 = vmatpush1.bf16.xpose.msra.mxu0 0
      %5180 = vmatprep.subr.bf16.mxu0 0
      %5181 = vmatpush1.bf16.xpose.msra.mxu0 0
      %5182 = vmatprep.subr.bf16.mxu0 0
      %5183 = vmatpush1.bf16.xpose.msra.mxu0 0
      %5184 = vmatprep.subr.bf16.mxu0 0
      %5185 = vmatpush1.bf16.xpose.msra.mxu0 0
      %5186 = vmatprep.subr.bf16.mxu0 0
      %5187 = vmatpush1.bf16.xpose.msra.mxu0 0
      %5188 = vmatprep.subr.bf16.mxu0 0
      %5189 = vmatpush1.bf16.xpose.msra.mxu0 0
      %5190 = vmatprep.subr.bf16.mxu0 0
      %5191 = vmatpush1.bf16.xpose.msra.mxu0 0
      %5192 = vmatprep.subr.bf16.mxu0 0
      %5193 = vmatpush1.bf16.xpose.msra.mxu0 0
      %5194 = vmatprep.subr.bf16.mxu0 0
      %5195 = vmatpush1.bf16.xpose.msra.mxu0 0
      %5196 = vmatprep.subr.bf16.mxu0 0
      %5197 = vmatpush1.bf16.xpose.msra.mxu0 0
      %5198 = vmatprep.mubr.bf16.mxu0 0
      %5199 = vmatmul.mubr.bf16.gmra.mrb[0].mxu0 %v5161
      %v5200 = vpop.f32.mrb[0].mxu0
      %v5201 = vadd.f32 0.0, %v5200
      %v5202 = vpop.f32.mrb[0].mxu0
      %v5203 = vpop.f32.mrb[0].mxu0
      %v5204 = vpop.f32.mrb[0].mxu0
      %5205 = vdwg.mxu0
      %5207 = vrot.lane.b32.xlu0 %v4710, 96
      %v5208 = vpop.permute.xlu0 %5207
      %v5210 = vsel %vm1428, %v4694, 0
      %v5213 = vsel %vm1428, %v5208, 0
      %5215 = vmatprep.subr.bf16.mxu0 0
      %5216 = vmatpush1.bf16.xpose.msra.mxu0 %v5213
      %5217 = vmatprep.subr.bf16.mxu0 0
      %5218 = vmatpush1.bf16.xpose.msra.mxu0 0
      %5219 = vmatprep.subr.bf16.mxu0 0
      %5220 = vmatpush1.bf16.xpose.msra.mxu0 0
      %5221 = vmatprep.subr.bf16.mxu0 0
      %5222 = vmatpush1.bf16.xpose.msra.mxu0 0
      %5223 = vmatprep.subr.bf16.mxu0 0
      %5224 = vmatpush1.bf16.xpose.msra.mxu0 0
      %5225 = vmatprep.subr.bf16.mxu0 0
      %5226 = vmatpush1.bf16.xpose.msra.mxu0 0
      %5227 = vmatprep.subr.bf16.mxu0 0
      %5228 = vmatpush1.bf16.xpose.msra.mxu0 0
      %5229 = vmatprep.subr.bf16.mxu0 0
      %5230 = vmatpush1.bf16.xpose.msra.mxu0 0
      %5231 = vmatprep.subr.bf16.mxu0 0
      %5232 = vmatpush1.bf16.xpose.msra.mxu0 0
      %5233 = vmatprep.subr.bf16.mxu0 0
      %5234 = vmatpush1.bf16.xpose.msra.mxu0 0
      %5235 = vmatprep.subr.bf16.mxu0 0
      %5236 = vmatpush1.bf16.xpose.msra.mxu0 0
      %5237 = vmatprep.subr.bf16.mxu0 0
      %5238 = vmatpush1.bf16.xpose.msra.mxu0 0
      %5239 = vmatprep.subr.bf16.mxu0 0
      %5240 = vmatpush1.bf16.xpose.msra.mxu0 0
      %5241 = vmatprep.subr.bf16.mxu0 0
      %5242 = vmatpush1.bf16.xpose.msra.mxu0 0
      %5243 = vmatprep.subr.bf16.mxu0 0
      %5244 = vmatpush1.bf16.xpose.msra.mxu0 0
      %5245 = vmatprep.subr.bf16.mxu0 0
      %5246 = vmatpush1.bf16.xpose.msra.mxu0 0
      %5247 = vmatprep.mubr.bf16.mxu0 0
      %5248 = vmatmul.mubr.bf16.gmra.mrb[0].mxu0 %v5210
      %v5249 = vpop.f32.mrb[0].mxu0
      %v5250 = vadd.f32 0.0, %v5249
      %v5251 = vpop.f32.mrb[0].mxu0
      %v5252 = vpop.f32.mrb[0].mxu0
      %v5253 = vpop.f32.mrb[0].mxu0
      %5254 = vdwg.mxu0
      %5256 = vrot.lane.b32.xlu0 %v4711, 96
      %v5257 = vpop.permute.xlu0 %5256
      %v5259 = vsel %vm1428, %v4695, 0
      %v5262 = vsel %vm1428, %v5257, 0
      %5264 = vmatprep.subr.bf16.mxu0 0
      %5265 = vmatpush1.bf16.xpose.msra.mxu0 %v5262
      %5266 = vmatprep.subr.bf16.mxu0 0
      %5267 = vmatpush1.bf16.xpose.msra.mxu0 0
      %5268 = vmatprep.subr.bf16.mxu0 0
      %5269 = vmatpush1.bf16.xpose.msra.mxu0 0
      %5270 = vmatprep.subr.bf16.mxu0 0
      %5271 = vmatpush1.bf16.xpose.msra.mxu0 0
      %5272 = vmatprep.subr.bf16.mxu0 0
      %5273 = vmatpush1.bf16.xpose.msra.mxu0 0
      %5274 = vmatprep.subr.bf16.mxu0 0
      %5275 = vmatpush1.bf16.xpose.msra.mxu0 0
      %5276 = vmatprep.subr.bf16.mxu0 0
      %5277 = vmatpush1.bf16.xpose.msra.mxu0 0
      %5278 = vmatprep.subr.bf16.mxu0 0
      %5279 = vmatpush1.bf16.xpose.msra.mxu0 0
      %5280 = vmatprep.subr.bf16.mxu0 0
      %5281 = vmatpush1.bf16.xpose.msra.mxu0 0
      %5282 = vmatprep.subr.bf16.mxu0 0
      %5283 = vmatpush1.bf16.xpose.msra.mxu0 0
      %5284 = vmatprep.subr.bf16.mxu0 0
      %5285 = vmatpush1.bf16.xpose.msra.mxu0 0
      %5286 = vmatprep.subr.bf16.mxu0 0
      %5287 = vmatpush1.bf16.xpose.msra.mxu0 0
      %5288 = vmatprep.subr.bf16.mxu0 0
      %5289 = vmatpush1.bf16.xpose.msra.mxu0 0
      %5290 = vmatprep.subr.bf16.mxu0 0
      %5291 = vmatpush1.bf16.xpose.msra.mxu0 0
      %5292 = vmatprep.subr.bf16.mxu0 0
      %5293 = vmatpush1.bf16.xpose.msra.mxu0 0
      %5294 = vmatprep.subr.bf16.mxu0 0
      %5295 = vmatpush1.bf16.xpose.msra.mxu0 0
      %5296 = vmatprep.mubr.bf16.mxu0 0
      %5297 = vmatmul.mubr.bf16.gmra.mrb[0].mxu0 %v5259
      %v5298 = vpop.f32.mrb[0].mxu0
      %v5299 = vadd.f32 0.0, %v5298
      %v5300 = vpop.f32.mrb[0].mxu0
      %v5301 = vpop.f32.mrb[0].mxu0
      %v5302 = vpop.f32.mrb[0].mxu0
      %5303 = vdwg.mxu0
      %5305 = vrot.lane.b32.xlu0 %v4712, 96
      %v5306 = vpop.permute.xlu0 %5305
      %v5308 = vsel %vm1428, %v4696, 0
      %v5311 = vsel %vm1428, %v5306, 0
      %5313 = vmatprep.subr.bf16.mxu0 0
      %5314 = vmatpush1.bf16.xpose.msra.mxu0 %v5311
      %5315 = vmatprep.subr.bf16.mxu0 0
      %5316 = vmatpush1.bf16.xpose.msra.mxu0 0
      %5317 = vmatprep.subr.bf16.mxu0 0
      %5318 = vmatpush1.bf16.xpose.msra.mxu0 0
      %5319 = vmatprep.subr.bf16.mxu0 0
      %5320 = vmatpush1.bf16.xpose.msra.mxu0 0
      %5321 = vmatprep.subr.bf16.mxu0 0
      %5322 = vmatpush1.bf16.xpose.msra.mxu0 0
      %5323 = vmatprep.subr.bf16.mxu0 0
      %5324 = vmatpush1.bf16.xpose.msra.mxu0 0
      %5325 = vmatprep.subr.bf16.mxu0 0
      %5326 = vmatpush1.bf16.xpose.msra.mxu0 0
      %5327 = vmatprep.subr.bf16.mxu0 0
      %5328 = vmatpush1.bf16.xpose.msra.mxu0 0
      %5329 = vmatprep.subr.bf16.mxu0 0
      %5330 = vmatpush1.bf16.xpose.msra.mxu0 0
      %5331 = vmatprep.subr.bf16.mxu0 0
      %5332 = vmatpush1.bf16.xpose.msra.mxu0 0
      %5333 = vmatprep.subr.bf16.mxu0 0
      %5334 = vmatpush1.bf16.xpose.msra.mxu0 0
      %5335 = vmatprep.subr.bf16.mxu0 0
      %5336 = vmatpush1.bf16.xpose.msra.mxu0 0
      %5337 = vmatprep.subr.bf16.mxu0 0
      %5338 = vmatpush1.bf16.xpose.msra.mxu0 0
      %5339 = vmatprep.subr.bf16.mxu0 0
      %5340 = vmatpush1.bf16.xpose.msra.mxu0 0
      %5341 = vmatprep.subr.bf16.mxu0 0
      %5342 = vmatpush1.bf16.xpose.msra.mxu0 0
      %5343 = vmatprep.subr.bf16.mxu0 0
      %5344 = vmatpush1.bf16.xpose.msra.mxu0 0
      %5345 = vmatprep.mubr.bf16.mxu0 0
      %5346 = vmatmul.mubr.bf16.gmra.mrb[0].mxu0 %v5308
      %v5347 = vpop.f32.mrb[0].mxu0
      %v5348 = vadd.f32 0.0, %v5347
      %v5349 = vpop.f32.mrb[0].mxu0
      %v5350 = vpop.f32.mrb[0].mxu0
      %v5351 = vpop.f32.mrb[0].mxu0
      %5352 = vdwg.mxu0
      %5354 = vrot.lane.b32.xlu0 %v4713, 96
      %v5355 = vpop.permute.xlu0 %5354
      %v5357 = vsel %vm1428, %v4697, 0
      %v5360 = vsel %vm1428, %v5355, 0
      %5362 = vmatprep.subr.bf16.mxu0 0
      %5363 = vmatpush1.bf16.xpose.msra.mxu0 %v5360
      %5364 = vmatprep.subr.bf16.mxu0 0
      %5365 = vmatpush1.bf16.xpose.msra.mxu0 0
      %5366 = vmatprep.subr.bf16.mxu0 0
      %5367 = vmatpush1.bf16.xpose.msra.mxu0 0
      %5368 = vmatprep.subr.bf16.mxu0 0
      %5369 = vmatpush1.bf16.xpose.msra.mxu0 0
      %5370 = vmatprep.subr.bf16.mxu0 0
      %5371 = vmatpush1.bf16.xpose.msra.mxu0 0
      %5372 = vmatprep.subr.bf16.mxu0 0
      %5373 = vmatpush1.bf16.xpose.msra.mxu0 0
      %5374 = vmatprep.subr.bf16.mxu0 0
      %5375 = vmatpush1.bf16.xpose.msra.mxu0 0
      %5376 = vmatprep.subr.bf16.mxu0 0
      %5377 = vmatpush1.bf16.xpose.msra.mxu0 0
      %5378 = vmatprep.subr.bf16.mxu0 0
      %5379 = vmatpush1.bf16.xpose.msra.mxu0 0
      %5380 = vmatprep.subr.bf16.mxu0 0
      %5381 = vmatpush1.bf16.xpose.msra.mxu0 0
      %5382 = vmatprep.subr.bf16.mxu0 0
      %5383 = vmatpush1.bf16.xpose.msra.mxu0 0
      %5384 = vmatprep.subr.bf16.mxu0 0
      %5385 = vmatpush1.bf16.xpose.msra.mxu0 0
      %5386 = vmatprep.subr.bf16.mxu0 0
      %5387 = vmatpush1.bf16.xpose.msra.mxu0 0
      %5388 = vmatprep.subr.bf16.mxu0 0
      %5389 = vmatpush1.bf16.xpose.msra.mxu0 0
      %5390 = vmatprep.subr.bf16.mxu0 0
      %5391 = vmatpush1.bf16.xpose.msra.mxu0 0
      %5392 = vmatprep.subr.bf16.mxu0 0
      %5393 = vmatpush1.bf16.xpose.msra.mxu0 0
      %5394 = vmatprep.mubr.bf16.mxu0 0
      %5395 = vmatmul.mubr.bf16.gmra.mrb[0].mxu0 %v5357
      %v5396 = vpop.f32.mrb[0].mxu0
      %v5397 = vadd.f32 0.0, %v5396
      %v5398 = vpop.f32.mrb[0].mxu0
      %v5399 = vpop.f32.mrb[0].mxu0
      %v5400 = vpop.f32.mrb[0].mxu0
      %5401 = vdwg.mxu0
      %5403 = vrot.lane.b32.xlu0 %v4714, 96
      %v5404 = vpop.permute.xlu0 %5403
      %v5406 = vsel %vm1428, %v4698, 0
      %v5409 = vsel %vm1428, %v5404, 0
      %5411 = vmatprep.subr.bf16.mxu0 0
      %5412 = vmatpush1.bf16.xpose.msra.mxu0 %v5409
      %5413 = vmatprep.subr.bf16.mxu0 0
      %5414 = vmatpush1.bf16.xpose.msra.mxu0 0
      %5415 = vmatprep.subr.bf16.mxu0 0
      %5416 = vmatpush1.bf16.xpose.msra.mxu0 0
      %5417 = vmatprep.subr.bf16.mxu0 0
      %5418 = vmatpush1.bf16.xpose.msra.mxu0 0
      %5419 = vmatprep.subr.bf16.mxu0 0
      %5420 = vmatpush1.bf16.xpose.msra.mxu0 0
      %5421 = vmatprep.subr.bf16.mxu0 0
      %5422 = vmatpush1.bf16.xpose.msra.mxu0 0
      %5423 = vmatprep.subr.bf16.mxu0 0
      %5424 = vmatpush1.bf16.xpose.msra.mxu0 0
      %5425 = vmatprep.subr.bf16.mxu0 0
      %5426 = vmatpush1.bf16.xpose.msra.mxu0 0
      %5427 = vmatprep.subr.bf16.mxu0 0
      %5428 = vmatpush1.bf16.xpose.msra.mxu0 0
      %5429 = vmatprep.subr.bf16.mxu0 0
      %5430 = vmatpush1.bf16.xpose.msra.mxu0 0
      %5431 = vmatprep.subr.bf16.mxu0 0
      %5432 = vmatpush1.bf16.xpose.msra.mxu0 0
      %5433 = vmatprep.subr.bf16.mxu0 0
      %5434 = vmatpush1.bf16.xpose.msra.mxu0 0
      %5435 = vmatprep.subr.bf16.mxu0 0
      %5436 = vmatpush1.bf16.xpose.msra.mxu0 0
      %5437 = vmatprep.subr.bf16.mxu0 0
      %5438 = vmatpush1.bf16.xpose.msra.mxu0 0
      %5439 = vmatprep.subr.bf16.mxu0 0
      %5440 = vmatpush1.bf16.xpose.msra.mxu0 0
      %5441 = vmatprep.subr.bf16.mxu0 0
      %5442 = vmatpush1.bf16.xpose.msra.mxu0 0
      %5443 = vmatprep.mubr.bf16.mxu0 0
      %5444 = vmatmul.mubr.bf16.gmra.mrb[0].mxu0 %v5406
      %v5445 = vpop.f32.mrb[0].mxu0
      %v5446 = vadd.f32 0.0, %v5445
      %v5447 = vpop.f32.mrb[0].mxu0
      %v5448 = vpop.f32.mrb[0].mxu0
      %v5449 = vpop.f32.mrb[0].mxu0
      %5450 = vdwg.mxu0
      %5452 = vrot.lane.b32.xlu0 %v4715, 96
      %v5453 = vpop.permute.xlu0 %5452
      %v5455 = vsel %vm1428, %v4699, 0
      %v5458 = vsel %vm1428, %v5453, 0
      %5460 = vmatprep.subr.bf16.mxu0 0
      %5461 = vmatpush1.bf16.xpose.msra.mxu0 %v5458
      %5462 = vmatprep.subr.bf16.mxu0 0
      %5463 = vmatpush1.bf16.xpose.msra.mxu0 0
      %5464 = vmatprep.subr.bf16.mxu0 0
      %5465 = vmatpush1.bf16.xpose.msra.mxu0 0
      %5466 = vmatprep.subr.bf16.mxu0 0
      %5467 = vmatpush1.bf16.xpose.msra.mxu0 0
      %5468 = vmatprep.subr.bf16.mxu0 0
      %5469 = vmatpush1.bf16.xpose.msra.mxu0 0
      %5470 = vmatprep.subr.bf16.mxu0 0
      %5471 = vmatpush1.bf16.xpose.msra.mxu0 0
      %5472 = vmatprep.subr.bf16.mxu0 0
      %5473 = vmatpush1.bf16.xpose.msra.mxu0 0
      %5474 = vmatprep.subr.bf16.mxu0 0
      %5475 = vmatpush1.bf16.xpose.msra.mxu0 0
      %5476 = vmatprep.subr.bf16.mxu0 0
      %5477 = vmatpush1.bf16.xpose.msra.mxu0 0
      %5478 = vmatprep.subr.bf16.mxu0 0
      %5479 = vmatpush1.bf16.xpose.msra.mxu0 0
      %5480 = vmatprep.subr.bf16.mxu0 0
      %5481 = vmatpush1.bf16.xpose.msra.mxu0 0
      %5482 = vmatprep.subr.bf16.mxu0 0
      %5483 = vmatpush1.bf16.xpose.msra.mxu0 0
      %5484 = vmatprep.subr.bf16.mxu0 0
      %5485 = vmatpush1.bf16.xpose.msra.mxu0 0
      %5486 = vmatprep.subr.bf16.mxu0 0
      %5487 = vmatpush1.bf16.xpose.msra.mxu0 0
      %5488 = vmatprep.subr.bf16.mxu0 0
      %5489 = vmatpush1.bf16.xpose.msra.mxu0 0
      %5490 = vmatprep.subr.bf16.mxu0 0
      %5491 = vmatpush1.bf16.xpose.msra.mxu0 0
      %5492 = vmatprep.mubr.bf16.mxu0 0
      %5493 = vmatmul.mubr.bf16.gmra.mrb[0].mxu0 %v5455
      %v5494 = vpop.f32.mrb[0].mxu0
      %v5495 = vadd.f32 0.0, %v5494
      %v5496 = vpop.f32.mrb[0].mxu0
      %v5497 = vpop.f32.mrb[0].mxu0
      %v5498 = vpop.f32.mrb[0].mxu0
      %5499 = vdwg.mxu0
      %v5500 = vlaneseq
      %v5501 = vshrl.u32 %v5500, 7
      %v5502 = vlaneseq
      %v5503 = vand.u32 %v5502, 127
      %vm5504 = vcmp.ge.s32.totalorder %v5501, %v5503
      %v5505 = vsel %vm5504, 1, 0
      %vm5506 = vcmp.eq.s32.totalorder %v5505, 1
      %v5507 = vsel %vm5506, %v4760, -1e+09
      %v5508 = vsel %vm5506, %v4809, -1e+09
      %v5509 = vsel %vm5506, %v4858, -1e+09
      %v5510 = vsel %vm5506, %v4907, -1e+09
      %v5511 = vsel %vm5506, %v4956, -1e+09
      %v5512 = vsel %vm5506, %v5005, -1e+09
      %v5513 = vsel %vm5506, %v5054, -1e+09
      %v5514 = vsel %vm5506, %v5103, -1e+09
      %v5515 = vsel %vm5506, %v5152, -1e+09
      %v5516 = vsel %vm5506, %v5201, -1e+09
      %v5517 = vsel %vm5506, %v5250, -1e+09
      %v5518 = vsel %vm5506, %v5299, -1e+09
      %v5519 = vsel %vm5506, %v5348, -1e+09
      %v5520 = vsel %vm5506, %v5397, -1e+09
      %v5521 = vsel %vm5506, %v5446, -1e+09
      %v5522 = vsel %vm5506, %v5495, -1e+09
      %v5523 = vsel %vm2382, %v5507, -inf
      %5524 = vmax.xlane.f32.xlu0 %v5523
      %v5525 = vpop.xlane.xlu0 %5524
      %v5526 = vsel %vm2382, %v5508, -inf
      %5527 = vmax.xlane.f32.xlu0 %v5526
      %v5528 = vpop.xlane.xlu0 %5527
      %v5529 = vsel %vm2382, %v5509, -inf
      %5530 = vmax.xlane.f32.xlu0 %v5529
      %v5531 = vpop.xlane.xlu0 %5530
      %v5532 = vsel %vm2382, %v5510, -inf
      %5533 = vmax.xlane.f32.xlu0 %v5532
      %v5534 = vpop.xlane.xlu0 %5533
      %v5535 = vsel %vm2382, %v5511, -inf
      %5536 = vmax.xlane.f32.xlu0 %v5535
      %v5537 = vpop.xlane.xlu0 %5536
      %v5538 = vsel %vm2382, %v5512, -inf
      %5539 = vmax.xlane.f32.xlu0 %v5538
      %v5540 = vpop.xlane.xlu0 %5539
      %v5541 = vsel %vm2382, %v5513, -inf
      %5542 = vmax.xlane.f32.xlu0 %v5541
      %v5543 = vpop.xlane.xlu0 %5542
      %v5544 = vsel %vm2382, %v5514, -inf
      %5545 = vmax.xlane.f32.xlu0 %v5544
      %v5546 = vpop.xlane.xlu0 %5545
      %v5547 = vsel %vm2382, %v5515, -inf
      %5548 = vmax.xlane.f32.xlu0 %v5547
      %v5549 = vpop.xlane.xlu0 %5548
      %v5550 = vsel %vm2382, %v5516, -inf
      %5551 = vmax.xlane.f32.xlu0 %v5550
      %v5552 = vpop.xlane.xlu0 %5551
      %v5553 = vsel %vm2382, %v5517, -inf
      %5554 = vmax.xlane.f32.xlu0 %v5553
      %v5555 = vpop.xlane.xlu0 %5554
      %v5556 = vsel %vm2382, %v5518, -inf
      %5557 = vmax.xlane.f32.xlu0 %v5556
      %v5558 = vpop.xlane.xlu0 %5557
      %v5559 = vsel %vm2382, %v5519, -inf
      %5560 = vmax.xlane.f32.xlu0 %v5559
      %v5561 = vpop.xlane.xlu0 %5560
      %v5562 = vsel %vm2382, %v5520, -inf
      %5563 = vmax.xlane.f32.xlu0 %v5562
      %v5564 = vpop.xlane.xlu0 %5563
      %v5565 = vsel %vm2382, %v5521, -inf
      %5566 = vmax.xlane.f32.xlu0 %v5565
      %v5567 = vpop.xlane.xlu0 %5566
      %v5568 = vsel %vm2382, %v5522, -inf
      %5569 = vmax.xlane.f32.xlu0 %v5568
      %v5570 = vpop.xlane.xlu0 %5569
      %v5571 = vsub.f32 %v5507, %v5525
      %v5572 = vsub.f32 %v5508, %v5528
      %v5573 = vsub.f32 %v5509, %v5531
      %v5574 = vsub.f32 %v5510, %v5534
      %v5575 = vsub.f32 %v5511, %v5537
      %v5576 = vsub.f32 %v5512, %v5540
      %v5577 = vsub.f32 %v5513, %v5543
      %v5578 = vsub.f32 %v5514, %v5546
      %v5579 = vsub.f32 %v5515, %v5549
      %v5580 = vsub.f32 %v5516, %v5552
      %v5581 = vsub.f32 %v5517, %v5555
      %v5582 = vsub.f32 %v5518, %v5558
      %v5583 = vsub.f32 %v5519, %v5561
      %v5584 = vsub.f32 %v5520, %v5564
      %v5585 = vsub.f32 %v5521, %v5567
      %v5586 = vsub.f32 %v5522, %v5570
      %v5587 = vmul.f32 %v5571, 1.442695
      %v5588 = vpow.pop %v5587
      %v5589 = vmul.f32 %v5572, 1.442695
      %v5590 = vpow.pop %v5589
      %v5591 = vmul.f32 %v5573, 1.442695
      %v5592 = vpow.pop %v5591
      %v5593 = vmul.f32 %v5574, 1.442695
      %v5594 = vpow.pop %v5593
      %v5595 = vmul.f32 %v5575, 1.442695
      %v5596 = vpow.pop %v5595
      %v5597 = vmul.f32 %v5576, 1.442695
      %v5598 = vpow.pop %v5597
      %v5599 = vmul.f32 %v5577, 1.442695
      %v5600 = vpow.pop %v5599
      %v5601 = vmul.f32 %v5578, 1.442695
      %v5602 = vpow.pop %v5601
      %v5603 = vmul.f32 %v5579, 1.442695
      %v5604 = vpow.pop %v5603
      %v5605 = vmul.f32 %v5580, 1.442695
      %v5606 = vpow.pop %v5605
      %v5607 = vmul.f32 %v5581, 1.442695
      %v5608 = vpow.pop %v5607
      %v5609 = vmul.f32 %v5582, 1.442695
      %v5610 = vpow.pop %v5609
      %v5611 = vmul.f32 %v5583, 1.442695
      %v5612 = vpow.pop %v5611
      %v5613 = vmul.f32 %v5584, 1.442695
      %v5614 = vpow.pop %v5613
      %v5615 = vmul.f32 %v5585, 1.442695
      %v5616 = vpow.pop %v5615
      %v5617 = vmul.f32 %v5586, 1.442695
      %v5618 = vpow.pop %v5617
      %v5619 = vsel %vm2382, %v5588, 0.0
      %5620 = vadd.xlane.f32.xlu0 %v5619
      %v5621 = vpop.xlane.xlu0 %5620
      %v5622 = vsel %vm2382, %v5590, 0.0
      %5623 = vadd.xlane.f32.xlu0 %v5622
      %v5624 = vpop.xlane.xlu0 %5623
      %v5625 = vsel %vm2382, %v5592, 0.0
      %5626 = vadd.xlane.f32.xlu0 %v5625
      %v5627 = vpop.xlane.xlu0 %5626
      %v5628 = vsel %vm2382, %v5594, 0.0
      %5629 = vadd.xlane.f32.xlu0 %v5628
      %v5630 = vpop.xlane.xlu0 %5629
      %v5631 = vsel %vm2382, %v5596, 0.0
      %5632 = vadd.xlane.f32.xlu0 %v5631
      %v5633 = vpop.xlane.xlu0 %5632
      %v5634 = vsel %vm2382, %v5598, 0.0
      %5635 = vadd.xlane.f32.xlu0 %v5634
      %v5636 = vpop.xlane.xlu0 %5635
      %v5637 = vsel %vm2382, %v5600, 0.0
      %5638 = vadd.xlane.f32.xlu0 %v5637
      %v5639 = vpop.xlane.xlu0 %5638
      %v5640 = vsel %vm2382, %v5602, 0.0
      %5641 = vadd.xlane.f32.xlu0 %v5640
      %v5642 = vpop.xlane.xlu0 %5641
      %v5643 = vsel %vm2382, %v5604, 0.0
      %5644 = vadd.xlane.f32.xlu0 %v5643
      %v5645 = vpop.xlane.xlu0 %5644
      %v5646 = vsel %vm2382, %v5606, 0.0
      %5647 = vadd.xlane.f32.xlu0 %v5646
      %v5648 = vpop.xlane.xlu0 %5647
      %v5649 = vsel %vm2382, %v5608, 0.0
      %5650 = vadd.xlane.f32.xlu0 %v5649
      %v5651 = vpop.xlane.xlu0 %5650
      %v5652 = vsel %vm2382, %v5610, 0.0
      %5653 = vadd.xlane.f32.xlu0 %v5652
      %v5654 = vpop.xlane.xlu0 %5653
      %v5655 = vsel %vm2382, %v5612, 0.0
      %5656 = vadd.xlane.f32.xlu0 %v5655
      %v5657 = vpop.xlane.xlu0 %5656
      %v5658 = vsel %vm2382, %v5614, 0.0
      %5659 = vadd.xlane.f32.xlu0 %v5658
      %v5660 = vpop.xlane.xlu0 %5659
      %v5661 = vsel %vm2382, %v5616, 0.0
      %5662 = vadd.xlane.f32.xlu0 %v5661
      %v5663 = vpop.xlane.xlu0 %5662
      %v5664 = vsel %vm2382, %v5618, 0.0
      %5665 = vadd.xlane.f32.xlu0 %v5664
      %v5666 = vpop.xlane.xlu0 %5665
      %v5667 = vrcp.pop %v5621
      %v5668 = vrcp.pop %v5624
      %v5669 = vrcp.pop %v5627
      %v5670 = vrcp.pop %v5630
      %v5671 = vrcp.pop %v5633
      %v5672 = vrcp.pop %v5636
      %v5673 = vrcp.pop %v5639
      %v5674 = vrcp.pop %v5642
      %v5675 = vrcp.pop %v5645
      %v5676 = vrcp.pop %v5648
      %v5677 = vrcp.pop %v5651
      %v5678 = vrcp.pop %v5654
      %v5679 = vrcp.pop %v5657
      %v5680 = vrcp.pop %v5660
      %v5681 = vrcp.pop %v5663
      %v5682 = vrcp.pop %v5666
      %v5683 = vmul.f32 %v5588, %v5667
      %v5684 = vmul.f32 %v5590, %v5668
      %v5685 = vmul.f32 %v5592, %v5669
      %v5686 = vmul.f32 %v5594, %v5670
      %v5687 = vmul.f32 %v5596, %v5671
      %v5688 = vmul.f32 %v5598, %v5672
      %v5689 = vmul.f32 %v5600, %v5673
      %v5690 = vmul.f32 %v5602, %v5674
      %v5691 = vmul.f32 %v5604, %v5675
      %v5692 = vmul.f32 %v5606, %v5676
      %v5693 = vmul.f32 %v5608, %v5677
      %v5694 = vmul.f32 %v5610, %v5678
      %v5695 = vmul.f32 %v5612, %v5679
      %v5696 = vmul.f32 %v5614, %v5680
      %v5697 = vmul.f32 %v5616, %v5681
      %v5698 = vmul.f32 %v5618, %v5682
      %v5699 = vpack.c.bf16 %v5683, %v5683
      %v5700 = vpack.c.bf16 %v5684, %v5684
      %v5701 = vpack.c.bf16 %v5685, %v5685
      %v5702 = vpack.c.bf16 %v5686, %v5686
      %v5703 = vpack.c.bf16 %v5687, %v5687
      %v5704 = vpack.c.bf16 %v5688, %v5688
      %v5705 = vpack.c.bf16 %v5689, %v5689
      %v5706 = vpack.c.bf16 %v5690, %v5690
      %v5707 = vpack.c.bf16 %v5691, %v5691
      %v5708 = vpack.c.bf16 %v5692, %v5692
      %v5709 = vpack.c.bf16 %v5693, %v5693
      %v5710 = vpack.c.bf16 %v5694, %v5694
      %v5711 = vpack.c.bf16 %v5695, %v5695
      %v5712 = vpack.c.bf16 %v5696, %v5696
      %v5713 = vpack.c.bf16 %v5697, %v5697
      %v5714 = vpack.c.bf16 %v5698, %v5698
      %5715 = vrot.lane.b32.xlu0 %v4700, 64
      %v5716 = vpop.permute.xlu0 %5715
      %v5718 = vsel %vm2382, %v5699, 0
      %v5721 = vsel %vm2580, %v5716, 0
      %5723 = vmatprep.subr.bf16.mxu0 0
      %5724 = vmatpush1.bf16.msra.mxu0 %v5721
      %5725 = vmatprep.subr.bf16.mxu0 0
      %5726 = vmatpush1.bf16.msra.mxu0 0
      %5727 = vmatprep.subr.bf16.mxu0 0
      %5728 = vmatpush1.bf16.msra.mxu0 0
      %5729 = vmatprep.subr.bf16.mxu0 0
      %5730 = vmatpush1.bf16.msra.mxu0 0
      %5731 = vmatprep.subr.bf16.mxu0 0
      %5732 = vmatpush1.bf16.msra.mxu0 0
      %5733 = vmatprep.subr.bf16.mxu0 0
      %5734 = vmatpush1.bf16.msra.mxu0 0
      %5735 = vmatprep.subr.bf16.mxu0 0
      %5736 = vmatpush1.bf16.msra.mxu0 0
      %5737 = vmatprep.subr.bf16.mxu0 0
      %5738 = vmatpush1.bf16.msra.mxu0 0
      %5739 = vmatprep.subr.bf16.mxu0 0
      %5740 = vmatpush1.bf16.msra.mxu0 0
      %5741 = vmatprep.subr.bf16.mxu0 0
      %5742 = vmatpush1.bf16.msra.mxu0 0
      %5743 = vmatprep.subr.bf16.mxu0 0
      %5744 = vmatpush1.bf16.msra.mxu0 0
      %5745 = vmatprep.subr.bf16.mxu0 0
      %5746 = vmatpush1.bf16.msra.mxu0 0
      %5747 = vmatprep.subr.bf16.mxu0 0
      %5748 = vmatpush1.bf16.msra.mxu0 0
      %5749 = vmatprep.subr.bf16.mxu0 0
      %5750 = vmatpush1.bf16.msra.mxu0 0
      %5751 = vmatprep.subr.bf16.mxu0 0
      %5752 = vmatpush1.bf16.msra.mxu0 0
      %5753 = vmatprep.subr.bf16.mxu0 0
      %5754 = vmatpush1.bf16.msra.mxu0 0
      %5755 = vmatprep.mubr.bf16.mxu0 0
      %5756 = vmatmul.mubr.bf16.gmra.mrb[0].mxu0 %v5718
      %v5757 = vpop.f32.mrb[0].mxu0
      %v5758 = vadd.f32 0.0, %v5757
      %v5759 = vpop.f32.mrb[0].mxu0
      %v5760 = vpop.f32.mrb[0].mxu0
      %v5761 = vpop.f32.mrb[0].mxu0
      %5762 = vdwg.mxu0
      %5763 = vrot.lane.b32.xlu0 %v4701, 64
      %v5764 = vpop.permute.xlu0 %5763
      %v5766 = vsel %vm2382, %v5700, 0
      %v5769 = vsel %vm2580, %v5764, 0
      %5771 = vmatprep.subr.bf16.mxu0 0
      %5772 = vmatpush1.bf16.msra.mxu0 %v5769
      %5773 = vmatprep.subr.bf16.mxu0 0
      %5774 = vmatpush1.bf16.msra.mxu0 0
      %5775 = vmatprep.subr.bf16.mxu0 0
      %5776 = vmatpush1.bf16.msra.mxu0 0
      %5777 = vmatprep.subr.bf16.mxu0 0
      %5778 = vmatpush1.bf16.msra.mxu0 0
      %5779 = vmatprep.subr.bf16.mxu0 0
      %5780 = vmatpush1.bf16.msra.mxu0 0
      %5781 = vmatprep.subr.bf16.mxu0 0
      %5782 = vmatpush1.bf16.msra.mxu0 0
      %5783 = vmatprep.subr.bf16.mxu0 0
      %5784 = vmatpush1.bf16.msra.mxu0 0
      %5785 = vmatprep.subr.bf16.mxu0 0
      %5786 = vmatpush1.bf16.msra.mxu0 0
      %5787 = vmatprep.subr.bf16.mxu0 0
      %5788 = vmatpush1.bf16.msra.mxu0 0
      %5789 = vmatprep.subr.bf16.mxu0 0
      %5790 = vmatpush1.bf16.msra.mxu0 0
      %5791 = vmatprep.subr.bf16.mxu0 0
      %5792 = vmatpush1.bf16.msra.mxu0 0
      %5793 = vmatprep.subr.bf16.mxu0 0
      %5794 = vmatpush1.bf16.msra.mxu0 0
      %5795 = vmatprep.subr.bf16.mxu0 0
      %5796 = vmatpush1.bf16.msra.mxu0 0
      %5797 = vmatprep.subr.bf16.mxu0 0
      %5798 = vmatpush1.bf16.msra.mxu0 0
      %5799 = vmatprep.subr.bf16.mxu0 0
      %5800 = vmatpush1.bf16.msra.mxu0 0
      %5801 = vmatprep.subr.bf16.mxu0 0
      %5802 = vmatpush1.bf16.msra.mxu0 0
      %5803 = vmatprep.mubr.bf16.mxu0 0
      %5804 = vmatmul.mubr.bf16.gmra.mrb[0].mxu0 %v5766
      %v5805 = vpop.f32.mrb[0].mxu0
      %v5806 = vadd.f32 0.0, %v5805
      %v5807 = vpop.f32.mrb[0].mxu0
      %v5808 = vpop.f32.mrb[0].mxu0
      %v5809 = vpop.f32.mrb[0].mxu0
      %5810 = vdwg.mxu0
      %5811 = vrot.lane.b32.xlu0 %v4702, 64
      %v5812 = vpop.permute.xlu0 %5811
      %v5814 = vsel %vm2382, %v5701, 0
      %v5817 = vsel %vm2580, %v5812, 0
      %5819 = vmatprep.subr.bf16.mxu0 0
      %5820 = vmatpush1.bf16.msra.mxu0 %v5817
      %5821 = vmatprep.subr.bf16.mxu0 0
      %5822 = vmatpush1.bf16.msra.mxu0 0
      %5823 = vmatprep.subr.bf16.mxu0 0
      %5824 = vmatpush1.bf16.msra.mxu0 0
      %5825 = vmatprep.subr.bf16.mxu0 0
      %5826 = vmatpush1.bf16.msra.mxu0 0
      %5827 = vmatprep.subr.bf16.mxu0 0
      %5828 = vmatpush1.bf16.msra.mxu0 0
      %5829 = vmatprep.subr.bf16.mxu0 0
      %5830 = vmatpush1.bf16.msra.mxu0 0
      %5831 = vmatprep.subr.bf16.mxu0 0
      %5832 = vmatpush1.bf16.msra.mxu0 0
      %5833 = vmatprep.subr.bf16.mxu0 0
      %5834 = vmatpush1.bf16.msra.mxu0 0
      %5835 = vmatprep.subr.bf16.mxu0 0
      %5836 = vmatpush1.bf16.msra.mxu0 0
      %5837 = vmatprep.subr.bf16.mxu0 0
      %5838 = vmatpush1.bf16.msra.mxu0 0
      %5839 = vmatprep.subr.bf16.mxu0 0
      %5840 = vmatpush1.bf16.msra.mxu0 0
      %5841 = vmatprep.subr.bf16.mxu0 0
      %5842 = vmatpush1.bf16.msra.mxu0 0
      %5843 = vmatprep.subr.bf16.mxu0 0
      %5844 = vmatpush1.bf16.msra.mxu0 0
      %5845 = vmatprep.subr.bf16.mxu0 0
      %5846 = vmatpush1.bf16.msra.mxu0 0
      %5847 = vmatprep.subr.bf16.mxu0 0
      %5848 = vmatpush1.bf16.msra.mxu0 0
      %5849 = vmatprep.subr.bf16.mxu0 0
      %5850 = vmatpush1.bf16.msra.mxu0 0
      %5851 = vmatprep.mubr.bf16.mxu0 0
      %5852 = vmatmul.mubr.bf16.gmra.mrb[0].mxu0 %v5814
      %v5853 = vpop.f32.mrb[0].mxu0
      %v5854 = vadd.f32 0.0, %v5853
      %v5855 = vpop.f32.mrb[0].mxu0
      %v5856 = vpop.f32.mrb[0].mxu0
      %v5857 = vpop.f32.mrb[0].mxu0
      %5858 = vdwg.mxu0
      %5859 = vrot.lane.b32.xlu0 %v4703, 64
      %v5860 = vpop.permute.xlu0 %5859
      %v5862 = vsel %vm2382, %v5702, 0
      %v5865 = vsel %vm2580, %v5860, 0
      %5867 = vmatprep.subr.bf16.mxu0 0
      %5868 = vmatpush1.bf16.msra.mxu0 %v5865
      %5869 = vmatprep.subr.bf16.mxu0 0
      %5870 = vmatpush1.bf16.msra.mxu0 0
      %5871 = vmatprep.subr.bf16.mxu0 0
      %5872 = vmatpush1.bf16.msra.mxu0 0
      %5873 = vmatprep.subr.bf16.mxu0 0
      %5874 = vmatpush1.bf16.msra.mxu0 0
      %5875 = vmatprep.subr.bf16.mxu0 0
      %5876 = vmatpush1.bf16.msra.mxu0 0
      %5877 = vmatprep.subr.bf16.mxu0 0
      %5878 = vmatpush1.bf16.msra.mxu0 0
      %5879 = vmatprep.subr.bf16.mxu0 0
      %5880 = vmatpush1.bf16.msra.mxu0 0
      %5881 = vmatprep.subr.bf16.mxu0 0
      %5882 = vmatpush1.bf16.msra.mxu0 0
      %5883 = vmatprep.subr.bf16.mxu0 0
      %5884 = vmatpush1.bf16.msra.mxu0 0
      %5885 = vmatprep.subr.bf16.mxu0 0
      %5886 = vmatpush1.bf16.msra.mxu0 0
      %5887 = vmatprep.subr.bf16.mxu0 0
      %5888 = vmatpush1.bf16.msra.mxu0 0
      %5889 = vmatprep.subr.bf16.mxu0 0
      %5890 = vmatpush1.bf16.msra.mxu0 0
      %5891 = vmatprep.subr.bf16.mxu0 0
      %5892 = vmatpush1.bf16.msra.mxu0 0
      %5893 = vmatprep.subr.bf16.mxu0 0
      %5894 = vmatpush1.bf16.msra.mxu0 0
      %5895 = vmatprep.subr.bf16.mxu0 0
      %5896 = vmatpush1.bf16.msra.mxu0 0
      %5897 = vmatprep.subr.bf16.mxu0 0
      %5898 = vmatpush1.bf16.msra.mxu0 0
      %5899 = vmatprep.mubr.bf16.mxu0 0
      %5900 = vmatmul.mubr.bf16.gmra.mrb[0].mxu0 %v5862
      %v5901 = vpop.f32.mrb[0].mxu0
      %v5902 = vadd.f32 0.0, %v5901
      %v5903 = vpop.f32.mrb[0].mxu0
      %v5904 = vpop.f32.mrb[0].mxu0
      %v5905 = vpop.f32.mrb[0].mxu0
      %5906 = vdwg.mxu0
      %5907 = vrot.lane.b32.xlu0 %v4704, 64
      %v5908 = vpop.permute.xlu0 %5907
      %v5910 = vsel %vm2382, %v5703, 0
      %v5913 = vsel %vm2580, %v5908, 0
      %5915 = vmatprep.subr.bf16.mxu0 0
      %5916 = vmatpush1.bf16.msra.mxu0 %v5913
      %5917 = vmatprep.subr.bf16.mxu0 0
      %5918 = vmatpush1.bf16.msra.mxu0 0
      %5919 = vmatprep.subr.bf16.mxu0 0
      %5920 = vmatpush1.bf16.msra.mxu0 0
      %5921 = vmatprep.subr.bf16.mxu0 0
      %5922 = vmatpush1.bf16.msra.mxu0 0
      %5923 = vmatprep.subr.bf16.mxu0 0
      %5924 = vmatpush1.bf16.msra.mxu0 0
      %5925 = vmatprep.subr.bf16.mxu0 0
      %5926 = vmatpush1.bf16.msra.mxu0 0
      %5927 = vmatprep.subr.bf16.mxu0 0
      %5928 = vmatpush1.bf16.msra.mxu0 0
      %5929 = vmatprep.subr.bf16.mxu0 0
      %5930 = vmatpush1.bf16.msra.mxu0 0
      %5931 = vmatprep.subr.bf16.mxu0 0
      %5932 = vmatpush1.bf16.msra.mxu0 0
      %5933 = vmatprep.subr.bf16.mxu0 0
      %5934 = vmatpush1.bf16.msra.mxu0 0
      %5935 = vmatprep.subr.bf16.mxu0 0
      %5936 = vmatpush1.bf16.msra.mxu0 0
      %5937 = vmatprep.subr.bf16.mxu0 0
      %5938 = vmatpush1.bf16.msra.mxu0 0
      %5939 = vmatprep.subr.bf16.mxu0 0
      %5940 = vmatpush1.bf16.msra.mxu0 0
      %5941 = vmatprep.subr.bf16.mxu0 0
      %5942 = vmatpush1.bf16.msra.mxu0 0
      %5943 = vmatprep.subr.bf16.mxu0 0
      %5944 = vmatpush1.bf16.msra.mxu0 0
      %5945 = vmatprep.subr.bf16.mxu0 0
      %5946 = vmatpush1.bf16.msra.mxu0 0
      %5947 = vmatprep.mubr.bf16.mxu0 0
      %5948 = vmatmul.mubr.bf16.gmra.mrb[0].mxu0 %v5910
      %v5949 = vpop.f32.mrb[0].mxu0
      %v5950 = vadd.f32 0.0, %v5949
      %v5951 = vpop.f32.mrb[0].mxu0
      %v5952 = vpop.f32.mrb[0].mxu0
      %v5953 = vpop.f32.mrb[0].mxu0
      %5954 = vdwg.mxu0
      %5955 = vrot.lane.b32.xlu0 %v4705, 64
      %v5956 = vpop.permute.xlu0 %5955
      %v5958 = vsel %vm2382, %v5704, 0
      %v5961 = vsel %vm2580, %v5956, 0
      %5963 = vmatprep.subr.bf16.mxu0 0
      %5964 = vmatpush1.bf16.msra.mxu0 %v5961
      %5965 = vmatprep.subr.bf16.mxu0 0
      %5966 = vmatpush1.bf16.msra.mxu0 0
      %5967 = vmatprep.subr.bf16.mxu0 0
      %5968 = vmatpush1.bf16.msra.mxu0 0
      %5969 = vmatprep.subr.bf16.mxu0 0
      %5970 = vmatpush1.bf16.msra.mxu0 0
      %5971 = vmatprep.subr.bf16.mxu0 0
      %5972 = vmatpush1.bf16.msra.mxu0 0
      %5973 = vmatprep.subr.bf16.mxu0 0
      %5974 = vmatpush1.bf16.msra.mxu0 0
      %5975 = vmatprep.subr.bf16.mxu0 0
      %5976 = vmatpush1.bf16.msra.mxu0 0
      %5977 = vmatprep.subr.bf16.mxu0 0
      %5978 = vmatpush1.bf16.msra.mxu0 0
      %5979 = vmatprep.subr.bf16.mxu0 0
      %5980 = vmatpush1.bf16.msra.mxu0 0
      %5981 = vmatprep.subr.bf16.mxu0 0
      %5982 = vmatpush1.bf16.msra.mxu0 0
      %5983 = vmatprep.subr.bf16.mxu0 0
      %5984 = vmatpush1.bf16.msra.mxu0 0
      %5985 = vmatprep.subr.bf16.mxu0 0
      %5986 = vmatpush1.bf16.msra.mxu0 0
      %5987 = vmatprep.subr.bf16.mxu0 0
      %5988 = vmatpush1.bf16.msra.mxu0 0
      %5989 = vmatprep.subr.bf16.mxu0 0
      %5990 = vmatpush1.bf16.msra.mxu0 0
      %5991 = vmatprep.subr.bf16.mxu0 0
      %5992 = vmatpush1.bf16.msra.mxu0 0
      %5993 = vmatprep.subr.bf16.mxu0 0
      %5994 = vmatpush1.bf16.msra.mxu0 0
      %5995 = vmatprep.mubr.bf16.mxu0 0
      %5996 = vmatmul.mubr.bf16.gmra.mrb[0].mxu0 %v5958
      %v5997 = vpop.f32.mrb[0].mxu0
      %v5998 = vadd.f32 0.0, %v5997
      %v5999 = vpop.f32.mrb[0].mxu0
      %v6000 = vpop.f32.mrb[0].mxu0
      %v6001 = vpop.f32.mrb[0].mxu0
      %6002 = vdwg.mxu0
      %6003 = vrot.lane.b32.xlu0 %v4706, 64
      %v6004 = vpop.permute.xlu0 %6003
      %v6006 = vsel %vm2382, %v5705, 0
      %v6009 = vsel %vm2580, %v6004, 0
      %6011 = vmatprep.subr.bf16.mxu0 0
      %6012 = vmatpush1.bf16.msra.mxu0 %v6009
      %6013 = vmatprep.subr.bf16.mxu0 0
      %6014 = vmatpush1.bf16.msra.mxu0 0
      %6015 = vmatprep.subr.bf16.mxu0 0
      %6016 = vmatpush1.bf16.msra.mxu0 0
      %6017 = vmatprep.subr.bf16.mxu0 0
      %6018 = vmatpush1.bf16.msra.mxu0 0
      %6019 = vmatprep.subr.bf16.mxu0 0
      %6020 = vmatpush1.bf16.msra.mxu0 0
      %6021 = vmatprep.subr.bf16.mxu0 0
      %6022 = vmatpush1.bf16.msra.mxu0 0
      %6023 = vmatprep.subr.bf16.mxu0 0
      %6024 = vmatpush1.bf16.msra.mxu0 0
      %6025 = vmatprep.subr.bf16.mxu0 0
      %6026 = vmatpush1.bf16.msra.mxu0 0
      %6027 = vmatprep.subr.bf16.mxu0 0
      %6028 = vmatpush1.bf16.msra.mxu0 0
      %6029 = vmatprep.subr.bf16.mxu0 0
      %6030 = vmatpush1.bf16.msra.mxu0 0
      %6031 = vmatprep.subr.bf16.mxu0 0
      %6032 = vmatpush1.bf16.msra.mxu0 0
      %6033 = vmatprep.subr.bf16.mxu0 0
      %6034 = vmatpush1.bf16.msra.mxu0 0
      %6035 = vmatprep.subr.bf16.mxu0 0
      %6036 = vmatpush1.bf16.msra.mxu0 0
      %6037 = vmatprep.subr.bf16.mxu0 0
      %6038 = vmatpush1.bf16.msra.mxu0 0
      %6039 = vmatprep.subr.bf16.mxu0 0
      %6040 = vmatpush1.bf16.msra.mxu0 0
      %6041 = vmatprep.subr.bf16.mxu0 0
      %6042 = vmatpush1.bf16.msra.mxu0 0
      %6043 = vmatprep.mubr.bf16.mxu0 0
      %6044 = vmatmul.mubr.bf16.gmra.mrb[0].mxu0 %v6006
      %v6045 = vpop.f32.mrb[0].mxu0
      %v6046 = vadd.f32 0.0, %v6045
      %v6047 = vpop.f32.mrb[0].mxu0
      %v6048 = vpop.f32.mrb[0].mxu0
      %v6049 = vpop.f32.mrb[0].mxu0
      %6050 = vdwg.mxu0
      %6051 = vrot.lane.b32.xlu0 %v4707, 64
      %v6052 = vpop.permute.xlu0 %6051
      %v6054 = vsel %vm2382, %v5706, 0
      %v6057 = vsel %vm2580, %v6052, 0
      %6059 = vmatprep.subr.bf16.mxu0 0
      %6060 = vmatpush1.bf16.msra.mxu0 %v6057
      %6061 = vmatprep.subr.bf16.mxu0 0
      %6062 = vmatpush1.bf16.msra.mxu0 0
      %6063 = vmatprep.subr.bf16.mxu0 0
      %6064 = vmatpush1.bf16.msra.mxu0 0
      %6065 = vmatprep.subr.bf16.mxu0 0
      %6066 = vmatpush1.bf16.msra.mxu0 0
      %6067 = vmatprep.subr.bf16.mxu0 0
      %6068 = vmatpush1.bf16.msra.mxu0 0
      %6069 = vmatprep.subr.bf16.mxu0 0
      %6070 = vmatpush1.bf16.msra.mxu0 0
      %6071 = vmatprep.subr.bf16.mxu0 0
      %6072 = vmatpush1.bf16.msra.mxu0 0
      %6073 = vmatprep.subr.bf16.mxu0 0
      %6074 = vmatpush1.bf16.msra.mxu0 0
      %6075 = vmatprep.subr.bf16.mxu0 0
      %6076 = vmatpush1.bf16.msra.mxu0 0
      %6077 = vmatprep.subr.bf16.mxu0 0
      %6078 = vmatpush1.bf16.msra.mxu0 0
      %6079 = vmatprep.subr.bf16.mxu0 0
      %6080 = vmatpush1.bf16.msra.mxu0 0
      %6081 = vmatprep.subr.bf16.mxu0 0
      %6082 = vmatpush1.bf16.msra.mxu0 0
      %6083 = vmatprep.subr.bf16.mxu0 0
      %6084 = vmatpush1.bf16.msra.mxu0 0
      %6085 = vmatprep.subr.bf16.mxu0 0
      %6086 = vmatpush1.bf16.msra.mxu0 0
      %6087 = vmatprep.subr.bf16.mxu0 0
      %6088 = vmatpush1.bf16.msra.mxu0 0
      %6089 = vmatprep.subr.bf16.mxu0 0
      %6090 = vmatpush1.bf16.msra.mxu0 0
      %6091 = vmatprep.mubr.bf16.mxu0 0
      %6092 = vmatmul.mubr.bf16.gmra.mrb[0].mxu0 %v6054
      %v6093 = vpop.f32.mrb[0].mxu0
      %v6094 = vadd.f32 0.0, %v6093
      %v6095 = vpop.f32.mrb[0].mxu0
      %v6096 = vpop.f32.mrb[0].mxu0
      %v6097 = vpop.f32.mrb[0].mxu0
      %6098 = vdwg.mxu0
      %6099 = vrot.lane.b32.xlu0 %v4708, 64
      %v6100 = vpop.permute.xlu0 %6099
      %v6102 = vsel %vm2382, %v5707, 0
      %v6105 = vsel %vm2580, %v6100, 0
      %6107 = vmatprep.subr.bf16.mxu0 0
      %6108 = vmatpush1.bf16.msra.mxu0 %v6105
      %6109 = vmatprep.subr.bf16.mxu0 0
      %6110 = vmatpush1.bf16.msra.mxu0 0
      %6111 = vmatprep.subr.bf16.mxu0 0
      %6112 = vmatpush1.bf16.msra.mxu0 0
      %6113 = vmatprep.subr.bf16.mxu0 0
      %6114 = vmatpush1.bf16.msra.mxu0 0
      %6115 = vmatprep.subr.bf16.mxu0 0
      %6116 = vmatpush1.bf16.msra.mxu0 0
      %6117 = vmatprep.subr.bf16.mxu0 0
      %6118 = vmatpush1.bf16.msra.mxu0 0
      %6119 = vmatprep.subr.bf16.mxu0 0
      %6120 = vmatpush1.bf16.msra.mxu0 0
      %6121 = vmatprep.subr.bf16.mxu0 0
      %6122 = vmatpush1.bf16.msra.mxu0 0
      %6123 = vmatprep.subr.bf16.mxu0 0
      %6124 = vmatpush1.bf16.msra.mxu0 0
      %6125 = vmatprep.subr.bf16.mxu0 0
      %6126 = vmatpush1.bf16.msra.mxu0 0
      %6127 = vmatprep.subr.bf16.mxu0 0
      %6128 = vmatpush1.bf16.msra.mxu0 0
      %6129 = vmatprep.subr.bf16.mxu0 0
      %6130 = vmatpush1.bf16.msra.mxu0 0
      %6131 = vmatprep.subr.bf16.mxu0 0
      %6132 = vmatpush1.bf16.msra.mxu0 0
      %6133 = vmatprep.subr.bf16.mxu0 0
      %6134 = vmatpush1.bf16.msra.mxu0 0
      %6135 = vmatprep.subr.bf16.mxu0 0
      %6136 = vmatpush1.bf16.msra.mxu0 0
      %6137 = vmatprep.subr.bf16.mxu0 0
      %6138 = vmatpush1.bf16.msra.mxu0 0
      %6139 = vmatprep.mubr.bf16.mxu0 0
      %6140 = vmatmul.mubr.bf16.gmra.mrb[0].mxu0 %v6102
      %v6141 = vpop.f32.mrb[0].mxu0
      %v6142 = vadd.f32 0.0, %v6141
      %v6143 = vpop.f32.mrb[0].mxu0
      %v6144 = vpop.f32.mrb[0].mxu0
      %v6145 = vpop.f32.mrb[0].mxu0
      %6146 = vdwg.mxu0
      %6147 = vrot.lane.b32.xlu0 %v4709, 64
      %v6148 = vpop.permute.xlu0 %6147
      %v6150 = vsel %vm2382, %v5708, 0
      %v6153 = vsel %vm2580, %v6148, 0
      %6155 = vmatprep.subr.bf16.mxu0 0
      %6156 = vmatpush1.bf16.msra.mxu0 %v6153
      %6157 = vmatprep.subr.bf16.mxu0 0
      %6158 = vmatpush1.bf16.msra.mxu0 0
      %6159 = vmatprep.subr.bf16.mxu0 0
      %6160 = vmatpush1.bf16.msra.mxu0 0
      %6161 = vmatprep.subr.bf16.mxu0 0
      %6162 = vmatpush1.bf16.msra.mxu0 0
      %6163 = vmatprep.subr.bf16.mxu0 0
      %6164 = vmatpush1.bf16.msra.mxu0 0
      %6165 = vmatprep.subr.bf16.mxu0 0
      %6166 = vmatpush1.bf16.msra.mxu0 0
      %6167 = vmatprep.subr.bf16.mxu0 0
      %6168 = vmatpush1.bf16.msra.mxu0 0
      %6169 = vmatprep.subr.bf16.mxu0 0
      %6170 = vmatpush1.bf16.msra.mxu0 0
      %6171 = vmatprep.subr.bf16.mxu0 0
      %6172 = vmatpush1.bf16.msra.mxu0 0
      %6173 = vmatprep.subr.bf16.mxu0 0
      %6174 = vmatpush1.bf16.msra.mxu0 0
      %6175 = vmatprep.subr.bf16.mxu0 0
      %6176 = vmatpush1.bf16.msra.mxu0 0
      %6177 = vmatprep.subr.bf16.mxu0 0
      %6178 = vmatpush1.bf16.msra.mxu0 0
      %6179 = vmatprep.subr.bf16.mxu0 0
      %6180 = vmatpush1.bf16.msra.mxu0 0
      %6181 = vmatprep.subr.bf16.mxu0 0
      %6182 = vmatpush1.bf16.msra.mxu0 0
      %6183 = vmatprep.subr.bf16.mxu0 0
      %6184 = vmatpush1.bf16.msra.mxu0 0
      %6185 = vmatprep.subr.bf16.mxu0 0
      %6186 = vmatpush1.bf16.msra.mxu0 0
      %6187 = vmatprep.mubr.bf16.mxu0 0
      %6188 = vmatmul.mubr.bf16.gmra.mrb[0].mxu0 %v6150
      %v6189 = vpop.f32.mrb[0].mxu0
      %v6190 = vadd.f32 0.0, %v6189
      %v6191 = vpop.f32.mrb[0].mxu0
      %v6192 = vpop.f32.mrb[0].mxu0
      %v6193 = vpop.f32.mrb[0].mxu0
      %6194 = vdwg.mxu0
      %6195 = vrot.lane.b32.xlu0 %v4710, 64
      %v6196 = vpop.permute.xlu0 %6195
      %v6198 = vsel %vm2382, %v5709, 0
      %v6201 = vsel %vm2580, %v6196, 0
      %6203 = vmatprep.subr.bf16.mxu0 0
      %6204 = vmatpush1.bf16.msra.mxu0 %v6201
      %6205 = vmatprep.subr.bf16.mxu0 0
      %6206 = vmatpush1.bf16.msra.mxu0 0
      %6207 = vmatprep.subr.bf16.mxu0 0
      %6208 = vmatpush1.bf16.msra.mxu0 0
      %6209 = vmatprep.subr.bf16.mxu0 0
      %6210 = vmatpush1.bf16.msra.mxu0 0
      %6211 = vmatprep.subr.bf16.mxu0 0
      %6212 = vmatpush1.bf16.msra.mxu0 0
      %6213 = vmatprep.subr.bf16.mxu0 0
      %6214 = vmatpush1.bf16.msra.mxu0 0
      %6215 = vmatprep.subr.bf16.mxu0 0
      %6216 = vmatpush1.bf16.msra.mxu0 0
      %6217 = vmatprep.subr.bf16.mxu0 0
      %6218 = vmatpush1.bf16.msra.mxu0 0
      %6219 = vmatprep.subr.bf16.mxu0 0
      %6220 = vmatpush1.bf16.msra.mxu0 0
      %6221 = vmatprep.subr.bf16.mxu0 0
      %6222 = vmatpush1.bf16.msra.mxu0 0
      %6223 = vmatprep.subr.bf16.mxu0 0
      %6224 = vmatpush1.bf16.msra.mxu0 0
      %6225 = vmatprep.subr.bf16.mxu0 0
      %6226 = vmatpush1.bf16.msra.mxu0 0
      %6227 = vmatprep.subr.bf16.mxu0 0
      %6228 = vmatpush1.bf16.msra.mxu0 0
      %6229 = vmatprep.subr.bf16.mxu0 0
      %6230 = vmatpush1.bf16.msra.mxu0 0
      %6231 = vmatprep.subr.bf16.mxu0 0
      %6232 = vmatpush1.bf16.msra.mxu0 0
      %6233 = vmatprep.subr.bf16.mxu0 0
      %6234 = vmatpush1.bf16.msra.mxu0 0
      %6235 = vmatprep.mubr.bf16.mxu0 0
      %6236 = vmatmul.mubr.bf16.gmra.mrb[0].mxu0 %v6198
      %v6237 = vpop.f32.mrb[0].mxu0
      %v6238 = vadd.f32 0.0, %v6237
      %v6239 = vpop.f32.mrb[0].mxu0
      %v6240 = vpop.f32.mrb[0].mxu0
      %v6241 = vpop.f32.mrb[0].mxu0
      %6242 = vdwg.mxu0
      %6243 = vrot.lane.b32.xlu0 %v4711, 64
      %v6244 = vpop.permute.xlu0 %6243
      %v6246 = vsel %vm2382, %v5710, 0
      %v6249 = vsel %vm2580, %v6244, 0
      %6251 = vmatprep.subr.bf16.mxu0 0
      %6252 = vmatpush1.bf16.msra.mxu0 %v6249
      %6253 = vmatprep.subr.bf16.mxu0 0
      %6254 = vmatpush1.bf16.msra.mxu0 0
      %6255 = vmatprep.subr.bf16.mxu0 0
      %6256 = vmatpush1.bf16.msra.mxu0 0
      %6257 = vmatprep.subr.bf16.mxu0 0
      %6258 = vmatpush1.bf16.msra.mxu0 0
      %6259 = vmatprep.subr.bf16.mxu0 0
      %6260 = vmatpush1.bf16.msra.mxu0 0
      %6261 = vmatprep.subr.bf16.mxu0 0
      %6262 = vmatpush1.bf16.msra.mxu0 0
      %6263 = vmatprep.subr.bf16.mxu0 0
      %6264 = vmatpush1.bf16.msra.mxu0 0
      %6265 = vmatprep.subr.bf16.mxu0 0
      %6266 = vmatpush1.bf16.msra.mxu0 0
      %6267 = vmatprep.subr.bf16.mxu0 0
      %6268 = vmatpush1.bf16.msra.mxu0 0
      %6269 = vmatprep.subr.bf16.mxu0 0
      %6270 = vmatpush1.bf16.msra.mxu0 0
      %6271 = vmatprep.subr.bf16.mxu0 0
      %6272 = vmatpush1.bf16.msra.mxu0 0
      %6273 = vmatprep.subr.bf16.mxu0 0
      %6274 = vmatpush1.bf16.msra.mxu0 0
      %6275 = vmatprep.subr.bf16.mxu0 0
      %6276 = vmatpush1.bf16.msra.mxu0 0
      %6277 = vmatprep.subr.bf16.mxu0 0
      %6278 = vmatpush1.bf16.msra.mxu0 0
      %6279 = vmatprep.subr.bf16.mxu0 0
      %6280 = vmatpush1.bf16.msra.mxu0 0
      %6281 = vmatprep.subr.bf16.mxu0 0
      %6282 = vmatpush1.bf16.msra.mxu0 0
      %6283 = vmatprep.mubr.bf16.mxu0 0
      %6284 = vmatmul.mubr.bf16.gmra.mrb[0].mxu0 %v6246
      %v6285 = vpop.f32.mrb[0].mxu0
      %v6286 = vadd.f32 0.0, %v6285
      %v6287 = vpop.f32.mrb[0].mxu0
      %v6288 = vpop.f32.mrb[0].mxu0
      %v6289 = vpop.f32.mrb[0].mxu0
      %6290 = vdwg.mxu0
      %6291 = vrot.lane.b32.xlu0 %v4712, 64
      %v6292 = vpop.permute.xlu0 %6291
      %v6294 = vsel %vm2382, %v5711, 0
      %v6297 = vsel %vm2580, %v6292, 0
      %6299 = vmatprep.subr.bf16.mxu0 0
      %6300 = vmatpush1.bf16.msra.mxu0 %v6297
      %6301 = vmatprep.subr.bf16.mxu0 0
      %6302 = vmatpush1.bf16.msra.mxu0 0
      %6303 = vmatprep.subr.bf16.mxu0 0
      %6304 = vmatpush1.bf16.msra.mxu0 0
      %6305 = vmatprep.subr.bf16.mxu0 0
      %6306 = vmatpush1.bf16.msra.mxu0 0
      %6307 = vmatprep.subr.bf16.mxu0 0
      %6308 = vmatpush1.bf16.msra.mxu0 0
      %6309 = vmatprep.subr.bf16.mxu0 0
      %6310 = vmatpush1.bf16.msra.mxu0 0
      %6311 = vmatprep.subr.bf16.mxu0 0
      %6312 = vmatpush1.bf16.msra.mxu0 0
      %6313 = vmatprep.subr.bf16.mxu0 0
      %6314 = vmatpush1.bf16.msra.mxu0 0
      %6315 = vmatprep.subr.bf16.mxu0 0
      %6316 = vmatpush1.bf16.msra.mxu0 0
      %6317 = vmatprep.subr.bf16.mxu0 0
      %6318 = vmatpush1.bf16.msra.mxu0 0
      %6319 = vmatprep.subr.bf16.mxu0 0
      %6320 = vmatpush1.bf16.msra.mxu0 0
      %6321 = vmatprep.subr.bf16.mxu0 0
      %6322 = vmatpush1.bf16.msra.mxu0 0
      %6323 = vmatprep.subr.bf16.mxu0 0
      %6324 = vmatpush1.bf16.msra.mxu0 0
      %6325 = vmatprep.subr.bf16.mxu0 0
      %6326 = vmatpush1.bf16.msra.mxu0 0
      %6327 = vmatprep.subr.bf16.mxu0 0
      %6328 = vmatpush1.bf16.msra.mxu0 0
      %6329 = vmatprep.subr.bf16.mxu0 0
      %6330 = vmatpush1.bf16.msra.mxu0 0
      %6331 = vmatprep.mubr.bf16.mxu0 0
      %6332 = vmatmul.mubr.bf16.gmra.mrb[0].mxu0 %v6294
      %v6333 = vpop.f32.mrb[0].mxu0
      %v6334 = vadd.f32 0.0, %v6333
      %v6335 = vpop.f32.mrb[0].mxu0
      %v6336 = vpop.f32.mrb[0].mxu0
      %v6337 = vpop.f32.mrb[0].mxu0
      %6338 = vdwg.mxu0
      %6339 = vrot.lane.b32.xlu0 %v4713, 64
      %v6340 = vpop.permute.xlu0 %6339
      %v6342 = vsel %vm2382, %v5712, 0
      %v6345 = vsel %vm2580, %v6340, 0
      %6347 = vmatprep.subr.bf16.mxu0 0
      %6348 = vmatpush1.bf16.msra.mxu0 %v6345
      %6349 = vmatprep.subr.bf16.mxu0 0
      %6350 = vmatpush1.bf16.msra.mxu0 0
      %6351 = vmatprep.subr.bf16.mxu0 0
      %6352 = vmatpush1.bf16.msra.mxu0 0
      %6353 = vmatprep.subr.bf16.mxu0 0
      %6354 = vmatpush1.bf16.msra.mxu0 0
      %6355 = vmatprep.subr.bf16.mxu0 0
      %6356 = vmatpush1.bf16.msra.mxu0 0
      %6357 = vmatprep.subr.bf16.mxu0 0
      %6358 = vmatpush1.bf16.msra.mxu0 0
      %6359 = vmatprep.subr.bf16.mxu0 0
      %6360 = vmatpush1.bf16.msra.mxu0 0
      %6361 = vmatprep.subr.bf16.mxu0 0
      %6362 = vmatpush1.bf16.msra.mxu0 0
      %6363 = vmatprep.subr.bf16.mxu0 0
      %6364 = vmatpush1.bf16.msra.mxu0 0
      %6365 = vmatprep.subr.bf16.mxu0 0
      %6366 = vmatpush1.bf16.msra.mxu0 0
      %6367 = vmatprep.subr.bf16.mxu0 0
      %6368 = vmatpush1.bf16.msra.mxu0 0
      %6369 = vmatprep.subr.bf16.mxu0 0
      %6370 = vmatpush1.bf16.msra.mxu0 0
      %6371 = vmatprep.subr.bf16.mxu0 0
      %6372 = vmatpush1.bf16.msra.mxu0 0
      %6373 = vmatprep.subr.bf16.mxu0 0
      %6374 = vmatpush1.bf16.msra.mxu0 0
      %6375 = vmatprep.subr.bf16.mxu0 0
      %6376 = vmatpush1.bf16.msra.mxu0 0
      %6377 = vmatprep.subr.bf16.mxu0 0
      %6378 = vmatpush1.bf16.msra.mxu0 0
      %6379 = vmatprep.mubr.bf16.mxu0 0
      %6380 = vmatmul.mubr.bf16.gmra.mrb[0].mxu0 %v6342
      %v6381 = vpop.f32.mrb[0].mxu0
      %v6382 = vadd.f32 0.0, %v6381
      %v6383 = vpop.f32.mrb[0].mxu0
      %v6384 = vpop.f32.mrb[0].mxu0
      %v6385 = vpop.f32.mrb[0].mxu0
      %6386 = vdwg.mxu0
      %6387 = vrot.lane.b32.xlu0 %v4714, 64
      %v6388 = vpop.permute.xlu0 %6387
      %v6390 = vsel %vm2382, %v5713, 0
      %v6393 = vsel %vm2580, %v6388, 0
      %6395 = vmatprep.subr.bf16.mxu0 0
      %6396 = vmatpush1.bf16.msra.mxu0 %v6393
      %6397 = vmatprep.subr.bf16.mxu0 0
      %6398 = vmatpush1.bf16.msra.mxu0 0
      %6399 = vmatprep.subr.bf16.mxu0 0
      %6400 = vmatpush1.bf16.msra.mxu0 0
      %6401 = vmatprep.subr.bf16.mxu0 0
      %6402 = vmatpush1.bf16.msra.mxu0 0
      %6403 = vmatprep.subr.bf16.mxu0 0
      %6404 = vmatpush1.bf16.msra.mxu0 0
      %6405 = vmatprep.subr.bf16.mxu0 0
      %6406 = vmatpush1.bf16.msra.mxu0 0
      %6407 = vmatprep.subr.bf16.mxu0 0
      %6408 = vmatpush1.bf16.msra.mxu0 0
      %6409 = vmatprep.subr.bf16.mxu0 0
      %6410 = vmatpush1.bf16.msra.mxu0 0
      %6411 = vmatprep.subr.bf16.mxu0 0
      %6412 = vmatpush1.bf16.msra.mxu0 0
      %6413 = vmatprep.subr.bf16.mxu0 0
      %6414 = vmatpush1.bf16.msra.mxu0 0
      %6415 = vmatprep.subr.bf16.mxu0 0
      %6416 = vmatpush1.bf16.msra.mxu0 0
      %6417 = vmatprep.subr.bf16.mxu0 0
      %6418 = vmatpush1.bf16.msra.mxu0 0
      %6419 = vmatprep.subr.bf16.mxu0 0
      %6420 = vmatpush1.bf16.msra.mxu0 0
      %6421 = vmatprep.subr.bf16.mxu0 0
      %6422 = vmatpush1.bf16.msra.mxu0 0
      %6423 = vmatprep.subr.bf16.mxu0 0
      %6424 = vmatpush1.bf16.msra.mxu0 0
      %6425 = vmatprep.subr.bf16.mxu0 0
      %6426 = vmatpush1.bf16.msra.mxu0 0
      %6427 = vmatprep.mubr.bf16.mxu0 0
      %6428 = vmatmul.mubr.bf16.gmra.mrb[0].mxu0 %v6390
      %v6429 = vpop.f32.mrb[0].mxu0
      %v6430 = vadd.f32 0.0, %v6429
      %v6431 = vpop.f32.mrb[0].mxu0
      %v6432 = vpop.f32.mrb[0].mxu0
      %v6433 = vpop.f32.mrb[0].mxu0
      %6434 = vdwg.mxu0
      %6435 = vrot.lane.b32.xlu0 %v4715, 64
      %v6436 = vpop.permute.xlu0 %6435
      %v6438 = vsel %vm2382, %v5714, 0
      %v6441 = vsel %vm2580, %v6436, 0
      %6443 = vmatprep.subr.bf16.mxu0 0
      %6444 = vmatpush1.bf16.msra.mxu0 %v6441
      %6445 = vmatprep.subr.bf16.mxu0 0
      %6446 = vmatpush1.bf16.msra.mxu0 0
      %6447 = vmatprep.subr.bf16.mxu0 0
      %6448 = vmatpush1.bf16.msra.mxu0 0
      %6449 = vmatprep.subr.bf16.mxu0 0
      %6450 = vmatpush1.bf16.msra.mxu0 0
      %6451 = vmatprep.subr.bf16.mxu0 0
      %6452 = vmatpush1.bf16.msra.mxu0 0
      %6453 = vmatprep.subr.bf16.mxu0 0
      %6454 = vmatpush1.bf16.msra.mxu0 0
      %6455 = vmatprep.subr.bf16.mxu0 0
      %6456 = vmatpush1.bf16.msra.mxu0 0
      %6457 = vmatprep.subr.bf16.mxu0 0
      %6458 = vmatpush1.bf16.msra.mxu0 0
      %6459 = vmatprep.subr.bf16.mxu0 0
      %6460 = vmatpush1.bf16.msra.mxu0 0
      %6461 = vmatprep.subr.bf16.mxu0 0
      %6462 = vmatpush1.bf16.msra.mxu0 0
      %6463 = vmatprep.subr.bf16.mxu0 0
      %6464 = vmatpush1.bf16.msra.mxu0 0
      %6465 = vmatprep.subr.bf16.mxu0 0
      %6466 = vmatpush1.bf16.msra.mxu0 0
      %6467 = vmatprep.subr.bf16.mxu0 0
      %6468 = vmatpush1.bf16.msra.mxu0 0
      %6469 = vmatprep.subr.bf16.mxu0 0
      %6470 = vmatpush1.bf16.msra.mxu0 0
      %6471 = vmatprep.subr.bf16.mxu0 0
      %6472 = vmatpush1.bf16.msra.mxu0 0
      %6473 = vmatprep.subr.bf16.mxu0 0
      %6474 = vmatpush1.bf16.msra.mxu0 0
      %6475 = vmatprep.mubr.bf16.mxu0 0
      %6476 = vmatmul.mubr.bf16.gmra.mrb[0].mxu0 %v6438
      %v6477 = vpop.f32.mrb[0].mxu0
      %v6478 = vadd.f32 0.0, %v6477
      %v6479 = vpop.f32.mrb[0].mxu0
      %v6480 = vpop.f32.mrb[0].mxu0
      %v6481 = vpop.f32.mrb[0].mxu0
      %6482 = vdwg.mxu0
      %v6483 = vpack.c.bf16 %v5806, %v5758
      %v6484 = vpack.c.bf16 %v5902, %v5854
      %v6485 = vpack.c.bf16 %v5998, %v5950
      %v6486 = vpack.c.bf16 %v6094, %v6046
      %v6487 = vpack.c.bf16 %v6190, %v6142
      %v6488 = vpack.c.bf16 %v6286, %v6238
      %v6489 = vpack.c.bf16 %v6382, %v6334
      %v6490 = vpack.c.bf16 %v6478, %v6430
      %v6491 = vld [vmem:[%s41] sm:$0xf]
      %v6492 = vld [vmem:[%s41 + $0x4] sm:$0xf]
      %v6493 = vld [vmem:[%s41 + $0x8] sm:$0xf]
      %v6494 = vld [vmem:[%s41 + $0xc] sm:$0xf]
      %v6495 = vld [vmem:[%s43] sm:$0x1]
      %v6497 = vlaneseq
      %v6498 = vshrl.u32 %v6497, 7
      %v6499 = vsub.s32 0, %v6498
      %v6500 = vrot.slane %v6495, %v6499
      %v6506 = vunpack.c.l.b16 %v6491
      %v6507 = vunpack.c.l.b16 %v6492
      %v6508 = vunpack.c.l.b16 %v6493
      %v6509 = vunpack.c.l.b16 %v6494
      %v6510 = vpack.c.b16 %v6507, %v6506
      %v6511 = vpack.c.b16 %v6509, %v6508
      %v6515 = vsel %vm1428, %v6483, 0
      %v6518 = vsel %vm1428, %v6484, 0
      %v6521 = vsel %vm1428, %v6485, 0
      %v6524 = vsel %vm1428, %v6486, 0
      %v6527 = vsel %vm1428, %v6487, 0
      %v6530 = vsel %vm1428, %v6488, 0
      %v6533 = vsel %vm1428, %v6489, 0
      %v6536 = vsel %vm1428, %v6490, 0
      %6538 = vmatprep.subr.bf16.mxu0 0
      %6539 = vmatpush1.bf16.msra.mxu0 %v6510
      %6540 = vmatprep.subr.bf16.mxu0 0
      %6541 = vmatpush1.bf16.msra.mxu0 %v6511
      %6542 = vmatprep.subr.bf16.mxu0 0
      %6543 = vmatpush1.bf16.msra.mxu0 0
      %6544 = vmatprep.subr.bf16.mxu0 0
      %6545 = vmatpush1.bf16.msra.mxu0 0
      %6546 = vmatprep.subr.bf16.mxu0 0
      %6547 = vmatpush1.bf16.msra.mxu0 0
      %6548 = vmatprep.subr.bf16.mxu0 0
      %6549 = vmatpush1.bf16.msra.mxu0 0
      %6550 = vmatprep.subr.bf16.mxu0 0
      %6551 = vmatpush1.bf16.msra.mxu0 0
      %6552 = vmatprep.subr.bf16.mxu0 0
      %6553 = vmatpush1.bf16.msra.mxu0 0
      %6554 = vmatprep.subr.bf16.mxu0 0
      %6555 = vmatpush1.bf16.msra.mxu0 0
      %6556 = vmatprep.subr.bf16.mxu0 0
      %6557 = vmatpush1.bf16.msra.mxu0 0
      %6558 = vmatprep.subr.bf16.mxu0 0
      %6559 = vmatpush1.bf16.msra.mxu0 0
      %6560 = vmatprep.subr.bf16.mxu0 0
      %6561 = vmatpush1.bf16.msra.mxu0 0
      %6562 = vmatprep.subr.bf16.mxu0 0
      %6563 = vmatpush1.bf16.msra.mxu0 0
      %6564 = vmatprep.subr.bf16.mxu0 0
      %6565 = vmatpush1.bf16.msra.mxu0 0
      %6566 = vmatprep.subr.bf16.mxu0 0
      %6567 = vmatpush1.bf16.msra.mxu0 0
      %6568 = vmatprep.subr.bf16.mxu0 0
      %6569 = vmatpush1.bf16.msra.mxu0 0
      %6570 = vmatprep.mubr.bf16.mxu0 0
      %6571 = vmatmul.mubr.bf16.gmra.mrb[0].mxu0 %v6515
      %v6572 = vpop.f32.mrb[0].mxu0
      %v6573 = vadd.f32 %v6500, %v6572
      %v6574 = vpop.f32.mrb[0].mxu0
      %v6575 = vpop.f32.mrb[0].mxu0
      %v6576 = vadd.f32 %v6500, %v6575
      %v6577 = vpop.f32.mrb[0].mxu0
      %6578 = vmatprep.mubr.bf16.mxu0 0
      %6579 = vmatmul.mubr.bf16.gmra.mrb[0].mxu0 %v6518
      %v6580 = vpop.f32.mrb[0].mxu0
      %v6581 = vadd.f32 %v6500, %v6580
      %v6582 = vpop.f32.mrb[0].mxu0
      %v6583 = vpop.f32.mrb[0].mxu0
      %v6584 = vadd.f32 %v6500, %v6583
      %v6585 = vpop.f32.mrb[0].mxu0
      %6586 = vmatprep.mubr.bf16.mxu0 0
      %6587 = vmatmul.mubr.bf16.gmra.mrb[0].mxu0 %v6521
      %v6588 = vpop.f32.mrb[0].mxu0
      %v6589 = vadd.f32 %v6500, %v6588
      %v6590 = vpop.f32.mrb[0].mxu0
      %v6591 = vpop.f32.mrb[0].mxu0
      %v6592 = vadd.f32 %v6500, %v6591
      %v6593 = vpop.f32.mrb[0].mxu0
      %6594 = vmatprep.mubr.bf16.mxu0 0
      %6595 = vmatmul.mubr.bf16.gmra.mrb[0].mxu0 %v6524
      %v6596 = vpop.f32.mrb[0].mxu0
      %v6597 = vadd.f32 %v6500, %v6596
      %v6598 = vpop.f32.mrb[0].mxu0
      %v6599 = vpop.f32.mrb[0].mxu0
      %v6600 = vadd.f32 %v6500, %v6599
      %v6601 = vpop.f32.mrb[0].mxu0
      %6602 = vmatprep.mubr.bf16.mxu0 0
      %6603 = vmatmul.mubr.bf16.gmra.mrb[0].mxu0 %v6527
      %v6604 = vpop.f32.mrb[0].mxu0
      %v6605 = vadd.f32 %v6500, %v6604
      %v6606 = vpop.f32.mrb[0].mxu0
      %v6607 = vpop.f32.mrb[0].mxu0
      %v6608 = vadd.f32 %v6500, %v6607
      %v6609 = vpop.f32.mrb[0].mxu0
      %6610 = vmatprep.mubr.bf16.mxu0 0
      %6611 = vmatmul.mubr.bf16.gmra.mrb[0].mxu0 %v6530
      %v6612 = vpop.f32.mrb[0].mxu0
      %v6613 = vadd.f32 %v6500, %v6612
      %v6614 = vpop.f32.mrb[0].mxu0
      %v6615 = vpop.f32.mrb[0].mxu0
      %v6616 = vadd.f32 %v6500, %v6615
      %v6617 = vpop.f32.mrb[0].mxu0
      %6618 = vmatprep.mubr.bf16.mxu0 0
      %6619 = vmatmul.mubr.bf16.gmra.mrb[0].mxu0 %v6533
      %v6620 = vpop.f32.mrb[0].mxu0
      %v6621 = vadd.f32 %v6500, %v6620
      %v6622 = vpop.f32.mrb[0].mxu0
      %v6623 = vpop.f32.mrb[0].mxu0
      %v6624 = vadd.f32 %v6500, %v6623
      %v6625 = vpop.f32.mrb[0].mxu0
      %6626 = vmatprep.mubr.bf16.mxu0 0
      %6627 = vmatmul.mubr.bf16.gmra.mrb[0].mxu0 %v6536
      %v6628 = vpop.f32.mrb[0].mxu0
      %v6629 = vadd.f32 %v6500, %v6628
      %v6630 = vpop.f32.mrb[0].mxu0
      %v6631 = vpop.f32.mrb[0].mxu0
      %v6632 = vadd.f32 %v6500, %v6631
      %v6633 = vpop.f32.mrb[0].mxu0
      %6634 = vdwg.mxu0
      %v6635 = vadd.f32 %v4500, %v6573
      %v6636 = vadd.f32 %v4501, %v6576
      %v6637 = vadd.f32 %v4502, %v6581
      %v6638 = vadd.f32 %v4503, %v6584
      %v6639 = vadd.f32 %v4504, %v6589
      %v6640 = vadd.f32 %v4505, %v6592
      %v6641 = vadd.f32 %v4506, %v6597
      %v6642 = vadd.f32 %v4507, %v6600
      %v6643 = vadd.f32 %v4508, %v6605
      %v6644 = vadd.f32 %v4509, %v6608
      %v6645 = vadd.f32 %v4510, %v6613
      %v6646 = vadd.f32 %v4511, %v6616
      %v6647 = vadd.f32 %v4512, %v6621
      %v6648 = vadd.f32 %v4513, %v6624
      %v6649 = vadd.f32 %v4514, %v6629
      %v6650 = vadd.f32 %v4515, %v6632
      %v6651 = vsel %vm1428, %v6635, 0.0
      %6652 = vadd.xlane.f32.xlu0 %v6651
      %v6653 = vpop.xlane.xlu0 %6652
      %v6654 = vsel %vm1428, %v6636, 0.0
      %6655 = vadd.xlane.f32.xlu0 %v6654
      %v6656 = vpop.xlane.xlu0 %6655
      %v6657 = vsel %vm1428, %v6637, 0.0
      %6658 = vadd.xlane.f32.xlu0 %v6657
      %v6659 = vpop.xlane.xlu0 %6658
      %v6660 = vsel %vm1428, %v6638, 0.0
      %6661 = vadd.xlane.f32.xlu0 %v6660
      %v6662 = vpop.xlane.xlu0 %6661
      %v6663 = vsel %vm1428, %v6639, 0.0
      %6664 = vadd.xlane.f32.xlu0 %v6663
      %v6665 = vpop.xlane.xlu0 %6664
      %v6666 = vsel %vm1428, %v6640, 0.0
      %6667 = vadd.xlane.f32.xlu0 %v6666
      %v6668 = vpop.xlane.xlu0 %6667
      %v6669 = vsel %vm1428, %v6641, 0.0
      %6670 = vadd.xlane.f32.xlu0 %v6669
      %v6671 = vpop.xlane.xlu0 %6670
      %v6672 = vsel %vm1428, %v6642, 0.0
      %6673 = vadd.xlane.f32.xlu0 %v6672
      %v6674 = vpop.xlane.xlu0 %6673
      %v6675 = vsel %vm1428, %v6643, 0.0
      %6676 = vadd.xlane.f32.xlu0 %v6675
      %v6677 = vpop.xlane.xlu0 %6676
      %v6678 = vsel %vm1428, %v6644, 0.0
      %6679 = vadd.xlane.f32.xlu0 %v6678
      %v6680 = vpop.xlane.xlu0 %6679
      %v6681 = vsel %vm1428, %v6645, 0.0
      %6682 = vadd.xlane.f32.xlu0 %v6681
      %v6683 = vpop.xlane.xlu0 %6682
      %v6684 = vsel %vm1428, %v6646, 0.0
      %6685 = vadd.xlane.f32.xlu0 %v6684
      %v6686 = vpop.xlane.xlu0 %6685
      %v6687 = vsel %vm1428, %v6647, 0.0
      %6688 = vadd.xlane.f32.xlu0 %v6687
      %v6689 = vpop.xlane.xlu0 %6688
      %v6690 = vsel %vm1428, %v6648, 0.0
      %6691 = vadd.xlane.f32.xlu0 %v6690
      %v6692 = vpop.xlane.xlu0 %6691
      %v6693 = vsel %vm1428, %v6649, 0.0
      %6694 = vadd.xlane.f32.xlu0 %v6693
      %v6695 = vpop.xlane.xlu0 %6694
      %v6696 = vsel %vm1428, %v6650, 0.0
      %6697 = vadd.xlane.f32.xlu0 %v6696
      %v6698 = vpop.xlane.xlu0 %6697
      %v6699 = vmul.f32 %v6653, %v3560
      %v6700 = vmul.f32 %v6656, %v3560
      %v6701 = vmul.f32 %v6659, %v3560
      %v6702 = vmul.f32 %v6662, %v3560
      %v6703 = vmul.f32 %v6665, %v3560
      %v6704 = vmul.f32 %v6668, %v3560
      %v6705 = vmul.f32 %v6671, %v3560
      %v6706 = vmul.f32 %v6674, %v3560
      %v6707 = vmul.f32 %v6677, %v3560
      %v6708 = vmul.f32 %v6680, %v3560
      %v6709 = vmul.f32 %v6683, %v3560
      %v6710 = vmul.f32 %v6686, %v3560
      %v6711 = vmul.f32 %v6689, %v3560
      %v6712 = vmul.f32 %v6692, %v3560
      %v6713 = vmul.f32 %v6695, %v3560
      %v6714 = vmul.f32 %v6698, %v3560
      %v6715 = vsub.f32 %v6635, %v6699
      %v6716 = vsub.f32 %v6636, %v6700
      %v6717 = vsub.f32 %v6637, %v6701
      %v6718 = vsub.f32 %v6638, %v6702
      %v6719 = vsub.f32 %v6639, %v6703
      %v6720 = vsub.f32 %v6640, %v6704
      %v6721 = vsub.f32 %v6641, %v6705
      %v6722 = vsub.f32 %v6642, %v6706
      %v6723 = vsub.f32 %v6643, %v6707
      %v6724 = vsub.f32 %v6644, %v6708
      %v6725 = vsub.f32 %v6645, %v6709
      %v6726 = vsub.f32 %v6646, %v6710
      %v6727 = vsub.f32 %v6647, %v6711
      %v6728 = vsub.f32 %v6648, %v6712
      %v6729 = vsub.f32 %v6649, %v6713
      %v6730 = vsub.f32 %v6650, %v6714
      %v6731 = vmul.f32 %v6715, %v6715
      %v6732 = vmul.f32 %v6716, %v6716
      %v6733 = vmul.f32 %v6717, %v6717
      %v6734 = vmul.f32 %v6718, %v6718
      %v6735 = vmul.f32 %v6719, %v6719
      %v6736 = vmul.f32 %v6720, %v6720
      %v6737 = vmul.f32 %v6721, %v6721
      %v6738 = vmul.f32 %v6722, %v6722
      %v6739 = vmul.f32 %v6723, %v6723
      %v6740 = vmul.f32 %v6724, %v6724
      %v6741 = vmul.f32 %v6725, %v6725
      %v6742 = vmul.f32 %v6726, %v6726
      %v6743 = vmul.f32 %v6727, %v6727
      %v6744 = vmul.f32 %v6728, %v6728
      %v6745 = vmul.f32 %v6729, %v6729
      %v6746 = vmul.f32 %v6730, %v6730
      %v6747 = vsel %vm1428, %v6731, 0.0
      %6748 = vadd.xlane.f32.xlu0 %v6747
      %v6749 = vpop.xlane.xlu0 %6748
      %v6750 = vsel %vm1428, %v6732, 0.0
      %6751 = vadd.xlane.f32.xlu0 %v6750
      %v6752 = vpop.xlane.xlu0 %6751
      %v6753 = vsel %vm1428, %v6733, 0.0
      %6754 = vadd.xlane.f32.xlu0 %v6753
      %v6755 = vpop.xlane.xlu0 %6754
      %v6756 = vsel %vm1428, %v6734, 0.0
      %6757 = vadd.xlane.f32.xlu0 %v6756
      %v6758 = vpop.xlane.xlu0 %6757
      %v6759 = vsel %vm1428, %v6735, 0.0
      %6760 = vadd.xlane.f32.xlu0 %v6759
      %v6761 = vpop.xlane.xlu0 %6760
      %v6762 = vsel %vm1428, %v6736, 0.0
      %6763 = vadd.xlane.f32.xlu0 %v6762
      %v6764 = vpop.xlane.xlu0 %6763
      %v6765 = vsel %vm1428, %v6737, 0.0
      %6766 = vadd.xlane.f32.xlu0 %v6765
      %v6767 = vpop.xlane.xlu0 %6766
      %v6768 = vsel %vm1428, %v6738, 0.0
      %6769 = vadd.xlane.f32.xlu0 %v6768
      %v6770 = vpop.xlane.xlu0 %6769
      %v6771 = vsel %vm1428, %v6739, 0.0
      %6772 = vadd.xlane.f32.xlu0 %v6771
      %v6773 = vpop.xlane.xlu0 %6772
      %v6774 = vsel %vm1428, %v6740, 0.0
      %6775 = vadd.xlane.f32.xlu0 %v6774
      %v6776 = vpop.xlane.xlu0 %6775
      %v6777 = vsel %vm1428, %v6741, 0.0
      %6778 = vadd.xlane.f32.xlu0 %v6777
      %v6779 = vpop.xlane.xlu0 %6778
      %v6780 = vsel %vm1428, %v6742, 0.0
      %6781 = vadd.xlane.f32.xlu0 %v6780
      %v6782 = vpop.xlane.xlu0 %6781
      %v6783 = vsel %vm1428, %v6743, 0.0
      %6784 = vadd.xlane.f32.xlu0 %v6783
      %v6785 = vpop.xlane.xlu0 %6784
      %v6786 = vsel %vm1428, %v6744, 0.0
      %6787 = vadd.xlane.f32.xlu0 %v6786
      %v6788 = vpop.xlane.xlu0 %6787
      %v6789 = vsel %vm1428, %v6745, 0.0
      %6790 = vadd.xlane.f32.xlu0 %v6789
      %v6791 = vpop.xlane.xlu0 %6790
      %v6792 = vsel %vm1428, %v6746, 0.0
      %6793 = vadd.xlane.f32.xlu0 %v6792
      %v6794 = vpop.xlane.xlu0 %6793
      %v6795 = vmul.f32 %v6749, %v3560
      %v6796 = vmul.f32 %v6752, %v3560
      %v6797 = vmul.f32 %v6755, %v3560
      %v6798 = vmul.f32 %v6758, %v3560
      %v6799 = vmul.f32 %v6761, %v3560
      %v6800 = vmul.f32 %v6764, %v3560
      %v6801 = vmul.f32 %v6767, %v3560
      %v6802 = vmul.f32 %v6770, %v3560
      %v6803 = vmul.f32 %v6773, %v3560
      %v6804 = vmul.f32 %v6776, %v3560
      %v6805 = vmul.f32 %v6779, %v3560
      %v6806 = vmul.f32 %v6782, %v3560
      %v6807 = vmul.f32 %v6785, %v3560
      %v6808 = vmul.f32 %v6788, %v3560
      %v6809 = vmul.f32 %v6791, %v3560
      %v6810 = vmul.f32 %v6794, %v3560
      %v6811 = vadd.f32 %v6795, 1e-05
      %v6812 = vadd.f32 %v6796, 1e-05
      %v6813 = vadd.f32 %v6797, 1e-05
      %v6814 = vadd.f32 %v6798, 1e-05
      %v6815 = vadd.f32 %v6799, 1e-05
      %v6816 = vadd.f32 %v6800, 1e-05
      %v6817 = vadd.f32 %v6801, 1e-05
      %v6818 = vadd.f32 %v6802, 1e-05
      %v6819 = vadd.f32 %v6803, 1e-05
      %v6820 = vadd.f32 %v6804, 1e-05
      %v6821 = vadd.f32 %v6805, 1e-05
      %v6822 = vadd.f32 %v6806, 1e-05
      %v6823 = vadd.f32 %v6807, 1e-05
      %v6824 = vadd.f32 %v6808, 1e-05
      %v6825 = vadd.f32 %v6809, 1e-05
      %v6826 = vadd.f32 %v6810, 1e-05
      %v6827 = vrsqrt.pop %v6811
      %v6828 = vrsqrt.pop %v6812
      %v6829 = vrsqrt.pop %v6813
      %v6830 = vrsqrt.pop %v6814
      %v6831 = vrsqrt.pop %v6815
      %v6832 = vrsqrt.pop %v6816
      %v6833 = vrsqrt.pop %v6817
      %v6834 = vrsqrt.pop %v6818
      %v6835 = vrsqrt.pop %v6819
      %v6836 = vrsqrt.pop %v6820
      %v6837 = vrsqrt.pop %v6821
      %v6838 = vrsqrt.pop %v6822
      %v6839 = vrsqrt.pop %v6823
      %v6840 = vrsqrt.pop %v6824
      %v6841 = vrsqrt.pop %v6825
      %v6842 = vrsqrt.pop %v6826
      %v6843 = vmul.f32 %v6715, %v6827
      %v6844 = vmul.f32 %v6716, %v6828
      %v6845 = vmul.f32 %v6717, %v6829
      %v6846 = vmul.f32 %v6718, %v6830
      %v6847 = vmul.f32 %v6719, %v6831
      %v6848 = vmul.f32 %v6720, %v6832
      %v6849 = vmul.f32 %v6721, %v6833
      %v6850 = vmul.f32 %v6722, %v6834
      %v6851 = vmul.f32 %v6723, %v6835
      %v6852 = vmul.f32 %v6724, %v6836
      %v6853 = vmul.f32 %v6725, %v6837
      %v6854 = vmul.f32 %v6726, %v6838
      %v6855 = vmul.f32 %v6727, %v6839
      %v6856 = vmul.f32 %v6728, %v6840
      %v6857 = vmul.f32 %v6729, %v6841
      %v6858 = vmul.f32 %v6730, %v6842
      %v6859 = vld [vmem:[%s45] sm:$0x1]
      %v6861 = vlaneseq
      %v6862 = vshrl.u32 %v6861, 7
      %v6863 = vsub.s32 0, %v6862
      %v6864 = vrot.slane %v6859, %v6863
      %v6866 = vmul.f32 %v6843, %v6864
      %v6867 = vmul.f32 %v6844, %v6864
      %v6868 = vmul.f32 %v6845, %v6864
      %v6869 = vmul.f32 %v6846, %v6864
      %v6870 = vmul.f32 %v6847, %v6864
      %v6871 = vmul.f32 %v6848, %v6864
      %v6872 = vmul.f32 %v6849, %v6864
      %v6873 = vmul.f32 %v6850, %v6864
      %v6874 = vmul.f32 %v6851, %v6864
      %v6875 = vmul.f32 %v6852, %v6864
      %v6876 = vmul.f32 %v6853, %v6864
      %v6877 = vmul.f32 %v6854, %v6864
      %v6878 = vmul.f32 %v6855, %v6864
      %v6879 = vmul.f32 %v6856, %v6864
      %v6880 = vmul.f32 %v6857, %v6864
      %v6881 = vmul.f32 %v6858, %v6864
      %v6882 = vld [vmem:[%s47] sm:$0x1]
      %v6884 = vlaneseq
      %v6885 = vshrl.u32 %v6884, 7
      %v6886 = vsub.s32 0, %v6885
      %v6887 = vrot.slane %v6882, %v6886
      %v6889 = vadd.f32 %v6866, %v6887
      %v6890 = vadd.f32 %v6867, %v6887
      %v6891 = vadd.f32 %v6868, %v6887
      %v6892 = vadd.f32 %v6869, %v6887
      %v6893 = vadd.f32 %v6870, %v6887
      %v6894 = vadd.f32 %v6871, %v6887
      %v6895 = vadd.f32 %v6872, %v6887
      %v6896 = vadd.f32 %v6873, %v6887
      %v6897 = vadd.f32 %v6874, %v6887
      %v6898 = vadd.f32 %v6875, %v6887
      %v6899 = vadd.f32 %v6876, %v6887
      %v6900 = vadd.f32 %v6877, %v6887
      %v6901 = vadd.f32 %v6878, %v6887
      %v6902 = vadd.f32 %v6879, %v6887
      %v6903 = vadd.f32 %v6880, %v6887
      %v6904 = vadd.f32 %v6881, %v6887
      %v6905 = vpack.c.bf16 %v6890, %v6889
      %v6906 = vpack.c.bf16 %v6892, %v6891
      %v6907 = vpack.c.bf16 %v6894, %v6893
      %v6908 = vpack.c.bf16 %v6896, %v6895
      %v6909 = vpack.c.bf16 %v6898, %v6897
      %v6910 = vpack.c.bf16 %v6900, %v6899
      %v6911 = vpack.c.bf16 %v6902, %v6901
      %v6912 = vpack.c.bf16 %v6904, %v6903
      %v6913 = vld [vmem:[%s49] sm:$0xf]
      %v6914 = vld [vmem:[%s49 + $0x4] sm:$0xf]
      %v6915 = vld [vmem:[%s49 + $0x8] sm:$0xf]
      %v6916 = vld [vmem:[%s49 + $0xc] sm:$0xf]
      %v6917 = vld [vmem:[%s51] sm:$0x1]
      %v6919 = vlaneseq
      %v6920 = vshrl.u32 %v6919, 7
      %v6921 = vsub.s32 0, %v6920
      %v6922 = vrot.slane %v6917, %v6921
      %v6928 = vunpack.c.l.b16 %v6913
      %v6929 = vunpack.c.l.b16 %v6914
      %v6930 = vunpack.c.l.b16 %v6915
      %v6931 = vunpack.c.l.b16 %v6916
      %v6932 = vpack.c.b16 %v6929, %v6928
      %v6933 = vpack.c.b16 %v6931, %v6930
      %v6937 = vsel %vm1428, %v6905, 0
      %v6940 = vsel %vm1428, %v6906, 0
      %v6943 = vsel %vm1428, %v6907, 0
      %v6946 = vsel %vm1428, %v6908, 0
      %v6949 = vsel %vm1428, %v6909, 0
      %v6952 = vsel %vm1428, %v6910, 0
      %v6955 = vsel %vm1428, %v6911, 0
      %v6958 = vsel %vm1428, %v6912, 0
      %6960 = vmatprep.subr.bf16.mxu0 0
      %6961 = vmatpush1.bf16.msra.mxu0 %v6932
      %6962 = vmatprep.subr.bf16.mxu0 0
      %6963 = vmatpush1.bf16.msra.mxu0 %v6933
      %6964 = vmatprep.subr.bf16.mxu0 0
      %6965 = vmatpush1.bf16.msra.mxu0 0
      %6966 = vmatprep.subr.bf16.mxu0 0
      %6967 = vmatpush1.bf16.msra.mxu0 0
      %6968 = vmatprep.subr.bf16.mxu0 0
      %6969 = vmatpush1.bf16.msra.mxu0 0
      %6970 = vmatprep.subr.bf16.mxu0 0
      %6971 = vmatpush1.bf16.msra.mxu0 0
      %6972 = vmatprep.subr.bf16.mxu0 0
      %6973 = vmatpush1.bf16.msra.mxu0 0
      %6974 = vmatprep.subr.bf16.mxu0 0
      %6975 = vmatpush1.bf16.msra.mxu0 0
      %6976 = vmatprep.subr.bf16.mxu0 0
      %6977 = vmatpush1.bf16.msra.mxu0 0
      %6978 = vmatprep.subr.bf16.mxu0 0
      %6979 = vmatpush1.bf16.msra.mxu0 0
      %6980 = vmatprep.subr.bf16.mxu0 0
      %6981 = vmatpush1.bf16.msra.mxu0 0
      %6982 = vmatprep.subr.bf16.mxu0 0
      %6983 = vmatpush1.bf16.msra.mxu0 0
      %6984 = vmatprep.subr.bf16.mxu0 0
      %6985 = vmatpush1.bf16.msra.mxu0 0
      %6986 = vmatprep.subr.bf16.mxu0 0
      %6987 = vmatpush1.bf16.msra.mxu0 0
      %6988 = vmatprep.subr.bf16.mxu0 0
      %6989 = vmatpush1.bf16.msra.mxu0 0
      %6990 = vmatprep.subr.bf16.mxu0 0
      %6991 = vmatpush1.bf16.msra.mxu0 0
      %6992 = vmatprep.mubr.bf16.mxu0 0
      %6993 = vmatmul.mubr.bf16.gmra.mrb[0].mxu0 %v6937
      %v6994 = vpop.f32.mrb[0].mxu0
      %v6995 = vadd.f32 %v6922, %v6994
      %v6996 = vpop.f32.mrb[0].mxu0
      %v6997 = vpop.f32.mrb[0].mxu0
      %v6998 = vadd.f32 %v6922, %v6997
      %v6999 = vpop.f32.mrb[0].mxu0
      %7000 = vmatprep.mubr.bf16.mxu0 0
      %7001 = vmatmul.mubr.bf16.gmra.mrb[0].mxu0 %v6940
      %v7002 = vpop.f32.mrb[0].mxu0
      %v7003 = vadd.f32 %v6922, %v7002
      %v7004 = vpop.f32.mrb[0].mxu0
      %v7005 = vpop.f32.mrb[0].mxu0
      %v7006 = vadd.f32 %v6922, %v7005
      %v7007 = vpop.f32.mrb[0].mxu0
      %7008 = vmatprep.mubr.bf16.mxu0 0
      %7009 = vmatmul.mubr.bf16.gmra.mrb[0].mxu0 %v6943
      %v7010 = vpop.f32.mrb[0].mxu0
      %v7011 = vadd.f32 %v6922, %v7010
      %v7012 = vpop.f32.mrb[0].mxu0
      %v7013 = vpop.f32.mrb[0].mxu0
      %v7014 = vadd.f32 %v6922, %v7013
      %v7015 = vpop.f32.mrb[0].mxu0
      %7016 = vmatprep.mubr.bf16.mxu0 0
      %7017 = vmatmul.mubr.bf16.gmra.mrb[0].mxu0 %v6946
      %v7018 = vpop.f32.mrb[0].mxu0
      %v7019 = vadd.f32 %v6922, %v7018
      %v7020 = vpop.f32.mrb[0].mxu0
      %v7021 = vpop.f32.mrb[0].mxu0
      %v7022 = vadd.f32 %v6922, %v7021
      %v7023 = vpop.f32.mrb[0].mxu0
      %7024 = vmatprep.mubr.bf16.mxu0 0
      %7025 = vmatmul.mubr.bf16.gmra.mrb[0].mxu0 %v6949
      %v7026 = vpop.f32.mrb[0].mxu0
      %v7027 = vadd.f32 %v6922, %v7026
      %v7028 = vpop.f32.mrb[0].mxu0
      %v7029 = vpop.f32.mrb[0].mxu0
      %v7030 = vadd.f32 %v6922, %v7029
      %v7031 = vpop.f32.mrb[0].mxu0
      %7032 = vmatprep.mubr.bf16.mxu0 0
      %7033 = vmatmul.mubr.bf16.gmra.mrb[0].mxu0 %v6952
      %v7034 = vpop.f32.mrb[0].mxu0
      %v7035 = vadd.f32 %v6922, %v7034
      %v7036 = vpop.f32.mrb[0].mxu0
      %v7037 = vpop.f32.mrb[0].mxu0
      %v7038 = vadd.f32 %v6922, %v7037
      %v7039 = vpop.f32.mrb[0].mxu0
      %7040 = vmatprep.mubr.bf16.mxu0 0
      %7041 = vmatmul.mubr.bf16.gmra.mrb[0].mxu0 %v6955
      %v7042 = vpop.f32.mrb[0].mxu0
      %v7043 = vadd.f32 %v6922, %v7042
      %v7044 = vpop.f32.mrb[0].mxu0
      %v7045 = vpop.f32.mrb[0].mxu0
      %v7046 = vadd.f32 %v6922, %v7045
      %v7047 = vpop.f32.mrb[0].mxu0
      %7048 = vmatprep.mubr.bf16.mxu0 0
      %7049 = vmatmul.mubr.bf16.gmra.mrb[0].mxu0 %v6958
      %v7050 = vpop.f32.mrb[0].mxu0
      %v7051 = vadd.f32 %v6922, %v7050
      %v7052 = vpop.f32.mrb[0].mxu0
      %v7053 = vpop.f32.mrb[0].mxu0
      %v7054 = vadd.f32 %v6922, %v7053
      %v7055 = vpop.f32.mrb[0].mxu0
      %7056 = vdwg.mxu0
      %v7057 = vpack.c.bf16 %v4359, %v4358
      %v7058 = vpack.c.bf16 %v4361, %v4360
      %v7059 = vpack.c.bf16 %v4363, %v4362
      %v7060 = vpack.c.bf16 %v4365, %v4364
      %v7061 = vpack.c.bf16 %v4367, %v4366
      %v7062 = vpack.c.bf16 %v4369, %v4368
      %v7063 = vpack.c.bf16 %v4371, %v4370
      %v7064 = vpack.c.bf16 %v4373, %v4372
      %v7065 = vld [vmem:[%s53] sm:$0xf]
      %v7066 = vld [vmem:[%s53 + $0x4] sm:$0xf]
      %v7067 = vld [vmem:[%s53 + $0x8] sm:$0xf]
      %v7068 = vld [vmem:[%s53 + $0xc] sm:$0xf]
      %v7069 = vld [vmem:[%s55] sm:$0x1]
      %v7071 = vlaneseq
      %v7072 = vshrl.u32 %v7071, 7
      %v7073 = vsub.s32 0, %v7072
      %v7074 = vrot.slane %v7069, %v7073
      %v7080 = vunpack.c.l.b16 %v7065
      %v7081 = vunpack.c.l.b16 %v7066
      %v7082 = vunpack.c.l.b16 %v7067
      %v7083 = vunpack.c.l.b16 %v7068
      %v7084 = vpack.c.b16 %v7081, %v7080
      %v7085 = vpack.c.b16 %v7083, %v7082
      %v7089 = vsel %vm1428, %v7057, 0
      %v7092 = vsel %vm1428, %v7058, 0
      %v7095 = vsel %vm1428, %v7059, 0
      %v7098 = vsel %vm1428, %v7060, 0
      %v7101 = vsel %vm1428, %v7061, 0
      %v7104 = vsel %vm1428, %v7062, 0
      %v7107 = vsel %vm1428, %v7063, 0
      %v7110 = vsel %vm1428, %v7064, 0
      %7112 = vmatprep.subr.bf16.mxu0 0
      %7113 = vmatpush1.bf16.msra.mxu0 %v7084
      %7114 = vmatprep.subr.bf16.mxu0 0
      %7115 = vmatpush1.bf16.msra.mxu0 %v7085
      %7116 = vmatprep.subr.bf16.mxu0 0
      %7117 = vmatpush1.bf16.msra.mxu0 0
      %7118 = vmatprep.subr.bf16.mxu0 0
      %7119 = vmatpush1.bf16.msra.mxu0 0
      %7120 = vmatprep.subr.bf16.mxu0 0
      %7121 = vmatpush1.bf16.msra.mxu0 0
      %7122 = vmatprep.subr.bf16.mxu0 0
      %7123 = vmatpush1.bf16.msra.mxu0 0
      %7124 = vmatprep.subr.bf16.mxu0 0
      %7125 = vmatpush1.bf16.msra.mxu0 0
      %7126 = vmatprep.subr.bf16.mxu0 0
      %7127 = vmatpush1.bf16.msra.mxu0 0
      %7128 = vmatprep.subr.bf16.mxu0 0
      %7129 = vmatpush1.bf16.msra.mxu0 0
      %7130 = vmatprep.subr.bf16.mxu0 0
      %7131 = vmatpush1.bf16.msra.mxu0 0
      %7132 = vmatprep.subr.bf16.mxu0 0
      %7133 = vmatpush1.bf16.msra.mxu0 0
      %7134 = vmatprep.subr.bf16.mxu0 0
      %7135 = vmatpush1.bf16.msra.mxu0 0
      %7136 = vmatprep.subr.bf16.mxu0 0
      %7137 = vmatpush1.bf16.msra.mxu0 0
      %7138 = vmatprep.subr.bf16.mxu0 0
      %7139 = vmatpush1.bf16.msra.mxu0 0
      %7140 = vmatprep.subr.bf16.mxu0 0
      %7141 = vmatpush1.bf16.msra.mxu0 0
      %7142 = vmatprep.subr.bf16.mxu0 0
      %7143 = vmatpush1.bf16.msra.mxu0 0
      %7144 = vmatprep.mubr.bf16.mxu0 0
      %7145 = vmatmul.mubr.bf16.gmra.mrb[0].mxu0 %v7089
      %v7146 = vpop.f32.mrb[0].mxu0
      %v7147 = vadd.f32 %v7074, %v7146
      %v7148 = vpop.f32.mrb[0].mxu0
      %v7149 = vpop.f32.mrb[0].mxu0
      %v7150 = vadd.f32 %v7074, %v7149
      %v7151 = vpop.f32.mrb[0].mxu0
      %7152 = vmatprep.mubr.bf16.mxu0 0
      %7153 = vmatmul.mubr.bf16.gmra.mrb[0].mxu0 %v7092
      %v7154 = vpop.f32.mrb[0].mxu0
      %v7155 = vadd.f32 %v7074, %v7154
      %v7156 = vpop.f32.mrb[0].mxu0
      %v7157 = vpop.f32.mrb[0].mxu0
      %v7158 = vadd.f32 %v7074, %v7157
      %v7159 = vpop.f32.mrb[0].mxu0
      %7160 = vmatprep.mubr.bf16.mxu0 0
      %7161 = vmatmul.mubr.bf16.gmra.mrb[0].mxu0 %v7095
      %v7162 = vpop.f32.mrb[0].mxu0
      %v7163 = vadd.f32 %v7074, %v7162
      %v7164 = vpop.f32.mrb[0].mxu0
      %v7165 = vpop.f32.mrb[0].mxu0
      %v7166 = vadd.f32 %v7074, %v7165
      %v7167 = vpop.f32.mrb[0].mxu0
      %7168 = vmatprep.mubr.bf16.mxu0 0
      %7169 = vmatmul.mubr.bf16.gmra.mrb[0].mxu0 %v7098
      %v7170 = vpop.f32.mrb[0].mxu0
      %v7171 = vadd.f32 %v7074, %v7170
      %v7172 = vpop.f32.mrb[0].mxu0
      %v7173 = vpop.f32.mrb[0].mxu0
      %v7174 = vadd.f32 %v7074, %v7173
      %v7175 = vpop.f32.mrb[0].mxu0
      %7176 = vmatprep.mubr.bf16.mxu0 0
      %7177 = vmatmul.mubr.bf16.gmra.mrb[0].mxu0 %v7101
      %v7178 = vpop.f32.mrb[0].mxu0
      %v7179 = vadd.f32 %v7074, %v7178
      %v7180 = vpop.f32.mrb[0].mxu0
      %v7181 = vpop.f32.mrb[0].mxu0
      %v7182 = vadd.f32 %v7074, %v7181
      %v7183 = vpop.f32.mrb[0].mxu0
      %7184 = vmatprep.mubr.bf16.mxu0 0
      %7185 = vmatmul.mubr.bf16.gmra.mrb[0].mxu0 %v7104
      %v7186 = vpop.f32.mrb[0].mxu0
      %v7187 = vadd.f32 %v7074, %v7186
      %v7188 = vpop.f32.mrb[0].mxu0
      %v7189 = vpop.f32.mrb[0].mxu0
      %v7190 = vadd.f32 %v7074, %v7189
      %v7191 = vpop.f32.mrb[0].mxu0
      %7192 = vmatprep.mubr.bf16.mxu0 0
      %7193 = vmatmul.mubr.bf16.gmra.mrb[0].mxu0 %v7107
      %v7194 = vpop.f32.mrb[0].mxu0
      %v7195 = vadd.f32 %v7074, %v7194
      %v7196 = vpop.f32.mrb[0].mxu0
      %v7197 = vpop.f32.mrb[0].mxu0
      %v7198 = vadd.f32 %v7074, %v7197
      %v7199 = vpop.f32.mrb[0].mxu0
      %7200 = vmatprep.mubr.bf16.mxu0 0
      %7201 = vmatmul.mubr.bf16.gmra.mrb[0].mxu0 %v7110
      %v7202 = vpop.f32.mrb[0].mxu0
      %v7203 = vadd.f32 %v7074, %v7202
      %v7204 = vpop.f32.mrb[0].mxu0
      %v7205 = vpop.f32.mrb[0].mxu0
      %v7206 = vadd.f32 %v7074, %v7205
      %v7207 = vpop.f32.mrb[0].mxu0
      %7208 = vdwg.mxu0
      %v7209 = vmul.f32 %v6995, 0.17677669
      %v7210 = vmul.f32 %v6998, 0.17677669
      %v7211 = vmul.f32 %v7003, 0.17677669
      %v7212 = vmul.f32 %v7006, 0.17677669
      %v7213 = vmul.f32 %v7011, 0.17677669
      %v7214 = vmul.f32 %v7014, 0.17677669
      %v7215 = vmul.f32 %v7019, 0.17677669
      %v7216 = vmul.f32 %v7022, 0.17677669
      %v7217 = vmul.f32 %v7027, 0.17677669
      %v7218 = vmul.f32 %v7030, 0.17677669
      %v7219 = vmul.f32 %v7035, 0.17677669
      %v7220 = vmul.f32 %v7038, 0.17677669
      %v7221 = vmul.f32 %v7043, 0.17677669
      %v7222 = vmul.f32 %v7046, 0.17677669
      %v7223 = vmul.f32 %v7051, 0.17677669
      %v7224 = vmul.f32 %v7054, 0.17677669
      %v7225 = vpack.c.bf16 %v7209, %v7209
      %v7226 = vpack.c.bf16 %v7210, %v7210
      %v7227 = vpack.c.bf16 %v7211, %v7211
      %v7228 = vpack.c.bf16 %v7212, %v7212
      %v7229 = vpack.c.bf16 %v7213, %v7213
      %v7230 = vpack.c.bf16 %v7214, %v7214
      %v7231 = vpack.c.bf16 %v7215, %v7215
      %v7232 = vpack.c.bf16 %v7216, %v7216
      %v7233 = vpack.c.bf16 %v7217, %v7217
      %v7234 = vpack.c.bf16 %v7218, %v7218
      %v7235 = vpack.c.bf16 %v7219, %v7219
      %v7236 = vpack.c.bf16 %v7220, %v7220
      %v7237 = vpack.c.bf16 %v7221, %v7221
      %v7238 = vpack.c.bf16 %v7222, %v7222
      %v7239 = vpack.c.bf16 %v7223, %v7223
      %v7240 = vpack.c.bf16 %v7224, %v7224
      %v7241 = vpack.c.bf16 %v7147, %v7147
      %v7242 = vpack.c.bf16 %v7150, %v7150
      %v7243 = vpack.c.bf16 %v7155, %v7155
      %v7244 = vpack.c.bf16 %v7158, %v7158
      %v7245 = vpack.c.bf16 %v7163, %v7163
      %v7246 = vpack.c.bf16 %v7166, %v7166
      %v7247 = vpack.c.bf16 %v7171, %v7171
      %v7248 = vpack.c.bf16 %v7174, %v7174
      %v7249 = vpack.c.bf16 %v7179, %v7179
      %v7250 = vpack.c.bf16 %v7182, %v7182
      %v7251 = vpack.c.bf16 %v7187, %v7187
      %v7252 = vpack.c.bf16 %v7190, %v7190
      %v7253 = vpack.c.bf16 %v7195, %v7195
      %v7254 = vpack.c.bf16 %v7198, %v7198
      %v7255 = vpack.c.bf16 %v7203, %v7203
      %v7256 = vpack.c.bf16 %v7206, %v7206
      %v7258 = vsel %vm1428, %v7225, 0
      %v7261 = vsel %vm1428, %v7241, 0
      %7263 = vmatprep.subr.bf16.mxu0 0
      %7264 = vmatpush1.bf16.xpose.msra.mxu0 %v7261
      %7265 = vmatprep.subr.bf16.mxu0 0
      %7266 = vmatpush1.bf16.xpose.msra.mxu0 0
      %7267 = vmatprep.subr.bf16.mxu0 0
      %7268 = vmatpush1.bf16.xpose.msra.mxu0 0
      %7269 = vmatprep.subr.bf16.mxu0 0
      %7270 = vmatpush1.bf16.xpose.msra.mxu0 0
      %7271 = vmatprep.subr.bf16.mxu0 0
      %7272 = vmatpush1.bf16.xpose.msra.mxu0 0
      %7273 = vmatprep.subr.bf16.mxu0 0
      %7274 = vmatpush1.bf16.xpose.msra.mxu0 0
      %7275 = vmatprep.subr.bf16.mxu0 0
      %7276 = vmatpush1.bf16.xpose.msra.mxu0 0
      %7277 = vmatprep.subr.bf16.mxu0 0
      %7278 = vmatpush1.bf16.xpose.msra.mxu0 0
      %7279 = vmatprep.subr.bf16.mxu0 0
      %7280 = vmatpush1.bf16.xpose.msra.mxu0 0
      %7281 = vmatprep.subr.bf16.mxu0 0
      %7282 = vmatpush1.bf16.xpose.msra.mxu0 0
      %7283 = vmatprep.subr.bf16.mxu0 0
      %7284 = vmatpush1.bf16.xpose.msra.mxu0 0
      %7285 = vmatprep.subr.bf16.mxu0 0
      %7286 = vmatpush1.bf16.xpose.msra.mxu0 0
      %7287 = vmatprep.subr.bf16.mxu0 0
      %7288 = vmatpush1.bf16.xpose.msra.mxu0 0
      %7289 = vmatprep.subr.bf16.mxu0 0
      %7290 = vmatpush1.bf16.xpose.msra.mxu0 0
      %7291 = vmatprep.subr.bf16.mxu0 0
      %7292 = vmatpush1.bf16.xpose.msra.mxu0 0
      %7293 = vmatprep.subr.bf16.mxu0 0
      %7294 = vmatpush1.bf16.xpose.msra.mxu0 0
      %7295 = vmatprep.mubr.bf16.mxu0 0
      %7296 = vmatmul.mubr.bf16.gmra.mrb[0].mxu0 %v7258
      %v7297 = vpop.f32.mrb[0].mxu0
      %v7298 = vadd.f32 0.0, %v7297
      %v7299 = vpop.f32.mrb[0].mxu0
      %v7300 = vpop.f32.mrb[0].mxu0
      %v7301 = vpop.f32.mrb[0].mxu0
      %7302 = vdwg.mxu0
      %v7304 = vsel %vm1428, %v7226, 0
      %v7307 = vsel %vm1428, %v7242, 0
      %7309 = vmatprep.subr.bf16.mxu0 0
      %7310 = vmatpush1.bf16.xpose.msra.mxu0 %v7307
      %7311 = vmatprep.subr.bf16.mxu0 0
      %7312 = vmatpush1.bf16.xpose.msra.mxu0 0
      %7313 = vmatprep.subr.bf16.mxu0 0
      %7314 = vmatpush1.bf16.xpose.msra.mxu0 0
      %7315 = vmatprep.subr.bf16.mxu0 0
      %7316 = vmatpush1.bf16.xpose.msra.mxu0 0
      %7317 = vmatprep.subr.bf16.mxu0 0
      %7318 = vmatpush1.bf16.xpose.msra.mxu0 0
      %7319 = vmatprep.subr.bf16.mxu0 0
      %7320 = vmatpush1.bf16.xpose.msra.mxu0 0
      %7321 = vmatprep.subr.bf16.mxu0 0
      %7322 = vmatpush1.bf16.xpose.msra.mxu0 0
      %7323 = vmatprep.subr.bf16.mxu0 0
      %7324 = vmatpush1.bf16.xpose.msra.mxu0 0
      %7325 = vmatprep.subr.bf16.mxu0 0
      %7326 = vmatpush1.bf16.xpose.msra.mxu0 0
      %7327 = vmatprep.subr.bf16.mxu0 0
      %7328 = vmatpush1.bf16.xpose.msra.mxu0 0
      %7329 = vmatprep.subr.bf16.mxu0 0
      %7330 = vmatpush1.bf16.xpose.msra.mxu0 0
      %7331 = vmatprep.subr.bf16.mxu0 0
      %7332 = vmatpush1.bf16.xpose.msra.mxu0 0
      %7333 = vmatprep.subr.bf16.mxu0 0
      %7334 = vmatpush1.bf16.xpose.msra.mxu0 0
      %7335 = vmatprep.subr.bf16.mxu0 0
      %7336 = vmatpush1.bf16.xpose.msra.mxu0 0
      %7337 = vmatprep.subr.bf16.mxu0 0
      %7338 = vmatpush1.bf16.xpose.msra.mxu0 0
      %7339 = vmatprep.subr.bf16.mxu0 0
      %7340 = vmatpush1.bf16.xpose.msra.mxu0 0
      %7341 = vmatprep.mubr.bf16.mxu0 0
      %7342 = vmatmul.mubr.bf16.gmra.mrb[0].mxu0 %v7304
      %v7343 = vpop.f32.mrb[0].mxu0
      %v7344 = vadd.f32 0.0, %v7343
      %v7345 = vpop.f32.mrb[0].mxu0
      %v7346 = vpop.f32.mrb[0].mxu0
      %v7347 = vpop.f32.mrb[0].mxu0
      %7348 = vdwg.mxu0
      %v7350 = vsel %vm1428, %v7227, 0
      %v7353 = vsel %vm1428, %v7243, 0
      %7355 = vmatprep.subr.bf16.mxu0 0
      %7356 = vmatpush1.bf16.xpose.msra.mxu0 %v7353
      %7357 = vmatprep.subr.bf16.mxu0 0
      %7358 = vmatpush1.bf16.xpose.msra.mxu0 0
      %7359 = vmatprep.subr.bf16.mxu0 0
      %7360 = vmatpush1.bf16.xpose.msra.mxu0 0
      %7361 = vmatprep.subr.bf16.mxu0 0
      %7362 = vmatpush1.bf16.xpose.msra.mxu0 0
      %7363 = vmatprep.subr.bf16.mxu0 0
      %7364 = vmatpush1.bf16.xpose.msra.mxu0 0
      %7365 = vmatprep.subr.bf16.mxu0 0
      %7366 = vmatpush1.bf16.xpose.msra.mxu0 0
      %7367 = vmatprep.subr.bf16.mxu0 0
      %7368 = vmatpush1.bf16.xpose.msra.mxu0 0
      %7369 = vmatprep.subr.bf16.mxu0 0
      %7370 = vmatpush1.bf16.xpose.msra.mxu0 0
      %7371 = vmatprep.subr.bf16.mxu0 0
      %7372 = vmatpush1.bf16.xpose.msra.mxu0 0
      %7373 = vmatprep.subr.bf16.mxu0 0
      %7374 = vmatpush1.bf16.xpose.msra.mxu0 0
      %7375 = vmatprep.subr.bf16.mxu0 0
      %7376 = vmatpush1.bf16.xpose.msra.mxu0 0
      %7377 = vmatprep.subr.bf16.mxu0 0
      %7378 = vmatpush1.bf16.xpose.msra.mxu0 0
      %7379 = vmatprep.subr.bf16.mxu0 0
      %7380 = vmatpush1.bf16.xpose.msra.mxu0 0
      %7381 = vmatprep.subr.bf16.mxu0 0
      %7382 = vmatpush1.bf16.xpose.msra.mxu0 0
      %7383 = vmatprep.subr.bf16.mxu0 0
      %7384 = vmatpush1.bf16.xpose.msra.mxu0 0
      %7385 = vmatprep.subr.bf16.mxu0 0
      %7386 = vmatpush1.bf16.xpose.msra.mxu0 0
      %7387 = vmatprep.mubr.bf16.mxu0 0
      %7388 = vmatmul.mubr.bf16.gmra.mrb[0].mxu0 %v7350
      %v7389 = vpop.f32.mrb[0].mxu0
      %v7390 = vadd.f32 0.0, %v7389
      %v7391 = vpop.f32.mrb[0].mxu0
      %v7392 = vpop.f32.mrb[0].mxu0
      %v7393 = vpop.f32.mrb[0].mxu0
      %7394 = vdwg.mxu0
      %v7396 = vsel %vm1428, %v7228, 0
      %v7399 = vsel %vm1428, %v7244, 0
      %7401 = vmatprep.subr.bf16.mxu0 0
      %7402 = vmatpush1.bf16.xpose.msra.mxu0 %v7399
      %7403 = vmatprep.subr.bf16.mxu0 0
      %7404 = vmatpush1.bf16.xpose.msra.mxu0 0
      %7405 = vmatprep.subr.bf16.mxu0 0
      %7406 = vmatpush1.bf16.xpose.msra.mxu0 0
      %7407 = vmatprep.subr.bf16.mxu0 0
      %7408 = vmatpush1.bf16.xpose.msra.mxu0 0
      %7409 = vmatprep.subr.bf16.mxu0 0
      %7410 = vmatpush1.bf16.xpose.msra.mxu0 0
      %7411 = vmatprep.subr.bf16.mxu0 0
      %7412 = vmatpush1.bf16.xpose.msra.mxu0 0
      %7413 = vmatprep.subr.bf16.mxu0 0
      %7414 = vmatpush1.bf16.xpose.msra.mxu0 0
      %7415 = vmatprep.subr.bf16.mxu0 0
      %7416 = vmatpush1.bf16.xpose.msra.mxu0 0
      %7417 = vmatprep.subr.bf16.mxu0 0
      %7418 = vmatpush1.bf16.xpose.msra.mxu0 0
      %7419 = vmatprep.subr.bf16.mxu0 0
      %7420 = vmatpush1.bf16.xpose.msra.mxu0 0
      %7421 = vmatprep.subr.bf16.mxu0 0
      %7422 = vmatpush1.bf16.xpose.msra.mxu0 0
      %7423 = vmatprep.subr.bf16.mxu0 0
      %7424 = vmatpush1.bf16.xpose.msra.mxu0 0
      %7425 = vmatprep.subr.bf16.mxu0 0
      %7426 = vmatpush1.bf16.xpose.msra.mxu0 0
      %7427 = vmatprep.subr.bf16.mxu0 0
      %7428 = vmatpush1.bf16.xpose.msra.mxu0 0
      %7429 = vmatprep.subr.bf16.mxu0 0
      %7430 = vmatpush1.bf16.xpose.msra.mxu0 0
      %7431 = vmatprep.subr.bf16.mxu0 0
      %7432 = vmatpush1.bf16.xpose.msra.mxu0 0
      %7433 = vmatprep.mubr.bf16.mxu0 0
      %7434 = vmatmul.mubr.bf16.gmra.mrb[0].mxu0 %v7396
      %v7435 = vpop.f32.mrb[0].mxu0
      %v7436 = vadd.f32 0.0, %v7435
      %v7437 = vpop.f32.mrb[0].mxu0
      %v7438 = vpop.f32.mrb[0].mxu0
      %v7439 = vpop.f32.mrb[0].mxu0
      %7440 = vdwg.mxu0
      %v7442 = vsel %vm1428, %v7229, 0
      %v7445 = vsel %vm1428, %v7245, 0
      %7447 = vmatprep.subr.bf16.mxu0 0
      %7448 = vmatpush1.bf16.xpose.msra.mxu0 %v7445
      %7449 = vmatprep.subr.bf16.mxu0 0
      %7450 = vmatpush1.bf16.xpose.msra.mxu0 0
      %7451 = vmatprep.subr.bf16.mxu0 0
      %7452 = vmatpush1.bf16.xpose.msra.mxu0 0
      %7453 = vmatprep.subr.bf16.mxu0 0
      %7454 = vmatpush1.bf16.xpose.msra.mxu0 0
      %7455 = vmatprep.subr.bf16.mxu0 0
      %7456 = vmatpush1.bf16.xpose.msra.mxu0 0
      %7457 = vmatprep.subr.bf16.mxu0 0
      %7458 = vmatpush1.bf16.xpose.msra.mxu0 0
      %7459 = vmatprep.subr.bf16.mxu0 0
      %7460 = vmatpush1.bf16.xpose.msra.mxu0 0
      %7461 = vmatprep.subr.bf16.mxu0 0
      %7462 = vmatpush1.bf16.xpose.msra.mxu0 0
      %7463 = vmatprep.subr.bf16.mxu0 0
      %7464 = vmatpush1.bf16.xpose.msra.mxu0 0
      %7465 = vmatprep.subr.bf16.mxu0 0
      %7466 = vmatpush1.bf16.xpose.msra.mxu0 0
      %7467 = vmatprep.subr.bf16.mxu0 0
      %7468 = vmatpush1.bf16.xpose.msra.mxu0 0
      %7469 = vmatprep.subr.bf16.mxu0 0
      %7470 = vmatpush1.bf16.xpose.msra.mxu0 0
      %7471 = vmatprep.subr.bf16.mxu0 0
      %7472 = vmatpush1.bf16.xpose.msra.mxu0 0
      %7473 = vmatprep.subr.bf16.mxu0 0
      %7474 = vmatpush1.bf16.xpose.msra.mxu0 0
      %7475 = vmatprep.subr.bf16.mxu0 0
      %7476 = vmatpush1.bf16.xpose.msra.mxu0 0
      %7477 = vmatprep.subr.bf16.mxu0 0
      %7478 = vmatpush1.bf16.xpose.msra.mxu0 0
      %7479 = vmatprep.mubr.bf16.mxu0 0
      %7480 = vmatmul.mubr.bf16.gmra.mrb[0].mxu0 %v7442
      %v7481 = vpop.f32.mrb[0].mxu0
      %v7482 = vadd.f32 0.0, %v7481
      %v7483 = vpop.f32.mrb[0].mxu0
      %v7484 = vpop.f32.mrb[0].mxu0
      %v7485 = vpop.f32.mrb[0].mxu0
      %7486 = vdwg.mxu0
      %v7488 = vsel %vm1428, %v7230, 0
      %v7491 = vsel %vm1428, %v7246, 0
      %7493 = vmatprep.subr.bf16.mxu0 0
      %7494 = vmatpush1.bf16.xpose.msra.mxu0 %v7491
      %7495 = vmatprep.subr.bf16.mxu0 0
      %7496 = vmatpush1.bf16.xpose.msra.mxu0 0
      %7497 = vmatprep.subr.bf16.mxu0 0
      %7498 = vmatpush1.bf16.xpose.msra.mxu0 0
      %7499 = vmatprep.subr.bf16.mxu0 0
      %7500 = vmatpush1.bf16.xpose.msra.mxu0 0
      %7501 = vmatprep.subr.bf16.mxu0 0
      %7502 = vmatpush1.bf16.xpose.msra.mxu0 0
      %7503 = vmatprep.subr.bf16.mxu0 0
      %7504 = vmatpush1.bf16.xpose.msra.mxu0 0
      %7505 = vmatprep.subr.bf16.mxu0 0
      %7506 = vmatpush1.bf16.xpose.msra.mxu0 0
      %7507 = vmatprep.subr.bf16.mxu0 0
      %7508 = vmatpush1.bf16.xpose.msra.mxu0 0
      %7509 = vmatprep.subr.bf16.mxu0 0
      %7510 = vmatpush1.bf16.xpose.msra.mxu0 0
      %7511 = vmatprep.subr.bf16.mxu0 0
      %7512 = vmatpush1.bf16.xpose.msra.mxu0 0
      %7513 = vmatprep.subr.bf16.mxu0 0
      %7514 = vmatpush1.bf16.xpose.msra.mxu0 0
      %7515 = vmatprep.subr.bf16.mxu0 0
      %7516 = vmatpush1.bf16.xpose.msra.mxu0 0
      %7517 = vmatprep.subr.bf16.mxu0 0
      %7518 = vmatpush1.bf16.xpose.msra.mxu0 0
      %7519 = vmatprep.subr.bf16.mxu0 0
      %7520 = vmatpush1.bf16.xpose.msra.mxu0 0
      %7521 = vmatprep.subr.bf16.mxu0 0
      %7522 = vmatpush1.bf16.xpose.msra.mxu0 0
      %7523 = vmatprep.subr.bf16.mxu0 0
      %7524 = vmatpush1.bf16.xpose.msra.mxu0 0
      %7525 = vmatprep.mubr.bf16.mxu0 0
      %7526 = vmatmul.mubr.bf16.gmra.mrb[0].mxu0 %v7488
      %v7527 = vpop.f32.mrb[0].mxu0
      %v7528 = vadd.f32 0.0, %v7527
      %v7529 = vpop.f32.mrb[0].mxu0
      %v7530 = vpop.f32.mrb[0].mxu0
      %v7531 = vpop.f32.mrb[0].mxu0
      %7532 = vdwg.mxu0
      %v7534 = vsel %vm1428, %v7231, 0
      %v7537 = vsel %vm1428, %v7247, 0
      %7539 = vmatprep.subr.bf16.mxu0 0
      %7540 = vmatpush1.bf16.xpose.msra.mxu0 %v7537
      %7541 = vmatprep.subr.bf16.mxu0 0
      %7542 = vmatpush1.bf16.xpose.msra.mxu0 0
      %7543 = vmatprep.subr.bf16.mxu0 0
      %7544 = vmatpush1.bf16.xpose.msra.mxu0 0
      %7545 = vmatprep.subr.bf16.mxu0 0
      %7546 = vmatpush1.bf16.xpose.msra.mxu0 0
      %7547 = vmatprep.subr.bf16.mxu0 0
      %7548 = vmatpush1.bf16.xpose.msra.mxu0 0
      %7549 = vmatprep.subr.bf16.mxu0 0
      %7550 = vmatpush1.bf16.xpose.msra.mxu0 0
      %7551 = vmatprep.subr.bf16.mxu0 0
      %7552 = vmatpush1.bf16.xpose.msra.mxu0 0
      %7553 = vmatprep.subr.bf16.mxu0 0
      %7554 = vmatpush1.bf16.xpose.msra.mxu0 0
      %7555 = vmatprep.subr.bf16.mxu0 0
      %7556 = vmatpush1.bf16.xpose.msra.mxu0 0
      %7557 = vmatprep.subr.bf16.mxu0 0
      %7558 = vmatpush1.bf16.xpose.msra.mxu0 0
      %7559 = vmatprep.subr.bf16.mxu0 0
      %7560 = vmatpush1.bf16.xpose.msra.mxu0 0
      %7561 = vmatprep.subr.bf16.mxu0 0
      %7562 = vmatpush1.bf16.xpose.msra.mxu0 0
      %7563 = vmatprep.subr.bf16.mxu0 0
      %7564 = vmatpush1.bf16.xpose.msra.mxu0 0
      %7565 = vmatprep.subr.bf16.mxu0 0
      %7566 = vmatpush1.bf16.xpose.msra.mxu0 0
      %7567 = vmatprep.subr.bf16.mxu0 0
      %7568 = vmatpush1.bf16.xpose.msra.mxu0 0
      %7569 = vmatprep.subr.bf16.mxu0 0
      %7570 = vmatpush1.bf16.xpose.msra.mxu0 0
      %7571 = vmatprep.mubr.bf16.mxu0 0
      %7572 = vmatmul.mubr.bf16.gmra.mrb[0].mxu0 %v7534
      %v7573 = vpop.f32.mrb[0].mxu0
      %v7574 = vadd.f32 0.0, %v7573
      %v7575 = vpop.f32.mrb[0].mxu0
      %v7576 = vpop.f32.mrb[0].mxu0
      %v7577 = vpop.f32.mrb[0].mxu0
      %7578 = vdwg.mxu0
      %v7580 = vsel %vm1428, %v7232, 0
      %v7583 = vsel %vm1428, %v7248, 0
      %7585 = vmatprep.subr.bf16.mxu0 0
      %7586 = vmatpush1.bf16.xpose.msra.mxu0 %v7583
      %7587 = vmatprep.subr.bf16.mxu0 0
      %7588 = vmatpush1.bf16.xpose.msra.mxu0 0
      %7589 = vmatprep.subr.bf16.mxu0 0
      %7590 = vmatpush1.bf16.xpose.msra.mxu0 0
      %7591 = vmatprep.subr.bf16.mxu0 0
      %7592 = vmatpush1.bf16.xpose.msra.mxu0 0
      %7593 = vmatprep.subr.bf16.mxu0 0
      %7594 = vmatpush1.bf16.xpose.msra.mxu0 0
      %7595 = vmatprep.subr.bf16.mxu0 0
      %7596 = vmatpush1.bf16.xpose.msra.mxu0 0
      %7597 = vmatprep.subr.bf16.mxu0 0
      %7598 = vmatpush1.bf16.xpose.msra.mxu0 0
      %7599 = vmatprep.subr.bf16.mxu0 0
      %7600 = vmatpush1.bf16.xpose.msra.mxu0 0
      %7601 = vmatprep.subr.bf16.mxu0 0
      %7602 = vmatpush1.bf16.xpose.msra.mxu0 0
      %7603 = vmatprep.subr.bf16.mxu0 0
      %7604 = vmatpush1.bf16.xpose.msra.mxu0 0
      %7605 = vmatprep.subr.bf16.mxu0 0
      %7606 = vmatpush1.bf16.xpose.msra.mxu0 0
      %7607 = vmatprep.subr.bf16.mxu0 0
      %7608 = vmatpush1.bf16.xpose.msra.mxu0 0
      %7609 = vmatprep.subr.bf16.mxu0 0
      %7610 = vmatpush1.bf16.xpose.msra.mxu0 0
      %7611 = vmatprep.subr.bf16.mxu0 0
      %7612 = vmatpush1.bf16.xpose.msra.mxu0 0
      %7613 = vmatprep.subr.bf16.mxu0 0
      %7614 = vmatpush1.bf16.xpose.msra.mxu0 0
      %7615 = vmatprep.subr.bf16.mxu0 0
      %7616 = vmatpush1.bf16.xpose.msra.mxu0 0
      %7617 = vmatprep.mubr.bf16.mxu0 0
      %7618 = vmatmul.mubr.bf16.gmra.mrb[0].mxu0 %v7580
      %v7619 = vpop.f32.mrb[0].mxu0
      %v7620 = vadd.f32 0.0, %v7619
      %v7621 = vpop.f32.mrb[0].mxu0
      %v7622 = vpop.f32.mrb[0].mxu0
      %v7623 = vpop.f32.mrb[0].mxu0
      %7624 = vdwg.mxu0
      %v7626 = vsel %vm1428, %v7233, 0
      %v7629 = vsel %vm1428, %v7249, 0
      %7631 = vmatprep.subr.bf16.mxu0 0
      %7632 = vmatpush1.bf16.xpose.msra.mxu0 %v7629
      %7633 = vmatprep.subr.bf16.mxu0 0
      %7634 = vmatpush1.bf16.xpose.msra.mxu0 0
      %7635 = vmatprep.subr.bf16.mxu0 0
      %7636 = vmatpush1.bf16.xpose.msra.mxu0 0
      %7637 = vmatprep.subr.bf16.mxu0 0
      %7638 = vmatpush1.bf16.xpose.msra.mxu0 0
      %7639 = vmatprep.subr.bf16.mxu0 0
      %7640 = vmatpush1.bf16.xpose.msra.mxu0 0
      %7641 = vmatprep.subr.bf16.mxu0 0
      %7642 = vmatpush1.bf16.xpose.msra.mxu0 0
      %7643 = vmatprep.subr.bf16.mxu0 0
      %7644 = vmatpush1.bf16.xpose.msra.mxu0 0
      %7645 = vmatprep.subr.bf16.mxu0 0
      %7646 = vmatpush1.bf16.xpose.msra.mxu0 0
      %7647 = vmatprep.subr.bf16.mxu0 0
      %7648 = vmatpush1.bf16.xpose.msra.mxu0 0
      %7649 = vmatprep.subr.bf16.mxu0 0
      %7650 = vmatpush1.bf16.xpose.msra.mxu0 0
      %7651 = vmatprep.subr.bf16.mxu0 0
      %7652 = vmatpush1.bf16.xpose.msra.mxu0 0
      %7653 = vmatprep.subr.bf16.mxu0 0
      %7654 = vmatpush1.bf16.xpose.msra.mxu0 0
      %7655 = vmatprep.subr.bf16.mxu0 0
      %7656 = vmatpush1.bf16.xpose.msra.mxu0 0
      %7657 = vmatprep.subr.bf16.mxu0 0
      %7658 = vmatpush1.bf16.xpose.msra.mxu0 0
      %7659 = vmatprep.subr.bf16.mxu0 0
      %7660 = vmatpush1.bf16.xpose.msra.mxu0 0
      %7661 = vmatprep.subr.bf16.mxu0 0
      %7662 = vmatpush1.bf16.xpose.msra.mxu0 0
      %7663 = vmatprep.mubr.bf16.mxu0 0
      %7664 = vmatmul.mubr.bf16.gmra.mrb[0].mxu0 %v7626
      %v7665 = vpop.f32.mrb[0].mxu0
      %v7666 = vadd.f32 0.0, %v7665
      %v7667 = vpop.f32.mrb[0].mxu0
      %v7668 = vpop.f32.mrb[0].mxu0
      %v7669 = vpop.f32.mrb[0].mxu0
      %7670 = vdwg.mxu0
      %v7672 = vsel %vm1428, %v7234, 0
      %v7675 = vsel %vm1428, %v7250, 0
      %7677 = vmatprep.subr.bf16.mxu0 0
      %7678 = vmatpush1.bf16.xpose.msra.mxu0 %v7675
      %7679 = vmatprep.subr.bf16.mxu0 0
      %7680 = vmatpush1.bf16.xpose.msra.mxu0 0
      %7681 = vmatprep.subr.bf16.mxu0 0
      %7682 = vmatpush1.bf16.xpose.msra.mxu0 0
      %7683 = vmatprep.subr.bf16.mxu0 0
      %7684 = vmatpush1.bf16.xpose.msra.mxu0 0
      %7685 = vmatprep.subr.bf16.mxu0 0
      %7686 = vmatpush1.bf16.xpose.msra.mxu0 0
      %7687 = vmatprep.subr.bf16.mxu0 0
      %7688 = vmatpush1.bf16.xpose.msra.mxu0 0
      %7689 = vmatprep.subr.bf16.mxu0 0
      %7690 = vmatpush1.bf16.xpose.msra.mxu0 0
      %7691 = vmatprep.subr.bf16.mxu0 0
      %7692 = vmatpush1.bf16.xpose.msra.mxu0 0
      %7693 = vmatprep.subr.bf16.mxu0 0
      %7694 = vmatpush1.bf16.xpose.msra.mxu0 0
      %7695 = vmatprep.subr.bf16.mxu0 0
      %7696 = vmatpush1.bf16.xpose.msra.mxu0 0
      %7697 = vmatprep.subr.bf16.mxu0 0
      %7698 = vmatpush1.bf16.xpose.msra.mxu0 0
      %7699 = vmatprep.subr.bf16.mxu0 0
      %7700 = vmatpush1.bf16.xpose.msra.mxu0 0
      %7701 = vmatprep.subr.bf16.mxu0 0
      %7702 = vmatpush1.bf16.xpose.msra.mxu0 0
      %7703 = vmatprep.subr.bf16.mxu0 0
      %7704 = vmatpush1.bf16.xpose.msra.mxu0 0
      %7705 = vmatprep.subr.bf16.mxu0 0
      %7706 = vmatpush1.bf16.xpose.msra.mxu0 0
      %7707 = vmatprep.subr.bf16.mxu0 0
      %7708 = vmatpush1.bf16.xpose.msra.mxu0 0
      %7709 = vmatprep.mubr.bf16.mxu0 0
      %7710 = vmatmul.mubr.bf16.gmra.mrb[0].mxu0 %v7672
      %v7711 = vpop.f32.mrb[0].mxu0
      %v7712 = vadd.f32 0.0, %v7711
      %v7713 = vpop.f32.mrb[0].mxu0
      %v7714 = vpop.f32.mrb[0].mxu0
      %v7715 = vpop.f32.mrb[0].mxu0
      %7716 = vdwg.mxu0
      %v7718 = vsel %vm1428, %v7235, 0
      %v7721 = vsel %vm1428, %v7251, 0
      %7723 = vmatprep.subr.bf16.mxu0 0
      %7724 = vmatpush1.bf16.xpose.msra.mxu0 %v7721
      %7725 = vmatprep.subr.bf16.mxu0 0
      %7726 = vmatpush1.bf16.xpose.msra.mxu0 0
      %7727 = vmatprep.subr.bf16.mxu0 0
      %7728 = vmatpush1.bf16.xpose.msra.mxu0 0
      %7729 = vmatprep.subr.bf16.mxu0 0
      %7730 = vmatpush1.bf16.xpose.msra.mxu0 0
      %7731 = vmatprep.subr.bf16.mxu0 0
      %7732 = vmatpush1.bf16.xpose.msra.mxu0 0
      %7733 = vmatprep.subr.bf16.mxu0 0
      %7734 = vmatpush1.bf16.xpose.msra.mxu0 0
      %7735 = vmatprep.subr.bf16.mxu0 0
      %7736 = vmatpush1.bf16.xpose.msra.mxu0 0
      %7737 = vmatprep.subr.bf16.mxu0 0
      %7738 = vmatpush1.bf16.xpose.msra.mxu0 0
      %7739 = vmatprep.subr.bf16.mxu0 0
      %7740 = vmatpush1.bf16.xpose.msra.mxu0 0
      %7741 = vmatprep.subr.bf16.mxu0 0
      %7742 = vmatpush1.bf16.xpose.msra.mxu0 0
      %7743 = vmatprep.subr.bf16.mxu0 0
      %7744 = vmatpush1.bf16.xpose.msra.mxu0 0
      %7745 = vmatprep.subr.bf16.mxu0 0
      %7746 = vmatpush1.bf16.xpose.msra.mxu0 0
      %7747 = vmatprep.subr.bf16.mxu0 0
      %7748 = vmatpush1.bf16.xpose.msra.mxu0 0
      %7749 = vmatprep.subr.bf16.mxu0 0
      %7750 = vmatpush1.bf16.xpose.msra.mxu0 0
      %7751 = vmatprep.subr.bf16.mxu0 0
      %7752 = vmatpush1.bf16.xpose.msra.mxu0 0
      %7753 = vmatprep.subr.bf16.mxu0 0
      %7754 = vmatpush1.bf16.xpose.msra.mxu0 0
      %7755 = vmatprep.mubr.bf16.mxu0 0
      %7756 = vmatmul.mubr.bf16.gmra.mrb[0].mxu0 %v7718
      %v7757 = vpop.f32.mrb[0].mxu0
      %v7758 = vadd.f32 0.0, %v7757
      %v7759 = vpop.f32.mrb[0].mxu0
      %v7760 = vpop.f32.mrb[0].mxu0
      %v7761 = vpop.f32.mrb[0].mxu0
      %7762 = vdwg.mxu0
      %v7764 = vsel %vm1428, %v7236, 0
      %v7767 = vsel %vm1428, %v7252, 0
      %7769 = vmatprep.subr.bf16.mxu0 0
      %7770 = vmatpush1.bf16.xpose.msra.mxu0 %v7767
      %7771 = vmatprep.subr.bf16.mxu0 0
      %7772 = vmatpush1.bf16.xpose.msra.mxu0 0
      %7773 = vmatprep.subr.bf16.mxu0 0
      %7774 = vmatpush1.bf16.xpose.msra.mxu0 0
      %7775 = vmatprep.subr.bf16.mxu0 0
      %7776 = vmatpush1.bf16.xpose.msra.mxu0 0
      %7777 = vmatprep.subr.bf16.mxu0 0
      %7778 = vmatpush1.bf16.xpose.msra.mxu0 0
      %7779 = vmatprep.subr.bf16.mxu0 0
      %7780 = vmatpush1.bf16.xpose.msra.mxu0 0
      %7781 = vmatprep.subr.bf16.mxu0 0
      %7782 = vmatpush1.bf16.xpose.msra.mxu0 0
      %7783 = vmatprep.subr.bf16.mxu0 0
      %7784 = vmatpush1.bf16.xpose.msra.mxu0 0
      %7785 = vmatprep.subr.bf16.mxu0 0
      %7786 = vmatpush1.bf16.xpose.msra.mxu0 0
      %7787 = vmatprep.subr.bf16.mxu0 0
      %7788 = vmatpush1.bf16.xpose.msra.mxu0 0
      %7789 = vmatprep.subr.bf16.mxu0 0
      %7790 = vmatpush1.bf16.xpose.msra.mxu0 0
      %7791 = vmatprep.subr.bf16.mxu0 0
      %7792 = vmatpush1.bf16.xpose.msra.mxu0 0
      %7793 = vmatprep.subr.bf16.mxu0 0
      %7794 = vmatpush1.bf16.xpose.msra.mxu0 0
      %7795 = vmatprep.subr.bf16.mxu0 0
      %7796 = vmatpush1.bf16.xpose.msra.mxu0 0
      %7797 = vmatprep.subr.bf16.mxu0 0
      %7798 = vmatpush1.bf16.xpose.msra.mxu0 0
      %7799 = vmatprep.subr.bf16.mxu0 0
      %7800 = vmatpush1.bf16.xpose.msra.mxu0 0
      %7801 = vmatprep.mubr.bf16.mxu0 0
      %7802 = vmatmul.mubr.bf16.gmra.mrb[0].mxu0 %v7764
      %v7803 = vpop.f32.mrb[0].mxu0
      %v7804 = vadd.f32 0.0, %v7803
      %v7805 = vpop.f32.mrb[0].mxu0
      %v7806 = vpop.f32.mrb[0].mxu0
      %v7807 = vpop.f32.mrb[0].mxu0
      %7808 = vdwg.mxu0
      %v7810 = vsel %vm1428, %v7237, 0
      %v7813 = vsel %vm1428, %v7253, 0
      %7815 = vmatprep.subr.bf16.mxu0 0
      %7816 = vmatpush1.bf16.xpose.msra.mxu0 %v7813
      %7817 = vmatprep.subr.bf16.mxu0 0
      %7818 = vmatpush1.bf16.xpose.msra.mxu0 0
      %7819 = vmatprep.subr.bf16.mxu0 0
      %7820 = vmatpush1.bf16.xpose.msra.mxu0 0
      %7821 = vmatprep.subr.bf16.mxu0 0
      %7822 = vmatpush1.bf16.xpose.msra.mxu0 0
      %7823 = vmatprep.subr.bf16.mxu0 0
      %7824 = vmatpush1.bf16.xpose.msra.mxu0 0
      %7825 = vmatprep.subr.bf16.mxu0 0
      %7826 = vmatpush1.bf16.xpose.msra.mxu0 0
      %7827 = vmatprep.subr.bf16.mxu0 0
      %7828 = vmatpush1.bf16.xpose.msra.mxu0 0
      %7829 = vmatprep.subr.bf16.mxu0 0
      %7830 = vmatpush1.bf16.xpose.msra.mxu0 0
      %7831 = vmatprep.subr.bf16.mxu0 0
      %7832 = vmatpush1.bf16.xpose.msra.mxu0 0
      %7833 = vmatprep.subr.bf16.mxu0 0
      %7834 = vmatpush1.bf16.xpose.msra.mxu0 0
      %7835 = vmatprep.subr.bf16.mxu0 0
      %7836 = vmatpush1.bf16.xpose.msra.mxu0 0
      %7837 = vmatprep.subr.bf16.mxu0 0
      %7838 = vmatpush1.bf16.xpose.msra.mxu0 0
      %7839 = vmatprep.subr.bf16.mxu0 0
      %7840 = vmatpush1.bf16.xpose.msra.mxu0 0
      %7841 = vmatprep.subr.bf16.mxu0 0
      %7842 = vmatpush1.bf16.xpose.msra.mxu0 0
      %7843 = vmatprep.subr.bf16.mxu0 0
      %7844 = vmatpush1.bf16.xpose.msra.mxu0 0
      %7845 = vmatprep.subr.bf16.mxu0 0
      %7846 = vmatpush1.bf16.xpose.msra.mxu0 0
      %7847 = vmatprep.mubr.bf16.mxu0 0
      %7848 = vmatmul.mubr.bf16.gmra.mrb[0].mxu0 %v7810
      %v7849 = vpop.f32.mrb[0].mxu0
      %v7850 = vadd.f32 0.0, %v7849
      %v7851 = vpop.f32.mrb[0].mxu0
      %v7852 = vpop.f32.mrb[0].mxu0
      %v7853 = vpop.f32.mrb[0].mxu0
      %7854 = vdwg.mxu0
      %v7856 = vsel %vm1428, %v7238, 0
      %v7859 = vsel %vm1428, %v7254, 0
      %7861 = vmatprep.subr.bf16.mxu0 0
      %7862 = vmatpush1.bf16.xpose.msra.mxu0 %v7859
      %7863 = vmatprep.subr.bf16.mxu0 0
      %7864 = vmatpush1.bf16.xpose.msra.mxu0 0
      %7865 = vmatprep.subr.bf16.mxu0 0
      %7866 = vmatpush1.bf16.xpose.msra.mxu0 0
      %7867 = vmatprep.subr.bf16.mxu0 0
      %7868 = vmatpush1.bf16.xpose.msra.mxu0 0
      %7869 = vmatprep.subr.bf16.mxu0 0
      %7870 = vmatpush1.bf16.xpose.msra.mxu0 0
      %7871 = vmatprep.subr.bf16.mxu0 0
      %7872 = vmatpush1.bf16.xpose.msra.mxu0 0
      %7873 = vmatprep.subr.bf16.mxu0 0
      %7874 = vmatpush1.bf16.xpose.msra.mxu0 0
      %7875 = vmatprep.subr.bf16.mxu0 0
      %7876 = vmatpush1.bf16.xpose.msra.mxu0 0
      %7877 = vmatprep.subr.bf16.mxu0 0
      %7878 = vmatpush1.bf16.xpose.msra.mxu0 0
      %7879 = vmatprep.subr.bf16.mxu0 0
      %7880 = vmatpush1.bf16.xpose.msra.mxu0 0
      %7881 = vmatprep.subr.bf16.mxu0 0
      %7882 = vmatpush1.bf16.xpose.msra.mxu0 0
      %7883 = vmatprep.subr.bf16.mxu0 0
      %7884 = vmatpush1.bf16.xpose.msra.mxu0 0
      %7885 = vmatprep.subr.bf16.mxu0 0
      %7886 = vmatpush1.bf16.xpose.msra.mxu0 0
      %7887 = vmatprep.subr.bf16.mxu0 0
      %7888 = vmatpush1.bf16.xpose.msra.mxu0 0
      %7889 = vmatprep.subr.bf16.mxu0 0
      %7890 = vmatpush1.bf16.xpose.msra.mxu0 0
      %7891 = vmatprep.subr.bf16.mxu0 0
      %7892 = vmatpush1.bf16.xpose.msra.mxu0 0
      %7893 = vmatprep.mubr.bf16.mxu0 0
      %7894 = vmatmul.mubr.bf16.gmra.mrb[0].mxu0 %v7856
      %v7895 = vpop.f32.mrb[0].mxu0
      %v7896 = vadd.f32 0.0, %v7895
      %v7897 = vpop.f32.mrb[0].mxu0
      %v7898 = vpop.f32.mrb[0].mxu0
      %v7899 = vpop.f32.mrb[0].mxu0
      %7900 = vdwg.mxu0
      %v7902 = vsel %vm1428, %v7239, 0
      %v7905 = vsel %vm1428, %v7255, 0
      %7907 = vmatprep.subr.bf16.mxu0 0
      %7908 = vmatpush1.bf16.xpose.msra.mxu0 %v7905
      %7909 = vmatprep.subr.bf16.mxu0 0
      %7910 = vmatpush1.bf16.xpose.msra.mxu0 0
      %7911 = vmatprep.subr.bf16.mxu0 0
      %7912 = vmatpush1.bf16.xpose.msra.mxu0 0
      %7913 = vmatprep.subr.bf16.mxu0 0
      %7914 = vmatpush1.bf16.xpose.msra.mxu0 0
      %7915 = vmatprep.subr.bf16.mxu0 0
      %7916 = vmatpush1.bf16.xpose.msra.mxu0 0
      %7917 = vmatprep.subr.bf16.mxu0 0
      %7918 = vmatpush1.bf16.xpose.msra.mxu0 0
      %7919 = vmatprep.subr.bf16.mxu0 0
      %7920 = vmatpush1.bf16.xpose.msra.mxu0 0
      %7921 = vmatprep.subr.bf16.mxu0 0
      %7922 = vmatpush1.bf16.xpose.msra.mxu0 0
      %7923 = vmatprep.subr.bf16.mxu0 0
      %7924 = vmatpush1.bf16.xpose.msra.mxu0 0
      %7925 = vmatprep.subr.bf16.mxu0 0
      %7926 = vmatpush1.bf16.xpose.msra.mxu0 0
      %7927 = vmatprep.subr.bf16.mxu0 0
      %7928 = vmatpush1.bf16.xpose.msra.mxu0 0
      %7929 = vmatprep.subr.bf16.mxu0 0
      %7930 = vmatpush1.bf16.xpose.msra.mxu0 0
      %7931 = vmatprep.subr.bf16.mxu0 0
      %7932 = vmatpush1.bf16.xpose.msra.mxu0 0
      %7933 = vmatprep.subr.bf16.mxu0 0
      %7934 = vmatpush1.bf16.xpose.msra.mxu0 0
      %7935 = vmatprep.subr.bf16.mxu0 0
      %7936 = vmatpush1.bf16.xpose.msra.mxu0 0
      %7937 = vmatprep.subr.bf16.mxu0 0
      %7938 = vmatpush1.bf16.xpose.msra.mxu0 0
      %7939 = vmatprep.mubr.bf16.mxu0 0
      %7940 = vmatmul.mubr.bf16.gmra.mrb[0].mxu0 %v7902
      %v7941 = vpop.f32.mrb[0].mxu0
      %v7942 = vadd.f32 0.0, %v7941
      %v7943 = vpop.f32.mrb[0].mxu0
      %v7944 = vpop.f32.mrb[0].mxu0
      %v7945 = vpop.f32.mrb[0].mxu0
      %7946 = vdwg.mxu0
      %v7948 = vsel %vm1428, %v7240, 0
      %v7951 = vsel %vm1428, %v7256, 0
      %7953 = vmatprep.subr.bf16.mxu0 0
      %7954 = vmatpush1.bf16.xpose.msra.mxu0 %v7951
      %7955 = vmatprep.subr.bf16.mxu0 0
      %7956 = vmatpush1.bf16.xpose.msra.mxu0 0
      %7957 = vmatprep.subr.bf16.mxu0 0
      %7958 = vmatpush1.bf16.xpose.msra.mxu0 0
      %7959 = vmatprep.subr.bf16.mxu0 0
      %7960 = vmatpush1.bf16.xpose.msra.mxu0 0
      %7961 = vmatprep.subr.bf16.mxu0 0
      %7962 = vmatpush1.bf16.xpose.msra.mxu0 0
      %7963 = vmatprep.subr.bf16.mxu0 0
      %7964 = vmatpush1.bf16.xpose.msra.mxu0 0
      %7965 = vmatprep.subr.bf16.mxu0 0
      %7966 = vmatpush1.bf16.xpose.msra.mxu0 0
      %7967 = vmatprep.subr.bf16.mxu0 0
      %7968 = vmatpush1.bf16.xpose.msra.mxu0 0
      %7969 = vmatprep.subr.bf16.mxu0 0
      %7970 = vmatpush1.bf16.xpose.msra.mxu0 0
      %7971 = vmatprep.subr.bf16.mxu0 0
      %7972 = vmatpush1.bf16.xpose.msra.mxu0 0
      %7973 = vmatprep.subr.bf16.mxu0 0
      %7974 = vmatpush1.bf16.xpose.msra.mxu0 0
      %7975 = vmatprep.subr.bf16.mxu0 0
      %7976 = vmatpush1.bf16.xpose.msra.mxu0 0
      %7977 = vmatprep.subr.bf16.mxu0 0
      %7978 = vmatpush1.bf16.xpose.msra.mxu0 0
      %7979 = vmatprep.subr.bf16.mxu0 0
      %7980 = vmatpush1.bf16.xpose.msra.mxu0 0
      %7981 = vmatprep.subr.bf16.mxu0 0
      %7982 = vmatpush1.bf16.xpose.msra.mxu0 0
      %7983 = vmatprep.subr.bf16.mxu0 0
      %7984 = vmatpush1.bf16.xpose.msra.mxu0 0
      %7985 = vmatprep.mubr.bf16.mxu0 0
      %7986 = vmatmul.mubr.bf16.gmra.mrb[0].mxu0 %v7948
      %v7987 = vpop.f32.mrb[0].mxu0
      %v7988 = vadd.f32 0.0, %v7987
      %v7989 = vpop.f32.mrb[0].mxu0
      %v7990 = vpop.f32.mrb[0].mxu0
      %v7991 = vpop.f32.mrb[0].mxu0
      %7992 = vdwg.mxu0
      %v7993 = vsel %vm2382, %v7298, -inf
      %7994 = vmax.xlane.f32.xlu0 %v7993
      %v7995 = vpop.xlane.xlu0 %7994
      %v7996 = vsel %vm2382, %v7344, -inf
      %7997 = vmax.xlane.f32.xlu0 %v7996
      %v7998 = vpop.xlane.xlu0 %7997
      %v7999 = vsel %vm2382, %v7390, -inf
      %8000 = vmax.xlane.f32.xlu0 %v7999
      %v8001 = vpop.xlane.xlu0 %8000
      %v8002 = vsel %vm2382, %v7436, -inf
      %8003 = vmax.xlane.f32.xlu0 %v8002
      %v8004 = vpop.xlane.xlu0 %8003
      %v8005 = vsel %vm2382, %v7482, -inf
      %8006 = vmax.xlane.f32.xlu0 %v8005
      %v8007 = vpop.xlane.xlu0 %8006
      %v8008 = vsel %vm2382, %v7528, -inf
      %8009 = vmax.xlane.f32.xlu0 %v8008
      %v8010 = vpop.xlane.xlu0 %8009
      %v8011 = vsel %vm2382, %v7574, -inf
      %8012 = vmax.xlane.f32.xlu0 %v8011
      %v8013 = vpop.xlane.xlu0 %8012
      %v8014 = vsel %vm2382, %v7620, -inf
      %8015 = vmax.xlane.f32.xlu0 %v8014
      %v8016 = vpop.xlane.xlu0 %8015
      %v8017 = vsel %vm2382, %v7666, -inf
      %8018 = vmax.xlane.f32.xlu0 %v8017
      %v8019 = vpop.xlane.xlu0 %8018
      %v8020 = vsel %vm2382, %v7712, -inf
      %8021 = vmax.xlane.f32.xlu0 %v8020
      %v8022 = vpop.xlane.xlu0 %8021
      %v8023 = vsel %vm2382, %v7758, -inf
      %8024 = vmax.xlane.f32.xlu0 %v8023
      %v8025 = vpop.xlane.xlu0 %8024
      %v8026 = vsel %vm2382, %v7804, -inf
      %8027 = vmax.xlane.f32.xlu0 %v8026
      %v8028 = vpop.xlane.xlu0 %8027
      %v8029 = vsel %vm2382, %v7850, -inf
      %8030 = vmax.xlane.f32.xlu0 %v8029
      %v8031 = vpop.xlane.xlu0 %8030
      %v8032 = vsel %vm2382, %v7896, -inf
      %8033 = vmax.xlane.f32.xlu0 %v8032
      %v8034 = vpop.xlane.xlu0 %8033
      %v8035 = vsel %vm2382, %v7942, -inf
      %8036 = vmax.xlane.f32.xlu0 %v8035
      %v8037 = vpop.xlane.xlu0 %8036
      %v8038 = vsel %vm2382, %v7988, -inf
      %8039 = vmax.xlane.f32.xlu0 %v8038
      %v8040 = vpop.xlane.xlu0 %8039
      %v8041 = vsub.f32 %v7298, %v7995
      %v8042 = vsub.f32 %v7344, %v7998
      %v8043 = vsub.f32 %v7390, %v8001
      %v8044 = vsub.f32 %v7436, %v8004
      %v8045 = vsub.f32 %v7482, %v8007
      %v8046 = vsub.f32 %v7528, %v8010
      %v8047 = vsub.f32 %v7574, %v8013
      %v8048 = vsub.f32 %v7620, %v8016
      %v8049 = vsub.f32 %v7666, %v8019
      %v8050 = vsub.f32 %v7712, %v8022
      %v8051 = vsub.f32 %v7758, %v8025
      %v8052 = vsub.f32 %v7804, %v8028
      %v8053 = vsub.f32 %v7850, %v8031
      %v8054 = vsub.f32 %v7896, %v8034
      %v8055 = vsub.f32 %v7942, %v8037
      %v8056 = vsub.f32 %v7988, %v8040
      %v8057 = vmul.f32 %v8041, 1.442695
      %v8058 = vpow.pop %v8057
      %v8059 = vmul.f32 %v8042, 1.442695
      %v8060 = vpow.pop %v8059
      %v8061 = vmul.f32 %v8043, 1.442695
      %v8062 = vpow.pop %v8061
      %v8063 = vmul.f32 %v8044, 1.442695
      %v8064 = vpow.pop %v8063
      %v8065 = vmul.f32 %v8045, 1.442695
      %v8066 = vpow.pop %v8065
      %v8067 = vmul.f32 %v8046, 1.442695
      %v8068 = vpow.pop %v8067
      %v8069 = vmul.f32 %v8047, 1.442695
      %v8070 = vpow.pop %v8069
      %v8071 = vmul.f32 %v8048, 1.442695
      %v8072 = vpow.pop %v8071
      %v8073 = vmul.f32 %v8049, 1.442695
      %v8074 = vpow.pop %v8073
      %v8075 = vmul.f32 %v8050, 1.442695
      %v8076 = vpow.pop %v8075
      %v8077 = vmul.f32 %v8051, 1.442695
      %v8078 = vpow.pop %v8077
      %v8079 = vmul.f32 %v8052, 1.442695
      %v8080 = vpow.pop %v8079
      %v8081 = vmul.f32 %v8053, 1.442695
      %v8082 = vpow.pop %v8081
      %v8083 = vmul.f32 %v8054, 1.442695
      %v8084 = vpow.pop %v8083
      %v8085 = vmul.f32 %v8055, 1.442695
      %v8086 = vpow.pop %v8085
      %v8087 = vmul.f32 %v8056, 1.442695
      %v8088 = vpow.pop %v8087
      %v8089 = vsel %vm2382, %v8058, 0.0
      %8090 = vadd.xlane.f32.xlu0 %v8089
      %v8091 = vpop.xlane.xlu0 %8090
      %v8092 = vsel %vm2382, %v8060, 0.0
      %8093 = vadd.xlane.f32.xlu0 %v8092
      %v8094 = vpop.xlane.xlu0 %8093
      %v8095 = vsel %vm2382, %v8062, 0.0
      %8096 = vadd.xlane.f32.xlu0 %v8095
      %v8097 = vpop.xlane.xlu0 %8096
      %v8098 = vsel %vm2382, %v8064, 0.0
      %8099 = vadd.xlane.f32.xlu0 %v8098
      %v8100 = vpop.xlane.xlu0 %8099
      %v8101 = vsel %vm2382, %v8066, 0.0
      %8102 = vadd.xlane.f32.xlu0 %v8101
      %v8103 = vpop.xlane.xlu0 %8102
      %v8104 = vsel %vm2382, %v8068, 0.0
      %8105 = vadd.xlane.f32.xlu0 %v8104
      %v8106 = vpop.xlane.xlu0 %8105
      %v8107 = vsel %vm2382, %v8070, 0.0
      %8108 = vadd.xlane.f32.xlu0 %v8107
      %v8109 = vpop.xlane.xlu0 %8108
      %v8110 = vsel %vm2382, %v8072, 0.0
      %8111 = vadd.xlane.f32.xlu0 %v8110
      %v8112 = vpop.xlane.xlu0 %8111
      %v8113 = vsel %vm2382, %v8074, 0.0
      %8114 = vadd.xlane.f32.xlu0 %v8113
      %v8115 = vpop.xlane.xlu0 %8114
      %v8116 = vsel %vm2382, %v8076, 0.0
      %8117 = vadd.xlane.f32.xlu0 %v8116
      %v8118 = vpop.xlane.xlu0 %8117
      %v8119 = vsel %vm2382, %v8078, 0.0
      %8120 = vadd.xlane.f32.xlu0 %v8119
      %v8121 = vpop.xlane.xlu0 %8120
      %v8122 = vsel %vm2382, %v8080, 0.0
      %8123 = vadd.xlane.f32.xlu0 %v8122
      %v8124 = vpop.xlane.xlu0 %8123
      %v8125 = vsel %vm2382, %v8082, 0.0
      %8126 = vadd.xlane.f32.xlu0 %v8125
      %v8127 = vpop.xlane.xlu0 %8126
      %v8128 = vsel %vm2382, %v8084, 0.0
      %8129 = vadd.xlane.f32.xlu0 %v8128
      %v8130 = vpop.xlane.xlu0 %8129
      %v8131 = vsel %vm2382, %v8086, 0.0
      %8132 = vadd.xlane.f32.xlu0 %v8131
      %v8133 = vpop.xlane.xlu0 %8132
      %v8134 = vsel %vm2382, %v8088, 0.0
      %8135 = vadd.xlane.f32.xlu0 %v8134
      %v8136 = vpop.xlane.xlu0 %8135
      %v8137 = vrcp.pop %v8091
      %v8138 = vrcp.pop %v8094
      %v8139 = vrcp.pop %v8097
      %v8140 = vrcp.pop %v8100
      %v8141 = vrcp.pop %v8103
      %v8142 = vrcp.pop %v8106
      %v8143 = vrcp.pop %v8109
      %v8144 = vrcp.pop %v8112
      %v8145 = vrcp.pop %v8115
      %v8146 = vrcp.pop %v8118
      %v8147 = vrcp.pop %v8121
      %v8148 = vrcp.pop %v8124
      %v8149 = vrcp.pop %v8127
      %v8150 = vrcp.pop %v8130
      %v8151 = vrcp.pop %v8133
      %v8152 = vrcp.pop %v8136
      %v8153 = vmul.f32 %v8058, %v8137
      %v8154 = vmul.f32 %v8060, %v8138
      %v8155 = vmul.f32 %v8062, %v8139
      %v8156 = vmul.f32 %v8064, %v8140
      %v8157 = vmul.f32 %v8066, %v8141
      %v8158 = vmul.f32 %v8068, %v8142
      %v8159 = vmul.f32 %v8070, %v8143
      %v8160 = vmul.f32 %v8072, %v8144
      %v8161 = vmul.f32 %v8074, %v8145
      %v8162 = vmul.f32 %v8076, %v8146
      %v8163 = vmul.f32 %v8078, %v8147
      %v8164 = vmul.f32 %v8080, %v8148
      %v8165 = vmul.f32 %v8082, %v8149
      %v8166 = vmul.f32 %v8084, %v8150
      %v8167 = vmul.f32 %v8086, %v8151
      %v8168 = vmul.f32 %v8088, %v8152
      %v8169 = vpack.c.bf16 %v8153, %v8153
      %v8170 = vpack.c.bf16 %v8154, %v8154
      %v8171 = vpack.c.bf16 %v8155, %v8155
      %v8172 = vpack.c.bf16 %v8156, %v8156
      %v8173 = vpack.c.bf16 %v8157, %v8157
      %v8174 = vpack.c.bf16 %v8158, %v8158
      %v8175 = vpack.c.bf16 %v8159, %v8159
      %v8176 = vpack.c.bf16 %v8160, %v8160
      %v8177 = vpack.c.bf16 %v8161, %v8161
      %v8178 = vpack.c.bf16 %v8162, %v8162
      %v8179 = vpack.c.bf16 %v8163, %v8163
      %v8180 = vpack.c.bf16 %v8164, %v8164
      %v8181 = vpack.c.bf16 %v8165, %v8165
      %v8182 = vpack.c.bf16 %v8166, %v8166
      %v8183 = vpack.c.bf16 %v8167, %v8167
      %v8184 = vpack.c.bf16 %v8168, %v8168
      %8186 = vrot.lane.b32.xlu0 %v7241, 96
      %v8187 = vpop.permute.xlu0 %8186
      %v8189 = vsel %vm2382, %v8169, 0
      %v8192 = vsel %vm2580, %v8187, 0
      %8194 = vmatprep.subr.bf16.mxu0 0
      %8195 = vmatpush1.bf16.msra.mxu0 %v8192
      %8196 = vmatprep.subr.bf16.mxu0 0
      %8197 = vmatpush1.bf16.msra.mxu0 0
      %8198 = vmatprep.subr.bf16.mxu0 0
      %8199 = vmatpush1.bf16.msra.mxu0 0
      %8200 = vmatprep.subr.bf16.mxu0 0
      %8201 = vmatpush1.bf16.msra.mxu0 0
      %8202 = vmatprep.subr.bf16.mxu0 0
      %8203 = vmatpush1.bf16.msra.mxu0 0
      %8204 = vmatprep.subr.bf16.mxu0 0
      %8205 = vmatpush1.bf16.msra.mxu0 0
      %8206 = vmatprep.subr.bf16.mxu0 0
      %8207 = vmatpush1.bf16.msra.mxu0 0
      %8208 = vmatprep.subr.bf16.mxu0 0
      %8209 = vmatpush1.bf16.msra.mxu0 0
      %8210 = vmatprep.subr.bf16.mxu0 0
      %8211 = vmatpush1.bf16.msra.mxu0 0
      %8212 = vmatprep.subr.bf16.mxu0 0
      %8213 = vmatpush1.bf16.msra.mxu0 0
      %8214 = vmatprep.subr.bf16.mxu0 0
      %8215 = vmatpush1.bf16.msra.mxu0 0
      %8216 = vmatprep.subr.bf16.mxu0 0
      %8217 = vmatpush1.bf16.msra.mxu0 0
      %8218 = vmatprep.subr.bf16.mxu0 0
      %8219 = vmatpush1.bf16.msra.mxu0 0
      %8220 = vmatprep.subr.bf16.mxu0 0
      %8221 = vmatpush1.bf16.msra.mxu0 0
      %8222 = vmatprep.subr.bf16.mxu0 0
      %8223 = vmatpush1.bf16.msra.mxu0 0
      %8224 = vmatprep.subr.bf16.mxu0 0
      %8225 = vmatpush1.bf16.msra.mxu0 0
      %8226 = vmatprep.mubr.bf16.mxu0 0
      %8227 = vmatmul.mubr.bf16.gmra.mrb[0].mxu0 %v8189
      %v8228 = vpop.f32.mrb[0].mxu0
      %v8229 = vadd.f32 0.0, %v8228
      %v8230 = vpop.f32.mrb[0].mxu0
      %v8231 = vpop.f32.mrb[0].mxu0
      %v8232 = vpop.f32.mrb[0].mxu0
      %8233 = vdwg.mxu0
      %8235 = vrot.lane.b32.xlu0 %v7242, 96
      %v8236 = vpop.permute.xlu0 %8235
      %v8238 = vsel %vm2382, %v8170, 0
      %v8241 = vsel %vm2580, %v8236, 0
      %8243 = vmatprep.subr.bf16.mxu0 0
      %8244 = vmatpush1.bf16.msra.mxu0 %v8241
      %8245 = vmatprep.subr.bf16.mxu0 0
      %8246 = vmatpush1.bf16.msra.mxu0 0
      %8247 = vmatprep.subr.bf16.mxu0 0
      %8248 = vmatpush1.bf16.msra.mxu0 0
      %8249 = vmatprep.subr.bf16.mxu0 0
      %8250 = vmatpush1.bf16.msra.mxu0 0
      %8251 = vmatprep.subr.bf16.mxu0 0
      %8252 = vmatpush1.bf16.msra.mxu0 0
      %8253 = vmatprep.subr.bf16.mxu0 0
      %8254 = vmatpush1.bf16.msra.mxu0 0
      %8255 = vmatprep.subr.bf16.mxu0 0
      %8256 = vmatpush1.bf16.msra.mxu0 0
      %8257 = vmatprep.subr.bf16.mxu0 0
      %8258 = vmatpush1.bf16.msra.mxu0 0
      %8259 = vmatprep.subr.bf16.mxu0 0
      %8260 = vmatpush1.bf16.msra.mxu0 0
      %8261 = vmatprep.subr.bf16.mxu0 0
      %8262 = vmatpush1.bf16.msra.mxu0 0
      %8263 = vmatprep.subr.bf16.mxu0 0
      %8264 = vmatpush1.bf16.msra.mxu0 0
      %8265 = vmatprep.subr.bf16.mxu0 0
      %8266 = vmatpush1.bf16.msra.mxu0 0
      %8267 = vmatprep.subr.bf16.mxu0 0
      %8268 = vmatpush1.bf16.msra.mxu0 0
      %8269 = vmatprep.subr.bf16.mxu0 0
      %8270 = vmatpush1.bf16.msra.mxu0 0
      %8271 = vmatprep.subr.bf16.mxu0 0
      %8272 = vmatpush1.bf16.msra.mxu0 0
      %8273 = vmatprep.subr.bf16.mxu0 0
      %8274 = vmatpush1.bf16.msra.mxu0 0
      %8275 = vmatprep.mubr.bf16.mxu0 0
      %8276 = vmatmul.mubr.bf16.gmra.mrb[0].mxu0 %v8238
      %v8277 = vpop.f32.mrb[0].mxu0
      %v8278 = vadd.f32 0.0, %v8277
      %v8279 = vpop.f32.mrb[0].mxu0
      %v8280 = vpop.f32.mrb[0].mxu0
      %v8281 = vpop.f32.mrb[0].mxu0
      %8282 = vdwg.mxu0
      %8284 = vrot.lane.b32.xlu0 %v7243, 96
      %v8285 = vpop.permute.xlu0 %8284
      %v8287 = vsel %vm2382, %v8171, 0
      %v8290 = vsel %vm2580, %v8285, 0
      %8292 = vmatprep.subr.bf16.mxu0 0
      %8293 = vmatpush1.bf16.msra.mxu0 %v8290
      %8294 = vmatprep.subr.bf16.mxu0 0
      %8295 = vmatpush1.bf16.msra.mxu0 0
      %8296 = vmatprep.subr.bf16.mxu0 0
      %8297 = vmatpush1.bf16.msra.mxu0 0
      %8298 = vmatprep.subr.bf16.mxu0 0
      %8299 = vmatpush1.bf16.msra.mxu0 0
      %8300 = vmatprep.subr.bf16.mxu0 0
      %8301 = vmatpush1.bf16.msra.mxu0 0
      %8302 = vmatprep.subr.bf16.mxu0 0
      %8303 = vmatpush1.bf16.msra.mxu0 0
      %8304 = vmatprep.subr.bf16.mxu0 0
      %8305 = vmatpush1.bf16.msra.mxu0 0
      %8306 = vmatprep.subr.bf16.mxu0 0
      %8307 = vmatpush1.bf16.msra.mxu0 0
      %8308 = vmatprep.subr.bf16.mxu0 0
      %8309 = vmatpush1.bf16.msra.mxu0 0
      %8310 = vmatprep.subr.bf16.mxu0 0
      %8311 = vmatpush1.bf16.msra.mxu0 0
      %8312 = vmatprep.subr.bf16.mxu0 0
      %8313 = vmatpush1.bf16.msra.mxu0 0
      %8314 = vmatprep.subr.bf16.mxu0 0
      %8315 = vmatpush1.bf16.msra.mxu0 0
      %8316 = vmatprep.subr.bf16.mxu0 0
      %8317 = vmatpush1.bf16.msra.mxu0 0
      %8318 = vmatprep.subr.bf16.mxu0 0
      %8319 = vmatpush1.bf16.msra.mxu0 0
      %8320 = vmatprep.subr.bf16.mxu0 0
      %8321 = vmatpush1.bf16.msra.mxu0 0
      %8322 = vmatprep.subr.bf16.mxu0 0
      %8323 = vmatpush1.bf16.msra.mxu0 0
      %8324 = vmatprep.mubr.bf16.mxu0 0
      %8325 = vmatmul.mubr.bf16.gmra.mrb[0].mxu0 %v8287
      %v8326 = vpop.f32.mrb[0].mxu0
      %v8327 = vadd.f32 0.0, %v8326
      %v8328 = vpop.f32.mrb[0].mxu0
      %v8329 = vpop.f32.mrb[0].mxu0
      %v8330 = vpop.f32.mrb[0].mxu0
      %8331 = vdwg.mxu0
      %8333 = vrot.lane.b32.xlu0 %v7244, 96
      %v8334 = vpop.permute.xlu0 %8333
      %v8336 = vsel %vm2382, %v8172, 0
      %v8339 = vsel %vm2580, %v8334, 0
      %8341 = vmatprep.subr.bf16.mxu0 0
      %8342 = vmatpush1.bf16.msra.mxu0 %v8339
      %8343 = vmatprep.subr.bf16.mxu0 0
      %8344 = vmatpush1.bf16.msra.mxu0 0
      %8345 = vmatprep.subr.bf16.mxu0 0
      %8346 = vmatpush1.bf16.msra.mxu0 0
      %8347 = vmatprep.subr.bf16.mxu0 0
      %8348 = vmatpush1.bf16.msra.mxu0 0
      %8349 = vmatprep.subr.bf16.mxu0 0
      %8350 = vmatpush1.bf16.msra.mxu0 0
      %8351 = vmatprep.subr.bf16.mxu0 0
      %8352 = vmatpush1.bf16.msra.mxu0 0
      %8353 = vmatprep.subr.bf16.mxu0 0
      %8354 = vmatpush1.bf16.msra.mxu0 0
      %8355 = vmatprep.subr.bf16.mxu0 0
      %8356 = vmatpush1.bf16.msra.mxu0 0
      %8357 = vmatprep.subr.bf16.mxu0 0
      %8358 = vmatpush1.bf16.msra.mxu0 0
      %8359 = vmatprep.subr.bf16.mxu0 0
      %8360 = vmatpush1.bf16.msra.mxu0 0
      %8361 = vmatprep.subr.bf16.mxu0 0
      %8362 = vmatpush1.bf16.msra.mxu0 0
      %8363 = vmatprep.subr.bf16.mxu0 0
      %8364 = vmatpush1.bf16.msra.mxu0 0
      %8365 = vmatprep.subr.bf16.mxu0 0
      %8366 = vmatpush1.bf16.msra.mxu0 0
      %8367 = vmatprep.subr.bf16.mxu0 0
      %8368 = vmatpush1.bf16.msra.mxu0 0
      %8369 = vmatprep.subr.bf16.mxu0 0
      %8370 = vmatpush1.bf16.msra.mxu0 0
      %8371 = vmatprep.subr.bf16.mxu0 0
      %8372 = vmatpush1.bf16.msra.mxu0 0
      %8373 = vmatprep.mubr.bf16.mxu0 0
      %8374 = vmatmul.mubr.bf16.gmra.mrb[0].mxu0 %v8336
      %v8375 = vpop.f32.mrb[0].mxu0
      %v8376 = vadd.f32 0.0, %v8375
      %v8377 = vpop.f32.mrb[0].mxu0
      %v8378 = vpop.f32.mrb[0].mxu0
      %v8379 = vpop.f32.mrb[0].mxu0
      %8380 = vdwg.mxu0
      %8382 = vrot.lane.b32.xlu0 %v7245, 96
      %v8383 = vpop.permute.xlu0 %8382
      %v8385 = vsel %vm2382, %v8173, 0
      %v8388 = vsel %vm2580, %v8383, 0
      %8390 = vmatprep.subr.bf16.mxu0 0
      %8391 = vmatpush1.bf16.msra.mxu0 %v8388
      %8392 = vmatprep.subr.bf16.mxu0 0
      %8393 = vmatpush1.bf16.msra.mxu0 0
      %8394 = vmatprep.subr.bf16.mxu0 0
      %8395 = vmatpush1.bf16.msra.mxu0 0
      %8396 = vmatprep.subr.bf16.mxu0 0
      %8397 = vmatpush1.bf16.msra.mxu0 0
      %8398 = vmatprep.subr.bf16.mxu0 0
      %8399 = vmatpush1.bf16.msra.mxu0 0
      %8400 = vmatprep.subr.bf16.mxu0 0
      %8401 = vmatpush1.bf16.msra.mxu0 0
      %8402 = vmatprep.subr.bf16.mxu0 0
      %8403 = vmatpush1.bf16.msra.mxu0 0
      %8404 = vmatprep.subr.bf16.mxu0 0
      %8405 = vmatpush1.bf16.msra.mxu0 0
      %8406 = vmatprep.subr.bf16.mxu0 0
      %8407 = vmatpush1.bf16.msra.mxu0 0
      %8408 = vmatprep.subr.bf16.mxu0 0
      %8409 = vmatpush1.bf16.msra.mxu0 0
      %8410 = vmatprep.subr.bf16.mxu0 0
      %8411 = vmatpush1.bf16.msra.mxu0 0
      %8412 = vmatprep.subr.bf16.mxu0 0
      %8413 = vmatpush1.bf16.msra.mxu0 0
      %8414 = vmatprep.subr.bf16.mxu0 0
      %8415 = vmatpush1.bf16.msra.mxu0 0
      %8416 = vmatprep.subr.bf16.mxu0 0
      %8417 = vmatpush1.bf16.msra.mxu0 0
      %8418 = vmatprep.subr.bf16.mxu0 0
      %8419 = vmatpush1.bf16.msra.mxu0 0
      %8420 = vmatprep.subr.bf16.mxu0 0
      %8421 = vmatpush1.bf16.msra.mxu0 0
      %8422 = vmatprep.mubr.bf16.mxu0 0
      %8423 = vmatmul.mubr.bf16.gmra.mrb[0].mxu0 %v8385
      %v8424 = vpop.f32.mrb[0].mxu0
      %v8425 = vadd.f32 0.0, %v8424
      %v8426 = vpop.f32.mrb[0].mxu0
      %v8427 = vpop.f32.mrb[0].mxu0
      %v8428 = vpop.f32.mrb[0].mxu0
      %8429 = vdwg.mxu0
      %8431 = vrot.lane.b32.xlu0 %v7246, 96
      %v8432 = vpop.permute.xlu0 %8431
      %v8434 = vsel %vm2382, %v8174, 0
      %v8437 = vsel %vm2580, %v8432, 0
      %8439 = vmatprep.subr.bf16.mxu0 0
      %8440 = vmatpush1.bf16.msra.mxu0 %v8437
      %8441 = vmatprep.subr.bf16.mxu0 0
      %8442 = vmatpush1.bf16.msra.mxu0 0
      %8443 = vmatprep.subr.bf16.mxu0 0
      %8444 = vmatpush1.bf16.msra.mxu0 0
      %8445 = vmatprep.subr.bf16.mxu0 0
      %8446 = vmatpush1.bf16.msra.mxu0 0
      %8447 = vmatprep.subr.bf16.mxu0 0
      %8448 = vmatpush1.bf16.msra.mxu0 0
      %8449 = vmatprep.subr.bf16.mxu0 0
      %8450 = vmatpush1.bf16.msra.mxu0 0
      %8451 = vmatprep.subr.bf16.mxu0 0
      %8452 = vmatpush1.bf16.msra.mxu0 0
      %8453 = vmatprep.subr.bf16.mxu0 0
      %8454 = vmatpush1.bf16.msra.mxu0 0
      %8455 = vmatprep.subr.bf16.mxu0 0
      %8456 = vmatpush1.bf16.msra.mxu0 0
      %8457 = vmatprep.subr.bf16.mxu0 0
      %8458 = vmatpush1.bf16.msra.mxu0 0
      %8459 = vmatprep.subr.bf16.mxu0 0
      %8460 = vmatpush1.bf16.msra.mxu0 0
      %8461 = vmatprep.subr.bf16.mxu0 0
      %8462 = vmatpush1.bf16.msra.mxu0 0
      %8463 = vmatprep.subr.bf16.mxu0 0
      %8464 = vmatpush1.bf16.msra.mxu0 0
      %8465 = vmatprep.subr.bf16.mxu0 0
      %8466 = vmatpush1.bf16.msra.mxu0 0
      %8467 = vmatprep.subr.bf16.mxu0 0
      %8468 = vmatpush1.bf16.msra.mxu0 0
      %8469 = vmatprep.subr.bf16.mxu0 0
      %8470 = vmatpush1.bf16.msra.mxu0 0
      %8471 = vmatprep.mubr.bf16.mxu0 0
      %8472 = vmatmul.mubr.bf16.gmra.mrb[0].mxu0 %v8434
      %v8473 = vpop.f32.mrb[0].mxu0
      %v8474 = vadd.f32 0.0, %v8473
      %v8475 = vpop.f32.mrb[0].mxu0
      %v8476 = vpop.f32.mrb[0].mxu0
      %v8477 = vpop.f32.mrb[0].mxu0
      %8478 = vdwg.mxu0
      %8480 = vrot.lane.b32.xlu0 %v7247, 96
      %v8481 = vpop.permute.xlu0 %8480
      %v8483 = vsel %vm2382, %v8175, 0
      %v8486 = vsel %vm2580, %v8481, 0
      %8488 = vmatprep.subr.bf16.mxu0 0
      %8489 = vmatpush1.bf16.msra.mxu0 %v8486
      %8490 = vmatprep.subr.bf16.mxu0 0
      %8491 = vmatpush1.bf16.msra.mxu0 0
      %8492 = vmatprep.subr.bf16.mxu0 0
      %8493 = vmatpush1.bf16.msra.mxu0 0
      %8494 = vmatprep.subr.bf16.mxu0 0
      %8495 = vmatpush1.bf16.msra.mxu0 0
      %8496 = vmatprep.subr.bf16.mxu0 0
      %8497 = vmatpush1.bf16.msra.mxu0 0
      %8498 = vmatprep.subr.bf16.mxu0 0
      %8499 = vmatpush1.bf16.msra.mxu0 0
      %8500 = vmatprep.subr.bf16.mxu0 0
      %8501 = vmatpush1.bf16.msra.mxu0 0
      %8502 = vmatprep.subr.bf16.mxu0 0
      %8503 = vmatpush1.bf16.msra.mxu0 0
      %8504 = vmatprep.subr.bf16.mxu0 0
      %8505 = vmatpush1.bf16.msra.mxu0 0
      %8506 = vmatprep.subr.bf16.mxu0 0
      %8507 = vmatpush1.bf16.msra.mxu0 0
      %8508 = vmatprep.subr.bf16.mxu0 0
      %8509 = vmatpush1.bf16.msra.mxu0 0
      %8510 = vmatprep.subr.bf16.mxu0 0
      %8511 = vmatpush1.bf16.msra.mxu0 0
      %8512 = vmatprep.subr.bf16.mxu0 0
      %8513 = vmatpush1.bf16.msra.mxu0 0
      %8514 = vmatprep.subr.bf16.mxu0 0
      %8515 = vmatpush1.bf16.msra.mxu0 0
      %8516 = vmatprep.subr.bf16.mxu0 0
      %8517 = vmatpush1.bf16.msra.mxu0 0
      %8518 = vmatprep.subr.bf16.mxu0 0
      %8519 = vmatpush1.bf16.msra.mxu0 0
      %8520 = vmatprep.mubr.bf16.mxu0 0
      %8521 = vmatmul.mubr.bf16.gmra.mrb[0].mxu0 %v8483
      %v8522 = vpop.f32.mrb[0].mxu0
      %v8523 = vadd.f32 0.0, %v8522
      %v8524 = vpop.f32.mrb[0].mxu0
      %v8525 = vpop.f32.mrb[0].mxu0
      %v8526 = vpop.f32.mrb[0].mxu0
      %8527 = vdwg.mxu0
      %8529 = vrot.lane.b32.xlu0 %v7248, 96
      %v8530 = vpop.permute.xlu0 %8529
      %v8532 = vsel %vm2382, %v8176, 0
      %v8535 = vsel %vm2580, %v8530, 0
      %8537 = vmatprep.subr.bf16.mxu0 0
      %8538 = vmatpush1.bf16.msra.mxu0 %v8535
      %8539 = vmatprep.subr.bf16.mxu0 0
      %8540 = vmatpush1.bf16.msra.mxu0 0
      %8541 = vmatprep.subr.bf16.mxu0 0
      %8542 = vmatpush1.bf16.msra.mxu0 0
      %8543 = vmatprep.subr.bf16.mxu0 0
      %8544 = vmatpush1.bf16.msra.mxu0 0
      %8545 = vmatprep.subr.bf16.mxu0 0
      %8546 = vmatpush1.bf16.msra.mxu0 0
      %8547 = vmatprep.subr.bf16.mxu0 0
      %8548 = vmatpush1.bf16.msra.mxu0 0
      %8549 = vmatprep.subr.bf16.mxu0 0
      %8550 = vmatpush1.bf16.msra.mxu0 0
      %8551 = vmatprep.subr.bf16.mxu0 0
      %8552 = vmatpush1.bf16.msra.mxu0 0
      %8553 = vmatprep.subr.bf16.mxu0 0
      %8554 = vmatpush1.bf16.msra.mxu0 0
      %8555 = vmatprep.subr.bf16.mxu0 0
      %8556 = vmatpush1.bf16.msra.mxu0 0
      %8557 = vmatprep.subr.bf16.mxu0 0
      %8558 = vmatpush1.bf16.msra.mxu0 0
      %8559 = vmatprep.subr.bf16.mxu0 0
      %8560 = vmatpush1.bf16.msra.mxu0 0
      %8561 = vmatprep.subr.bf16.mxu0 0
      %8562 = vmatpush1.bf16.msra.mxu0 0
      %8563 = vmatprep.subr.bf16.mxu0 0
      %8564 = vmatpush1.bf16.msra.mxu0 0
      %8565 = vmatprep.subr.bf16.mxu0 0
      %8566 = vmatpush1.bf16.msra.mxu0 0
      %8567 = vmatprep.subr.bf16.mxu0 0
      %8568 = vmatpush1.bf16.msra.mxu0 0
      %8569 = vmatprep.mubr.bf16.mxu0 0
      %8570 = vmatmul.mubr.bf16.gmra.mrb[0].mxu0 %v8532
      %v8571 = vpop.f32.mrb[0].mxu0
      %v8572 = vadd.f32 0.0, %v8571
      %v8573 = vpop.f32.mrb[0].mxu0
      %v8574 = vpop.f32.mrb[0].mxu0
      %v8575 = vpop.f32.mrb[0].mxu0
      %8576 = vdwg.mxu0
      %8578 = vrot.lane.b32.xlu0 %v7249, 96
      %v8579 = vpop.permute.xlu0 %8578
      %v8581 = vsel %vm2382, %v8177, 0
      %v8584 = vsel %vm2580, %v8579, 0
      %8586 = vmatprep.subr.bf16.mxu0 0
      %8587 = vmatpush1.bf16.msra.mxu0 %v8584
      %8588 = vmatprep.subr.bf16.mxu0 0
      %8589 = vmatpush1.bf16.msra.mxu0 0
      %8590 = vmatprep.subr.bf16.mxu0 0
      %8591 = vmatpush1.bf16.msra.mxu0 0
      %8592 = vmatprep.subr.bf16.mxu0 0
      %8593 = vmatpush1.bf16.msra.mxu0 0
      %8594 = vmatprep.subr.bf16.mxu0 0
      %8595 = vmatpush1.bf16.msra.mxu0 0
      %8596 = vmatprep.subr.bf16.mxu0 0
      %8597 = vmatpush1.bf16.msra.mxu0 0
      %8598 = vmatprep.subr.bf16.mxu0 0
      %8599 = vmatpush1.bf16.msra.mxu0 0
      %8600 = vmatprep.subr.bf16.mxu0 0
      %8601 = vmatpush1.bf16.msra.mxu0 0
      %8602 = vmatprep.subr.bf16.mxu0 0
      %8603 = vmatpush1.bf16.msra.mxu0 0
      %8604 = vmatprep.subr.bf16.mxu0 0
      %8605 = vmatpush1.bf16.msra.mxu0 0
      %8606 = vmatprep.subr.bf16.mxu0 0
      %8607 = vmatpush1.bf16.msra.mxu0 0
      %8608 = vmatprep.subr.bf16.mxu0 0
      %8609 = vmatpush1.bf16.msra.mxu0 0
      %8610 = vmatprep.subr.bf16.mxu0 0
      %8611 = vmatpush1.bf16.msra.mxu0 0
      %8612 = vmatprep.subr.bf16.mxu0 0
      %8613 = vmatpush1.bf16.msra.mxu0 0
      %8614 = vmatprep.subr.bf16.mxu0 0
      %8615 = vmatpush1.bf16.msra.mxu0 0
      %8616 = vmatprep.subr.bf16.mxu0 0
      %8617 = vmatpush1.bf16.msra.mxu0 0
      %8618 = vmatprep.mubr.bf16.mxu0 0
      %8619 = vmatmul.mubr.bf16.gmra.mrb[0].mxu0 %v8581
      %v8620 = vpop.f32.mrb[0].mxu0
      %v8621 = vadd.f32 0.0, %v8620
      %v8622 = vpop.f32.mrb[0].mxu0
      %v8623 = vpop.f32.mrb[0].mxu0
      %v8624 = vpop.f32.mrb[0].mxu0
      %8625 = vdwg.mxu0
      %8627 = vrot.lane.b32.xlu0 %v7250, 96
      %v8628 = vpop.permute.xlu0 %8627
      %v8630 = vsel %vm2382, %v8178, 0
      %v8633 = vsel %vm2580, %v8628, 0
      %8635 = vmatprep.subr.bf16.mxu0 0
      %8636 = vmatpush1.bf16.msra.mxu0 %v8633
      %8637 = vmatprep.subr.bf16.mxu0 0
      %8638 = vmatpush1.bf16.msra.mxu0 0
      %8639 = vmatprep.subr.bf16.mxu0 0
      %8640 = vmatpush1.bf16.msra.mxu0 0
      %8641 = vmatprep.subr.bf16.mxu0 0
      %8642 = vmatpush1.bf16.msra.mxu0 0
      %8643 = vmatprep.subr.bf16.mxu0 0
      %8644 = vmatpush1.bf16.msra.mxu0 0
      %8645 = vmatprep.subr.bf16.mxu0 0
      %8646 = vmatpush1.bf16.msra.mxu0 0
      %8647 = vmatprep.subr.bf16.mxu0 0
      %8648 = vmatpush1.bf16.msra.mxu0 0
      %8649 = vmatprep.subr.bf16.mxu0 0
      %8650 = vmatpush1.bf16.msra.mxu0 0
      %8651 = vmatprep.subr.bf16.mxu0 0
      %8652 = vmatpush1.bf16.msra.mxu0 0
      %8653 = vmatprep.subr.bf16.mxu0 0
      %8654 = vmatpush1.bf16.msra.mxu0 0
      %8655 = vmatprep.subr.bf16.mxu0 0
      %8656 = vmatpush1.bf16.msra.mxu0 0
      %8657 = vmatprep.subr.bf16.mxu0 0
      %8658 = vmatpush1.bf16.msra.mxu0 0
      %8659 = vmatprep.subr.bf16.mxu0 0
      %8660 = vmatpush1.bf16.msra.mxu0 0
      %8661 = vmatprep.subr.bf16.mxu0 0
      %8662 = vmatpush1.bf16.msra.mxu0 0
      %8663 = vmatprep.subr.bf16.mxu0 0
      %8664 = vmatpush1.bf16.msra.mxu0 0
      %8665 = vmatprep.subr.bf16.mxu0 0
      %8666 = vmatpush1.bf16.msra.mxu0 0
      %8667 = vmatprep.mubr.bf16.mxu0 0
      %8668 = vmatmul.mubr.bf16.gmra.mrb[0].mxu0 %v8630
      %v8669 = vpop.f32.mrb[0].mxu0
      %v8670 = vadd.f32 0.0, %v8669
      %v8671 = vpop.f32.mrb[0].mxu0
      %v8672 = vpop.f32.mrb[0].mxu0
      %v8673 = vpop.f32.mrb[0].mxu0
      %8674 = vdwg.mxu0
      %8676 = vrot.lane.b32.xlu0 %v7251, 96
      %v8677 = vpop.permute.xlu0 %8676
      %v8679 = vsel %vm2382, %v8179, 0
      %v8682 = vsel %vm2580, %v8677, 0
      %8684 = vmatprep.subr.bf16.mxu0 0
      %8685 = vmatpush1.bf16.msra.mxu0 %v8682
      %8686 = vmatprep.subr.bf16.mxu0 0
      %8687 = vmatpush1.bf16.msra.mxu0 0
      %8688 = vmatprep.subr.bf16.mxu0 0
      %8689 = vmatpush1.bf16.msra.mxu0 0
      %8690 = vmatprep.subr.bf16.mxu0 0
      %8691 = vmatpush1.bf16.msra.mxu0 0
      %8692 = vmatprep.subr.bf16.mxu0 0
      %8693 = vmatpush1.bf16.msra.mxu0 0
      %8694 = vmatprep.subr.bf16.mxu0 0
      %8695 = vmatpush1.bf16.msra.mxu0 0
      %8696 = vmatprep.subr.bf16.mxu0 0
      %8697 = vmatpush1.bf16.msra.mxu0 0
      %8698 = vmatprep.subr.bf16.mxu0 0
      %8699 = vmatpush1.bf16.msra.mxu0 0
      %8700 = vmatprep.subr.bf16.mxu0 0
      %8701 = vmatpush1.bf16.msra.mxu0 0
      %8702 = vmatprep.subr.bf16.mxu0 0
      %8703 = vmatpush1.bf16.msra.mxu0 0
      %8704 = vmatprep.subr.bf16.mxu0 0
      %8705 = vmatpush1.bf16.msra.mxu0 0
      %8706 = vmatprep.subr.bf16.mxu0 0
      %8707 = vmatpush1.bf16.msra.mxu0 0
      %8708 = vmatprep.subr.bf16.mxu0 0
      %8709 = vmatpush1.bf16.msra.mxu0 0
      %8710 = vmatprep.subr.bf16.mxu0 0
      %8711 = vmatpush1.bf16.msra.mxu0 0
      %8712 = vmatprep.subr.bf16.mxu0 0
      %8713 = vmatpush1.bf16.msra.mxu0 0
      %8714 = vmatprep.subr.bf16.mxu0 0
      %8715 = vmatpush1.bf16.msra.mxu0 0
      %8716 = vmatprep.mubr.bf16.mxu0 0
      %8717 = vmatmul.mubr.bf16.gmra.mrb[0].mxu0 %v8679
      %v8718 = vpop.f32.mrb[0].mxu0
      %v8719 = vadd.f32 0.0, %v8718
      %v8720 = vpop.f32.mrb[0].mxu0
      %v8721 = vpop.f32.mrb[0].mxu0
      %v8722 = vpop.f32.mrb[0].mxu0
      %8723 = vdwg.mxu0
      %8725 = vrot.lane.b32.xlu0 %v7252, 96
      %v8726 = vpop.permute.xlu0 %8725
      %v8728 = vsel %vm2382, %v8180, 0
      %v8731 = vsel %vm2580, %v8726, 0
      %8733 = vmatprep.subr.bf16.mxu0 0
      %8734 = vmatpush1.bf16.msra.mxu0 %v8731
      %8735 = vmatprep.subr.bf16.mxu0 0
      %8736 = vmatpush1.bf16.msra.mxu0 0
      %8737 = vmatprep.subr.bf16.mxu0 0
      %8738 = vmatpush1.bf16.msra.mxu0 0
      %8739 = vmatprep.subr.bf16.mxu0 0
      %8740 = vmatpush1.bf16.msra.mxu0 0
      %8741 = vmatprep.subr.bf16.mxu0 0
      %8742 = vmatpush1.bf16.msra.mxu0 0
      %8743 = vmatprep.subr.bf16.mxu0 0
      %8744 = vmatpush1.bf16.msra.mxu0 0
      %8745 = vmatprep.subr.bf16.mxu0 0
      %8746 = vmatpush1.bf16.msra.mxu0 0
      %8747 = vmatprep.subr.bf16.mxu0 0
      %8748 = vmatpush1.bf16.msra.mxu0 0
      %8749 = vmatprep.subr.bf16.mxu0 0
      %8750 = vmatpush1.bf16.msra.mxu0 0
      %8751 = vmatprep.subr.bf16.mxu0 0
      %8752 = vmatpush1.bf16.msra.mxu0 0
      %8753 = vmatprep.subr.bf16.mxu0 0
      %8754 = vmatpush1.bf16.msra.mxu0 0
      %8755 = vmatprep.subr.bf16.mxu0 0
      %8756 = vmatpush1.bf16.msra.mxu0 0
      %8757 = vmatprep.subr.bf16.mxu0 0
      %8758 = vmatpush1.bf16.msra.mxu0 0
      %8759 = vmatprep.subr.bf16.mxu0 0
      %8760 = vmatpush1.bf16.msra.mxu0 0
      %8761 = vmatprep.subr.bf16.mxu0 0
      %8762 = vmatpush1.bf16.msra.mxu0 0
      %8763 = vmatprep.subr.bf16.mxu0 0
      %8764 = vmatpush1.bf16.msra.mxu0 0
      %8765 = vmatprep.mubr.bf16.mxu0 0
      %8766 = vmatmul.mubr.bf16.gmra.mrb[0].mxu0 %v8728
      %v8767 = vpop.f32.mrb[0].mxu0
      %v8768 = vadd.f32 0.0, %v8767
      %v8769 = vpop.f32.mrb[0].mxu0
      %v8770 = vpop.f32.mrb[0].mxu0
      %v8771 = vpop.f32.mrb[0].mxu0
      %8772 = vdwg.mxu0
      %8774 = vrot.lane.b32.xlu0 %v7253, 96
      %v8775 = vpop.permute.xlu0 %8774
      %v8777 = vsel %vm2382, %v8181, 0
      %v8780 = vsel %vm2580, %v8775, 0
      %8782 = vmatprep.subr.bf16.mxu0 0
      %8783 = vmatpush1.bf16.msra.mxu0 %v8780
      %8784 = vmatprep.subr.bf16.mxu0 0
      %8785 = vmatpush1.bf16.msra.mxu0 0
      %8786 = vmatprep.subr.bf16.mxu0 0
      %8787 = vmatpush1.bf16.msra.mxu0 0
      %8788 = vmatprep.subr.bf16.mxu0 0
      %8789 = vmatpush1.bf16.msra.mxu0 0
      %8790 = vmatprep.subr.bf16.mxu0 0
      %8791 = vmatpush1.bf16.msra.mxu0 0
      %8792 = vmatprep.subr.bf16.mxu0 0
      %8793 = vmatpush1.bf16.msra.mxu0 0
      %8794 = vmatprep.subr.bf16.mxu0 0
      %8795 = vmatpush1.bf16.msra.mxu0 0
      %8796 = vmatprep.subr.bf16.mxu0 0
      %8797 = vmatpush1.bf16.msra.mxu0 0
      %8798 = vmatprep.subr.bf16.mxu0 0
      %8799 = vmatpush1.bf16.msra.mxu0 0
      %8800 = vmatprep.subr.bf16.mxu0 0
      %8801 = vmatpush1.bf16.msra.mxu0 0
      %8802 = vmatprep.subr.bf16.mxu0 0
      %8803 = vmatpush1.bf16.msra.mxu0 0
      %8804 = vmatprep.subr.bf16.mxu0 0
      %8805 = vmatpush1.bf16.msra.mxu0 0
      %8806 = vmatprep.subr.bf16.mxu0 0
      %8807 = vmatpush1.bf16.msra.mxu0 0
      %8808 = vmatprep.subr.bf16.mxu0 0
      %8809 = vmatpush1.bf16.msra.mxu0 0
      %8810 = vmatprep.subr.bf16.mxu0 0
      %8811 = vmatpush1.bf16.msra.mxu0 0
      %8812 = vmatprep.subr.bf16.mxu0 0
      %8813 = vmatpush1.bf16.msra.mxu0 0
      %8814 = vmatprep.mubr.bf16.mxu0 0
      %8815 = vmatmul.mubr.bf16.gmra.mrb[0].mxu0 %v8777
      %v8816 = vpop.f32.mrb[0].mxu0
      %v8817 = vadd.f32 0.0, %v8816
      %v8818 = vpop.f32.mrb[0].mxu0
      %v8819 = vpop.f32.mrb[0].mxu0
      %v8820 = vpop.f32.mrb[0].mxu0
      %8821 = vdwg.mxu0
      %8823 = vrot.lane.b32.xlu0 %v7254, 96
      %v8824 = vpop.permute.xlu0 %8823
      %v8826 = vsel %vm2382, %v8182, 0
      %v8829 = vsel %vm2580, %v8824, 0
      %8831 = vmatprep.subr.bf16.mxu0 0
      %8832 = vmatpush1.bf16.msra.mxu0 %v8829
      %8833 = vmatprep.subr.bf16.mxu0 0
      %8834 = vmatpush1.bf16.msra.mxu0 0
      %8835 = vmatprep.subr.bf16.mxu0 0
      %8836 = vmatpush1.bf16.msra.mxu0 0
      %8837 = vmatprep.subr.bf16.mxu0 0
      %8838 = vmatpush1.bf16.msra.mxu0 0
      %8839 = vmatprep.subr.bf16.mxu0 0
      %8840 = vmatpush1.bf16.msra.mxu0 0
      %8841 = vmatprep.subr.bf16.mxu0 0
      %8842 = vmatpush1.bf16.msra.mxu0 0
      %8843 = vmatprep.subr.bf16.mxu0 0
      %8844 = vmatpush1.bf16.msra.mxu0 0
      %8845 = vmatprep.subr.bf16.mxu0 0
      %8846 = vmatpush1.bf16.msra.mxu0 0
      %8847 = vmatprep.subr.bf16.mxu0 0
      %8848 = vmatpush1.bf16.msra.mxu0 0
      %8849 = vmatprep.subr.bf16.mxu0 0
      %8850 = vmatpush1.bf16.msra.mxu0 0
      %8851 = vmatprep.subr.bf16.mxu0 0
      %8852 = vmatpush1.bf16.msra.mxu0 0
      %8853 = vmatprep.subr.bf16.mxu0 0
      %8854 = vmatpush1.bf16.msra.mxu0 0
      %8855 = vmatprep.subr.bf16.mxu0 0
      %8856 = vmatpush1.bf16.msra.mxu0 0
      %8857 = vmatprep.subr.bf16.mxu0 0
      %8858 = vmatpush1.bf16.msra.mxu0 0
      %8859 = vmatprep.subr.bf16.mxu0 0
      %8860 = vmatpush1.bf16.msra.mxu0 0
      %8861 = vmatprep.subr.bf16.mxu0 0
      %8862 = vmatpush1.bf16.msra.mxu0 0
      %8863 = vmatprep.mubr.bf16.mxu0 0
      %8864 = vmatmul.mubr.bf16.gmra.mrb[0].mxu0 %v8826
      %v8865 = vpop.f32.mrb[0].mxu0
      %v8866 = vadd.f32 0.0, %v8865
      %v8867 = vpop.f32.mrb[0].mxu0
      %v8868 = vpop.f32.mrb[0].mxu0
      %v8869 = vpop.f32.mrb[0].mxu0
      %8870 = vdwg.mxu0
      %8872 = vrot.lane.b32.xlu0 %v7255, 96
      %v8873 = vpop.permute.xlu0 %8872
      %v8875 = vsel %vm2382, %v8183, 0
      %v8878 = vsel %vm2580, %v8873, 0
      %8880 = vmatprep.subr.bf16.mxu0 0
      %8881 = vmatpush1.bf16.msra.mxu0 %v8878
      %8882 = vmatprep.subr.bf16.mxu0 0
      %8883 = vmatpush1.bf16.msra.mxu0 0
      %8884 = vmatprep.subr.bf16.mxu0 0
      %8885 = vmatpush1.bf16.msra.mxu0 0
      %8886 = vmatprep.subr.bf16.mxu0 0
      %8887 = vmatpush1.bf16.msra.mxu0 0
      %8888 = vmatprep.subr.bf16.mxu0 0
      %8889 = vmatpush1.bf16.msra.mxu0 0
      %8890 = vmatprep.subr.bf16.mxu0 0
      %8891 = vmatpush1.bf16.msra.mxu0 0
      %8892 = vmatprep.subr.bf16.mxu0 0
      %8893 = vmatpush1.bf16.msra.mxu0 0
      %8894 = vmatprep.subr.bf16.mxu0 0
      %8895 = vmatpush1.bf16.msra.mxu0 0
      %8896 = vmatprep.subr.bf16.mxu0 0
      %8897 = vmatpush1.bf16.msra.mxu0 0
      %8898 = vmatprep.subr.bf16.mxu0 0
      %8899 = vmatpush1.bf16.msra.mxu0 0
      %8900 = vmatprep.subr.bf16.mxu0 0
      %8901 = vmatpush1.bf16.msra.mxu0 0
      %8902 = vmatprep.subr.bf16.mxu0 0
      %8903 = vmatpush1.bf16.msra.mxu0 0
      %8904 = vmatprep.subr.bf16.mxu0 0
      %8905 = vmatpush1.bf16.msra.mxu0 0
      %8906 = vmatprep.subr.bf16.mxu0 0
      %8907 = vmatpush1.bf16.msra.mxu0 0
      %8908 = vmatprep.subr.bf16.mxu0 0
      %8909 = vmatpush1.bf16.msra.mxu0 0
      %8910 = vmatprep.subr.bf16.mxu0 0
      %8911 = vmatpush1.bf16.msra.mxu0 0
      %8912 = vmatprep.mubr.bf16.mxu0 0
      %8913 = vmatmul.mubr.bf16.gmra.mrb[0].mxu0 %v8875
      %v8914 = vpop.f32.mrb[0].mxu0
      %v8915 = vadd.f32 0.0, %v8914
      %v8916 = vpop.f32.mrb[0].mxu0
      %v8917 = vpop.f32.mrb[0].mxu0
      %v8918 = vpop.f32.mrb[0].mxu0
      %8919 = vdwg.mxu0
      %8921 = vrot.lane.b32.xlu0 %v7256, 96
      %v8922 = vpop.permute.xlu0 %8921
      %v8924 = vsel %vm2382, %v8184, 0
      %v8927 = vsel %vm2580, %v8922, 0
      %8929 = vmatprep.subr.bf16.mxu0 0
      %8930 = vmatpush1.bf16.msra.mxu0 %v8927
      %8931 = vmatprep.subr.bf16.mxu0 0
      %8932 = vmatpush1.bf16.msra.mxu0 0
      %8933 = vmatprep.subr.bf16.mxu0 0
      %8934 = vmatpush1.bf16.msra.mxu0 0
      %8935 = vmatprep.subr.bf16.mxu0 0
      %8936 = vmatpush1.bf16.msra.mxu0 0
      %8937 = vmatprep.subr.bf16.mxu0 0
      %8938 = vmatpush1.bf16.msra.mxu0 0
      %8939 = vmatprep.subr.bf16.mxu0 0
      %8940 = vmatpush1.bf16.msra.mxu0 0
      %8941 = vmatprep.subr.bf16.mxu0 0
      %8942 = vmatpush1.bf16.msra.mxu0 0
      %8943 = vmatprep.subr.bf16.mxu0 0
      %8944 = vmatpush1.bf16.msra.mxu0 0
      %8945 = vmatprep.subr.bf16.mxu0 0
      %8946 = vmatpush1.bf16.msra.mxu0 0
      %8947 = vmatprep.subr.bf16.mxu0 0
      %8948 = vmatpush1.bf16.msra.mxu0 0
      %8949 = vmatprep.subr.bf16.mxu0 0
      %8950 = vmatpush1.bf16.msra.mxu0 0
      %8951 = vmatprep.subr.bf16.mxu0 0
      %8952 = vmatpush1.bf16.msra.mxu0 0
      %8953 = vmatprep.subr.bf16.mxu0 0
      %8954 = vmatpush1.bf16.msra.mxu0 0
      %8955 = vmatprep.subr.bf16.mxu0 0
      %8956 = vmatpush1.bf16.msra.mxu0 0
      %8957 = vmatprep.subr.bf16.mxu0 0
      %8958 = vmatpush1.bf16.msra.mxu0 0
      %8959 = vmatprep.subr.bf16.mxu0 0
      %8960 = vmatpush1.bf16.msra.mxu0 0
      %8961 = vmatprep.mubr.bf16.mxu0 0
      %8962 = vmatmul.mubr.bf16.gmra.mrb[0].mxu0 %v8924
      %v8963 = vpop.f32.mrb[0].mxu0
      %v8964 = vadd.f32 0.0, %v8963
      %v8965 = vpop.f32.mrb[0].mxu0
      %v8966 = vpop.f32.mrb[0].mxu0
      %v8967 = vpop.f32.mrb[0].mxu0
      %8968 = vdwg.mxu0
      %v8969 = vpack.c.bf16 %v8278, %v8229
      %v8970 = vpack.c.bf16 %v8376, %v8327
      %v8971 = vpack.c.bf16 %v8474, %v8425
      %v8972 = vpack.c.bf16 %v8572, %v8523
      %v8973 = vpack.c.bf16 %v8670, %v8621
      %v8974 = vpack.c.bf16 %v8768, %v8719
      %v8975 = vpack.c.bf16 %v8866, %v8817
      %v8976 = vpack.c.bf16 %v8964, %v8915
      %v8977 = vld [vmem:[%s57] sm:$0xf]
      %v8978 = vld [vmem:[%s57 + $0x4] sm:$0xf]
      %v8979 = vld [vmem:[%s57 + $0x8] sm:$0xf]
      %v8980 = vld [vmem:[%s57 + $0xc] sm:$0xf]
      %v8981 = vld [vmem:[%s59] sm:$0x1]
      %v8983 = vlaneseq
      %v8984 = vshrl.u32 %v8983, 7
      %v8985 = vsub.s32 0, %v8984
      %v8986 = vrot.slane %v8981, %v8985
      %v8992 = vunpack.c.l.b16 %v8977
      %v8993 = vunpack.c.l.b16 %v8978
      %v8994 = vunpack.c.l.b16 %v8979
      %v8995 = vunpack.c.l.b16 %v8980
      %v8996 = vpack.c.b16 %v8993, %v8992
      %v8997 = vpack.c.b16 %v8995, %v8994
      %v9001 = vsel %vm1428, %v8969, 0
      %v9004 = vsel %vm1428, %v8970, 0
      %v9007 = vsel %vm1428, %v8971, 0
      %v9010 = vsel %vm1428, %v8972, 0
      %v9013 = vsel %vm1428, %v8973, 0
      %v9016 = vsel %vm1428, %v8974, 0
      %v9019 = vsel %vm1428, %v8975, 0
      %v9022 = vsel %vm1428, %v8976, 0
      %9024 = vmatprep.subr.bf16.mxu0 0
      %9025 = vmatpush1.bf16.msra.mxu0 %v8996
      %9026 = vmatprep.subr.bf16.mxu0 0
      %9027 = vmatpush1.bf16.msra.mxu0 %v8997
      %9028 = vmatprep.subr.bf16.mxu0 0
      %9029 = vmatpush1.bf16.msra.mxu0 0
      %9030 = vmatprep.subr.bf16.mxu0 0
      %9031 = vmatpush1.bf16.msra.mxu0 0
      %9032 = vmatprep.subr.bf16.mxu0 0
      %9033 = vmatpush1.bf16.msra.mxu0 0
      %9034 = vmatprep.subr.bf16.mxu0 0
      %9035 = vmatpush1.bf16.msra.mxu0 0
      %9036 = vmatprep.subr.bf16.mxu0 0
      %9037 = vmatpush1.bf16.msra.mxu0 0
      %9038 = vmatprep.subr.bf16.mxu0 0
      %9039 = vmatpush1.bf16.msra.mxu0 0
      %9040 = vmatprep.subr.bf16.mxu0 0
      %9041 = vmatpush1.bf16.msra.mxu0 0
      %9042 = vmatprep.subr.bf16.mxu0 0
      %9043 = vmatpush1.bf16.msra.mxu0 0
      %9044 = vmatprep.subr.bf16.mxu0 0
      %9045 = vmatpush1.bf16.msra.mxu0 0
      %9046 = vmatprep.subr.bf16.mxu0 0
      %9047 = vmatpush1.bf16.msra.mxu0 0
      %9048 = vmatprep.subr.bf16.mxu0 0
      %9049 = vmatpush1.bf16.msra.mxu0 0
      %9050 = vmatprep.subr.bf16.mxu0 0
      %9051 = vmatpush1.bf16.msra.mxu0 0
      %9052 = vmatprep.subr.bf16.mxu0 0
      %9053 = vmatpush1.bf16.msra.mxu0 0
      %9054 = vmatprep.subr.bf16.mxu0 0
      %9055 = vmatpush1.bf16.msra.mxu0 0
      %9056 = vmatprep.mubr.bf16.mxu0 0
      %9057 = vmatmul.mubr.bf16.gmra.mrb[0].mxu0 %v9001
      %v9058 = vpop.f32.mrb[0].mxu0
      %v9059 = vadd.f32 %v8986, %v9058
      %v9060 = vpop.f32.mrb[0].mxu0
      %v9061 = vpop.f32.mrb[0].mxu0
      %v9062 = vadd.f32 %v8986, %v9061
      %v9063 = vpop.f32.mrb[0].mxu0
      %9064 = vmatprep.mubr.bf16.mxu0 0
      %9065 = vmatmul.mubr.bf16.gmra.mrb[0].mxu0 %v9004
      %v9066 = vpop.f32.mrb[0].mxu0
      %v9067 = vadd.f32 %v8986, %v9066
      %v9068 = vpop.f32.mrb[0].mxu0
      %v9069 = vpop.f32.mrb[0].mxu0
      %v9070 = vadd.f32 %v8986, %v9069
      %v9071 = vpop.f32.mrb[0].mxu0
      %9072 = vmatprep.mubr.bf16.mxu0 0
      %9073 = vmatmul.mubr.bf16.gmra.mrb[0].mxu0 %v9007
      %v9074 = vpop.f32.mrb[0].mxu0
      %v9075 = vadd.f32 %v8986, %v9074
      %v9076 = vpop.f32.mrb[0].mxu0
      %v9077 = vpop.f32.mrb[0].mxu0
      %v9078 = vadd.f32 %v8986, %v9077
      %v9079 = vpop.f32.mrb[0].mxu0
      %9080 = vmatprep.mubr.bf16.mxu0 0
      %9081 = vmatmul.mubr.bf16.gmra.mrb[0].mxu0 %v9010
      %v9082 = vpop.f32.mrb[0].mxu0
      %v9083 = vadd.f32 %v8986, %v9082
      %v9084 = vpop.f32.mrb[0].mxu0
      %v9085 = vpop.f32.mrb[0].mxu0
      %v9086 = vadd.f32 %v8986, %v9085
      %v9087 = vpop.f32.mrb[0].mxu0
      %9088 = vmatprep.mubr.bf16.mxu0 0
      %9089 = vmatmul.mubr.bf16.gmra.mrb[0].mxu0 %v9013
      %v9090 = vpop.f32.mrb[0].mxu0
      %v9091 = vadd.f32 %v8986, %v9090
      %v9092 = vpop.f32.mrb[0].mxu0
      %v9093 = vpop.f32.mrb[0].mxu0
      %v9094 = vadd.f32 %v8986, %v9093
      %v9095 = vpop.f32.mrb[0].mxu0
      %9096 = vmatprep.mubr.bf16.mxu0 0
      %9097 = vmatmul.mubr.bf16.gmra.mrb[0].mxu0 %v9016
      %v9098 = vpop.f32.mrb[0].mxu0
      %v9099 = vadd.f32 %v8986, %v9098
      %v9100 = vpop.f32.mrb[0].mxu0
      %v9101 = vpop.f32.mrb[0].mxu0
      %v9102 = vadd.f32 %v8986, %v9101
      %v9103 = vpop.f32.mrb[0].mxu0
      %9104 = vmatprep.mubr.bf16.mxu0 0
      %9105 = vmatmul.mubr.bf16.gmra.mrb[0].mxu0 %v9019
      %v9106 = vpop.f32.mrb[0].mxu0
      %v9107 = vadd.f32 %v8986, %v9106
      %v9108 = vpop.f32.mrb[0].mxu0
      %v9109 = vpop.f32.mrb[0].mxu0
      %v9110 = vadd.f32 %v8986, %v9109
      %v9111 = vpop.f32.mrb[0].mxu0
      %9112 = vmatprep.mubr.bf16.mxu0 0
      %9113 = vmatmul.mubr.bf16.gmra.mrb[0].mxu0 %v9022
      %v9114 = vpop.f32.mrb[0].mxu0
      %v9115 = vadd.f32 %v8986, %v9114
      %v9116 = vpop.f32.mrb[0].mxu0
      %v9117 = vpop.f32.mrb[0].mxu0
      %v9118 = vadd.f32 %v8986, %v9117
      %v9119 = vpop.f32.mrb[0].mxu0
      %9120 = vdwg.mxu0
      %v9121 = vadd.f32 %v6889, %v9059
      %v9122 = vadd.f32 %v6890, %v9062
      %v9123 = vadd.f32 %v6891, %v9067
      %v9124 = vadd.f32 %v6892, %v9070
      %v9125 = vadd.f32 %v6893, %v9075
      %v9126 = vadd.f32 %v6894, %v9078
      %v9127 = vadd.f32 %v6895, %v9083
      %v9128 = vadd.f32 %v6896, %v9086
      %v9129 = vadd.f32 %v6897, %v9091
      %v9130 = vadd.f32 %v6898, %v9094
      %v9131 = vadd.f32 %v6899, %v9099
      %v9132 = vadd.f32 %v6900, %v9102
      %v9133 = vadd.f32 %v6901, %v9107
      %v9134 = vadd.f32 %v6902, %v9110
      %v9135 = vadd.f32 %v6903, %v9115
      %v9136 = vadd.f32 %v6904, %v9118
      %v9137 = vsel %vm1428, %v9121, 0.0
      %9138 = vadd.xlane.f32.xlu0 %v9137
      %v9139 = vpop.xlane.xlu0 %9138
      %v9140 = vsel %vm1428, %v9122, 0.0
      %9141 = vadd.xlane.f32.xlu0 %v9140
      %v9142 = vpop.xlane.xlu0 %9141
      %v9143 = vsel %vm1428, %v9123, 0.0
      %9144 = vadd.xlane.f32.xlu0 %v9143
      %v9145 = vpop.xlane.xlu0 %9144
      %v9146 = vsel %vm1428, %v9124, 0.0
      %9147 = vadd.xlane.f32.xlu0 %v9146
      %v9148 = vpop.xlane.xlu0 %9147
      %v9149 = vsel %vm1428, %v9125, 0.0
      %9150 = vadd.xlane.f32.xlu0 %v9149
      %v9151 = vpop.xlane.xlu0 %9150
      %v9152 = vsel %vm1428, %v9126, 0.0
      %9153 = vadd.xlane.f32.xlu0 %v9152
      %v9154 = vpop.xlane.xlu0 %9153
      %v9155 = vsel %vm1428, %v9127, 0.0
      %9156 = vadd.xlane.f32.xlu0 %v9155
      %v9157 = vpop.xlane.xlu0 %9156
      %v9158 = vsel %vm1428, %v9128, 0.0
      %9159 = vadd.xlane.f32.xlu0 %v9158
      %v9160 = vpop.xlane.xlu0 %9159
      %v9161 = vsel %vm1428, %v9129, 0.0
      %9162 = vadd.xlane.f32.xlu0 %v9161
      %v9163 = vpop.xlane.xlu0 %9162
      %v9164 = vsel %vm1428, %v9130, 0.0
      %9165 = vadd.xlane.f32.xlu0 %v9164
      %v9166 = vpop.xlane.xlu0 %9165
      %v9167 = vsel %vm1428, %v9131, 0.0
      %9168 = vadd.xlane.f32.xlu0 %v9167
      %v9169 = vpop.xlane.xlu0 %9168
      %v9170 = vsel %vm1428, %v9132, 0.0
      %9171 = vadd.xlane.f32.xlu0 %v9170
      %v9172 = vpop.xlane.xlu0 %9171
      %v9173 = vsel %vm1428, %v9133, 0.0
      %9174 = vadd.xlane.f32.xlu0 %v9173
      %v9175 = vpop.xlane.xlu0 %9174
      %v9176 = vsel %vm1428, %v9134, 0.0
      %9177 = vadd.xlane.f32.xlu0 %v9176
      %v9178 = vpop.xlane.xlu0 %9177
      %v9179 = vsel %vm1428, %v9135, 0.0
      %9180 = vadd.xlane.f32.xlu0 %v9179
      %v9181 = vpop.xlane.xlu0 %9180
      %v9182 = vsel %vm1428, %v9136, 0.0
      %9183 = vadd.xlane.f32.xlu0 %v9182
      %v9184 = vpop.xlane.xlu0 %9183
      %v9185 = vmul.f32 %v9139, %v3560
      %v9186 = vmul.f32 %v9142, %v3560
      %v9187 = vmul.f32 %v9145, %v3560
      %v9188 = vmul.f32 %v9148, %v3560
      %v9189 = vmul.f32 %v9151, %v3560
      %v9190 = vmul.f32 %v9154, %v3560
      %v9191 = vmul.f32 %v9157, %v3560
      %v9192 = vmul.f32 %v9160, %v3560
      %v9193 = vmul.f32 %v9163, %v3560
      %v9194 = vmul.f32 %v9166, %v3560
      %v9195 = vmul.f32 %v9169, %v3560
      %v9196 = vmul.f32 %v9172, %v3560
      %v9197 = vmul.f32 %v9175, %v3560
      %v9198 = vmul.f32 %v9178, %v3560
      %v9199 = vmul.f32 %v9181, %v3560
      %v9200 = vmul.f32 %v9184, %v3560
      %v9201 = vsub.f32 %v9121, %v9185
      %v9202 = vsub.f32 %v9122, %v9186
      %v9203 = vsub.f32 %v9123, %v9187
      %v9204 = vsub.f32 %v9124, %v9188
      %v9205 = vsub.f32 %v9125, %v9189
      %v9206 = vsub.f32 %v9126, %v9190
      %v9207 = vsub.f32 %v9127, %v9191
      %v9208 = vsub.f32 %v9128, %v9192
      %v9209 = vsub.f32 %v9129, %v9193
      %v9210 = vsub.f32 %v9130, %v9194
      %v9211 = vsub.f32 %v9131, %v9195
      %v9212 = vsub.f32 %v9132, %v9196
      %v9213 = vsub.f32 %v9133, %v9197
      %v9214 = vsub.f32 %v9134, %v9198
      %v9215 = vsub.f32 %v9135, %v9199
      %v9216 = vsub.f32 %v9136, %v9200
      %v9217 = vmul.f32 %v9201, %v9201
      %v9218 = vmul.f32 %v9202, %v9202
      %v9219 = vmul.f32 %v9203, %v9203
      %v9220 = vmul.f32 %v9204, %v9204
      %v9221 = vmul.f32 %v9205, %v9205
      %v9222 = vmul.f32 %v9206, %v9206
      %v9223 = vmul.f32 %v9207, %v9207
      %v9224 = vmul.f32 %v9208, %v9208
      %v9225 = vmul.f32 %v9209, %v9209
      %v9226 = vmul.f32 %v9210, %v9210
      %v9227 = vmul.f32 %v9211, %v9211
      %v9228 = vmul.f32 %v9212, %v9212
      %v9229 = vmul.f32 %v9213, %v9213
      %v9230 = vmul.f32 %v9214, %v9214
      %v9231 = vmul.f32 %v9215, %v9215
      %v9232 = vmul.f32 %v9216, %v9216
      %v9233 = vsel %vm1428, %v9217, 0.0
      %9234 = vadd.xlane.f32.xlu0 %v9233
      %v9235 = vpop.xlane.xlu0 %9234
      %v9236 = vsel %vm1428, %v9218, 0.0
      %9237 = vadd.xlane.f32.xlu0 %v9236
      %v9238 = vpop.xlane.xlu0 %9237
      %v9239 = vsel %vm1428, %v9219, 0.0
      %9240 = vadd.xlane.f32.xlu0 %v9239
      %v9241 = vpop.xlane.xlu0 %9240
      %v9242 = vsel %vm1428, %v9220, 0.0
      %9243 = vadd.xlane.f32.xlu0 %v9242
      %v9244 = vpop.xlane.xlu0 %9243
      %v9245 = vsel %vm1428, %v9221, 0.0
      %9246 = vadd.xlane.f32.xlu0 %v9245
      %v9247 = vpop.xlane.xlu0 %9246
      %v9248 = vsel %vm1428, %v9222, 0.0
      %9249 = vadd.xlane.f32.xlu0 %v9248
      %v9250 = vpop.xlane.xlu0 %9249
      %v9251 = vsel %vm1428, %v9223, 0.0
      %9252 = vadd.xlane.f32.xlu0 %v9251
      %v9253 = vpop.xlane.xlu0 %9252
      %v9254 = vsel %vm1428, %v9224, 0.0
      %9255 = vadd.xlane.f32.xlu0 %v9254
      %v9256 = vpop.xlane.xlu0 %9255
      %v9257 = vsel %vm1428, %v9225, 0.0
      %9258 = vadd.xlane.f32.xlu0 %v9257
      %v9259 = vpop.xlane.xlu0 %9258
      %v9260 = vsel %vm1428, %v9226, 0.0
      %9261 = vadd.xlane.f32.xlu0 %v9260
      %v9262 = vpop.xlane.xlu0 %9261
      %v9263 = vsel %vm1428, %v9227, 0.0
      %9264 = vadd.xlane.f32.xlu0 %v9263
      %v9265 = vpop.xlane.xlu0 %9264
      %v9266 = vsel %vm1428, %v9228, 0.0
      %9267 = vadd.xlane.f32.xlu0 %v9266
      %v9268 = vpop.xlane.xlu0 %9267
      %v9269 = vsel %vm1428, %v9229, 0.0
      %9270 = vadd.xlane.f32.xlu0 %v9269
      %v9271 = vpop.xlane.xlu0 %9270
      %v9272 = vsel %vm1428, %v9230, 0.0
      %9273 = vadd.xlane.f32.xlu0 %v9272
      %v9274 = vpop.xlane.xlu0 %9273
      %v9275 = vsel %vm1428, %v9231, 0.0
      %9276 = vadd.xlane.f32.xlu0 %v9275
      %v9277 = vpop.xlane.xlu0 %9276
      %v9278 = vsel %vm1428, %v9232, 0.0
      %9279 = vadd.xlane.f32.xlu0 %v9278
      %v9280 = vpop.xlane.xlu0 %9279
      %v9281 = vmul.f32 %v9235, %v3560
      %v9282 = vmul.f32 %v9238, %v3560
      %v9283 = vmul.f32 %v9241, %v3560
      %v9284 = vmul.f32 %v9244, %v3560
      %v9285 = vmul.f32 %v9247, %v3560
      %v9286 = vmul.f32 %v9250, %v3560
      %v9287 = vmul.f32 %v9253, %v3560
      %v9288 = vmul.f32 %v9256, %v3560
      %v9289 = vmul.f32 %v9259, %v3560
      %v9290 = vmul.f32 %v9262, %v3560
      %v9291 = vmul.f32 %v9265, %v3560
      %v9292 = vmul.f32 %v9268, %v3560
      %v9293 = vmul.f32 %v9271, %v3560
      %v9294 = vmul.f32 %v9274, %v3560
      %v9295 = vmul.f32 %v9277, %v3560
      %v9296 = vmul.f32 %v9280, %v3560
      %v9297 = vadd.f32 %v9281, 1e-05
      %v9298 = vadd.f32 %v9282, 1e-05
      %v9299 = vadd.f32 %v9283, 1e-05
      %v9300 = vadd.f32 %v9284, 1e-05
      %v9301 = vadd.f32 %v9285, 1e-05
      %v9302 = vadd.f32 %v9286, 1e-05
      %v9303 = vadd.f32 %v9287, 1e-05
      %v9304 = vadd.f32 %v9288, 1e-05
      %v9305 = vadd.f32 %v9289, 1e-05
      %v9306 = vadd.f32 %v9290, 1e-05
      %v9307 = vadd.f32 %v9291, 1e-05
      %v9308 = vadd.f32 %v9292, 1e-05
      %v9309 = vadd.f32 %v9293, 1e-05
      %v9310 = vadd.f32 %v9294, 1e-05
      %v9311 = vadd.f32 %v9295, 1e-05
      %v9312 = vadd.f32 %v9296, 1e-05
      %v9313 = vrsqrt.pop %v9297
      %v9314 = vrsqrt.pop %v9298
      %v9315 = vrsqrt.pop %v9299
      %v9316 = vrsqrt.pop %v9300
      %v9317 = vrsqrt.pop %v9301
      %v9318 = vrsqrt.pop %v9302
      %v9319 = vrsqrt.pop %v9303
      %v9320 = vrsqrt.pop %v9304
      %v9321 = vrsqrt.pop %v9305
      %v9322 = vrsqrt.pop %v9306
      %v9323 = vrsqrt.pop %v9307
      %v9324 = vrsqrt.pop %v9308
      %v9325 = vrsqrt.pop %v9309
      %v9326 = vrsqrt.pop %v9310
      %v9327 = vrsqrt.pop %v9311
      %v9328 = vrsqrt.pop %v9312
      %v9329 = vmul.f32 %v9201, %v9313
      %v9330 = vmul.f32 %v9202, %v9314
      %v9331 = vmul.f32 %v9203, %v9315
      %v9332 = vmul.f32 %v9204, %v9316
      %v9333 = vmul.f32 %v9205, %v9317
      %v9334 = vmul.f32 %v9206, %v9318
      %v9335 = vmul.f32 %v9207, %v9319
      %v9336 = vmul.f32 %v9208, %v9320
      %v9337 = vmul.f32 %v9209, %v9321
      %v9338 = vmul.f32 %v9210, %v9322
      %v9339 = vmul.f32 %v9211, %v9323
      %v9340 = vmul.f32 %v9212, %v9324
      %v9341 = vmul.f32 %v9213, %v9325
      %v9342 = vmul.f32 %v9214, %v9326
      %v9343 = vmul.f32 %v9215, %v9327
      %v9344 = vmul.f32 %v9216, %v9328
      %v9345 = vld [vmem:[%s61] sm:$0x1]
      %v9347 = vlaneseq
      %v9348 = vshrl.u32 %v9347, 7
      %v9349 = vsub.s32 0, %v9348
      %v9350 = vrot.slane %v9345, %v9349
      %v9352 = vmul.f32 %v9329, %v9350
      %v9353 = vmul.f32 %v9330, %v9350
      %v9354 = vmul.f32 %v9331, %v9350
      %v9355 = vmul.f32 %v9332, %v9350
      %v9356 = vmul.f32 %v9333, %v9350
      %v9357 = vmul.f32 %v9334, %v9350
      %v9358 = vmul.f32 %v9335, %v9350
      %v9359 = vmul.f32 %v9336, %v9350
      %v9360 = vmul.f32 %v9337, %v9350
      %v9361 = vmul.f32 %v9338, %v9350
      %v9362 = vmul.f32 %v9339, %v9350
      %v9363 = vmul.f32 %v9340, %v9350
      %v9364 = vmul.f32 %v9341, %v9350
      %v9365 = vmul.f32 %v9342, %v9350
      %v9366 = vmul.f32 %v9343, %v9350
      %v9367 = vmul.f32 %v9344, %v9350
      %v9368 = vld [vmem:[%s63] sm:$0x1]
      %v9370 = vlaneseq
      %v9371 = vshrl.u32 %v9370, 7
      %v9372 = vsub.s32 0, %v9371
      %v9373 = vrot.slane %v9368, %v9372
      %v9375 = vadd.f32 %v9352, %v9373
      %v9376 = vadd.f32 %v9353, %v9373
      %v9377 = vadd.f32 %v9354, %v9373
      %v9378 = vadd.f32 %v9355, %v9373
      %v9379 = vadd.f32 %v9356, %v9373
      %v9380 = vadd.f32 %v9357, %v9373
      %v9381 = vadd.f32 %v9358, %v9373
      %v9382 = vadd.f32 %v9359, %v9373
      %v9383 = vadd.f32 %v9360, %v9373
      %v9384 = vadd.f32 %v9361, %v9373
      %v9385 = vadd.f32 %v9362, %v9373
      %v9386 = vadd.f32 %v9363, %v9373
      %v9387 = vadd.f32 %v9364, %v9373
      %v9388 = vadd.f32 %v9365, %v9373
      %v9389 = vadd.f32 %v9366, %v9373
      %v9390 = vadd.f32 %v9367, %v9373
      %v9391 = vpack.c.bf16 %v9376, %v9375
      %v9392 = vpack.c.bf16 %v9378, %v9377
      %v9393 = vpack.c.bf16 %v9380, %v9379
      %v9394 = vpack.c.bf16 %v9382, %v9381
      %v9395 = vpack.c.bf16 %v9384, %v9383
      %v9396 = vpack.c.bf16 %v9386, %v9385
      %v9397 = vpack.c.bf16 %v9388, %v9387
      %v9398 = vpack.c.bf16 %v9390, %v9389
      %v9399 = vld [vmem:[%s65] sm:$0xf]
      %v9400 = vld [vmem:[%s65 + $0x4] sm:$0xf]
      %v9401 = vld [vmem:[%s65 + $0x8] sm:$0xf]
      %v9402 = vld [vmem:[%s65 + $0xc] sm:$0xf]
      %v9403 = vld [vmem:[%s67] sm:$0x1]
      %v9405 = vlaneseq
      %v9406 = vshrl.u32 %v9405, 7
      %v9407 = vsub.s32 0, %v9406
      %v9408 = vrot.slane %v9403, %v9407
      %v9414 = vunpack.c.l.b16 %v9399
      %v9415 = vunpack.c.l.b16 %v9400
      %v9416 = vunpack.c.l.b16 %v9401
      %v9417 = vunpack.c.l.b16 %v9402
      %v9418 = vpack.c.b16 %v9415, %v9414
      %v9419 = vpack.c.b16 %v9417, %v9416
      %v9423 = vsel %vm1428, %v9391, 0
      %v9426 = vsel %vm1428, %v9392, 0
      %v9429 = vsel %vm1428, %v9393, 0
      %v9432 = vsel %vm1428, %v9394, 0
      %v9435 = vsel %vm1428, %v9395, 0
      %v9438 = vsel %vm1428, %v9396, 0
      %v9441 = vsel %vm1428, %v9397, 0
      %v9444 = vsel %vm1428, %v9398, 0
      %9446 = vmatprep.subr.bf16.mxu0 0
      %9447 = vmatpush1.bf16.msra.mxu0 %v9418
      %9448 = vmatprep.subr.bf16.mxu0 0
      %9449 = vmatpush1.bf16.msra.mxu0 %v9419
      %9450 = vmatprep.subr.bf16.mxu0 0
      %9451 = vmatpush1.bf16.msra.mxu0 0
      %9452 = vmatprep.subr.bf16.mxu0 0
      %9453 = vmatpush1.bf16.msra.mxu0 0
      %9454 = vmatprep.subr.bf16.mxu0 0
      %9455 = vmatpush1.bf16.msra.mxu0 0
      %9456 = vmatprep.subr.bf16.mxu0 0
      %9457 = vmatpush1.bf16.msra.mxu0 0
      %9458 = vmatprep.subr.bf16.mxu0 0
      %9459 = vmatpush1.bf16.msra.mxu0 0
      %9460 = vmatprep.subr.bf16.mxu0 0
      %9461 = vmatpush1.bf16.msra.mxu0 0
      %9462 = vmatprep.subr.bf16.mxu0 0
      %9463 = vmatpush1.bf16.msra.mxu0 0
      %9464 = vmatprep.subr.bf16.mxu0 0
      %9465 = vmatpush1.bf16.msra.mxu0 0
      %9466 = vmatprep.subr.bf16.mxu0 0
      %9467 = vmatpush1.bf16.msra.mxu0 0
      %9468 = vmatprep.subr.bf16.mxu0 0
      %9469 = vmatpush1.bf16.msra.mxu0 0
      %9470 = vmatprep.subr.bf16.mxu0 0
      %9471 = vmatpush1.bf16.msra.mxu0 0
      %9472 = vmatprep.subr.bf16.mxu0 0
      %9473 = vmatpush1.bf16.msra.mxu0 0
      %9474 = vmatprep.subr.bf16.mxu0 0
      %9475 = vmatpush1.bf16.msra.mxu0 0
      %9476 = vmatprep.subr.bf16.mxu0 0
      %9477 = vmatpush1.bf16.msra.mxu0 0
      %9478 = vmatprep.mubr.bf16.mxu0 0
      %9479 = vmatmul.mubr.bf16.gmra.mrb[0].mxu0 %v9423
      %v9480 = vpop.f32.mrb[0].mxu0
      %v9481 = vadd.f32 %v9408, %v9480
      %v9482 = vpop.f32.mrb[0].mxu0
      %v9483 = vpop.f32.mrb[0].mxu0
      %v9484 = vadd.f32 %v9408, %v9483
      %v9485 = vpop.f32.mrb[0].mxu0
      %9486 = vmatprep.mubr.bf16.mxu0 0
      %9487 = vmatmul.mubr.bf16.gmra.mrb[0].mxu0 %v9426
      %v9488 = vpop.f32.mrb[0].mxu0
      %v9489 = vadd.f32 %v9408, %v9488
      %v9490 = vpop.f32.mrb[0].mxu0
      %v9491 = vpop.f32.mrb[0].mxu0
      %v9492 = vadd.f32 %v9408, %v9491
      %v9493 = vpop.f32.mrb[0].mxu0
      %9494 = vmatprep.mubr.bf16.mxu0 0
      %9495 = vmatmul.mubr.bf16.gmra.mrb[0].mxu0 %v9429
      %v9496 = vpop.f32.mrb[0].mxu0
      %v9497 = vadd.f32 %v9408, %v9496
      %v9498 = vpop.f32.mrb[0].mxu0
      %v9499 = vpop.f32.mrb[0].mxu0
      %v9500 = vadd.f32 %v9408, %v9499
      %v9501 = vpop.f32.mrb[0].mxu0
      %9502 = vmatprep.mubr.bf16.mxu0 0
      %9503 = vmatmul.mubr.bf16.gmra.mrb[0].mxu0 %v9432
      %v9504 = vpop.f32.mrb[0].mxu0
      %v9505 = vadd.f32 %v9408, %v9504
      %v9506 = vpop.f32.mrb[0].mxu0
      %v9507 = vpop.f32.mrb[0].mxu0
      %v9508 = vadd.f32 %v9408, %v9507
      %v9509 = vpop.f32.mrb[0].mxu0
      %9510 = vmatprep.mubr.bf16.mxu0 0
      %9511 = vmatmul.mubr.bf16.gmra.mrb[0].mxu0 %v9435
      %v9512 = vpop.f32.mrb[0].mxu0
      %v9513 = vadd.f32 %v9408, %v9512
      %v9514 = vpop.f32.mrb[0].mxu0
      %v9515 = vpop.f32.mrb[0].mxu0
      %v9516 = vadd.f32 %v9408, %v9515
      %v9517 = vpop.f32.mrb[0].mxu0
      %9518 = vmatprep.mubr.bf16.mxu0 0
      %9519 = vmatmul.mubr.bf16.gmra.mrb[0].mxu0 %v9438
      %v9520 = vpop.f32.mrb[0].mxu0
      %v9521 = vadd.f32 %v9408, %v9520
      %v9522 = vpop.f32.mrb[0].mxu0
      %v9523 = vpop.f32.mrb[0].mxu0
      %v9524 = vadd.f32 %v9408, %v9523
      %v9525 = vpop.f32.mrb[0].mxu0
      %9526 = vmatprep.mubr.bf16.mxu0 0
      %9527 = vmatmul.mubr.bf16.gmra.mrb[0].mxu0 %v9441
      %v9528 = vpop.f32.mrb[0].mxu0
      %v9529 = vadd.f32 %v9408, %v9528
      %v9530 = vpop.f32.mrb[0].mxu0
      %v9531 = vpop.f32.mrb[0].mxu0
      %v9532 = vadd.f32 %v9408, %v9531
      %v9533 = vpop.f32.mrb[0].mxu0
      %9534 = vmatprep.mubr.bf16.mxu0 0
      %9535 = vmatmul.mubr.bf16.gmra.mrb[0].mxu0 %v9444
      %v9536 = vpop.f32.mrb[0].mxu0
      %v9537 = vadd.f32 %v9408, %v9536
      %v9538 = vpop.f32.mrb[0].mxu0
      %v9539 = vpop.f32.mrb[0].mxu0
      %v9540 = vadd.f32 %v9408, %v9539
      %v9541 = vpop.f32.mrb[0].mxu0
      %9542 = vdwg.mxu0
      %v9543 = vmax.f32 %v9481, 0.0
      %v9544 = vmax.f32 %v9484, 0.0
      %v9545 = vmax.f32 %v9489, 0.0
      %v9546 = vmax.f32 %v9492, 0.0
      %v9547 = vmax.f32 %v9497, 0.0
      %v9548 = vmax.f32 %v9500, 0.0
      %v9549 = vmax.f32 %v9505, 0.0
      %v9550 = vmax.f32 %v9508, 0.0
      %v9551 = vmax.f32 %v9513, 0.0
      %v9552 = vmax.f32 %v9516, 0.0
      %v9553 = vmax.f32 %v9521, 0.0
      %v9554 = vmax.f32 %v9524, 0.0
      %v9555 = vmax.f32 %v9529, 0.0
      %v9556 = vmax.f32 %v9532, 0.0
      %v9557 = vmax.f32 %v9537, 0.0
      %v9558 = vmax.f32 %v9540, 0.0
      %v9559 = vpack.c.bf16 %v9544, %v9543
      %v9560 = vpack.c.bf16 %v9546, %v9545
      %v9561 = vpack.c.bf16 %v9548, %v9547
      %v9562 = vpack.c.bf16 %v9550, %v9549
      %v9563 = vpack.c.bf16 %v9552, %v9551
      %v9564 = vpack.c.bf16 %v9554, %v9553
      %v9565 = vpack.c.bf16 %v9556, %v9555
      %v9566 = vpack.c.bf16 %v9558, %v9557
      %v9567 = vld [vmem:[%s69] sm:$0xf]
      %v9568 = vld [vmem:[%s69 + $0x4] sm:$0xf]
      %v9569 = vld [vmem:[%s69 + $0x8] sm:$0xf]
      %v9570 = vld [vmem:[%s69 + $0xc] sm:$0xf]
      %v9571 = vld [vmem:[%s69 + $0x10] sm:$0xf]
      %v9572 = vld [vmem:[%s69 + $0x14] sm:$0xf]
      %v9573 = vld [vmem:[%s69 + $0x18] sm:$0xf]
      %v9574 = vld [vmem:[%s69 + $0x1c] sm:$0xf]
      %v9575 = vld [vmem:[%s71] sm:$0x1]
      %v9577 = vlaneseq
      %v9578 = vshrl.u32 %v9577, 7
      %v9579 = vsub.s32 0, %v9578
      %v9580 = vrot.slane %v9575, %v9579
      %v9590 = vunpack.c.l.b16 %v9567
      %v9591 = vunpack.c.l.b16 %v9568
      %v9592 = vunpack.c.l.b16 %v9569
      %v9593 = vunpack.c.l.b16 %v9570
      %v9594 = vunpack.c.l.b16 %v9571
      %v9595 = vunpack.c.l.b16 %v9572
      %v9596 = vunpack.c.l.b16 %v9573
      %v9597 = vunpack.c.l.b16 %v9574
      %v9598 = vpack.c.b16 %v9591, %v9590
      %v9599 = vpack.c.b16 %v9593, %v9592
      %v9600 = vpack.c.b16 %v9595, %v9594
      %v9601 = vpack.c.b16 %v9597, %v9596
      %v9607 = vsel %vm3982, %v9559, 0
      %v9610 = vsel %vm3982, %v9560, 0
      %v9613 = vsel %vm3982, %v9561, 0
      %v9616 = vsel %vm3982, %v9562, 0
      %v9619 = vsel %vm3982, %v9563, 0
      %v9622 = vsel %vm3982, %v9564, 0
      %v9625 = vsel %vm3982, %v9565, 0
      %v9628 = vsel %vm3982, %v9566, 0
      %9630 = vmatprep.subr.bf16.mxu0 0
      %9631 = vmatpush1.bf16.msra.mxu0 %v9598
      %9632 = vmatprep.subr.bf16.mxu0 0
      %9633 = vmatpush1.bf16.msra.mxu0 %v9599
      %9634 = vmatprep.subr.bf16.mxu0 0
      %9635 = vmatpush1.bf16.msra.mxu0 %v9600
      %9636 = vmatprep.subr.bf16.mxu0 0
      %9637 = vmatpush1.bf16.msra.mxu0 %v9601
      %9638 = vmatprep.subr.bf16.mxu0 0
      %9639 = vmatpush1.bf16.msra.mxu0 0
      %9640 = vmatprep.subr.bf16.mxu0 0
      %9641 = vmatpush1.bf16.msra.mxu0 0
      %9642 = vmatprep.subr.bf16.mxu0 0
      %9643 = vmatpush1.bf16.msra.mxu0 0
      %9644 = vmatprep.subr.bf16.mxu0 0
      %9645 = vmatpush1.bf16.msra.mxu0 0
      %9646 = vmatprep.subr.bf16.mxu0 0
      %9647 = vmatpush1.bf16.msra.mxu0 0
      %9648 = vmatprep.subr.bf16.mxu0 0
      %9649 = vmatpush1.bf16.msra.mxu0 0
      %9650 = vmatprep.subr.bf16.mxu0 0
      %9651 = vmatpush1.bf16.msra.mxu0 0
      %9652 = vmatprep.subr.bf16.mxu0 0
      %9653 = vmatpush1.bf16.msra.mxu0 0
      %9654 = vmatprep.subr.bf16.mxu0 0
      %9655 = vmatpush1.bf16.msra.mxu0 0
      %9656 = vmatprep.subr.bf16.mxu0 0
      %9657 = vmatpush1.bf16.msra.mxu0 0
      %9658 = vmatprep.subr.bf16.mxu0 0
      %9659 = vmatpush1.bf16.msra.mxu0 0
      %9660 = vmatprep.subr.bf16.mxu0 0
      %9661 = vmatpush1.bf16.msra.mxu0 0
      %9662 = vmatprep.mubr.bf16.mxu0 0
      %9663 = vmatmul.mubr.bf16.gmra.mrb[0].mxu0 %v9607
      %v9664 = vpop.f32.mrb[0].mxu0
      %v9665 = vadd.f32 %v9580, %v9664
      %v9666 = vpop.f32.mrb[0].mxu0
      %v9667 = vpop.f32.mrb[0].mxu0
      %v9668 = vadd.f32 %v9580, %v9667
      %v9669 = vpop.f32.mrb[0].mxu0
      %9670 = vmatprep.mubr.bf16.mxu0 0
      %9671 = vmatmul.mubr.bf16.gmra.mrb[0].mxu0 %v9610
      %v9672 = vpop.f32.mrb[0].mxu0
      %v9673 = vadd.f32 %v9580, %v9672
      %v9674 = vpop.f32.mrb[0].mxu0
      %v9675 = vpop.f32.mrb[0].mxu0
      %v9676 = vadd.f32 %v9580, %v9675
      %v9677 = vpop.f32.mrb[0].mxu0
      %9678 = vmatprep.mubr.bf16.mxu0 0
      %9679 = vmatmul.mubr.bf16.gmra.mrb[0].mxu0 %v9613
      %v9680 = vpop.f32.mrb[0].mxu0
      %v9681 = vadd.f32 %v9580, %v9680
      %v9682 = vpop.f32.mrb[0].mxu0
      %v9683 = vpop.f32.mrb[0].mxu0
      %v9684 = vadd.f32 %v9580, %v9683
      %v9685 = vpop.f32.mrb[0].mxu0
      %9686 = vmatprep.mubr.bf16.mxu0 0
      %9687 = vmatmul.mubr.bf16.gmra.mrb[0].mxu0 %v9616
      %v9688 = vpop.f32.mrb[0].mxu0
      %v9689 = vadd.f32 %v9580, %v9688
      %v9690 = vpop.f32.mrb[0].mxu0
      %v9691 = vpop.f32.mrb[0].mxu0
      %v9692 = vadd.f32 %v9580, %v9691
      %v9693 = vpop.f32.mrb[0].mxu0
      %9694 = vmatprep.mubr.bf16.mxu0 0
      %9695 = vmatmul.mubr.bf16.gmra.mrb[0].mxu0 %v9619
      %v9696 = vpop.f32.mrb[0].mxu0
      %v9697 = vadd.f32 %v9580, %v9696
      %v9698 = vpop.f32.mrb[0].mxu0
      %v9699 = vpop.f32.mrb[0].mxu0
      %v9700 = vadd.f32 %v9580, %v9699
      %v9701 = vpop.f32.mrb[0].mxu0
      %9702 = vmatprep.mubr.bf16.mxu0 0
      %9703 = vmatmul.mubr.bf16.gmra.mrb[0].mxu0 %v9622
      %v9704 = vpop.f32.mrb[0].mxu0
      %v9705 = vadd.f32 %v9580, %v9704
      %v9706 = vpop.f32.mrb[0].mxu0
      %v9707 = vpop.f32.mrb[0].mxu0
      %v9708 = vadd.f32 %v9580, %v9707
      %v9709 = vpop.f32.mrb[0].mxu0
      %9710 = vmatprep.mubr.bf16.mxu0 0
      %9711 = vmatmul.mubr.bf16.gmra.mrb[0].mxu0 %v9625
      %v9712 = vpop.f32.mrb[0].mxu0
      %v9713 = vadd.f32 %v9580, %v9712
      %v9714 = vpop.f32.mrb[0].mxu0
      %v9715 = vpop.f32.mrb[0].mxu0
      %v9716 = vadd.f32 %v9580, %v9715
      %v9717 = vpop.f32.mrb[0].mxu0
      %9718 = vmatprep.mubr.bf16.mxu0 0
      %9719 = vmatmul.mubr.bf16.gmra.mrb[0].mxu0 %v9628
      %v9720 = vpop.f32.mrb[0].mxu0
      %v9721 = vadd.f32 %v9580, %v9720
      %v9722 = vpop.f32.mrb[0].mxu0
      %v9723 = vpop.f32.mrb[0].mxu0
      %v9724 = vadd.f32 %v9580, %v9723
      %v9725 = vpop.f32.mrb[0].mxu0
      %9726 = vdwg.mxu0
      %v9727 = vadd.f32 %v9375, %v9665
      %v9728 = vadd.f32 %v9376, %v9668
      %v9729 = vadd.f32 %v9377, %v9673
      %v9730 = vadd.f32 %v9378, %v9676
      %v9731 = vadd.f32 %v9379, %v9681
      %v9732 = vadd.f32 %v9380, %v9684
      %v9733 = vadd.f32 %v9381, %v9689
      %v9734 = vadd.f32 %v9382, %v9692
      %v9735 = vadd.f32 %v9383, %v9697
      %v9736 = vadd.f32 %v9384, %v9700
      %v9737 = vadd.f32 %v9385, %v9705
      %v9738 = vadd.f32 %v9386, %v9708
      %v9739 = vadd.f32 %v9387, %v9713
      %v9740 = vadd.f32 %v9388, %v9716
      %v9741 = vadd.f32 %v9389, %v9721
      %v9742 = vadd.f32 %v9390, %v9724
      %v9743 = vsel %vm1428, %v9727, 0.0
      %9744 = vadd.xlane.f32.xlu0 %v9743
      %v9745 = vpop.xlane.xlu0 %9744
      %v9746 = vsel %vm1428, %v9728, 0.0
      %9747 = vadd.xlane.f32.xlu0 %v9746
      %v9748 = vpop.xlane.xlu0 %9747
      %v9749 = vsel %vm1428, %v9729, 0.0
      %9750 = vadd.xlane.f32.xlu0 %v9749
      %v9751 = vpop.xlane.xlu0 %9750
      %v9752 = vsel %vm1428, %v9730, 0.0
      %9753 = vadd.xlane.f32.xlu0 %v9752
      %v9754 = vpop.xlane.xlu0 %9753
      %v9755 = vsel %vm1428, %v9731, 0.0
      %9756 = vadd.xlane.f32.xlu0 %v9755
      %v9757 = vpop.xlane.xlu0 %9756
      %v9758 = vsel %vm1428, %v9732, 0.0
      %9759 = vadd.xlane.f32.xlu0 %v9758
      %v9760 = vpop.xlane.xlu0 %9759
      %v9761 = vsel %vm1428, %v9733, 0.0
      %9762 = vadd.xlane.f32.xlu0 %v9761
      %v9763 = vpop.xlane.xlu0 %9762
      %v9764 = vsel %vm1428, %v9734, 0.0
      %9765 = vadd.xlane.f32.xlu0 %v9764
      %v9766 = vpop.xlane.xlu0 %9765
      %v9767 = vsel %vm1428, %v9735, 0.0
      %9768 = vadd.xlane.f32.xlu0 %v9767
      %v9769 = vpop.xlane.xlu0 %9768
      %v9770 = vsel %vm1428, %v9736, 0.0
      %9771 = vadd.xlane.f32.xlu0 %v9770
      %v9772 = vpop.xlane.xlu0 %9771
      %v9773 = vsel %vm1428, %v9737, 0.0
      %9774 = vadd.xlane.f32.xlu0 %v9773
      %v9775 = vpop.xlane.xlu0 %9774
      %v9776 = vsel %vm1428, %v9738, 0.0
      %9777 = vadd.xlane.f32.xlu0 %v9776
      %v9778 = vpop.xlane.xlu0 %9777
      %v9779 = vsel %vm1428, %v9739, 0.0
      %9780 = vadd.xlane.f32.xlu0 %v9779
      %v9781 = vpop.xlane.xlu0 %9780
      %v9782 = vsel %vm1428, %v9740, 0.0
      %9783 = vadd.xlane.f32.xlu0 %v9782
      %v9784 = vpop.xlane.xlu0 %9783
      %v9785 = vsel %vm1428, %v9741, 0.0
      %9786 = vadd.xlane.f32.xlu0 %v9785
      %v9787 = vpop.xlane.xlu0 %9786
      %v9788 = vsel %vm1428, %v9742, 0.0
      %9789 = vadd.xlane.f32.xlu0 %v9788
      %v9790 = vpop.xlane.xlu0 %9789
      %v9791 = vmul.f32 %v9745, %v3560
      %v9792 = vmul.f32 %v9748, %v3560
      %v9793 = vmul.f32 %v9751, %v3560
      %v9794 = vmul.f32 %v9754, %v3560
      %v9795 = vmul.f32 %v9757, %v3560
      %v9796 = vmul.f32 %v9760, %v3560
      %v9797 = vmul.f32 %v9763, %v3560
      %v9798 = vmul.f32 %v9766, %v3560
      %v9799 = vmul.f32 %v9769, %v3560
      %v9800 = vmul.f32 %v9772, %v3560
      %v9801 = vmul.f32 %v9775, %v3560
      %v9802 = vmul.f32 %v9778, %v3560
      %v9803 = vmul.f32 %v9781, %v3560
      %v9804 = vmul.f32 %v9784, %v3560
      %v9805 = vmul.f32 %v9787, %v3560
      %v9806 = vmul.f32 %v9790, %v3560
      %v9807 = vsub.f32 %v9727, %v9791
      %v9808 = vsub.f32 %v9728, %v9792
      %v9809 = vsub.f32 %v9729, %v9793
      %v9810 = vsub.f32 %v9730, %v9794
      %v9811 = vsub.f32 %v9731, %v9795
      %v9812 = vsub.f32 %v9732, %v9796
      %v9813 = vsub.f32 %v9733, %v9797
      %v9814 = vsub.f32 %v9734, %v9798
      %v9815 = vsub.f32 %v9735, %v9799
      %v9816 = vsub.f32 %v9736, %v9800
      %v9817 = vsub.f32 %v9737, %v9801
      %v9818 = vsub.f32 %v9738, %v9802
      %v9819 = vsub.f32 %v9739, %v9803
      %v9820 = vsub.f32 %v9740, %v9804
      %v9821 = vsub.f32 %v9741, %v9805
      %v9822 = vsub.f32 %v9742, %v9806
      %v9823 = vmul.f32 %v9807, %v9807
      %v9824 = vmul.f32 %v9808, %v9808
      %v9825 = vmul.f32 %v9809, %v9809
      %v9826 = vmul.f32 %v9810, %v9810
      %v9827 = vmul.f32 %v9811, %v9811
      %v9828 = vmul.f32 %v9812, %v9812
      %v9829 = vmul.f32 %v9813, %v9813
      %v9830 = vmul.f32 %v9814, %v9814
      %v9831 = vmul.f32 %v9815, %v9815
      %v9832 = vmul.f32 %v9816, %v9816
      %v9833 = vmul.f32 %v9817, %v9817
      %v9834 = vmul.f32 %v9818, %v9818
      %v9835 = vmul.f32 %v9819, %v9819
      %v9836 = vmul.f32 %v9820, %v9820
      %v9837 = vmul.f32 %v9821, %v9821
      %v9838 = vmul.f32 %v9822, %v9822
      %v9839 = vsel %vm1428, %v9823, 0.0
      %9840 = vadd.xlane.f32.xlu0 %v9839
      %v9841 = vpop.xlane.xlu0 %9840
      %v9842 = vsel %vm1428, %v9824, 0.0
      %9843 = vadd.xlane.f32.xlu0 %v9842
      %v9844 = vpop.xlane.xlu0 %9843
      %v9845 = vsel %vm1428, %v9825, 0.0
      %9846 = vadd.xlane.f32.xlu0 %v9845
      %v9847 = vpop.xlane.xlu0 %9846
      %v9848 = vsel %vm1428, %v9826, 0.0
      %9849 = vadd.xlane.f32.xlu0 %v9848
      %v9850 = vpop.xlane.xlu0 %9849
      %v9851 = vsel %vm1428, %v9827, 0.0
      %9852 = vadd.xlane.f32.xlu0 %v9851
      %v9853 = vpop.xlane.xlu0 %9852
      %v9854 = vsel %vm1428, %v9828, 0.0
      %9855 = vadd.xlane.f32.xlu0 %v9854
      %v9856 = vpop.xlane.xlu0 %9855
      %v9857 = vsel %vm1428, %v9829, 0.0
      %9858 = vadd.xlane.f32.xlu0 %v9857
      %v9859 = vpop.xlane.xlu0 %9858
      %v9860 = vsel %vm1428, %v9830, 0.0
      %9861 = vadd.xlane.f32.xlu0 %v9860
      %v9862 = vpop.xlane.xlu0 %9861
      %v9863 = vsel %vm1428, %v9831, 0.0
      %9864 = vadd.xlane.f32.xlu0 %v9863
      %v9865 = vpop.xlane.xlu0 %9864
      %v9866 = vsel %vm1428, %v9832, 0.0
      %9867 = vadd.xlane.f32.xlu0 %v9866
      %v9868 = vpop.xlane.xlu0 %9867
      %v9869 = vsel %vm1428, %v9833, 0.0
      %9870 = vadd.xlane.f32.xlu0 %v9869
      %v9871 = vpop.xlane.xlu0 %9870
      %v9872 = vsel %vm1428, %v9834, 0.0
      %9873 = vadd.xlane.f32.xlu0 %v9872
      %v9874 = vpop.xlane.xlu0 %9873
      %v9875 = vsel %vm1428, %v9835, 0.0
      %9876 = vadd.xlane.f32.xlu0 %v9875
      %v9877 = vpop.xlane.xlu0 %9876
      %v9878 = vsel %vm1428, %v9836, 0.0
      %9879 = vadd.xlane.f32.xlu0 %v9878
      %v9880 = vpop.xlane.xlu0 %9879
      %v9881 = vsel %vm1428, %v9837, 0.0
      %9882 = vadd.xlane.f32.xlu0 %v9881
      %v9883 = vpop.xlane.xlu0 %9882
      %v9884 = vsel %vm1428, %v9838, 0.0
      %9885 = vadd.xlane.f32.xlu0 %v9884
      %v9886 = vpop.xlane.xlu0 %9885
      %v9887 = vmul.f32 %v9841, %v3560
      %v9888 = vmul.f32 %v9844, %v3560
      %v9889 = vmul.f32 %v9847, %v3560
      %v9890 = vmul.f32 %v9850, %v3560
      %v9891 = vmul.f32 %v9853, %v3560
      %v9892 = vmul.f32 %v9856, %v3560
      %v9893 = vmul.f32 %v9859, %v3560
      %v9894 = vmul.f32 %v9862, %v3560
      %v9895 = vmul.f32 %v9865, %v3560
      %v9896 = vmul.f32 %v9868, %v3560
      %v9897 = vmul.f32 %v9871, %v3560
      %v9898 = vmul.f32 %v9874, %v3560
      %v9899 = vmul.f32 %v9877, %v3560
      %v9900 = vmul.f32 %v9880, %v3560
      %v9901 = vmul.f32 %v9883, %v3560
      %v9902 = vmul.f32 %v9886, %v3560
      %v9903 = vadd.f32 %v9887, 1e-05
      %v9904 = vadd.f32 %v9888, 1e-05
      %v9905 = vadd.f32 %v9889, 1e-05
      %v9906 = vadd.f32 %v9890, 1e-05
      %v9907 = vadd.f32 %v9891, 1e-05
      %v9908 = vadd.f32 %v9892, 1e-05
      %v9909 = vadd.f32 %v9893, 1e-05
      %v9910 = vadd.f32 %v9894, 1e-05
      %v9911 = vadd.f32 %v9895, 1e-05
      %v9912 = vadd.f32 %v9896, 1e-05
      %v9913 = vadd.f32 %v9897, 1e-05
      %v9914 = vadd.f32 %v9898, 1e-05
      %v9915 = vadd.f32 %v9899, 1e-05
      %v9916 = vadd.f32 %v9900, 1e-05
      %v9917 = vadd.f32 %v9901, 1e-05
      %v9918 = vadd.f32 %v9902, 1e-05
      %v9919 = vrsqrt.pop %v9903
      %v9920 = vrsqrt.pop %v9904
      %v9921 = vrsqrt.pop %v9905
      %v9922 = vrsqrt.pop %v9906
      %v9923 = vrsqrt.pop %v9907
      %v9924 = vrsqrt.pop %v9908
      %v9925 = vrsqrt.pop %v9909
      %v9926 = vrsqrt.pop %v9910
      %v9927 = vrsqrt.pop %v9911
      %v9928 = vrsqrt.pop %v9912
      %v9929 = vrsqrt.pop %v9913
      %v9930 = vrsqrt.pop %v9914
      %v9931 = vrsqrt.pop %v9915
      %v9932 = vrsqrt.pop %v9916
      %v9933 = vrsqrt.pop %v9917
      %v9934 = vrsqrt.pop %v9918
      %v9935 = vmul.f32 %v9807, %v9919
      %v9936 = vmul.f32 %v9808, %v9920
      %v9937 = vmul.f32 %v9809, %v9921
      %v9938 = vmul.f32 %v9810, %v9922
      %v9939 = vmul.f32 %v9811, %v9923
      %v9940 = vmul.f32 %v9812, %v9924
      %v9941 = vmul.f32 %v9813, %v9925
      %v9942 = vmul.f32 %v9814, %v9926
      %v9943 = vmul.f32 %v9815, %v9927
      %v9944 = vmul.f32 %v9816, %v9928
      %v9945 = vmul.f32 %v9817, %v9929
      %v9946 = vmul.f32 %v9818, %v9930
      %v9947 = vmul.f32 %v9819, %v9931
      %v9948 = vmul.f32 %v9820, %v9932
      %v9949 = vmul.f32 %v9821, %v9933
      %v9950 = vmul.f32 %v9822, %v9934
      %v9951 = vld [vmem:[%s73] sm:$0x1]
      %v9953 = vlaneseq
      %v9954 = vshrl.u32 %v9953, 7
      %v9955 = vsub.s32 0, %v9954
      %v9956 = vrot.slane %v9951, %v9955
      %v9958 = vmul.f32 %v9935, %v9956
      %v9959 = vmul.f32 %v9936, %v9956
      %v9960 = vmul.f32 %v9937, %v9956
      %v9961 = vmul.f32 %v9938, %v9956
      %v9962 = vmul.f32 %v9939, %v9956
      %v9963 = vmul.f32 %v9940, %v9956
      %v9964 = vmul.f32 %v9941, %v9956
      %v9965 = vmul.f32 %v9942, %v9956
      %v9966 = vmul.f32 %v9943, %v9956
      %v9967 = vmul.f32 %v9944, %v9956
      %v9968 = vmul.f32 %v9945, %v9956
      %v9969 = vmul.f32 %v9946, %v9956
      %v9970 = vmul.f32 %v9947, %v9956
      %v9971 = vmul.f32 %v9948, %v9956
      %v9972 = vmul.f32 %v9949, %v9956
      %v9973 = vmul.f32 %v9950, %v9956
      %v9974 = vld [vmem:[%s75] sm:$0x1]
      %v9976 = vlaneseq
      %v9977 = vshrl.u32 %v9976, 7
      %v9978 = vsub.s32 0, %v9977
      %v9979 = vrot.slane %v9974, %v9978
      %v9981 = vadd.f32 %v9958, %v9979
      %v9982 = vadd.f32 %v9959, %v9979
      %v9983 = vadd.f32 %v9960, %v9979
      %v9984 = vadd.f32 %v9961, %v9979
      %v9985 = vadd.f32 %v9962, %v9979
      %v9986 = vadd.f32 %v9963, %v9979
      %v9987 = vadd.f32 %v9964, %v9979
      %v9988 = vadd.f32 %v9965, %v9979
      %v9989 = vadd.f32 %v9966, %v9979
      %v9990 = vadd.f32 %v9967, %v9979
      %v9991 = vadd.f32 %v9968, %v9979
      %v9992 = vadd.f32 %v9969, %v9979
      %v9993 = vadd.f32 %v9970, %v9979
      %v9994 = vadd.f32 %v9971, %v9979
      %v9995 = vadd.f32 %v9972, %v9979
      %v9996 = vadd.f32 %v9973, %v9979
      %v9997 = vld [vmem:[%s77] sm:$0x1]
      %v9999 = vlaneseq
      %v10000 = vshrl.u32 %v9999, 7
      %v10001 = vsub.s32 0, %v10000
      %v10002 = vrot.slane %v9997, %v10001
      %v10004 = vmul.f32 %v9981, %v10002
      %v10005 = vmul.f32 %v9982, %v10002
      %v10006 = vmul.f32 %v9983, %v10002
      %v10007 = vmul.f32 %v9984, %v10002
      %v10008 = vmul.f32 %v9985, %v10002
      %v10009 = vmul.f32 %v9986, %v10002
      %v10010 = vmul.f32 %v9987, %v10002
      %v10011 = vmul.f32 %v9988, %v10002
      %v10012 = vmul.f32 %v9989, %v10002
      %v10013 = vmul.f32 %v9990, %v10002
      %v10014 = vmul.f32 %v9991, %v10002
      %v10015 = vmul.f32 %v9992, %v10002
      %v10016 = vmul.f32 %v9993, %v10002
      %v10017 = vmul.f32 %v9994, %v10002
      %v10018 = vmul.f32 %v9995, %v10002
      %v10019 = vmul.f32 %v9996, %v10002
      %v10020 = vsel %vm1428, %v10004, 0.0
      %10021 = vadd.xlane.f32.xlu0 %v10020
      %v10022 = vpop.xlane.xlu0 %10021
      %v10023 = vsel %vm1428, %v10005, 0.0
      %10024 = vadd.xlane.f32.xlu0 %v10023
      %v10025 = vpop.xlane.xlu0 %10024
      %v10026 = vsel %vm1428, %v10006, 0.0
      %10027 = vadd.xlane.f32.xlu0 %v10026
      %v10028 = vpop.xlane.xlu0 %10027
      %v10029 = vsel %vm1428, %v10007, 0.0
      %10030 = vadd.xlane.f32.xlu0 %v10029
      %v10031 = vpop.xlane.xlu0 %10030
      %v10032 = vsel %vm1428, %v10008, 0.0
      %10033 = vadd.xlane.f32.xlu0 %v10032
      %v10034 = vpop.xlane.xlu0 %10033
      %v10035 = vsel %vm1428, %v10009, 0.0
      %10036 = vadd.xlane.f32.xlu0 %v10035
      %v10037 = vpop.xlane.xlu0 %10036
      %v10038 = vsel %vm1428, %v10010, 0.0
      %10039 = vadd.xlane.f32.xlu0 %v10038
      %v10040 = vpop.xlane.xlu0 %10039
      %v10041 = vsel %vm1428, %v10011, 0.0
      %10042 = vadd.xlane.f32.xlu0 %v10041
      %v10043 = vpop.xlane.xlu0 %10042
      %v10044 = vsel %vm1428, %v10012, 0.0
      %10045 = vadd.xlane.f32.xlu0 %v10044
      %v10046 = vpop.xlane.xlu0 %10045
      %v10047 = vsel %vm1428, %v10013, 0.0
      %10048 = vadd.xlane.f32.xlu0 %v10047
      %v10049 = vpop.xlane.xlu0 %10048
      %v10050 = vsel %vm1428, %v10014, 0.0
      %10051 = vadd.xlane.f32.xlu0 %v10050
      %v10052 = vpop.xlane.xlu0 %10051
      %v10053 = vsel %vm1428, %v10015, 0.0
      %10054 = vadd.xlane.f32.xlu0 %v10053
      %v10055 = vpop.xlane.xlu0 %10054
      %v10056 = vsel %vm1428, %v10016, 0.0
      %10057 = vadd.xlane.f32.xlu0 %v10056
      %v10058 = vpop.xlane.xlu0 %10057
      %v10059 = vsel %vm1428, %v10017, 0.0
      %10060 = vadd.xlane.f32.xlu0 %v10059
      %v10061 = vpop.xlane.xlu0 %10060
      %v10062 = vsel %vm1428, %v10018, 0.0
      %10063 = vadd.xlane.f32.xlu0 %v10062
      %v10064 = vpop.xlane.xlu0 %10063
      %v10065 = vsel %vm1428, %v10019, 0.0
      %10066 = vadd.xlane.f32.xlu0 %v10065
      %v10067 = vpop.xlane.xlu0 %10066
      %v10068 = vld [vmem:[#allocation2] sm:$0x1]
      %v10070 = vlaneseq
      %v10071 = vshrl.u32 %v10070, 7
      %v10072 = vsub.s32 0, %v10071
      %v10073 = vrot.slane %v10068, %v10072
      %10074 = vset.pattern.permute.xlu0 0
      %10075 = vperm.xlu0 %10074, %v10073
      %v10076 = vpop.permute.xlu0 %10075
      %v10078 = vadd.f32 %v10022, %v10076
      %v10079 = vadd.f32 %v10025, %v10076
      %v10080 = vadd.f32 %v10028, %v10076
      %v10081 = vadd.f32 %v10031, %v10076
      %v10082 = vadd.f32 %v10034, %v10076
      %v10083 = vadd.f32 %v10037, %v10076
      %v10084 = vadd.f32 %v10040, %v10076
      %v10085 = vadd.f32 %v10043, %v10076
      %v10086 = vadd.f32 %v10046, %v10076
      %v10087 = vadd.f32 %v10049, %v10076
      %v10088 = vadd.f32 %v10052, %v10076
      %v10089 = vadd.f32 %v10055, %v10076
      %v10090 = vadd.f32 %v10058, %v10076
      %v10091 = vadd.f32 %v10061, %v10076
      %v10092 = vadd.f32 %v10064, %v10076
      %v10093 = vadd.f32 %v10067, %v10076
      %v10110 = vlaneseq
      %v10111 = vshrl.u32 %v10110, 7
      %v10112 = vsub.s32 %v5503, %v10111
      %v10113 = vrot.slane %v10078, %v10112
      %v10114 = vlaneseq
      %v10115 = vshrl.u32 %v10114, 7
      %v10116 = vsub.s32 %v5503, %v10115
      %v10117 = vrot.slane %v10079, %v10116
      %v10118 = vlaneseq
      %v10119 = vshrl.u32 %v10118, 7
      %v10120 = vsub.s32 %v5503, %v10119
      %v10121 = vrot.slane %v10080, %v10120
      %v10122 = vlaneseq
      %v10123 = vshrl.u32 %v10122, 7
      %v10124 = vsub.s32 %v5503, %v10123
      %v10125 = vrot.slane %v10081, %v10124
      %v10126 = vlaneseq
      %v10127 = vshrl.u32 %v10126, 7
      %v10128 = vsub.s32 %v5503, %v10127
      %v10129 = vrot.slane %v10082, %v10128
      %v10130 = vlaneseq
      %v10131 = vshrl.u32 %v10130, 7
      %v10132 = vsub.s32 %v5503, %v10131
      %v10133 = vrot.slane %v10083, %v10132
      %v10134 = vlaneseq
      %v10135 = vshrl.u32 %v10134, 7
      %v10136 = vsub.s32 %v5503, %v10135
      %v10137 = vrot.slane %v10084, %v10136
      %v10138 = vlaneseq
      %v10139 = vshrl.u32 %v10138, 7
      %v10140 = vsub.s32 %v5503, %v10139
      %v10141 = vrot.slane %v10085, %v10140
      %v10142 = vlaneseq
      %v10143 = vshrl.u32 %v10142, 7
      %v10144 = vsub.s32 %v5503, %v10143
      %v10145 = vrot.slane %v10086, %v10144
      %v10146 = vlaneseq
      %v10147 = vshrl.u32 %v10146, 7
      %v10148 = vsub.s32 %v5503, %v10147
      %v10149 = vrot.slane %v10087, %v10148
      %v10150 = vlaneseq
      %v10151 = vshrl.u32 %v10150, 7
      %v10152 = vsub.s32 %v5503, %v10151
      %v10153 = vrot.slane %v10088, %v10152
      %v10154 = vlaneseq
      %v10155 = vshrl.u32 %v10154, 7
      %v10156 = vsub.s32 %v5503, %v10155
      %v10157 = vrot.slane %v10089, %v10156
      %v10158 = vlaneseq
      %v10159 = vshrl.u32 %v10158, 7
      %v10160 = vsub.s32 %v5503, %v10159
      %v10161 = vrot.slane %v10090, %v10160
      %v10162 = vlaneseq
      %v10163 = vshrl.u32 %v10162, 7
      %v10164 = vsub.s32 %v5503, %v10163
      %v10165 = vrot.slane %v10091, %v10164
      %v10166 = vlaneseq
      %v10167 = vshrl.u32 %v10166, 7
      %v10168 = vsub.s32 %v5503, %v10167
      %v10169 = vrot.slane %v10092, %v10168
      %v10170 = vlaneseq
      %v10171 = vshrl.u32 %v10170, 7
      %v10172 = vsub.s32 %v5503, %v10171
      %v10173 = vrot.slane %v10093, %v10172
      %vm10174 = vcmask 1041409
      %v10175 = vsel %vm10174, %v10117, %v10113
      %vm10176 = vcmask 1042434
      %v10177 = vsel %vm10176, %v10121, %v10175
      %vm10178 = vcmask 1043459
      %v10179 = vsel %vm10178, %v10125, %v10177
      %vm10180 = vcmask 1044484
      %v10181 = vsel %vm10180, %v10129, %v10179
      %vm10182 = vcmask 1045509
      %v10183 = vsel %vm10182, %v10133, %v10181
      %vm10184 = vcmask 1046534
      %v10185 = vsel %vm10184, %v10137, %v10183
      %vm10186 = vcmask 1047559
      %v10187 = vsel %vm10186, %v10141, %v10185
      %v10188 = vsel %vm10174, %v10149, %v10145
      %v10189 = vsel %vm10176, %v10153, %v10188
      %v10190 = vsel %vm10178, %v10157, %v10189
      %v10191 = vsel %vm10180, %v10161, %v10190
      %v10192 = vsel %vm10182, %v10165, %v10191
      %v10193 = vsel %vm10184, %v10169, %v10192
      %v10194 = vsel %vm10186, %v10173, %v10193
      %10197 = vst.msk [vmem:[%s1236] sm:$0xff] %vm2382, %v10187
      %10198 = vst.msk [vmem:[%s1236 + $0x8] sm:$0xff] %vm2382, %v10194
      %s10199 = smul.u32 2, %s94
      %p10200 = scmp.lt.s32.totalorder %s10199, 3
      %s10201 = scalar_select %p10200, %s10199, 3
      %s10202 = smul.addr %s10201, 8
      %s10203 = scalar_lea.vmem %s81, %s10202
      // Predicated region
      $region181: #{proximal_forward.3} parent=179 // pred_check
        %p10204 = pneg %p962
      $region182: #{proximal_forward.3} parent=179 // pred_check_branch
        %10206 = sbr.rel (%p10204) target = $region184
      $region183: #{proximal_forward.3} parent=179 // pred_region
        %s10207 = smul.u32 2, %s94
      $region184: #{proximal_forward.3} parent=179 // pred_fallthru
        _
    $region180: #{proximal_forward.3} parent=5 // pred_fallthru
      _
    %p10208 = scmp.le.s32.totalorder 2, %s89
    // Predicated region
    $region185: #{proximal_forward.3} parent=5 // pred_check
      %p10209 = pneg %p10208
    $region186: #{proximal_forward.3} parent=5 // pred_check_branch
      %10211 = sbr.rel (%p10209) target = $region188
    $region187: #{proximal_forward.3} parent=5 // pred_region
      %s10212 = ssub.s32 %s89, 2
      // Predicated region
      $region189: #{proximal_forward.3} parent=187 // pred_check
        %p10213 = pneg %p968
      $region190: #{proximal_forward.3} parent=187 // pred_check_branch
        %10215 = sbr.rel (%p10213) target = $region192
      $region191: #{proximal_forward.3} parent=187 // pred_region
        %s10216 = smul.u32 2, %s95
        %p10217 = scmp.lt.s32.totalorder %s10216, 3
        %s10218 = scalar_select %p10217, %s10216, 3
        %s10219 = smul.addr %s10218, 8
        %s10220 = scalar_lea.vmem %s81, %s10219
      $region192: #{proximal_forward.3} parent=187 // pred_fallthru
        _
    $region188: #{proximal_forward.3} parent=5 // pred_fallthru
      _
  $region6: #{proximal_forward.3} parent=0 // loop_footer
    %s93 = sadd.s32 1, %s89
  $region7: #{proximal_forward.3} parent=0 // loop_footer_branch
    %88 = sbr.rel target = $region3
  $region8: #{proximal_forward.3} parent=0 // loop_exit
    _

</llo_original>
